<compile_context>
chip_gen: v6e
topology: v6e:2x2x1
jax: 0.10.0
libtpu: 0.0.40
codegen_flags: <defaults>
</compile_context>

<pallas_src>
import functools

import jax
import jax.numpy as jnp
from jax.experimental import pallas as pl
from jax.experimental.pallas import tpu as pltpu

PK_LEN = 40
PP_LEN = 40
SMILES_CLEN = 64
EMBED = 128
HIDDEN = 384            # 128 * 3  (== hidden_dim == out_channle)
CPAD = 128              # all conv activations are kept 128-channel (zero padded)


# --------------------------- in-kernel building blocks ---------------------------

def _prelu(y, a_row):
    """PReLU with a (1, C) broadcast of the (scalar) learnable weight."""
    return jnp.where(y >= 0.0, y, y * a_row)


def _conv_prelu(x, ksize, w_ref, b_ref, a_row):
    """Valid 1-D conv + bias + PReLU.

    x:     (L_in, 128) f32  (channels zero-padded to 128)
    w_ref: (ksize*128, 128) bf16  (zero rows/cols for the padded channels)
    Returns (L_out, 128) f32.
    """
    l_in = x.shape[0]
    l_out = l_in - ksize + 1
    # im2col: one deep-contraction MXU matmul instead of `ksize` shallow ones.
    # Each piece is 128 lanes wide, so the lane concat is tile-aligned.
    patches = jnp.concatenate([x[k:k + l_out, :] for k in range(ksize)],
                              axis=1).astype(jnp.bfloat16)
    y = jnp.dot(patches, w_ref[...], preferred_element_type=jnp.float32)
    return _prelu(y + b_ref[...], a_row)


def _maxpool2(x):
    """nn.MaxPool1d(2) along the length (sublane) axis via two 0/1 selection
    matmuls (exact, avoids strided / sub-tile reshapes inside the kernel)."""
    l_in = x.shape[0]
    l_out = l_in // 2
    ii = jax.lax.broadcasted_iota(jnp.int32, (l_out, l_in), 0)
    jj = jax.lax.broadcasted_iota(jnp.int32, (l_out, l_in), 1)
    s_even = (jj == 2 * ii).astype(jnp.float32)
    s_odd = (jj == 2 * ii + 1).astype(jnp.float32)
    even = jnp.dot(s_even, x, preferred_element_type=jnp.float32)
    odd = jnp.dot(s_odd, x, preferred_element_type=jnp.float32)
    return jnp.maximum(even, odd)


# -------------------------------- branch kernel ----------------------------------

def _branch_kernel(x_ref, ew_ref, eb_ref,
                   w1_ref, b1_ref, w2_ref, b2_ref, w3_ref, b3_ref,
                   a_ref, o_ref, *, embed_mode):
    # ---- embedding -> (L0, 128) f32 ----
    if embed_mode == "linear":
        x = jnp.dot(x_ref[0].astype(jnp.bfloat16), ew_ref[...],
                    preferred_element_type=jnp.float32) + eb_ref[...]
    else:
        # nn.Embedding realized as an in-kernel one-hot @ table (no HBM one-hot).
        ids = x_ref[0]                                       # (L0, 1) int32
        l0 = ids.shape[0]
        vocab = ew_ref.shape[0]
        iota = jax.lax.broadcasted_iota(jnp.int32, (l0, vocab), 1)
        onehot = (iota == ids).astype(jnp.bfloat16)          # (L0, V)
        x = jnp.dot(onehot, ew_ref[...], preferred_element_type=jnp.float32)

    alphas = a_ref[...]                                      # (3, 128) f32
    k1 = w1_ref.shape[0] // CPAD
    k2 = w2_ref.shape[0] // CPAD
    k3 = w3_ref.shape[0] // CPAD

    y = _conv_prelu(x, k1, w1_ref, b1_ref, alphas[0:1, :])
    y = _maxpool2(y)
    y = _conv_prelu(y, k2, w2_ref, b2_ref, alphas[1:2, :])
    y = _maxpool2(y)
    y = _conv_prelu(y, k3, w3_ref, b3_ref, alphas[2:3, :])

    # AdaptiveMaxPool1d(1) + Squeeze  -> (1, 128)
    o_ref[0] = jnp.max(y, axis=0, keepdims=True)


def conv_branch(x, ew, eb, convs, alphas, *, embed_mode):
    """Fused branch pipeline.  x: (B, L0, 40) f32  or  (B, L0, 1) int32.
    Returns (B, 128) f32."""
    B = x.shape[0]
    (w1, b1), (w2, b2), (w3, b3) = convs

    def whole(a):
        nd = a.ndim
        return pl.BlockSpec(a.shape, lambda *_: (0,) * nd)

    x_spec = pl.BlockSpec((1,) + x.shape[1:], lambda i: (i, 0, 0))
    out = pl.pallas_call(
        functools.partial(_branch_kernel, embed_mode=embed_mode),
        out_shape=jax.ShapeDtypeStruct((B, 1, CPAD), jnp.float32),
        grid=(B,),
        in_specs=[x_spec, whole(ew), whole(eb),
                  whole(w1), whole(b1), whole(w2), whole(b2), whole(w3), whole(b3),
                  whole(alphas)],
        out_specs=pl.BlockSpec((1, 1, CPAD), lambda i: (i, 0, 0)),
        compiler_params=pltpu.CompilerParams(dimension_semantics=("parallel",)),
    )(x, ew, eb, w1, b1, w2, b2, w3, b3, alphas)
    return out.reshape(B, CPAD)


# ------------------------- attention + classifier head ---------------------------

def _head_kernel(pp_ref, pk_ref, ll_ref, wo_ref,
                 w1_ref, b1_ref, a1_ref, w2_ref, b2_ref, a2_ref,
                 w3_ref, b3_ref, o_ref):
    # Concat along lanes at 128-aligned offsets -> (B, 384)
    x = jnp.concatenate([pp_ref[...], pk_ref[...], ll_ref[...]], axis=1)

    # AttentionNet over a length-1 sequence: q=k=v=tanh(x @ w_omega); softmax over
    # a single key is identically 1 => context == v => out = x + tanh(x @ w_omega).
    ctx = jnp.tanh(jnp.dot(x.astype(jnp.bfloat16), wo_ref[...],
                           preferred_element_type=jnp.float32))
    x = x + ctx

    # cat_dropout(p=0.2) is identity at inference time.
    h = jnp.dot(x.astype(jnp.bfloat16), w1_ref[...],
                preferred_element_type=jnp.float32) + b1_ref[...]
    h = _prelu(h, a1_ref[...])
    h = jnp.dot(h.astype(jnp.bfloat16), w2_ref[...],
                preferred_element_type=jnp.float32) + b2_ref[...]
    h = _prelu(h, a2_ref[...])
    o_ref[...] = jnp.dot(h.astype(jnp.bfloat16), w3_ref[...],
                         preferred_element_type=jnp.float32) + b3_ref[...]


def attention_classifier_head(pp_c, pk_c, ll_c, wo, cls, cls_alphas):
    B = pp_c.shape[0]
    (w1, b1), (w2, b2), (w3, b3) = cls
    a1, a2 = cls_alphas
    vmem = pl.BlockSpec(memory_space=pltpu.MemorySpace.VMEM)
    return pl.pallas_call(
        _head_kernel,
        out_shape=jax.ShapeDtypeStruct((B, 1), jnp.float32),
        in_specs=[vmem] * 12,
        out_specs=vmem,
    )(pp_c, pk_c, ll_c, wo, w1, b1, a1, w2, b2, a2, w3, b3)


# ------------------------------ params & packing ---------------------------------

def init_params(key):
    keys = iter(jax.random.split(key, 48))

    def uni(shape, scale=0.1):
        return jax.random.uniform(next(keys), shape, jnp.float32, -scale, scale)

    def conv_params(spec):
        out, cin = [], EMBED
        for cout, k in spec:
            out.append((uni((k, cin, cout)), uni((cout,))))
            cin = cout
        return out

    return {
        "ll_embed": uni((SMILES_CLEN + 1, EMBED)),
        "pp_embed_w": uni((PP_LEN, EMBED)), "pp_embed_b": uni((EMBED,)),
        "pk_embed_w": uni((PK_LEN, EMBED)), "pk_embed_b": uni((EMBED,)),
        "conv_pp": conv_params([(32, 4), (64, 8), (128, 12)]),
        "conv_pk": conv_params([(32, 4), (64, 6), (128, 8)]),
        "conv_ll": conv_params([(32, 4), (64, 6), (128, 8)]),
        "w_omega": uni((HIDDEN, HIDDEN)),
        "cls": [(uni((HIDDEN, 256)), uni((256,))),
                (uni((256, 128)), uni((128,))),
                (uni((128, 1)), uni((1,)))],
        # learnable PReLU weights (PyTorch nn.PReLU() default init = 0.25)
        "prelu_pp": jnp.full((3,), 0.25, jnp.float32),
        "prelu_pk": jnp.full((3,), 0.25, jnp.float32),
        "prelu_ll": jnp.full((3,), 0.25, jnp.float32),
        "prelu_cls": jnp.full((2,), 0.25, jnp.float32),
    }


def _pack_conv(w, b):
    """(K, C_in, C_out) conv weight -> lane-aligned im2col matrix (K*128, 128) bf16
    with zero rows/cols for padded channels; bias -> (1, 128) f32 (zero padded)."""
    k, cin, cout = w.shape
    wp = jnp.zeros((k, CPAD, CPAD), jnp.float32).at[:, :cin, :cout].set(w)
    bp = jnp.zeros((1, CPAD), jnp.float32).at[0, :cout].set(b)
    return wp.reshape(k * CPAD, CPAD).astype(jnp.bfloat16), bp


def prepare_params(p):
    def rows(alpha_vec):
        return jnp.broadcast_to(alpha_vec.astype(jnp.float32)[:, None],
                                (alpha_vec.shape[0], CPAD))

    return {
        "ew_pp": p["pp_embed_w"].astype(jnp.bfloat16),
        "eb_pp": p["pp_embed_b"].reshape(1, EMBED).astype(jnp.float32),
        "ew_pk": p["pk_embed_w"].astype(jnp.bfloat16),
        "eb_pk": p["pk_embed_b"].reshape(1, EMBED).astype(jnp.float32),
        "tab_ll": p["ll_embed"].astype(jnp.bfloat16),
        "eb_ll": jnp.zeros((1, EMBED), jnp.float32),   # nn.Embedding has no bias
        "conv_pp": [_pack_conv(w, b) for (w, b) in p["conv_pp"]],
        "conv_pk": [_pack_conv(w, b) for (w, b) in p["conv_pk"]],
        "conv_ll": [_pack_conv(w, b) for (w, b) in p["conv_ll"]],
        "a_pp": rows(p["prelu_pp"]),
        "a_pk": rows(p["prelu_pk"]),
        "a_ll": rows(p["prelu_ll"]),
        "w_omega": p["w_omega"].astype(jnp.bfloat16),
        "cls": [(w.astype(jnp.bfloat16), b.reshape(1, -1).astype(jnp.float32))
                for (w, b) in p["cls"]],
        "a_cls": (jnp.full((1, 256), p["prelu_cls"][0], jnp.float32),
                  jnp.full((1, 128), p["prelu_cls"][1], jnp.float32)),
    }


# ----------------------------------- forward -------------------------------------

def forward(prepped, ll, pk, pp):
    # Faithful to the reference forward(): the pk branch is fed `pp`
    # (the torch code calls self.pk_embed(pp)); the `pk` tensor itself is unused.
    del pk
    B = pp.shape[0]
    pp = pp.astype(jnp.float32)
    ll_col = ll.astype(jnp.int32).reshape(B, -1, 1)          # (B, L_smi, 1)

    pp_c = conv_branch(pp, prepped["ew_pp"], prepped["eb_pp"],
                       prepped["conv_pp"], prepped["a_pp"], embed_mode="linear")
    pk_c = conv_branch(pp, prepped["ew_pk"], prepped["eb_pk"],
                       prepped["conv_pk"], prepped["a_pk"], embed_mode="linear")
    ll_c = conv_branch(ll_col, prepped["tab_ll"], prepped["eb_ll"],
                       prepped["conv_ll"], prepped["a_ll"], embed_mode="lookup")

    return attention_classifier_head(pp_c, pk_c, ll_c, prepped["w_omega"],
                                     prepped["cls"], prepped["a_cls"])


if __name__ == "__main__":
    key = jax.random.PRNGKey(0)
    k_ll, k_pk, k_pp, k_par = jax.random.split(key, 4)

    B, L_SEQ, L_SMI = 2, 72, 48
    ll = jax.random.randint(k_ll, (B, L_SMI), 0, SMILES_CLEN + 1, dtype=jnp.int32)
    pk = jax.random.uniform(k_pk, (B, L_SEQ, PK_LEN), jnp.float32)
    pp = jax.random.uniform(k_pp, (B, L_SEQ, PP_LEN), jnp.float32)

    params = init_params(k_par)
    prepped = prepare_params(params)

    out = jax.jit(forward)(prepped, ll, pk, pp)
    out = jax.block_until_ready(out)
    assert out.shape == (B, 1) and out.dtype == jnp.float32
    print("KERNEL_OK")
</pallas_src>

<mosaic_0001>
module attributes {stable_mosaic.version = 11 : i64} {
  func.func @_branch_kernel(%arg0: i32, %arg1: memref<1x72x40xf32, #tpu.memory_space<vmem>>, %arg2: memref<40x128xbf16, #tpu.memory_space<vmem>>, %arg3: memref<1x128xf32, #tpu.memory_space<vmem>>, %arg4: memref<512x128xbf16, #tpu.memory_space<vmem>>, %arg5: memref<1x128xf32, #tpu.memory_space<vmem>>, %arg6: memref<1024x128xbf16, #tpu.memory_space<vmem>>, %arg7: memref<1x128xf32, #tpu.memory_space<vmem>>, %arg8: memref<1536x128xbf16, #tpu.memory_space<vmem>>, %arg9: memref<1x128xf32, #tpu.memory_space<vmem>>, %arg10: memref<3x128xf32, #tpu.memory_space<vmem>>, %arg11: memref<1x1x128xf32, #tpu.memory_space<vmem>>) attributes {dimension_semantics = [#tpu.dimension_semantics<parallel>], iteration_bounds = array<i64: 2>, scalar_prefetch = 0 : i64, scratch_operands = 0 : i64, tpu.core_type = #tpu.core_type<tc>, window_params = [{transform_indices = @transform_0, window_bounds = array<i64: 1, 72, 40>}, {pipeline_mode = #tpu.pipeline_mode<synchronous>, transform_indices = @transform_1, window_bounds = array<i64: 40, 128>}, {pipeline_mode = #tpu.pipeline_mode<synchronous>, transform_indices = @transform_2, window_bounds = array<i64: 1, 128>}, {pipeline_mode = #tpu.pipeline_mode<synchronous>, transform_indices = @transform_3, window_bounds = array<i64: 512, 128>}, {pipeline_mode = #tpu.pipeline_mode<synchronous>, transform_indices = @transform_4, window_bounds = array<i64: 1, 128>}, {pipeline_mode = #tpu.pipeline_mode<synchronous>, transform_indices = @transform_5, window_bounds = array<i64: 1024, 128>}, {pipeline_mode = #tpu.pipeline_mode<synchronous>, transform_indices = @transform_6, window_bounds = array<i64: 1, 128>}, {pipeline_mode = #tpu.pipeline_mode<synchronous>, transform_indices = @transform_7, window_bounds = array<i64: 1536, 128>}, {pipeline_mode = #tpu.pipeline_mode<synchronous>, transform_indices = @transform_8, window_bounds = array<i64: 1, 128>}, {pipeline_mode = #tpu.pipeline_mode<synchronous>, transform_indices = @transform_9, window_bounds = array<i64: 3, 128>}, {transform_indices = @transform_10, window_bounds = array<i64: 1, 1, 128>}]} {
    %c0 = arith.constant 0 : index
    %c0_0 = arith.constant 0 : index
    %c0_1 = arith.constant 0 : index
    %0 = vector.load %arg1[%c0, %c0_0, %c0_1] : memref<1x72x40xf32, #tpu.memory_space<vmem>>, vector<1x72x40xf32>
    %1 = vector.shape_cast %0 : vector<1x72x40xf32> to vector<72x40xf32>
    %2 = arith.truncf %1 : vector<72x40xf32> to vector<72x40xbf16>
    %c0_2 = arith.constant 0 : index
    %c0_3 = arith.constant 0 : index
    %3 = vector.load %arg2[%c0_2, %c0_3] : memref<40x128xbf16, #tpu.memory_space<vmem>>, vector<40x128xbf16>
    %cst = arith.constant dense<0.000000e+00> : vector<72x128xf32>
    %4 = tpu.matmul %2, %3, %cst {dimension_numbers = #tpu.dot_dimension_numbers<[1], [0], [0], [1], [0, 0, 1, 1], [], []>} : vector<72x40xbf16>, vector<40x128xbf16>, vector<72x128xf32> -> vector<72x128xf32>
    %c0_4 = arith.constant 0 : index
    %c0_5 = arith.constant 0 : index
    %5 = vector.load %arg3[%c0_4, %c0_5] : memref<1x128xf32, #tpu.memory_space<vmem>>, vector<1x128xf32>
    %6 = vector.broadcast %5 : vector<1x128xf32> to vector<72x128xf32>
    %7 = arith.addf %4, %6 : vector<72x128xf32>
    %c0_6 = arith.constant 0 : index
    %c0_7 = arith.constant 0 : index
    %8 = vector.load %arg10[%c0_6, %c0_7] : memref<3x128xf32, #tpu.memory_space<vmem>>, vector<3x128xf32>
    %9 = vector.extract_strided_slice %8 {offsets = [0, 0], sizes = [1, 128], strides = [1, 1]} : vector<3x128xf32> to vector<1x128xf32>
    %10 = vector.extract_strided_slice %7 {offsets = [0, 0], sizes = [69, 128], strides = [1, 1]} : vector<72x128xf32> to vector<69x128xf32>
    %11 = vector.extract_strided_slice %7 {offsets = [1, 0], sizes = [69, 128], strides = [1, 1]} : vector<72x128xf32> to vector<69x128xf32>
    %12 = vector.extract_strided_slice %7 {offsets = [2, 0], sizes = [69, 128], strides = [1, 1]} : vector<72x128xf32> to vector<69x128xf32>
    %13 = vector.extract_strided_slice %7 {offsets = [3, 0], sizes = [69, 128], strides = [1, 1]} : vector<72x128xf32> to vector<69x128xf32>
    %14 = tpu.concatenate %10, %11, %12, %13 in 1 : vector<69x128xf32>, vector<69x128xf32>, vector<69x128xf32>, vector<69x128xf32> -> vector<69x512xf32>
    %15 = arith.truncf %14 : vector<69x512xf32> to vector<69x512xbf16>
    %c0_8 = arith.constant 0 : index
    %c0_9 = arith.constant 0 : index
    %16 = vector.load %arg4[%c0_8, %c0_9] : memref<512x128xbf16, #tpu.memory_space<vmem>>, vector<512x128xbf16>
    %cst_10 = arith.constant dense<0.000000e+00> : vector<69x128xf32>
    %17 = tpu.matmul %15, %16, %cst_10 {dimension_numbers = #tpu.dot_dimension_numbers<[1], [0], [0], [1], [0, 0, 1, 1], [], []>} : vector<69x512xbf16>, vector<512x128xbf16>, vector<69x128xf32> -> vector<69x128xf32>
    %c0_11 = arith.constant 0 : index
    %c0_12 = arith.constant 0 : index
    %18 = vector.load %arg5[%c0_11, %c0_12] : memref<1x128xf32, #tpu.memory_space<vmem>>, vector<1x128xf32>
    %19 = vector.broadcast %18 : vector<1x128xf32> to vector<69x128xf32>
    %20 = arith.addf %17, %19 : vector<69x128xf32>
    %cst_13 = arith.constant 0.000000e+00 : f32
    %21 = vector.broadcast %cst_13 : f32 to vector<69x128xf32>
    %22 = arith.cmpf oge, %20, %21 : vector<69x128xf32>
    %23 = vector.broadcast %9 : vector<1x128xf32> to vector<69x128xf32>
    %24 = arith.mulf %20, %23 : vector<69x128xf32>
    %25 = arith.select %22, %20, %24 : vector<69x128xi1>, vector<69x128xf32>
    %26 = tpu.iota {dimensions = array<i32: 0>} : vector<34x69xi32>
    %27 = tpu.iota {dimensions = array<i32: 1>} : vector<34x69xi32>
    %c2_i32 = arith.constant 2 : i32
    %28 = vector.broadcast %c2_i32 : i32 to vector<34x69xi32>
    %29 = arith.muli %28, %26 : vector<34x69xi32>
    %30 = arith.cmpi eq, %27, %29 : vector<34x69xi32>
    %31 = arith.extui %30 : vector<34x69xi1> to vector<34x69xi32>
    %32 = arith.sitofp %31 : vector<34x69xi32> to vector<34x69xf32>
    %c2_i32_14 = arith.constant 2 : i32
    %33 = vector.broadcast %c2_i32_14 : i32 to vector<34x69xi32>
    %34 = arith.muli %33, %26 : vector<34x69xi32>
    %c1_i32 = arith.constant 1 : i32
    %35 = vector.broadcast %c1_i32 : i32 to vector<34x69xi32>
    %36 = arith.addi %34, %35 : vector<34x69xi32>
    %37 = arith.cmpi eq, %27, %36 : vector<34x69xi32>
    %38 = arith.extui %37 : vector<34x69xi1> to vector<34x69xi32>
    %39 = arith.sitofp %38 : vector<34x69xi32> to vector<34x69xf32>
    %cst_15 = arith.constant dense<0.000000e+00> : vector<34x128xf32>
    %40 = tpu.matmul %32, %25, %cst_15 {dimension_numbers = #tpu.dot_dimension_numbers<[1], [0], [0], [1], [0, 0, 1, 1], [], []>} : vector<34x69xf32>, vector<69x128xf32>, vector<34x128xf32> -> vector<34x128xf32>
    %cst_16 = arith.constant dense<0.000000e+00> : vector<34x128xf32>
    %41 = tpu.matmul %39, %25, %cst_16 {dimension_numbers = #tpu.dot_dimension_numbers<[1], [0], [0], [1], [0, 0, 1, 1], [], []>} : vector<34x69xf32>, vector<69x128xf32>, vector<34x128xf32> -> vector<34x128xf32>
    %42 = arith.maximumf %40, %41 : vector<34x128xf32>
    %43 = vector.extract_strided_slice %8 {offsets = [1, 0], sizes = [1, 128], strides = [1, 1]} : vector<3x128xf32> to vector<1x128xf32>
    %44 = vector.extract_strided_slice %42 {offsets = [0, 0], sizes = [27, 128], strides = [1, 1]} : vector<34x128xf32> to vector<27x128xf32>
    %45 = vector.extract_strided_slice %42 {offsets = [1, 0], sizes = [27, 128], strides = [1, 1]} : vector<34x128xf32> to vector<27x128xf32>
    %46 = vector.extract_strided_slice %42 {offsets = [2, 0], sizes = [27, 128], strides = [1, 1]} : vector<34x128xf32> to vector<27x128xf32>
    %47 = vector.extract_strided_slice %42 {offsets = [3, 0], sizes = [27, 128], strides = [1, 1]} : vector<34x128xf32> to vector<27x128xf32>
    %48 = vector.extract_strided_slice %42 {offsets = [4, 0], sizes = [27, 128], strides = [1, 1]} : vector<34x128xf32> to vector<27x128xf32>
    %49 = vector.extract_strided_slice %42 {offsets = [5, 0], sizes = [27, 128], strides = [1, 1]} : vector<34x128xf32> to vector<27x128xf32>
    %50 = vector.extract_strided_slice %42 {offsets = [6, 0], sizes = [27, 128], strides = [1, 1]} : vector<34x128xf32> to vector<27x128xf32>
    %51 = vector.extract_strided_slice %42 {offsets = [7, 0], sizes = [27, 128], strides = [1, 1]} : vector<34x128xf32> to vector<27x128xf32>
    %52 = tpu.concatenate %44, %45, %46, %47, %48, %49, %50, %51 in 1 : vector<27x128xf32>, vector<27x128xf32>, vector<27x128xf32>, vector<27x128xf32>, vector<27x128xf32>, vector<27x128xf32>, vector<27x128xf32>, vector<27x128xf32> -> vector<27x1024xf32>
    %53 = arith.truncf %52 : vector<27x1024xf32> to vector<27x1024xbf16>
    %c0_17 = arith.constant 0 : index
    %c0_18 = arith.constant 0 : index
    %54 = vector.load %arg6[%c0_17, %c0_18] : memref<1024x128xbf16, #tpu.memory_space<vmem>>, vector<1024x128xbf16>
    %cst_19 = arith.constant dense<0.000000e+00> : vector<27x128xf32>
    %55 = tpu.matmul %53, %54, %cst_19 {dimension_numbers = #tpu.dot_dimension_numbers<[1], [0], [0], [1], [0, 0, 1, 1], [], []>} : vector<27x1024xbf16>, vector<1024x128xbf16>, vector<27x128xf32> -> vector<27x128xf32>
    %c0_20 = arith.constant 0 : index
    %c0_21 = arith.constant 0 : index
    %56 = vector.load %arg7[%c0_20, %c0_21] : memref<1x128xf32, #tpu.memory_space<vmem>>, vector<1x128xf32>
    %57 = vector.broadcast %56 : vector<1x128xf32> to vector<27x128xf32>
    %58 = arith.addf %55, %57 : vector<27x128xf32>
    %cst_22 = arith.constant 0.000000e+00 : f32
    %59 = vector.broadcast %cst_22 : f32 to vector<27x128xf32>
    %60 = arith.cmpf oge, %58, %59 : vector<27x128xf32>
    %61 = vector.broadcast %43 : vector<1x128xf32> to vector<27x128xf32>
    %62 = arith.mulf %58, %61 : vector<27x128xf32>
    %63 = arith.select %60, %58, %62 : vector<27x128xi1>, vector<27x128xf32>
    %64 = tpu.iota {dimensions = array<i32: 0>} : vector<13x27xi32>
    %65 = tpu.iota {dimensions = array<i32: 1>} : vector<13x27xi32>
    %c2_i32_23 = arith.constant 2 : i32
    %66 = vector.broadcast %c2_i32_23 : i32 to vector<13x27xi32>
    %67 = arith.muli %66, %64 : vector<13x27xi32>
    %68 = arith.cmpi eq, %65, %67 : vector<13x27xi32>
    %69 = arith.extui %68 : vector<13x27xi1> to vector<13x27xi32>
    %70 = arith.sitofp %69 : vector<13x27xi32> to vector<13x27xf32>
    %c2_i32_24 = arith.constant 2 : i32
    %71 = vector.broadcast %c2_i32_24 : i32 to vector<13x27xi32>
    %72 = arith.muli %71, %64 : vector<13x27xi32>
    %c1_i32_25 = arith.constant 1 : i32
    %73 = vector.broadcast %c1_i32_25 : i32 to vector<13x27xi32>
    %74 = arith.addi %72, %73 : vector<13x27xi32>
    %75 = arith.cmpi eq, %65, %74 : vector<13x27xi32>
    %76 = arith.extui %75 : vector<13x27xi1> to vector<13x27xi32>
    %77 = arith.sitofp %76 : vector<13x27xi32> to vector<13x27xf32>
    %cst_26 = arith.constant dense<0.000000e+00> : vector<13x128xf32>
    %78 = tpu.matmul %70, %63, %cst_26 {dimension_numbers = #tpu.dot_dimension_numbers<[1], [0], [0], [1], [0, 0, 1, 1], [], []>} : vector<13x27xf32>, vector<27x128xf32>, vector<13x128xf32> -> vector<13x128xf32>
    %cst_27 = arith.constant dense<0.000000e+00> : vector<13x128xf32>
    %79 = tpu.matmul %77, %63, %cst_27 {dimension_numbers = #tpu.dot_dimension_numbers<[1], [0], [0], [1], [0, 0, 1, 1], [], []>} : vector<13x27xf32>, vector<27x128xf32>, vector<13x128xf32> -> vector<13x128xf32>
    %80 = arith.maximumf %78, %79 : vector<13x128xf32>
    %81 = vector.extract_strided_slice %8 {offsets = [2, 0], sizes = [1, 128], strides = [1, 1]} : vector<3x128xf32> to vector<1x128xf32>
    %82 = vector.extract_strided_slice %80 {offsets = [0, 0], sizes = [2, 128], strides = [1, 1]} : vector<13x128xf32> to vector<2x128xf32>
    %83 = vector.extract_strided_slice %80 {offsets = [1, 0], sizes = [2, 128], strides = [1, 1]} : vector<13x128xf32> to vector<2x128xf32>
    %84 = vector.extract_strided_slice %80 {offsets = [2, 0], sizes = [2, 128], strides = [1, 1]} : vector<13x128xf32> to vector<2x128xf32>
    %85 = vector.extract_strided_slice %80 {offsets = [3, 0], sizes = [2, 128], strides = [1, 1]} : vector<13x128xf32> to vector<2x128xf32>
    %86 = vector.extract_strided_slice %80 {offsets = [4, 0], sizes = [2, 128], strides = [1, 1]} : vector<13x128xf32> to vector<2x128xf32>
    %87 = vector.extract_strided_slice %80 {offsets = [5, 0], sizes = [2, 128], strides = [1, 1]} : vector<13x128xf32> to vector<2x128xf32>
    %88 = vector.extract_strided_slice %80 {offsets = [6, 0], sizes = [2, 128], strides = [1, 1]} : vector<13x128xf32> to vector<2x128xf32>
    %89 = vector.extract_strided_slice %80 {offsets = [7, 0], sizes = [2, 128], strides = [1, 1]} : vector<13x128xf32> to vector<2x128xf32>
    %90 = vector.extract_strided_slice %80 {offsets = [8, 0], sizes = [2, 128], strides = [1, 1]} : vector<13x128xf32> to vector<2x128xf32>
    %91 = vector.extract_strided_slice %80 {offsets = [9, 0], sizes = [2, 128], strides = [1, 1]} : vector<13x128xf32> to vector<2x128xf32>
    %92 = vector.extract_strided_slice %80 {offsets = [10, 0], sizes = [2, 128], strides = [1, 1]} : vector<13x128xf32> to vector<2x128xf32>
    %93 = vector.extract_strided_slice %80 {offsets = [11, 0], sizes = [2, 128], strides = [1, 1]} : vector<13x128xf32> to vector<2x128xf32>
    %94 = tpu.concatenate %82, %83, %84, %85, %86, %87, %88, %89, %90, %91, %92, %93 in 1 : vector<2x128xf32>, vector<2x128xf32>, vector<2x128xf32>, vector<2x128xf32>, vector<2x128xf32>, vector<2x128xf32>, vector<2x128xf32>, vector<2x128xf32>, vector<2x128xf32>, vector<2x128xf32>, vector<2x128xf32>, vector<2x128xf32> -> vector<2x1536xf32>
    %95 = arith.truncf %94 : vector<2x1536xf32> to vector<2x1536xbf16>
    %c0_28 = arith.constant 0 : index
    %c0_29 = arith.constant 0 : index
    %96 = vector.load %arg8[%c0_28, %c0_29] : memref<1536x128xbf16, #tpu.memory_space<vmem>>, vector<1536x128xbf16>
    %cst_30 = arith.constant dense<0.000000e+00> : vector<2x128xf32>
    %97 = tpu.matmul %95, %96, %cst_30 {dimension_numbers = #tpu.dot_dimension_numbers<[1], [0], [0], [1], [0, 0, 1, 1], [], []>} : vector<2x1536xbf16>, vector<1536x128xbf16>, vector<2x128xf32> -> vector<2x128xf32>
    %c0_31 = arith.constant 0 : index
    %c0_32 = arith.constant 0 : index
    %98 = vector.load %arg9[%c0_31, %c0_32] : memref<1x128xf32, #tpu.memory_space<vmem>>, vector<1x128xf32>
    %99 = vector.broadcast %98 : vector<1x128xf32> to vector<2x128xf32>
    %100 = arith.addf %97, %99 : vector<2x128xf32>
    %cst_33 = arith.constant 0.000000e+00 : f32
    %101 = vector.broadcast %cst_33 : f32 to vector<2x128xf32>
    %102 = arith.cmpf oge, %100, %101 : vector<2x128xf32>
    %103 = vector.broadcast %81 : vector<1x128xf32> to vector<2x128xf32>
    %104 = arith.mulf %100, %103 : vector<2x128xf32>
    %105 = arith.select %102, %100, %104 : vector<2x128xi1>, vector<2x128xf32>
    %cst_34 = arith.constant dense<0xFF800000> : vector<128xf32>
    %106 = vector.multi_reduction <maximumf>, %105, %cst_34 [0] : vector<2x128xf32> to vector<128xf32>
    %107 = vector.shape_cast %106 : vector<128xf32> to vector<1x128xf32>
    %c0_35 = arith.constant 0 : index
    %c0_36 = arith.constant 0 : index
    %c0_37 = arith.constant 0 : index
    %108 = vector.load %arg11[%c0_35, %c0_36, %c0_37] : memref<1x1x128xf32, #tpu.memory_space<vmem>>, vector<1x1x128xf32>
    %109 = vector.shape_cast %108 : vector<1x1x128xf32> to vector<1x128xf32>
    %110 = vector.shape_cast %107 : vector<1x128xf32> to vector<1x1x128xf32>
    tpu.vector_store %arg11[%c0_35, %c0_36, %c0_37], %110 {strides = array<i32>} : memref<1x1x128xf32, #tpu.memory_space<vmem>>, vector<1x1x128xf32>,
    return
  }
  func.func @transform_0(%arg0: i32) -> (i32, i32, i32) {
    %c0_i32 = arith.constant 0 : i32
    %c0_i32_0 = arith.constant 0 : i32
    %c0_i32_1 = arith.constant 0 : i32
    return %arg0, %c0_i32, %c0_i32_0 : i32, i32, i32
  }
  func.func @transform_1(%arg0: i32) -> (i32, i32) {
    %c0_i32 = arith.constant 0 : i32
    %c0_i32_0 = arith.constant 0 : i32
    %c0_i32_1 = arith.constant 0 : i32
    return %c0_i32, %c0_i32_0 : i32, i32
  }
  func.func @transform_2(%arg0: i32) -> (i32, i32) {
    %c0_i32 = arith.constant 0 : i32
    %c0_i32_0 = arith.constant 0 : i32
    %c0_i32_1 = arith.constant 0 : i32
    return %c0_i32, %c0_i32_0 : i32, i32
  }
  func.func @transform_3(%arg0: i32) -> (i32, i32) {
    %c0_i32 = arith.constant 0 : i32
    %c0_i32_0 = arith.constant 0 : i32
    %c0_i32_1 = arith.constant 0 : i32
    return %c0_i32, %c0_i32_0 : i32, i32
  }
  func.func @transform_4(%arg0: i32) -> (i32, i32) {
    %c0_i32 = arith.constant 0 : i32
    %c0_i32_0 = arith.constant 0 : i32
    %c0_i32_1 = arith.constant 0 : i32
    return %c0_i32, %c0_i32_0 : i32, i32
  }
  func.func @transform_5(%arg0: i32) -> (i32, i32) {
    %c0_i32 = arith.constant 0 : i32
    %c0_i32_0 = arith.constant 0 : i32
    %c0_i32_1 = arith.constant 0 : i32
    return %c0_i32, %c0_i32_0 : i32, i32
  }
  func.func @transform_6(%arg0: i32) -> (i32, i32) {
    %c0_i32 = arith.constant 0 : i32
    %c0_i32_0 = arith.constant 0 : i32
    %c0_i32_1 = arith.constant 0 : i32
    return %c0_i32, %c0_i32_0 : i32, i32
  }
  func.func @transform_7(%arg0: i32) -> (i32, i32) {
    %c0_i32 = arith.constant 0 : i32
    %c0_i32_0 = arith.constant 0 : i32
    %c0_i32_1 = arith.constant 0 : i32
    return %c0_i32, %c0_i32_0 : i32, i32
  }
  func.func @transform_8(%arg0: i32) -> (i32, i32) {
    %c0_i32 = arith.constant 0 : i32
    %c0_i32_0 = arith.constant 0 : i32
    %c0_i32_1 = arith.constant 0 : i32
    return %c0_i32, %c0_i32_0 : i32, i32
  }
  func.func @transform_9(%arg0: i32) -> (i32, i32) {
    %c0_i32 = arith.constant 0 : i32
    %c0_i32_0 = arith.constant 0 : i32
    %c0_i32_1 = arith.constant 0 : i32
    return %c0_i32, %c0_i32_0 : i32, i32
  }
  func.func @transform_10(%arg0: i32) -> (i32, i32, i32) {
    %c0_i32 = arith.constant 0 : i32
    %c0_i32_0 = arith.constant 0 : i32
    %c0_i32_1 = arith.constant 0 : i32
    return %arg0, %c0_i32, %c0_i32_0 : i32, i32, i32
  }
}

module attributes {stable_mosaic.version = 11 : i64} {
  func.func @_branch_kernel(%arg0: i32, %arg1: memref<1x72x40xf32, #tpu.memory_space<vmem>>, %arg2: memref<40x128xbf16, #tpu.memory_space<vmem>>, %arg3: memref<1x128xf32, #tpu.memory_space<vmem>>, %arg4: memref<512x128xbf16, #tpu.memory_space<vmem>>, %arg5: memref<1x128xf32, #tpu.memory_space<vmem>>, %arg6: memref<768x128xbf16, #tpu.memory_space<vmem>>, %arg7: memref<1x128xf32, #tpu.memory_space<vmem>>, %arg8: memref<1024x128xbf16, #tpu.memory_space<vmem>>, %arg9: memref<1x128xf32, #tpu.memory_space<vmem>>, %arg10: memref<3x128xf32, #tpu.memory_space<vmem>>, %arg11: memref<1x1x128xf32, #tpu.memory_space<vmem>>) attributes {dimension_semantics = [#tpu.dimension_semantics<parallel>], iteration_bounds = array<i64: 2>, scalar_prefetch = 0 : i64, scratch_operands = 0 : i64, tpu.core_type = #tpu.core_type<tc>, window_params = [{transform_indices = @transform_0, window_bounds = array<i64: 1, 72, 40>}, {pipeline_mode = #tpu.pipeline_mode<synchronous>, transform_indices = @transform_1, window_bounds = array<i64: 40, 128>}, {pipeline_mode = #tpu.pipeline_mode<synchronous>, transform_indices = @transform_2, window_bounds = array<i64: 1, 128>}, {pipeline_mode = #tpu.pipeline_mode<synchronous>, transform_indices = @transform_3, window_bounds = array<i64: 512, 128>}, {pipeline_mode = #tpu.pipeline_mode<synchronous>, transform_indices = @transform_4, window_bounds = array<i64: 1, 128>}, {pipeline_mode = #tpu.pipeline_mode<synchronous>, transform_indices = @transform_5, window_bounds = array<i64: 768, 128>}, {pipeline_mode = #tpu.pipeline_mode<synchronous>, transform_indices = @transform_6, window_bounds = array<i64: 1, 128>}, {pipeline_mode = #tpu.pipeline_mode<synchronous>, transform_indices = @transform_7, window_bounds = array<i64: 1024, 128>}, {pipeline_mode = #tpu.pipeline_mode<synchronous>, transform_indices = @transform_8, window_bounds = array<i64: 1, 128>}, {pipeline_mode = #tpu.pipeline_mode<synchronous>, transform_indices = @transform_9, window_bounds = array<i64: 3, 128>}, {transform_indices = @transform_10, window_bounds = array<i64: 1, 1, 128>}]} {
    %c0 = arith.constant 0 : index
    %c0_0 = arith.constant 0 : index
    %c0_1 = arith.constant 0 : index
    %0 = vector.load %arg1[%c0, %c0_0, %c0_1] : memref<1x72x40xf32, #tpu.memory_space<vmem>>, vector<1x72x40xf32>
    %1 = vector.shape_cast %0 : vector<1x72x40xf32> to vector<72x40xf32>
    %2 = arith.truncf %1 : vector<72x40xf32> to vector<72x40xbf16>
    %c0_2 = arith.constant 0 : index
    %c0_3 = arith.constant 0 : index
    %3 = vector.load %arg2[%c0_2, %c0_3] : memref<40x128xbf16, #tpu.memory_space<vmem>>, vector<40x128xbf16>
    %cst = arith.constant dense<0.000000e+00> : vector<72x128xf32>
    %4 = tpu.matmul %2, %3, %cst {dimension_numbers = #tpu.dot_dimension_numbers<[1], [0], [0], [1], [0, 0, 1, 1], [], []>} : vector<72x40xbf16>, vector<40x128xbf16>, vector<72x128xf32> -> vector<72x128xf32>
    %c0_4 = arith.constant 0 : index
    %c0_5 = arith.constant 0 : index
    %5 = vector.load %arg3[%c0_4, %c0_5] : memref<1x128xf32, #tpu.memory_space<vmem>>, vector<1x128xf32>
    %6 = vector.broadcast %5 : vector<1x128xf32> to vector<72x128xf32>
    %7 = arith.addf %4, %6 : vector<72x128xf32>
    %c0_6 = arith.constant 0 : index
    %c0_7 = arith.constant 0 : index
    %8 = vector.load %arg10[%c0_6, %c0_7] : memref<3x128xf32, #tpu.memory_space<vmem>>, vector<3x128xf32>
    %9 = vector.extract_strided_slice %8 {offsets = [0, 0], sizes = [1, 128], strides = [1, 1]} : vector<3x128xf32> to vector<1x128xf32>
    %10 = vector.extract_strided_slice %7 {offsets = [0, 0], sizes = [69, 128], strides = [1, 1]} : vector<72x128xf32> to vector<69x128xf32>
    %11 = vector.extract_strided_slice %7 {offsets = [1, 0], sizes = [69, 128], strides = [1, 1]} : vector<72x128xf32> to vector<69x128xf32>
    %12 = vector.extract_strided_slice %7 {offsets = [2, 0], sizes = [69, 128], strides = [1, 1]} : vector<72x128xf32> to vector<69x128xf32>
    %13 = vector.extract_strided_slice %7 {offsets = [3, 0], sizes = [69, 128], strides = [1, 1]} : vector<72x128xf32> to vector<69x128xf32>
    %14 = tpu.concatenate %10, %11, %12, %13 in 1 : vector<69x128xf32>, vector<69x128xf32>, vector<69x128xf32>, vector<69x128xf32> -> vector<69x512xf32>
    %15 = arith.truncf %14 : vector<69x512xf32> to vector<69x512xbf16>
    %c0_8 = arith.constant 0 : index
    %c0_9 = arith.constant 0 : index
    %16 = vector.load %arg4[%c0_8, %c0_9] : memref<512x128xbf16, #tpu.memory_space<vmem>>, vector<512x128xbf16>
    %cst_10 = arith.constant dense<0.000000e+00> : vector<69x128xf32>
    %17 = tpu.matmul %15, %16, %cst_10 {dimension_numbers = #tpu.dot_dimension_numbers<[1], [0], [0], [1], [0, 0, 1, 1], [], []>} : vector<69x512xbf16>, vector<512x128xbf16>, vector<69x128xf32> -> vector<69x128xf32>
    %c0_11 = arith.constant 0 : index
    %c0_12 = arith.constant 0 : index
    %18 = vector.load %arg5[%c0_11, %c0_12] : memref<1x128xf32, #tpu.memory_space<vmem>>, vector<1x128xf32>
    %19 = vector.broadcast %18 : vector<1x128xf32> to vector<69x128xf32>
    %20 = arith.addf %17, %19 : vector<69x128xf32>
    %cst_13 = arith.constant 0.000000e+00 : f32
    %21 = vector.broadcast %cst_13 : f32 to vector<69x128xf32>
    %22 = arith.cmpf oge, %20, %21 : vector<69x128xf32>
    %23 = vector.broadcast %9 : vector<1x128xf32> to vector<69x128xf32>
    %24 = arith.mulf %20, %23 : vector<69x128xf32>
    %25 = arith.select %22, %20, %24 : vector<69x128xi1>, vector<69x128xf32>
    %26 = tpu.iota {dimensions = array<i32: 0>} : vector<34x69xi32>
    %27 = tpu.iota {dimensions = array<i32: 1>} : vector<34x69xi32>
    %c2_i32 = arith.constant 2 : i32
    %28 = vector.broadcast %c2_i32 : i32 to vector<34x69xi32>
    %29 = arith.muli %28, %26 : vector<34x69xi32>
    %30 = arith.cmpi eq, %27, %29 : vector<34x69xi32>
    %31 = arith.extui %30 : vector<34x69xi1> to vector<34x69xi32>
    %32 = arith.sitofp %31 : vector<34x69xi32> to vector<34x69xf32>
    %c2_i32_14 = arith.constant 2 : i32
    %33 = vector.broadcast %c2_i32_14 : i32 to vector<34x69xi32>
    %34 = arith.muli %33, %26 : vector<34x69xi32>
    %c1_i32 = arith.constant 1 : i32
    %35 = vector.broadcast %c1_i32 : i32 to vector<34x69xi32>
    %36 = arith.addi %34, %35 : vector<34x69xi32>
    %37 = arith.cmpi eq, %27, %36 : vector<34x69xi32>
    %38 = arith.extui %37 : vector<34x69xi1> to vector<34x69xi32>
    %39 = arith.sitofp %38 : vector<34x69xi32> to vector<34x69xf32>
    %cst_15 = arith.constant dense<0.000000e+00> : vector<34x128xf32>
    %40 = tpu.matmul %32, %25, %cst_15 {dimension_numbers = #tpu.dot_dimension_numbers<[1], [0], [0], [1], [0, 0, 1, 1], [], []>} : vector<34x69xf32>, vector<69x128xf32>, vector<34x128xf32> -> vector<34x128xf32>
    %cst_16 = arith.constant dense<0.000000e+00> : vector<34x128xf32>
    %41 = tpu.matmul %39, %25, %cst_16 {dimension_numbers = #tpu.dot_dimension_numbers<[1], [0], [0], [1], [0, 0, 1, 1], [], []>} : vector<34x69xf32>, vector<69x128xf32>, vector<34x128xf32> -> vector<34x128xf32>
    %42 = arith.maximumf %40, %41 : vector<34x128xf32>
    %43 = vector.extract_strided_slice %8 {offsets = [1, 0], sizes = [1, 128], strides = [1, 1]} : vector<3x128xf32> to vector<1x128xf32>
    %44 = vector.extract_strided_slice %42 {offsets = [0, 0], sizes = [29, 128], strides = [1, 1]} : vector<34x128xf32> to vector<29x128xf32>
    %45 = vector.extract_strided_slice %42 {offsets = [1, 0], sizes = [29, 128], strides = [1, 1]} : vector<34x128xf32> to vector<29x128xf32>
    %46 = vector.extract_strided_slice %42 {offsets = [2, 0], sizes = [29, 128], strides = [1, 1]} : vector<34x128xf32> to vector<29x128xf32>
    %47 = vector.extract_strided_slice %42 {offsets = [3, 0], sizes = [29, 128], strides = [1, 1]} : vector<34x128xf32> to vector<29x128xf32>
    %48 = vector.extract_strided_slice %42 {offsets = [4, 0], sizes = [29, 128], strides = [1, 1]} : vector<34x128xf32> to vector<29x128xf32>
    %49 = vector.extract_strided_slice %42 {offsets = [5, 0], sizes = [29, 128], strides = [1, 1]} : vector<34x128xf32> to vector<29x128xf32>
    %50 = tpu.concatenate %44, %45, %46, %47, %48, %49 in 1 : vector<29x128xf32>, vector<29x128xf32>, vector<29x128xf32>, vector<29x128xf32>, vector<29x128xf32>, vector<29x128xf32> -> vector<29x768xf32>
    %51 = arith.truncf %50 : vector<29x768xf32> to vector<29x768xbf16>
    %c0_17 = arith.constant 0 : index
    %c0_18 = arith.constant 0 : index
    %52 = vector.load %arg6[%c0_17, %c0_18] : memref<768x128xbf16, #tpu.memory_space<vmem>>, vector<768x128xbf16>
    %cst_19 = arith.constant dense<0.000000e+00> : vector<29x128xf32>
    %53 = tpu.matmul %51, %52, %cst_19 {dimension_numbers = #tpu.dot_dimension_numbers<[1], [0], [0], [1], [0, 0, 1, 1], [], []>} : vector<29x768xbf16>, vector<768x128xbf16>, vector<29x128xf32> -> vector<29x128xf32>
    %c0_20 = arith.constant 0 : index
    %c0_21 = arith.constant 0 : index
    %54 = vector.load %arg7[%c0_20, %c0_21] : memref<1x128xf32, #tpu.memory_space<vmem>>, vector<1x128xf32>
    %55 = vector.broadcast %54 : vector<1x128xf32> to vector<29x128xf32>
    %56 = arith.addf %53, %55 : vector<29x128xf32>
    %cst_22 = arith.constant 0.000000e+00 : f32
    %57 = vector.broadcast %cst_22 : f32 to vector<29x128xf32>
    %58 = arith.cmpf oge, %56, %57 : vector<29x128xf32>
    %59 = vector.broadcast %43 : vector<1x128xf32> to vector<29x128xf32>
    %60 = arith.mulf %56, %59 : vector<29x128xf32>
    %61 = arith.select %58, %56, %60 : vector<29x128xi1>, vector<29x128xf32>
    %62 = tpu.iota {dimensions = array<i32: 0>} : vector<14x29xi32>
    %63 = tpu.iota {dimensions = array<i32: 1>} : vector<14x29xi32>
    %c2_i32_23 = arith.constant 2 : i32
    %64 = vector.broadcast %c2_i32_23 : i32 to vector<14x29xi32>
    %65 = arith.muli %64, %62 : vector<14x29xi32>
    %66 = arith.cmpi eq, %63, %65 : vector<14x29xi32>
    %67 = arith.extui %66 : vector<14x29xi1> to vector<14x29xi32>
    %68 = arith.sitofp %67 : vector<14x29xi32> to vector<14x29xf32>
    %c2_i32_24 = arith.constant 2 : i32
    %69 = vector.broadcast %c2_i32_24 : i32 to vector<14x29xi32>
    %70 = arith.muli %69, %62 : vector<14x29xi32>
    %c1_i32_25 = arith.constant 1 : i32
    %71 = vector.broadcast %c1_i32_25 : i32 to vector<14x29xi32>
    %72 = arith.addi %70, %71 : vector<14x29xi32>
    %73 = arith.cmpi eq, %63, %72 : vector<14x29xi32>
    %74 = arith.extui %73 : vector<14x29xi1> to vector<14x29xi32>
    %75 = arith.sitofp %74 : vector<14x29xi32> to vector<14x29xf32>
    %cst_26 = arith.constant dense<0.000000e+00> : vector<14x128xf32>
    %76 = tpu.matmul %68, %61, %cst_26 {dimension_numbers = #tpu.dot_dimension_numbers<[1], [0], [0], [1], [0, 0, 1, 1], [], []>} : vector<14x29xf32>, vector<29x128xf32>, vector<14x128xf32> -> vector<14x128xf32>
    %cst_27 = arith.constant dense<0.000000e+00> : vector<14x128xf32>
    %77 = tpu.matmul %75, %61, %cst_27 {dimension_numbers = #tpu.dot_dimension_numbers<[1], [0], [0], [1], [0, 0, 1, 1], [], []>} : vector<14x29xf32>, vector<29x128xf32>, vector<14x128xf32> -> vector<14x128xf32>
    %78 = arith.maximumf %76, %77 : vector<14x128xf32>
    %79 = vector.extract_strided_slice %8 {offsets = [2, 0], sizes = [1, 128], strides = [1, 1]} : vector<3x128xf32> to vector<1x128xf32>
    %80 = vector.extract_strided_slice %78 {offsets = [0, 0], sizes = [7, 128], strides = [1, 1]} : vector<14x128xf32> to vector<7x128xf32>
    %81 = vector.extract_strided_slice %78 {offsets = [1, 0], sizes = [7, 128], strides = [1, 1]} : vector<14x128xf32> to vector<7x128xf32>
    %82 = vector.extract_strided_slice %78 {offsets = [2, 0], sizes = [7, 128], strides = [1, 1]} : vector<14x128xf32> to vector<7x128xf32>
    %83 = vector.extract_strided_slice %78 {offsets = [3, 0], sizes = [7, 128], strides = [1, 1]} : vector<14x128xf32> to vector<7x128xf32>
    %84 = vector.extract_strided_slice %78 {offsets = [4, 0], sizes = [7, 128], strides = [1, 1]} : vector<14x128xf32> to vector<7x128xf32>
    %85 = vector.extract_strided_slice %78 {offsets = [5, 0], sizes = [7, 128], strides = [1, 1]} : vector<14x128xf32> to vector<7x128xf32>
    %86 = vector.extract_strided_slice %78 {offsets = [6, 0], sizes = [7, 128], strides = [1, 1]} : vector<14x128xf32> to vector<7x128xf32>
    %87 = vector.extract_strided_slice %78 {offsets = [7, 0], sizes = [7, 128], strides = [1, 1]} : vector<14x128xf32> to vector<7x128xf32>
    %88 = tpu.concatenate %80, %81, %82, %83, %84, %85, %86, %87 in 1 : vector<7x128xf32>, vector<7x128xf32>, vector<7x128xf32>, vector<7x128xf32>, vector<7x128xf32>, vector<7x128xf32>, vector<7x128xf32>, vector<7x128xf32> -> vector<7x1024xf32>
    %89 = arith.truncf %88 : vector<7x1024xf32> to vector<7x1024xbf16>
    %c0_28 = arith.constant 0 : index
    %c0_29 = arith.constant 0 : index
    %90 = vector.load %arg8[%c0_28, %c0_29] : memref<1024x128xbf16, #tpu.memory_space<vmem>>, vector<1024x128xbf16>
    %cst_30 = arith.constant dense<0.000000e+00> : vector<7x128xf32>
    %91 = tpu.matmul %89, %90, %cst_30 {dimension_numbers = #tpu.dot_dimension_numbers<[1], [0], [0], [1], [0, 0, 1, 1], [], []>} : vector<7x1024xbf16>, vector<1024x128xbf16>, vector<7x128xf32> -> vector<7x128xf32>
    %c0_31 = arith.constant 0 : index
    %c0_32 = arith.constant 0 : index
    %92 = vector.load %arg9[%c0_31, %c0_32] : memref<1x128xf32, #tpu.memory_space<vmem>>, vector<1x128xf32>
    %93 = vector.broadcast %92 : vector<1x128xf32> to vector<7x128xf32>
    %94 = arith.addf %91, %93 : vector<7x128xf32>
    %cst_33 = arith.constant 0.000000e+00 : f32
    %95 = vector.broadcast %cst_33 : f32 to vector<7x128xf32>
    %96 = arith.cmpf oge, %94, %95 : vector<7x128xf32>
    %97 = vector.broadcast %79 : vector<1x128xf32> to vector<7x128xf32>
    %98 = arith.mulf %94, %97 : vector<7x128xf32>
    %99 = arith.select %96, %94, %98 : vector<7x128xi1>, vector<7x128xf32>
    %cst_34 = arith.constant dense<0xFF800000> : vector<128xf32>
    %100 = vector.multi_reduction <maximumf>, %99, %cst_34 [0] : vector<7x128xf32> to vector<128xf32>
    %101 = vector.shape_cast %100 : vector<128xf32> to vector<1x128xf32>
    %c0_35 = arith.constant 0 : index
    %c0_36 = arith.constant 0 : index
    %c0_37 = arith.constant 0 : index
    %102 = vector.load %arg11[%c0_35, %c0_36, %c0_37] : memref<1x1x128xf32, #tpu.memory_space<vmem>>, vector<1x1x128xf32>
    %103 = vector.shape_cast %102 : vector<1x1x128xf32> to vector<1x128xf32>
    %104 = vector.shape_cast %101 : vector<1x128xf32> to vector<1x1x128xf32>
    tpu.vector_store %arg11[%c0_35, %c0_36, %c0_37], %104 {strides = array<i32>} : memref<1x1x128xf32, #tpu.memory_space<vmem>>, vector<1x1x128xf32>,
    return
  }
  func.func @transform_0(%arg0: i32) -> (i32, i32, i32) {
    %c0_i32 = arith.constant 0 : i32
    %c0_i32_0 = arith.constant 0 : i32
    %c0_i32_1 = arith.constant 0 : i32
    return %arg0, %c0_i32, %c0_i32_0 : i32, i32, i32
  }
  func.func @transform_1(%arg0: i32) -> (i32, i32) {
    %c0_i32 = arith.constant 0 : i32
    %c0_i32_0 = arith.constant 0 : i32
    %c0_i32_1 = arith.constant 0 : i32
    return %c0_i32, %c0_i32_0 : i32, i32
  }
  func.func @transform_2(%arg0: i32) -> (i32, i32) {
    %c0_i32 = arith.constant 0 : i32
    %c0_i32_0 = arith.constant 0 : i32
    %c0_i32_1 = arith.constant 0 : i32
    return %c0_i32, %c0_i32_0 : i32, i32
  }
  func.func @transform_3(%arg0: i32) -> (i32, i32) {
    %c0_i32 = arith.constant 0 : i32
    %c0_i32_0 = arith.constant 0 : i32
    %c0_i32_1 = arith.constant 0 : i32
    return %c0_i32, %c0_i32_0 : i32, i32
  }
  func.func @transform_4(%arg0: i32) -> (i32, i32) {
    %c0_i32 = arith.constant 0 : i32
    %c0_i32_0 = arith.constant 0 : i32
    %c0_i32_1 = arith.constant 0 : i32
    return %c0_i32, %c0_i32_0 : i32, i32
  }
  func.func @transform_5(%arg0: i32) -> (i32, i32) {
    %c0_i32 = arith.constant 0 : i32
    %c0_i32_0 = arith.constant 0 : i32
    %c0_i32_1 = arith.constant 0 : i32
    return %c0_i32, %c0_i32_0 : i32, i32
  }
  func.func @transform_6(%arg0: i32) -> (i32, i32) {
    %c0_i32 = arith.constant 0 : i32
    %c0_i32_0 = arith.constant 0 : i32
    %c0_i32_1 = arith.constant 0 : i32
    return %c0_i32, %c0_i32_0 : i32, i32
  }
  func.func @transform_7(%arg0: i32) -> (i32, i32) {
    %c0_i32 = arith.constant 0 : i32
    %c0_i32_0 = arith.constant 0 : i32
    %c0_i32_1 = arith.constant 0 : i32
    return %c0_i32, %c0_i32_0 : i32, i32
  }
  func.func @transform_8(%arg0: i32) -> (i32, i32) {
    %c0_i32 = arith.constant 0 : i32
    %c0_i32_0 = arith.constant 0 : i32
    %c0_i32_1 = arith.constant 0 : i32
    return %c0_i32, %c0_i32_0 : i32, i32
  }
  func.func @transform_9(%arg0: i32) -> (i32, i32) {
    %c0_i32 = arith.constant 0 : i32
    %c0_i32_0 = arith.constant 0 : i32
    %c0_i32_1 = arith.constant 0 : i32
    return %c0_i32, %c0_i32_0 : i32, i32
  }
  func.func @transform_10(%arg0: i32) -> (i32, i32, i32) {
    %c0_i32 = arith.constant 0 : i32
    %c0_i32_0 = arith.constant 0 : i32
    %c0_i32_1 = arith.constant 0 : i32
    return %arg0, %c0_i32, %c0_i32_0 : i32, i32, i32
  }
}

module attributes {stable_mosaic.version = 11 : i64} {
  func.func @_branch_kernel(%arg0: i32, %arg1: memref<1x48x1xi32, #tpu.memory_space<vmem>>, %arg2: memref<65x128xbf16, #tpu.memory_space<vmem>>, %arg3: memref<1x128xf32, #tpu.memory_space<vmem>>, %arg4: memref<512x128xbf16, #tpu.memory_space<vmem>>, %arg5: memref<1x128xf32, #tpu.memory_space<vmem>>, %arg6: memref<768x128xbf16, #tpu.memory_space<vmem>>, %arg7: memref<1x128xf32, #tpu.memory_space<vmem>>, %arg8: memref<1024x128xbf16, #tpu.memory_space<vmem>>, %arg9: memref<1x128xf32, #tpu.memory_space<vmem>>, %arg10: memref<3x128xf32, #tpu.memory_space<vmem>>, %arg11: memref<1x1x128xf32, #tpu.memory_space<vmem>>) attributes {dimension_semantics = [#tpu.dimension_semantics<parallel>], iteration_bounds = array<i64: 2>, scalar_prefetch = 0 : i64, scratch_operands = 0 : i64, tpu.core_type = #tpu.core_type<tc>, window_params = [{transform_indices = @transform_0, window_bounds = array<i64: 1, 48, 1>}, {pipeline_mode = #tpu.pipeline_mode<synchronous>, transform_indices = @transform_1, window_bounds = array<i64: 65, 128>}, {pipeline_mode = #tpu.pipeline_mode<synchronous>, transform_indices = @transform_2, window_bounds = array<i64: 1, 128>}, {pipeline_mode = #tpu.pipeline_mode<synchronous>, transform_indices = @transform_3, window_bounds = array<i64: 512, 128>}, {pipeline_mode = #tpu.pipeline_mode<synchronous>, transform_indices = @transform_4, window_bounds = array<i64: 1, 128>}, {pipeline_mode = #tpu.pipeline_mode<synchronous>, transform_indices = @transform_5, window_bounds = array<i64: 768, 128>}, {pipeline_mode = #tpu.pipeline_mode<synchronous>, transform_indices = @transform_6, window_bounds = array<i64: 1, 128>}, {pipeline_mode = #tpu.pipeline_mode<synchronous>, transform_indices = @transform_7, window_bounds = array<i64: 1024, 128>}, {pipeline_mode = #tpu.pipeline_mode<synchronous>, transform_indices = @transform_8, window_bounds = array<i64: 1, 128>}, {pipeline_mode = #tpu.pipeline_mode<synchronous>, transform_indices = @transform_9, window_bounds = array<i64: 3, 128>}, {transform_indices = @transform_10, window_bounds = array<i64: 1, 1, 128>}]} {
    %c0 = arith.constant 0 : index
    %c0_0 = arith.constant 0 : index
    %c0_1 = arith.constant 0 : index
    %0 = vector.load %arg1[%c0, %c0_0, %c0_1] : memref<1x48x1xi32, #tpu.memory_space<vmem>>, vector<1x48x1xi32>
    %1 = vector.shape_cast %0 : vector<1x48x1xi32> to vector<48x1xi32>
    %2 = tpu.iota {dimensions = array<i32: 1>} : vector<48x65xi32>
    %3 = vector.broadcast %1 : vector<48x1xi32> to vector<48x65xi32>
    %4 = arith.cmpi eq, %2, %3 : vector<48x65xi32>
    %5 = arith.extui %4 : vector<48x65xi1> to vector<48x65xi32>
    %6 = arith.sitofp %5 : vector<48x65xi32> to vector<48x65xf32>
    %7 = arith.truncf %6 : vector<48x65xf32> to vector<48x65xbf16>
    %c0_2 = arith.constant 0 : index
    %c0_3 = arith.constant 0 : index
    %8 = vector.load %arg2[%c0_2, %c0_3] : memref<65x128xbf16, #tpu.memory_space<vmem>>, vector<65x128xbf16>
    %cst = arith.constant dense<0.000000e+00> : vector<48x128xf32>
    %9 = tpu.matmul %7, %8, %cst {dimension_numbers = #tpu.dot_dimension_numbers<[1], [0], [0], [1], [0, 0, 1, 1], [], []>} : vector<48x65xbf16>, vector<65x128xbf16>, vector<48x128xf32> -> vector<48x128xf32>
    %c0_4 = arith.constant 0 : index
    %c0_5 = arith.constant 0 : index
    %10 = vector.load %arg10[%c0_4, %c0_5] : memref<3x128xf32, #tpu.memory_space<vmem>>, vector<3x128xf32>
    %11 = vector.extract_strided_slice %10 {offsets = [0, 0], sizes = [1, 128], strides = [1, 1]} : vector<3x128xf32> to vector<1x128xf32>
    %12 = vector.extract_strided_slice %9 {offsets = [0, 0], sizes = [45, 128], strides = [1, 1]} : vector<48x128xf32> to vector<45x128xf32>
    %13 = vector.extract_strided_slice %9 {offsets = [1, 0], sizes = [45, 128], strides = [1, 1]} : vector<48x128xf32> to vector<45x128xf32>
    %14 = vector.extract_strided_slice %9 {offsets = [2, 0], sizes = [45, 128], strides = [1, 1]} : vector<48x128xf32> to vector<45x128xf32>
    %15 = vector.extract_strided_slice %9 {offsets = [3, 0], sizes = [45, 128], strides = [1, 1]} : vector<48x128xf32> to vector<45x128xf32>
    %16 = tpu.concatenate %12, %13, %14, %15 in 1 : vector<45x128xf32>, vector<45x128xf32>, vector<45x128xf32>, vector<45x128xf32> -> vector<45x512xf32>
    %17 = arith.truncf %16 : vector<45x512xf32> to vector<45x512xbf16>
    %c0_6 = arith.constant 0 : index
    %c0_7 = arith.constant 0 : index
    %18 = vector.load %arg4[%c0_6, %c0_7] : memref<512x128xbf16, #tpu.memory_space<vmem>>, vector<512x128xbf16>
    %cst_8 = arith.constant dense<0.000000e+00> : vector<45x128xf32>
    %19 = tpu.matmul %17, %18, %cst_8 {dimension_numbers = #tpu.dot_dimension_numbers<[1], [0], [0], [1], [0, 0, 1, 1], [], []>} : vector<45x512xbf16>, vector<512x128xbf16>, vector<45x128xf32> -> vector<45x128xf32>
    %c0_9 = arith.constant 0 : index
    %c0_10 = arith.constant 0 : index
    %20 = vector.load %arg5[%c0_9, %c0_10] : memref<1x128xf32, #tpu.memory_space<vmem>>, vector<1x128xf32>
    %21 = vector.broadcast %20 : vector<1x128xf32> to vector<45x128xf32>
    %22 = arith.addf %19, %21 : vector<45x128xf32>
    %cst_11 = arith.constant 0.000000e+00 : f32
    %23 = vector.broadcast %cst_11 : f32 to vector<45x128xf32>
    %24 = arith.cmpf oge, %22, %23 : vector<45x128xf32>
    %25 = vector.broadcast %11 : vector<1x128xf32> to vector<45x128xf32>
    %26 = arith.mulf %22, %25 : vector<45x128xf32>
    %27 = arith.select %24, %22, %26 : vector<45x128xi1>, vector<45x128xf32>
    %28 = tpu.iota {dimensions = array<i32: 0>} : vector<22x45xi32>
    %29 = tpu.iota {dimensions = array<i32: 1>} : vector<22x45xi32>
    %c2_i32 = arith.constant 2 : i32
    %30 = vector.broadcast %c2_i32 : i32 to vector<22x45xi32>
    %31 = arith.muli %30, %28 : vector<22x45xi32>
    %32 = arith.cmpi eq, %29, %31 : vector<22x45xi32>
    %33 = arith.extui %32 : vector<22x45xi1> to vector<22x45xi32>
    %34 = arith.sitofp %33 : vector<22x45xi32> to vector<22x45xf32>
    %c2_i32_12 = arith.constant 2 : i32
    %35 = vector.broadcast %c2_i32_12 : i32 to vector<22x45xi32>
    %36 = arith.muli %35, %28 : vector<22x45xi32>
    %c1_i32 = arith.constant 1 : i32
    %37 = vector.broadcast %c1_i32 : i32 to vector<22x45xi32>
    %38 = arith.addi %36, %37 : vector<22x45xi32>
    %39 = arith.cmpi eq, %29, %38 : vector<22x45xi32>
    %40 = arith.extui %39 : vector<22x45xi1> to vector<22x45xi32>
    %41 = arith.sitofp %40 : vector<22x45xi32> to vector<22x45xf32>
    %cst_13 = arith.constant dense<0.000000e+00> : vector<22x128xf32>
    %42 = tpu.matmul %34, %27, %cst_13 {dimension_numbers = #tpu.dot_dimension_numbers<[1], [0], [0], [1], [0, 0, 1, 1], [], []>} : vector<22x45xf32>, vector<45x128xf32>, vector<22x128xf32> -> vector<22x128xf32>
    %cst_14 = arith.constant dense<0.000000e+00> : vector<22x128xf32>
    %43 = tpu.matmul %41, %27, %cst_14 {dimension_numbers = #tpu.dot_dimension_numbers<[1], [0], [0], [1], [0, 0, 1, 1], [], []>} : vector<22x45xf32>, vector<45x128xf32>, vector<22x128xf32> -> vector<22x128xf32>
    %44 = arith.maximumf %42, %43 : vector<22x128xf32>
    %45 = vector.extract_strided_slice %10 {offsets = [1, 0], sizes = [1, 128], strides = [1, 1]} : vector<3x128xf32> to vector<1x128xf32>
    %46 = vector.extract_strided_slice %44 {offsets = [0, 0], sizes = [17, 128], strides = [1, 1]} : vector<22x128xf32> to vector<17x128xf32>
    %47 = vector.extract_strided_slice %44 {offsets = [1, 0], sizes = [17, 128], strides = [1, 1]} : vector<22x128xf32> to vector<17x128xf32>
    %48 = vector.extract_strided_slice %44 {offsets = [2, 0], sizes = [17, 128], strides = [1, 1]} : vector<22x128xf32> to vector<17x128xf32>
    %49 = vector.extract_strided_slice %44 {offsets = [3, 0], sizes = [17, 128], strides = [1, 1]} : vector<22x128xf32> to vector<17x128xf32>
    %50 = vector.extract_strided_slice %44 {offsets = [4, 0], sizes = [17, 128], strides = [1, 1]} : vector<22x128xf32> to vector<17x128xf32>
    %51 = vector.extract_strided_slice %44 {offsets = [5, 0], sizes = [17, 128], strides = [1, 1]} : vector<22x128xf32> to vector<17x128xf32>
    %52 = tpu.concatenate %46, %47, %48, %49, %50, %51 in 1 : vector<17x128xf32>, vector<17x128xf32>, vector<17x128xf32>, vector<17x128xf32>, vector<17x128xf32>, vector<17x128xf32> -> vector<17x768xf32>
    %53 = arith.truncf %52 : vector<17x768xf32> to vector<17x768xbf16>
    %c0_15 = arith.constant 0 : index
    %c0_16 = arith.constant 0 : index
    %54 = vector.load %arg6[%c0_15, %c0_16] : memref<768x128xbf16, #tpu.memory_space<vmem>>, vector<768x128xbf16>
    %cst_17 = arith.constant dense<0.000000e+00> : vector<17x128xf32>
    %55 = tpu.matmul %53, %54, %cst_17 {dimension_numbers = #tpu.dot_dimension_numbers<[1], [0], [0], [1], [0, 0, 1, 1], [], []>} : vector<17x768xbf16>, vector<768x128xbf16>, vector<17x128xf32> -> vector<17x128xf32>
    %c0_18 = arith.constant 0 : index
    %c0_19 = arith.constant 0 : index
    %56 = vector.load %arg7[%c0_18, %c0_19] : memref<1x128xf32, #tpu.memory_space<vmem>>, vector<1x128xf32>
    %57 = vector.broadcast %56 : vector<1x128xf32> to vector<17x128xf32>
    %58 = arith.addf %55, %57 : vector<17x128xf32>
    %cst_20 = arith.constant 0.000000e+00 : f32
    %59 = vector.broadcast %cst_20 : f32 to vector<17x128xf32>
    %60 = arith.cmpf oge, %58, %59 : vector<17x128xf32>
    %61 = vector.broadcast %45 : vector<1x128xf32> to vector<17x128xf32>
    %62 = arith.mulf %58, %61 : vector<17x128xf32>
    %63 = arith.select %60, %58, %62 : vector<17x128xi1>, vector<17x128xf32>
    %64 = tpu.iota {dimensions = array<i32: 0>} : vector<8x17xi32>
    %65 = tpu.iota {dimensions = array<i32: 1>} : vector<8x17xi32>
    %c2_i32_21 = arith.constant 2 : i32
    %66 = vector.broadcast %c2_i32_21 : i32 to vector<8x17xi32>
    %67 = arith.muli %66, %64 : vector<8x17xi32>
    %68 = arith.cmpi eq, %65, %67 : vector<8x17xi32>
    %69 = arith.extui %68 : vector<8x17xi1> to vector<8x17xi32>
    %70 = arith.sitofp %69 : vector<8x17xi32> to vector<8x17xf32>
    %c2_i32_22 = arith.constant 2 : i32
    %71 = vector.broadcast %c2_i32_22 : i32 to vector<8x17xi32>
    %72 = arith.muli %71, %64 : vector<8x17xi32>
    %c1_i32_23 = arith.constant 1 : i32
    %73 = vector.broadcast %c1_i32_23 : i32 to vector<8x17xi32>
    %74 = arith.addi %72, %73 : vector<8x17xi32>
    %75 = arith.cmpi eq, %65, %74 : vector<8x17xi32>
    %76 = arith.extui %75 : vector<8x17xi1> to vector<8x17xi32>
    %77 = arith.sitofp %76 : vector<8x17xi32> to vector<8x17xf32>
    %cst_24 = arith.constant dense<0.000000e+00> : vector<8x128xf32>
    %78 = tpu.matmul %70, %63, %cst_24 {dimension_numbers = #tpu.dot_dimension_numbers<[1], [0], [0], [1], [0, 0, 1, 1], [], []>} : vector<8x17xf32>, vector<17x128xf32>, vector<8x128xf32> -> vector<8x128xf32>
    %cst_25 = arith.constant dense<0.000000e+00> : vector<8x128xf32>
    %79 = tpu.matmul %77, %63, %cst_25 {dimension_numbers = #tpu.dot_dimension_numbers<[1], [0], [0], [1], [0, 0, 1, 1], [], []>} : vector<8x17xf32>, vector<17x128xf32>, vector<8x128xf32> -> vector<8x128xf32>
    %80 = arith.maximumf %78, %79 : vector<8x128xf32>
    %81 = vector.extract_strided_slice %10 {offsets = [2, 0], sizes = [1, 128], strides = [1, 1]} : vector<3x128xf32> to vector<1x128xf32>
    %82 = vector.extract_strided_slice %80 {offsets = [0, 0], sizes = [1, 128], strides = [1, 1]} : vector<8x128xf32> to vector<1x128xf32>
    %83 = vector.extract_strided_slice %80 {offsets = [1, 0], sizes = [1, 128], strides = [1, 1]} : vector<8x128xf32> to vector<1x128xf32>
    %84 = vector.extract_strided_slice %80 {offsets = [2, 0], sizes = [1, 128], strides = [1, 1]} : vector<8x128xf32> to vector<1x128xf32>
    %85 = vector.extract_strided_slice %80 {offsets = [3, 0], sizes = [1, 128], strides = [1, 1]} : vector<8x128xf32> to vector<1x128xf32>
    %86 = vector.extract_strided_slice %80 {offsets = [4, 0], sizes = [1, 128], strides = [1, 1]} : vector<8x128xf32> to vector<1x128xf32>
    %87 = vector.extract_strided_slice %80 {offsets = [5, 0], sizes = [1, 128], strides = [1, 1]} : vector<8x128xf32> to vector<1x128xf32>
    %88 = vector.extract_strided_slice %80 {offsets = [6, 0], sizes = [1, 128], strides = [1, 1]} : vector<8x128xf32> to vector<1x128xf32>
    %89 = vector.extract_strided_slice %80 {offsets = [7, 0], sizes = [1, 128], strides = [1, 1]} : vector<8x128xf32> to vector<1x128xf32>
    %90 = tpu.concatenate %82, %83, %84, %85, %86, %87, %88, %89 in 1 : vector<1x128xf32>, vector<1x128xf32>, vector<1x128xf32>, vector<1x128xf32>, vector<1x128xf32>, vector<1x128xf32>, vector<1x128xf32>, vector<1x128xf32> -> vector<1x1024xf32>
    %91 = arith.truncf %90 : vector<1x1024xf32> to vector<1x1024xbf16>
    %c0_26 = arith.constant 0 : index
    %c0_27 = arith.constant 0 : index
    %92 = vector.load %arg8[%c0_26, %c0_27] : memref<1024x128xbf16, #tpu.memory_space<vmem>>, vector<1024x128xbf16>
    %cst_28 = arith.constant dense<0.000000e+00> : vector<1x128xf32>
    %93 = tpu.matmul %91, %92, %cst_28 {dimension_numbers = #tpu.dot_dimension_numbers<[1], [0], [0], [1], [0, 0, 1, 1], [], []>} : vector<1x1024xbf16>, vector<1024x128xbf16>, vector<1x128xf32> -> vector<1x128xf32>
    %c0_29 = arith.constant 0 : index
    %c0_30 = arith.constant 0 : index
    %94 = vector.load %arg9[%c0_29, %c0_30] : memref<1x128xf32, #tpu.memory_space<vmem>>, vector<1x128xf32>
    %95 = arith.addf %93, %94 : vector<1x128xf32>
    %cst_31 = arith.constant 0.000000e+00 : f32
    %96 = vector.broadcast %cst_31 : f32 to vector<1x128xf32>
    %97 = arith.cmpf oge, %95, %96 : vector<1x128xf32>
    %98 = arith.mulf %95, %81 : vector<1x128xf32>
    %99 = arith.select %97, %95, %98 : vector<1x128xi1>, vector<1x128xf32>
    %cst_32 = arith.constant dense<0xFF800000> : vector<128xf32>
    %100 = vector.multi_reduction <maximumf>, %99, %cst_32 [0] : vector<1x128xf32> to vector<128xf32>
    %101 = vector.shape_cast %100 : vector<128xf32> to vector<1x128xf32>
    %c0_33 = arith.constant 0 : index
    %c0_34 = arith.constant 0 : index
    %c0_35 = arith.constant 0 : index
    %102 = vector.load %arg11[%c0_33, %c0_34, %c0_35] : memref<1x1x128xf32, #tpu.memory_space<vmem>>, vector<1x1x128xf32>
    %103 = vector.shape_cast %102 : vector<1x1x128xf32> to vector<1x128xf32>
    %104 = vector.shape_cast %101 : vector<1x128xf32> to vector<1x1x128xf32>
    tpu.vector_store %arg11[%c0_33, %c0_34, %c0_35], %104 {strides = array<i32>} : memref<1x1x128xf32, #tpu.memory_space<vmem>>, vector<1x1x128xf32>,
    return
  }
  func.func @transform_0(%arg0: i32) -> (i32, i32, i32) {
    %c0_i32 = arith.constant 0 : i32
    %c0_i32_0 = arith.constant 0 : i32
    %c0_i32_1 = arith.constant 0 : i32
    return %arg0, %c0_i32, %c0_i32_0 : i32, i32, i32
  }
  func.func @transform_1(%arg0: i32) -> (i32, i32) {
    %c0_i32 = arith.constant 0 : i32
    %c0_i32_0 = arith.constant 0 : i32
    %c0_i32_1 = arith.constant 0 : i32
    return %c0_i32, %c0_i32_0 : i32, i32
  }
  func.func @transform_2(%arg0: i32) -> (i32, i32) {
    %c0_i32 = arith.constant 0 : i32
    %c0_i32_0 = arith.constant 0 : i32
    %c0_i32_1 = arith.constant 0 : i32
    return %c0_i32, %c0_i32_0 : i32, i32
  }
  func.func @transform_3(%arg0: i32) -> (i32, i32) {
    %c0_i32 = arith.constant 0 : i32
    %c0_i32_0 = arith.constant 0 : i32
    %c0_i32_1 = arith.constant 0 : i32
    return %c0_i32, %c0_i32_0 : i32, i32
  }
  func.func @transform_4(%arg0: i32) -> (i32, i32) {
    %c0_i32 = arith.constant 0 : i32
    %c0_i32_0 = arith.constant 0 : i32
    %c0_i32_1 = arith.constant 0 : i32
    return %c0_i32, %c0_i32_0 : i32, i32
  }
  func.func @transform_5(%arg0: i32) -> (i32, i32) {
    %c0_i32 = arith.constant 0 : i32
    %c0_i32_0 = arith.constant 0 : i32
    %c0_i32_1 = arith.constant 0 : i32
    return %c0_i32, %c0_i32_0 : i32, i32
  }
  func.func @transform_6(%arg0: i32) -> (i32, i32) {
    %c0_i32 = arith.constant 0 : i32
    %c0_i32_0 = arith.constant 0 : i32
    %c0_i32_1 = arith.constant 0 : i32
    return %c0_i32, %c0_i32_0 : i32, i32
  }
  func.func @transform_7(%arg0: i32) -> (i32, i32) {
    %c0_i32 = arith.constant 0 : i32
    %c0_i32_0 = arith.constant 0 : i32
    %c0_i32_1 = arith.constant 0 : i32
    return %c0_i32, %c0_i32_0 : i32, i32
  }
  func.func @transform_8(%arg0: i32) -> (i32, i32) {
    %c0_i32 = arith.constant 0 : i32
    %c0_i32_0 = arith.constant 0 : i32
    %c0_i32_1 = arith.constant 0 : i32
    return %c0_i32, %c0_i32_0 : i32, i32
  }
  func.func @transform_9(%arg0: i32) -> (i32, i32) {
    %c0_i32 = arith.constant 0 : i32
    %c0_i32_0 = arith.constant 0 : i32
    %c0_i32_1 = arith.constant 0 : i32
    return %c0_i32, %c0_i32_0 : i32, i32
  }
  func.func @transform_10(%arg0: i32) -> (i32, i32, i32) {
    %c0_i32 = arith.constant 0 : i32
    %c0_i32_0 = arith.constant 0 : i32
    %c0_i32_1 = arith.constant 0 : i32
    return %arg0, %c0_i32, %c0_i32_0 : i32, i32, i32
  }
}

module attributes {stable_mosaic.version = 11 : i64} {
  func.func @_head_kernel(%arg0: memref<2x128xf32, #tpu.memory_space<vmem>>, %arg1: memref<2x128xf32, #tpu.memory_space<vmem>>, %arg2: memref<2x128xf32, #tpu.memory_space<vmem>>, %arg3: memref<384x384xbf16, #tpu.memory_space<vmem>>, %arg4: memref<384x256xbf16, #tpu.memory_space<vmem>>, %arg5: memref<1x256xf32, #tpu.memory_space<vmem>>, %arg6: memref<1x256xf32, #tpu.memory_space<vmem>>, %arg7: memref<256x128xbf16, #tpu.memory_space<vmem>>, %arg8: memref<1x128xf32, #tpu.memory_space<vmem>>, %arg9: memref<1x128xf32, #tpu.memory_space<vmem>>, %arg10: memref<128x1xbf16, #tpu.memory_space<vmem>>, %arg11: memref<1x1xf32, #tpu.memory_space<vmem>>, %arg12: memref<2x1xf32, #tpu.memory_space<vmem>>) attributes {dimension_semantics = [], scalar_prefetch = 0 : i64, scratch_operands = 0 : i64, tpu.core_type = #tpu.core_type<tc>} {
    %c0 = arith.constant 0 : index
    %c0_0 = arith.constant 0 : index
    %0 = vector.load %arg0[%c0, %c0_0] : memref<2x128xf32, #tpu.memory_space<vmem>>, vector<2x128xf32>
    %c0_1 = arith.constant 0 : index
    %c0_2 = arith.constant 0 : index
    %1 = vector.load %arg1[%c0_1, %c0_2] : memref<2x128xf32, #tpu.memory_space<vmem>>, vector<2x128xf32>
    %c0_3 = arith.constant 0 : index
    %c0_4 = arith.constant 0 : index
    %2 = vector.load %arg2[%c0_3, %c0_4] : memref<2x128xf32, #tpu.memory_space<vmem>>, vector<2x128xf32>
    %3 = tpu.concatenate %0, %1, %2 in 1 : vector<2x128xf32>, vector<2x128xf32>, vector<2x128xf32> -> vector<2x384xf32>
    %4 = arith.truncf %3 : vector<2x384xf32> to vector<2x384xbf16>
    %c0_5 = arith.constant 0 : index
    %c0_6 = arith.constant 0 : index
    %5 = vector.load %arg3[%c0_5, %c0_6] : memref<384x384xbf16, #tpu.memory_space<vmem>>, vector<384x384xbf16>
    %cst = arith.constant dense<0.000000e+00> : vector<2x384xf32>
    %6 = tpu.matmul %4, %5, %cst {dimension_numbers = #tpu.dot_dimension_numbers<[1], [0], [0], [1], [0, 0, 1, 1], [], []>} : vector<2x384xbf16>, vector<384x384xbf16>, vector<2x384xf32> -> vector<2x384xf32>
    %7 = math.tanh %6 : vector<2x384xf32>
    %8 = arith.addf %3, %7 : vector<2x384xf32>
    %9 = arith.truncf %8 : vector<2x384xf32> to vector<2x384xbf16>
    %c0_7 = arith.constant 0 : index
    %c0_8 = arith.constant 0 : index
    %10 = vector.load %arg4[%c0_7, %c0_8] : memref<384x256xbf16, #tpu.memory_space<vmem>>, vector<384x256xbf16>
    %cst_9 = arith.constant dense<0.000000e+00> : vector<2x256xf32>
    %11 = tpu.matmul %9, %10, %cst_9 {dimension_numbers = #tpu.dot_dimension_numbers<[1], [0], [0], [1], [0, 0, 1, 1], [], []>} : vector<2x384xbf16>, vector<384x256xbf16>, vector<2x256xf32> -> vector<2x256xf32>
    %c0_10 = arith.constant 0 : index
    %c0_11 = arith.constant 0 : index
    %12 = vector.load %arg5[%c0_10, %c0_11] : memref<1x256xf32, #tpu.memory_space<vmem>>, vector<1x256xf32>
    %13 = vector.broadcast %12 : vector<1x256xf32> to vector<2x256xf32>
    %14 = arith.addf %11, %13 : vector<2x256xf32>
    %c0_12 = arith.constant 0 : index
    %c0_13 = arith.constant 0 : index
    %15 = vector.load %arg6[%c0_12, %c0_13] : memref<1x256xf32, #tpu.memory_space<vmem>>, vector<1x256xf32>
    %cst_14 = arith.constant 0.000000e+00 : f32
    %16 = vector.broadcast %cst_14 : f32 to vector<2x256xf32>
    %17 = arith.cmpf oge, %14, %16 : vector<2x256xf32>
    %18 = vector.broadcast %15 : vector<1x256xf32> to vector<2x256xf32>
    %19 = arith.mulf %14, %18 : vector<2x256xf32>
    %20 = arith.select %17, %14, %19 : vector<2x256xi1>, vector<2x256xf32>
    %21 = arith.truncf %20 : vector<2x256xf32> to vector<2x256xbf16>
    %c0_15 = arith.constant 0 : index
    %c0_16 = arith.constant 0 : index
    %22 = vector.load %arg7[%c0_15, %c0_16] : memref<256x128xbf16, #tpu.memory_space<vmem>>, vector<256x128xbf16>
    %cst_17 = arith.constant dense<0.000000e+00> : vector<2x128xf32>
    %23 = tpu.matmul %21, %22, %cst_17 {dimension_numbers = #tpu.dot_dimension_numbers<[1], [0], [0], [1], [0, 0, 1, 1], [], []>} : vector<2x256xbf16>, vector<256x128xbf16>, vector<2x128xf32> -> vector<2x128xf32>
    %c0_18 = arith.constant 0 : index
    %c0_19 = arith.constant 0 : index
    %24 = vector.load %arg8[%c0_18, %c0_19] : memref<1x128xf32, #tpu.memory_space<vmem>>, vector<1x128xf32>
    %25 = vector.broadcast %24 : vector<1x128xf32> to vector<2x128xf32>
    %26 = arith.addf %23, %25 : vector<2x128xf32>
    %c0_20 = arith.constant 0 : index
    %c0_21 = arith.constant 0 : index
    %27 = vector.load %arg9[%c0_20, %c0_21] : memref<1x128xf32, #tpu.memory_space<vmem>>, vector<1x128xf32>
    %cst_22 = arith.constant 0.000000e+00 : f32
    %28 = vector.broadcast %cst_22 : f32 to vector<2x128xf32>
    %29 = arith.cmpf oge, %26, %28 : vector<2x128xf32>
    %30 = vector.broadcast %27 : vector<1x128xf32> to vector<2x128xf32>
    %31 = arith.mulf %26, %30 : vector<2x128xf32>
    %32 = arith.select %29, %26, %31 : vector<2x128xi1>, vector<2x128xf32>
    %33 = arith.truncf %32 : vector<2x128xf32> to vector<2x128xbf16>
    %c0_23 = arith.constant 0 : index
    %c0_24 = arith.constant 0 : index
    %34 = vector.load %arg10[%c0_23, %c0_24] : memref<128x1xbf16, #tpu.memory_space<vmem>>, vector<128x1xbf16>
    %cst_25 = arith.constant dense<0.000000e+00> : vector<2x1xf32>
    %35 = tpu.matmul %33, %34, %cst_25 {dimension_numbers = #tpu.dot_dimension_numbers<[1], [0], [0], [1], [0, 0, 1, 1], [], []>} : vector<2x128xbf16>, vector<128x1xbf16>, vector<2x1xf32> -> vector<2x1xf32>
    %c0_26 = arith.constant 0 : index
    %c0_27 = arith.constant 0 : index
    %36 = vector.load %arg11[%c0_26, %c0_27] : memref<1x1xf32, #tpu.memory_space<vmem>>, vector<1x1xf32>
    %37 = vector.broadcast %36 : vector<1x1xf32> to vector<2x1xf32>
    %38 = arith.addf %35, %37 : vector<2x1xf32>
    %c0_28 = arith.constant 0 : index
    %c0_29 = arith.constant 0 : index
    %39 = vector.load %arg12[%c0_28, %c0_29] : memref<2x1xf32, #tpu.memory_space<vmem>>, vector<2x1xf32>
    tpu.vector_store %arg12[%c0_28, %c0_29], %38 {strides = array<i32>} : memref<2x1xf32, #tpu.memory_space<vmem>>, vector<2x1xf32>,
    return
  }
}

</mosaic_0001>

<llo_original>
// kernel: forward.7
$region0: #{forward.7}
  #allocation0 [shape = 'u32[]', space=smem, size = 0x4, offset = 0x4, fixed_abs, tag = 'smem constant byte address 0x4 - core index']
  #allocation1 [shape = 'u32[144,128]{1,0:T(1,128)}', space=vmem, size = 0x12000, scoped, tag = 'internal scratch']
  #allocation2 [shape = 'f32[1,1]{1,0:T(1,128)S(1)}', space=vmem, size = 0x200, scoped, tag = 'scoped memory for forward.7']
  %s0 = inlined_call_operand.vmem [shape: f32[2,128], index: 0, kind: input, shape index: {}]
  %s1 = inlined_call_operand.vmem [shape: f32[2,128], index: 1, kind: input, shape index: {}]
  %s2 = inlined_call_operand.vmem [shape: f32[2,128], index: 2, kind: input, shape index: {}]
  %s3 = inlined_call_operand.vmem [shape: bf16[384,384], index: 3, kind: input, shape index: {}]
  %s4 = inlined_call_operand.vmem [shape: bf16[384,256], index: 4, kind: input, shape index: {}]
  %s5 = inlined_call_operand.vmem [shape: f32[1,256], index: 5, kind: input, shape index: {}]
  %s6 = inlined_call_operand.vmem [shape: f32[1,256], index: 6, kind: input, shape index: {}]
  %s7 = inlined_call_operand.vmem [shape: bf16[256,128], index: 7, kind: input, shape index: {}]
  %s8 = inlined_call_operand.vmem [shape: f32[1,128], index: 8, kind: input, shape index: {}]
  %s9 = inlined_call_operand.vmem [shape: f32[1,128], index: 9, kind: input, shape index: {}]
  %s10 = inlined_call_operand.vmem [shape: bf16[128,1], index: 10, kind: input, shape index: {}]
  %s11 = inlined_call_operand.<no memory space> [shape: f32[1,1], index: 11, kind: input, shape index: {}]
  %s12 = inlined_call_operand.vmem [shape: f32[2,1], index: 12, kind: output, shape index: {}]
  %s13 = sld [smem:[#allocation0]]
  $region58: #{forward.7} parent=0
    _
  %s15 = ssub.s32 1, %s13
  %s16 = scalar_select 0, %s15, %s13
  %v17 = vstv %s11
  %18 = vst [vmem:[#allocation2] sm:$0x1] %v17
  // Predicated region
  $region2: #{forward.7} parent=0 // pred_check
    _
  $region3: #{forward.7} parent=0 // pred_check_branch
    %20 = sbr.rel (0) target = $region5
  $region4: #{forward.7} parent=0 // pred_region
    _
  $region5: #{forward.7} parent=0 // pred_fallthru
    _
  // Predicated region
  $region6: #{forward.7} parent=0 // pred_check
    _
  $region7: #{forward.7} parent=0 // pred_check_branch
    %22 = sbr.rel (0) target = $region9
  $region8: #{forward.7} parent=0 // pred_region
    _
  $region9: #{forward.7} parent=0 // pred_fallthru
    _
  // Predicated region
  $region10: #{forward.7} parent=0 // pred_check
    _
  $region11: #{forward.7} parent=0 // pred_check_branch
    %24 = sbr.rel (0) target = $region13
  $region12: #{forward.7} parent=0 // pred_region
    _
  $region13: #{forward.7} parent=0 // pred_fallthru
    _
  // Predicated region
  $region14: #{forward.7} parent=0 // pred_check
    _
  $region15: #{forward.7} parent=0 // pred_check_branch
    %26 = sbr.rel (0) target = $region17
  $region16: #{forward.7} parent=0 // pred_region
    _
  $region17: #{forward.7} parent=0 // pred_fallthru
    _
  // Predicated region
  $region18: #{forward.7} parent=0 // pred_check
    _
  $region19: #{forward.7} parent=0 // pred_check_branch
    %28 = sbr.rel (0) target = $region21
  $region20: #{forward.7} parent=0 // pred_region
    _
  $region21: #{forward.7} parent=0 // pred_fallthru
    _
  // Predicated region
  $region22: #{forward.7} parent=0 // pred_check
    _
  $region23: #{forward.7} parent=0 // pred_check_branch
    %30 = sbr.rel (0) target = $region25
  $region24: #{forward.7} parent=0 // pred_region
    _
  $region25: #{forward.7} parent=0 // pred_fallthru
    _
  // Predicated region
  $region26: #{forward.7} parent=0 // pred_check
    _
  $region27: #{forward.7} parent=0 // pred_check_branch
    %32 = sbr.rel (0) target = $region29
  $region28: #{forward.7} parent=0 // pred_region
    _
  $region29: #{forward.7} parent=0 // pred_fallthru
    _
  // Predicated region
  $region30: #{forward.7} parent=0 // pred_check
    _
  $region31: #{forward.7} parent=0 // pred_check_branch
    %34 = sbr.rel (0) target = $region33
  $region32: #{forward.7} parent=0 // pred_region
    _
  $region33: #{forward.7} parent=0 // pred_fallthru
    _
  // Predicated region
  $region34: #{forward.7} parent=0 // pred_check
    _
  $region35: #{forward.7} parent=0 // pred_check_branch
    %36 = sbr.rel (0) target = $region37
  $region36: #{forward.7} parent=0 // pred_region
    _
  $region37: #{forward.7} parent=0 // pred_fallthru
    _
  // Predicated region
  $region38: #{forward.7} parent=0 // pred_check
    _
  $region39: #{forward.7} parent=0 // pred_check_branch
    %38 = sbr.rel (0) target = $region41
  $region40: #{forward.7} parent=0 // pred_region
    _
  $region41: #{forward.7} parent=0 // pred_fallthru
    _
  // Predicated region
  $region42: #{forward.7} parent=0 // pred_check
    _
  $region43: #{forward.7} parent=0 // pred_check_branch
    %40 = sbr.rel (0) target = $region45
  $region44: #{forward.7} parent=0 // pred_region
    _
  $region45: #{forward.7} parent=0 // pred_fallthru
    _
  // Predicated region
  $region46: #{forward.7} parent=0 // pred_check
    _
  $region47: #{forward.7} parent=0 // pred_check_branch
    %42 = sbr.rel (0) target = $region49
  $region48: #{forward.7} parent=0 // pred_region
    _
  $region49: #{forward.7} parent=0 // pred_fallthru
    _
  %v44 = vld [vmem:[%s0] sm:$0x3]
  %v45 = vld [vmem:[%s1] sm:$0x3]
  %v46 = vld [vmem:[%s2] sm:$0x3]
  %v47 = vpack.c.bf16 %v44, %v44
  %v48 = vpack.c.bf16 %v45, %v45
  %v49 = vpack.c.bf16 %v46, %v46
  %v50 = vld [vmem:[%s3] sm:$0xff]
  %v51 = vld [vmem:[%s3 + $0x8] sm:$0xf]
  %v52 = vld [vmem:[%s3 + $0xc] sm:$0xff]
  %v53 = vld [vmem:[%s3 + $0x14] sm:$0xf]
  %v54 = vld [vmem:[%s3 + $0x18] sm:$0xff]
  %v55 = vld [vmem:[%s3 + $0x20] sm:$0xf]
  %v56 = vld [vmem:[%s3 + $0x24] sm:$0xff]
  %v57 = vld [vmem:[%s3 + $0x2c] sm:$0xf]
  %v58 = vld [vmem:[%s3 + $0x30] sm:$0xff]
  %v59 = vld [vmem:[%s3 + $0x38] sm:$0xf]
  %v60 = vld [vmem:[%s3 + $0x3c] sm:$0xff]
  %v61 = vld [vmem:[%s3 + $0x44] sm:$0xf]
  %v62 = vld [vmem:[%s3 + $0x48] sm:$0xff]
  %v63 = vld [vmem:[%s3 + $0x50] sm:$0xf]
  %v64 = vld [vmem:[%s3 + $0x54] sm:$0xff]
  %v65 = vld [vmem:[%s3 + $0x5c] sm:$0xf]
  %v66 = vld [vmem:[%s3 + $0x60] sm:$0xff]
  %v67 = vld [vmem:[%s3 + $0x68] sm:$0xf]
  %v68 = vld [vmem:[%s3 + $0x6c] sm:$0xff]
  %v69 = vld [vmem:[%s3 + $0x74] sm:$0xf]
  %v70 = vld [vmem:[%s3 + $0x78] sm:$0xff]
  %v71 = vld [vmem:[%s3 + $0x80] sm:$0xf]
  %v72 = vld [vmem:[%s3 + $0x84] sm:$0xff]
  %v73 = vld [vmem:[%s3 + $0x8c] sm:$0xf]
  %v74 = vld [vmem:[%s3 + $0x90] sm:$0xff]
  %v75 = vld [vmem:[%s3 + $0x98] sm:$0xf]
  %v76 = vld [vmem:[%s3 + $0x9c] sm:$0xff]
  %v77 = vld [vmem:[%s3 + $0xa4] sm:$0xf]
  %v78 = vld [vmem:[%s3 + $0xa8] sm:$0xff]
  %v79 = vld [vmem:[%s3 + $0xb0] sm:$0xf]
  %v80 = vld [vmem:[%s3 + $0xb4] sm:$0xff]
  %v81 = vld [vmem:[%s3 + $0xbc] sm:$0xf]
  %v82 = vld [vmem:[%s3 + $0xc0] sm:$0xff]
  %v83 = vld [vmem:[%s3 + $0xc8] sm:$0xf]
  %v84 = vld [vmem:[%s3 + $0xcc] sm:$0xff]
  %v85 = vld [vmem:[%s3 + $0xd4] sm:$0xf]
  %v86 = vld [vmem:[%s3 + $0xd8] sm:$0xff]
  %v87 = vld [vmem:[%s3 + $0xe0] sm:$0xf]
  %v88 = vld [vmem:[%s3 + $0xe4] sm:$0xff]
  %v89 = vld [vmem:[%s3 + $0xec] sm:$0xf]
  %v90 = vld [vmem:[%s3 + $0xf0] sm:$0xff]
  %v91 = vld [vmem:[%s3 + $0xf8] sm:$0xf]
  %v92 = vld [vmem:[%s3 + $0xfc] sm:$0xff]
  %v93 = vld [vmem:[%s3 + $0x104] sm:$0xf]
  %v94 = vld [vmem:[%s3 + $0x108] sm:$0xff]
  %v95 = vld [vmem:[%s3 + $0x110] sm:$0xf]
  %v96 = vld [vmem:[%s3 + $0x114] sm:$0xff]
  %v97 = vld [vmem:[%s3 + $0x11c] sm:$0xf]
  %v98 = vld [vmem:[%s3 + $0x120] sm:$0xff]
  %v99 = vld [vmem:[%s3 + $0x128] sm:$0xf]
  %v100 = vld [vmem:[%s3 + $0x12c] sm:$0xff]
  %v101 = vld [vmem:[%s3 + $0x134] sm:$0xf]
  %v102 = vld [vmem:[%s3 + $0x138] sm:$0xff]
  %v103 = vld [vmem:[%s3 + $0x140] sm:$0xf]
  %v104 = vld [vmem:[%s3 + $0x144] sm:$0xff]
  %v105 = vld [vmem:[%s3 + $0x14c] sm:$0xf]
  %v106 = vld [vmem:[%s3 + $0x150] sm:$0xff]
  %v107 = vld [vmem:[%s3 + $0x158] sm:$0xf]
  %v108 = vld [vmem:[%s3 + $0x15c] sm:$0xff]
  %v109 = vld [vmem:[%s3 + $0x164] sm:$0xf]
  %v110 = vld [vmem:[%s3 + $0x168] sm:$0xff]
  %v111 = vld [vmem:[%s3 + $0x170] sm:$0xf]
  %v112 = vld [vmem:[%s3 + $0x174] sm:$0xff]
  %v113 = vld [vmem:[%s3 + $0x17c] sm:$0xf]
  %v114 = vld [vmem:[%s3 + $0x180] sm:$0xff]
  %v115 = vld [vmem:[%s3 + $0x188] sm:$0xf]
  %v116 = vld [vmem:[%s3 + $0x18c] sm:$0xff]
  %v117 = vld [vmem:[%s3 + $0x194] sm:$0xf]
  %v118 = vld [vmem:[%s3 + $0x198] sm:$0xff]
  %v119 = vld [vmem:[%s3 + $0x1a0] sm:$0xf]
  %v120 = vld [vmem:[%s3 + $0x1a4] sm:$0xff]
  %v121 = vld [vmem:[%s3 + $0x1ac] sm:$0xf]
  %v122 = vld [vmem:[%s3 + $0x1b0] sm:$0xff]
  %v123 = vld [vmem:[%s3 + $0x1b8] sm:$0xf]
  %v124 = vld [vmem:[%s3 + $0x1bc] sm:$0xff]
  %v125 = vld [vmem:[%s3 + $0x1c4] sm:$0xf]
  %v126 = vld [vmem:[%s3 + $0x1c8] sm:$0xff]
  %v127 = vld [vmem:[%s3 + $0x1d0] sm:$0xf]
  %v128 = vld [vmem:[%s3 + $0x1d4] sm:$0xff]
  %v129 = vld [vmem:[%s3 + $0x1dc] sm:$0xf]
  %v130 = vld [vmem:[%s3 + $0x1e0] sm:$0xff]
  %v131 = vld [vmem:[%s3 + $0x1e8] sm:$0xf]
  %v132 = vld [vmem:[%s3 + $0x1ec] sm:$0xff]
  %v133 = vld [vmem:[%s3 + $0x1f4] sm:$0xf]
  %v134 = vld [vmem:[%s3 + $0x1f8] sm:$0xff]
  %v135 = vld [vmem:[%s3 + $0x200] sm:$0xf]
  %v136 = vld [vmem:[%s3 + $0x204] sm:$0xff]
  %v137 = vld [vmem:[%s3 + $0x20c] sm:$0xf]
  %v138 = vld [vmem:[%s3 + $0x210] sm:$0xff]
  %v139 = vld [vmem:[%s3 + $0x218] sm:$0xf]
  %v140 = vld [vmem:[%s3 + $0x21c] sm:$0xff]
  %v141 = vld [vmem:[%s3 + $0x224] sm:$0xf]
  %v142 = vld [vmem:[%s3 + $0x228] sm:$0xff]
  %v143 = vld [vmem:[%s3 + $0x230] sm:$0xf]
  %v144 = vld [vmem:[%s3 + $0x234] sm:$0xff]
  %v145 = vld [vmem:[%s3 + $0x23c] sm:$0xf]
  %v242 = vunpack.c.l.b16 %v50
  %v243 = vunpack.c.h.b16 %v50
  %v244 = vunpack.c.l.b16 %v51
  %v245 = vunpack.c.l.b16 %v52
  %v246 = vunpack.c.h.b16 %v52
  %v247 = vunpack.c.l.b16 %v53
  %v248 = vunpack.c.l.b16 %v54
  %v249 = vunpack.c.h.b16 %v54
  %v250 = vunpack.c.l.b16 %v55
  %v251 = vunpack.c.l.b16 %v56
  %v252 = vunpack.c.h.b16 %v56
  %v253 = vunpack.c.l.b16 %v57
  %v254 = vunpack.c.l.b16 %v58
  %v255 = vunpack.c.h.b16 %v58
  %v256 = vunpack.c.l.b16 %v59
  %v257 = vunpack.c.l.b16 %v60
  %v258 = vunpack.c.h.b16 %v60
  %v259 = vunpack.c.l.b16 %v61
  %v260 = vunpack.c.l.b16 %v62
  %v261 = vunpack.c.h.b16 %v62
  %v262 = vunpack.c.l.b16 %v63
  %v263 = vunpack.c.l.b16 %v64
  %v264 = vunpack.c.h.b16 %v64
  %v265 = vunpack.c.l.b16 %v65
  %v266 = vunpack.c.l.b16 %v66
  %v267 = vunpack.c.h.b16 %v66
  %v268 = vunpack.c.l.b16 %v67
  %v269 = vunpack.c.l.b16 %v68
  %v270 = vunpack.c.h.b16 %v68
  %v271 = vunpack.c.l.b16 %v69
  %v272 = vunpack.c.l.b16 %v70
  %v273 = vunpack.c.h.b16 %v70
  %v274 = vunpack.c.l.b16 %v71
  %v275 = vunpack.c.l.b16 %v72
  %v276 = vunpack.c.h.b16 %v72
  %v277 = vunpack.c.l.b16 %v73
  %v278 = vunpack.c.l.b16 %v74
  %v279 = vunpack.c.h.b16 %v74
  %v280 = vunpack.c.l.b16 %v75
  %v281 = vunpack.c.l.b16 %v76
  %v282 = vunpack.c.h.b16 %v76
  %v283 = vunpack.c.l.b16 %v77
  %v284 = vunpack.c.l.b16 %v78
  %v285 = vunpack.c.h.b16 %v78
  %v286 = vunpack.c.l.b16 %v79
  %v287 = vunpack.c.l.b16 %v80
  %v288 = vunpack.c.h.b16 %v80
  %v289 = vunpack.c.l.b16 %v81
  %v290 = vunpack.c.l.b16 %v82
  %v291 = vunpack.c.h.b16 %v82
  %v292 = vunpack.c.l.b16 %v83
  %v293 = vunpack.c.l.b16 %v84
  %v294 = vunpack.c.h.b16 %v84
  %v295 = vunpack.c.l.b16 %v85
  %v296 = vunpack.c.l.b16 %v86
  %v297 = vunpack.c.h.b16 %v86
  %v298 = vunpack.c.l.b16 %v87
  %v299 = vunpack.c.l.b16 %v88
  %v300 = vunpack.c.h.b16 %v88
  %v301 = vunpack.c.l.b16 %v89
  %v302 = vunpack.c.l.b16 %v90
  %v303 = vunpack.c.h.b16 %v90
  %v304 = vunpack.c.l.b16 %v91
  %v305 = vunpack.c.l.b16 %v92
  %v306 = vunpack.c.h.b16 %v92
  %v307 = vunpack.c.l.b16 %v93
  %v308 = vunpack.c.l.b16 %v94
  %v309 = vunpack.c.h.b16 %v94
  %v310 = vunpack.c.l.b16 %v95
  %v311 = vunpack.c.l.b16 %v96
  %v312 = vunpack.c.h.b16 %v96
  %v313 = vunpack.c.l.b16 %v97
  %v314 = vunpack.c.l.b16 %v98
  %v315 = vunpack.c.h.b16 %v98
  %v316 = vunpack.c.l.b16 %v99
  %v317 = vunpack.c.l.b16 %v100
  %v318 = vunpack.c.h.b16 %v100
  %v319 = vunpack.c.l.b16 %v101
  %v320 = vunpack.c.l.b16 %v102
  %v321 = vunpack.c.h.b16 %v102
  %v322 = vunpack.c.l.b16 %v103
  %v323 = vunpack.c.l.b16 %v104
  %v324 = vunpack.c.h.b16 %v104
  %v325 = vunpack.c.l.b16 %v105
  %v326 = vunpack.c.l.b16 %v106
  %v327 = vunpack.c.h.b16 %v106
  %v328 = vunpack.c.l.b16 %v107
  %v329 = vunpack.c.l.b16 %v108
  %v330 = vunpack.c.h.b16 %v108
  %v331 = vunpack.c.l.b16 %v109
  %v332 = vunpack.c.l.b16 %v110
  %v333 = vunpack.c.h.b16 %v110
  %v334 = vunpack.c.l.b16 %v111
  %v335 = vunpack.c.l.b16 %v112
  %v336 = vunpack.c.h.b16 %v112
  %v337 = vunpack.c.l.b16 %v113
  %v338 = vunpack.c.l.b16 %v114
  %v339 = vunpack.c.h.b16 %v114
  %v340 = vunpack.c.l.b16 %v115
  %v341 = vunpack.c.l.b16 %v116
  %v342 = vunpack.c.h.b16 %v116
  %v343 = vunpack.c.l.b16 %v117
  %v344 = vunpack.c.l.b16 %v118
  %v345 = vunpack.c.h.b16 %v118
  %v346 = vunpack.c.l.b16 %v119
  %v347 = vunpack.c.l.b16 %v120
  %v348 = vunpack.c.h.b16 %v120
  %v349 = vunpack.c.l.b16 %v121
  %v350 = vunpack.c.l.b16 %v122
  %v351 = vunpack.c.h.b16 %v122
  %v352 = vunpack.c.l.b16 %v123
  %v353 = vunpack.c.l.b16 %v124
  %v354 = vunpack.c.h.b16 %v124
  %v355 = vunpack.c.l.b16 %v125
  %v356 = vunpack.c.l.b16 %v126
  %v357 = vunpack.c.h.b16 %v126
  %v358 = vunpack.c.l.b16 %v127
  %v359 = vunpack.c.l.b16 %v128
  %v360 = vunpack.c.h.b16 %v128
  %v361 = vunpack.c.l.b16 %v129
  %v362 = vunpack.c.l.b16 %v130
  %v363 = vunpack.c.h.b16 %v130
  %v364 = vunpack.c.l.b16 %v131
  %v365 = vunpack.c.l.b16 %v132
  %v366 = vunpack.c.h.b16 %v132
  %v367 = vunpack.c.l.b16 %v133
  %v368 = vunpack.c.l.b16 %v134
  %v369 = vunpack.c.h.b16 %v134
  %v370 = vunpack.c.l.b16 %v135
  %v371 = vunpack.c.l.b16 %v136
  %v372 = vunpack.c.h.b16 %v136
  %v373 = vunpack.c.l.b16 %v137
  %v374 = vunpack.c.l.b16 %v138
  %v375 = vunpack.c.h.b16 %v138
  %v376 = vunpack.c.l.b16 %v139
  %v377 = vunpack.c.l.b16 %v140
  %v378 = vunpack.c.h.b16 %v140
  %v379 = vunpack.c.l.b16 %v141
  %v380 = vunpack.c.l.b16 %v142
  %v381 = vunpack.c.h.b16 %v142
  %v382 = vunpack.c.l.b16 %v143
  %v383 = vunpack.c.l.b16 %v144
  %v384 = vunpack.c.h.b16 %v144
  %v385 = vunpack.c.l.b16 %v145
  %v386 = vpack.c.b16 %v245, %v242
  %v387 = vpack.c.b16 %v246, %v243
  %v388 = vpack.c.b16 %v247, %v244
  %v389 = vpack.c.b16 %v251, %v248
  %v390 = vpack.c.b16 %v252, %v249
  %v391 = vpack.c.b16 %v253, %v250
  %v392 = vpack.c.b16 %v257, %v254
  %v393 = vpack.c.b16 %v258, %v255
  %v394 = vpack.c.b16 %v259, %v256
  %v395 = vpack.c.b16 %v263, %v260
  %v396 = vpack.c.b16 %v264, %v261
  %v397 = vpack.c.b16 %v265, %v262
  %v398 = vpack.c.b16 %v269, %v266
  %v399 = vpack.c.b16 %v270, %v267
  %v400 = vpack.c.b16 %v271, %v268
  %v401 = vpack.c.b16 %v275, %v272
  %v402 = vpack.c.b16 %v276, %v273
  %v403 = vpack.c.b16 %v277, %v274
  %v404 = vpack.c.b16 %v281, %v278
  %v405 = vpack.c.b16 %v282, %v279
  %v406 = vpack.c.b16 %v283, %v280
  %v407 = vpack.c.b16 %v287, %v284
  %v408 = vpack.c.b16 %v288, %v285
  %v409 = vpack.c.b16 %v289, %v286
  %v410 = vpack.c.b16 %v293, %v290
  %v411 = vpack.c.b16 %v294, %v291
  %v412 = vpack.c.b16 %v295, %v292
  %v413 = vpack.c.b16 %v299, %v296
  %v414 = vpack.c.b16 %v300, %v297
  %v415 = vpack.c.b16 %v301, %v298
  %v416 = vpack.c.b16 %v305, %v302
  %v417 = vpack.c.b16 %v306, %v303
  %v418 = vpack.c.b16 %v307, %v304
  %v419 = vpack.c.b16 %v311, %v308
  %v420 = vpack.c.b16 %v312, %v309
  %v421 = vpack.c.b16 %v313, %v310
  %v422 = vpack.c.b16 %v317, %v314
  %v423 = vpack.c.b16 %v318, %v315
  %v424 = vpack.c.b16 %v319, %v316
  %v425 = vpack.c.b16 %v323, %v320
  %v426 = vpack.c.b16 %v324, %v321
  %v427 = vpack.c.b16 %v325, %v322
  %v428 = vpack.c.b16 %v329, %v326
  %v429 = vpack.c.b16 %v330, %v327
  %v430 = vpack.c.b16 %v331, %v328
  %v431 = vpack.c.b16 %v335, %v332
  %v432 = vpack.c.b16 %v336, %v333
  %v433 = vpack.c.b16 %v337, %v334
  %v434 = vpack.c.b16 %v341, %v338
  %v435 = vpack.c.b16 %v342, %v339
  %v436 = vpack.c.b16 %v343, %v340
  %v437 = vpack.c.b16 %v347, %v344
  %v438 = vpack.c.b16 %v348, %v345
  %v439 = vpack.c.b16 %v349, %v346
  %v440 = vpack.c.b16 %v353, %v350
  %v441 = vpack.c.b16 %v354, %v351
  %v442 = vpack.c.b16 %v355, %v352
  %v443 = vpack.c.b16 %v359, %v356
  %v444 = vpack.c.b16 %v360, %v357
  %v445 = vpack.c.b16 %v361, %v358
  %v446 = vpack.c.b16 %v365, %v362
  %v447 = vpack.c.b16 %v366, %v363
  %v448 = vpack.c.b16 %v367, %v364
  %v449 = vpack.c.b16 %v371, %v368
  %v450 = vpack.c.b16 %v372, %v369
  %v451 = vpack.c.b16 %v373, %v370
  %v452 = vpack.c.b16 %v377, %v374
  %v453 = vpack.c.b16 %v378, %v375
  %v454 = vpack.c.b16 %v379, %v376
  %v455 = vpack.c.b16 %v383, %v380
  %v456 = vpack.c.b16 %v384, %v381
  %v457 = vpack.c.b16 %v385, %v382
  %530 = vmatprep.subr.bf16.mxu0 %v408
  %531 = vmatpush1.bf16.msra.mxu0 %v407
  %532 = vmatprep.subr.bf16.mxu0 %v405
  %533 = vmatpush1.bf16.msra.mxu0 %v404
  %534 = vmatprep.subr.bf16.mxu0 %v402
  %535 = vmatpush1.bf16.msra.mxu0 %v401
  %536 = vmatprep.subr.bf16.mxu0 %v399
  %537 = vmatpush1.bf16.msra.mxu0 %v398
  %538 = vmatprep.subr.bf16.mxu0 %v396
  %539 = vmatpush1.bf16.msra.mxu0 %v395
  %540 = vmatprep.subr.bf16.mxu0 %v393
  %541 = vmatpush1.bf16.msra.mxu0 %v392
  %542 = vmatprep.subr.bf16.mxu0 %v390
  %543 = vmatpush1.bf16.msra.mxu0 %v389
  %544 = vmatprep.subr.bf16.mxu0 %v387
  %545 = vmatpush1.bf16.msra.mxu0 %v386
  %546 = vmatprep.subr.bf16.mxu0 %v432
  %547 = vmatpush2.bf16.msra.mxu0 %v431
  %548 = vmatprep.subr.bf16.mxu0 %v429
  %549 = vmatpush2.bf16.msra.mxu0 %v428
  %550 = vmatprep.subr.bf16.mxu0 %v426
  %551 = vmatpush2.bf16.msra.mxu0 %v425
  %552 = vmatprep.subr.bf16.mxu0 %v423
  %553 = vmatpush2.bf16.msra.mxu0 %v422
  %554 = vmatprep.subr.bf16.mxu0 %v420
  %555 = vmatpush2.bf16.msra.mxu0 %v419
  %556 = vmatprep.subr.bf16.mxu0 %v417
  %557 = vmatpush2.bf16.msra.mxu0 %v416
  %558 = vmatprep.subr.bf16.mxu0 %v414
  %559 = vmatpush2.bf16.msra.mxu0 %v413
  %560 = vmatprep.subr.bf16.mxu0 %v411
  %561 = vmatpush2.bf16.msra.mxu0 %v410
  %562 = vmatprep.mubr.bf16.mxu0 %v48
  %563 = vmatmul.mubr.bf16.gmra.mxu0 %v47
  %v564 = vpop.f32.mrf.mxu0
  %v565 = vadd.f32 0.0, %v564
  %v566 = vpop.f32.mrf.mxu0
  %v567 = vadd.f32 0.0, %v566
  %v568 = vpop.f32.mrf.mxu0
  %v569 = vpop.f32.mrf.mxu0
  %570 = vdwg.mxu0
  %571 = vmatprep.subr.bf16.mxu0 %v456
  %572 = vmatpush1.bf16.msra.mxu0 %v455
  %573 = vmatprep.subr.bf16.mxu0 %v453
  %574 = vmatpush1.bf16.msra.mxu0 %v452
  %575 = vmatprep.subr.bf16.mxu0 %v450
  %576 = vmatpush1.bf16.msra.mxu0 %v449
  %577 = vmatprep.subr.bf16.mxu0 %v447
  %578 = vmatpush1.bf16.msra.mxu0 %v446
  %579 = vmatprep.subr.bf16.mxu0 %v444
  %580 = vmatpush1.bf16.msra.mxu0 %v443
  %581 = vmatprep.subr.bf16.mxu0 %v441
  %582 = vmatpush1.bf16.msra.mxu0 %v440
  %583 = vmatprep.subr.bf16.mxu0 %v438
  %584 = vmatpush1.bf16.msra.mxu0 %v437
  %585 = vmatprep.subr.bf16.mxu0 %v435
  %586 = vmatpush1.bf16.msra.mxu0 %v434
  %587 = vmatprep.subr.bf16.mxu0 0
  %588 = vmatpush2.bf16.msra.mxu0 0
  %589 = vmatprep.subr.bf16.mxu0 0
  %590 = vmatpush2.bf16.msra.mxu0 0
  %591 = vmatprep.subr.bf16.mxu0 0
  %592 = vmatpush2.bf16.msra.mxu0 0
  %593 = vmatprep.subr.bf16.mxu0 0
  %594 = vmatpush2.bf16.msra.mxu0 0
  %595 = vmatprep.subr.bf16.mxu0 0
  %596 = vmatpush2.bf16.msra.mxu0 0
  %597 = vmatprep.subr.bf16.mxu0 0
  %598 = vmatpush2.bf16.msra.mxu0 0
  %599 = vmatprep.subr.bf16.mxu0 0
  %600 = vmatpush2.bf16.msra.mxu0 0
  %601 = vmatprep.subr.bf16.mxu0 0
  %602 = vmatpush2.bf16.msra.mxu0 0
  %603 = vmatprep.mubr.bf16.mxu0 0
  %604 = vmatmul.mubr.bf16.gmra.mxu0 %v49
  %v605 = vpop.f32.mrf.mxu0
  %v606 = vadd.f32 %v565, %v605
  %v607 = vpop.f32.mrf.mxu0
  %v608 = vadd.f32 %v567, %v607
  %v609 = vpop.f32.mrf.mxu0
  %v610 = vpop.f32.mrf.mxu0
  %611 = vdwg.mxu0
  %612 = vmatprep.subr.bf16.mxu0 0
  %613 = vmatpush1.bf16.msra.mxu0 %v409
  %614 = vmatprep.subr.bf16.mxu0 0
  %615 = vmatpush1.bf16.msra.mxu0 %v406
  %616 = vmatprep.subr.bf16.mxu0 0
  %617 = vmatpush1.bf16.msra.mxu0 %v403
  %618 = vmatprep.subr.bf16.mxu0 0
  %619 = vmatpush1.bf16.msra.mxu0 %v400
  %620 = vmatprep.subr.bf16.mxu0 0
  %621 = vmatpush1.bf16.msra.mxu0 %v397
  %622 = vmatprep.subr.bf16.mxu0 0
  %623 = vmatpush1.bf16.msra.mxu0 %v394
  %624 = vmatprep.subr.bf16.mxu0 0
  %625 = vmatpush1.bf16.msra.mxu0 %v391
  %626 = vmatprep.subr.bf16.mxu0 0
  %627 = vmatpush1.bf16.msra.mxu0 %v388
  %628 = vmatprep.subr.bf16.mxu0 0
  %629 = vmatpush2.bf16.msra.mxu0 %v433
  %630 = vmatprep.subr.bf16.mxu0 0
  %631 = vmatpush2.bf16.msra.mxu0 %v430
  %632 = vmatprep.subr.bf16.mxu0 0
  %633 = vmatpush2.bf16.msra.mxu0 %v427
  %634 = vmatprep.subr.bf16.mxu0 0
  %635 = vmatpush2.bf16.msra.mxu0 %v424
  %636 = vmatprep.subr.bf16.mxu0 0
  %637 = vmatpush2.bf16.msra.mxu0 %v421
  %638 = vmatprep.subr.bf16.mxu0 0
  %639 = vmatpush2.bf16.msra.mxu0 %v418
  %640 = vmatprep.subr.bf16.mxu0 0
  %641 = vmatpush2.bf16.msra.mxu0 %v415
  %642 = vmatprep.subr.bf16.mxu0 0
  %643 = vmatpush2.bf16.msra.mxu0 %v412
  %644 = vmatprep.mubr.bf16.mxu0 %v48
  %645 = vmatmul.mubr.bf16.gmra.mxu0 %v47
  %v646 = vpop.f32.mrf.mxu0
  %v647 = vadd.f32 0.0, %v646
  %v648 = vpop.f32.mrf.mxu0
  %v649 = vpop.f32.mrf.mxu0
  %v650 = vpop.f32.mrf.mxu0
  %651 = vdwg.mxu0
  %652 = vmatprep.subr.bf16.mxu0 0
  %653 = vmatpush1.bf16.msra.mxu0 %v457
  %654 = vmatprep.subr.bf16.mxu0 0
  %655 = vmatpush1.bf16.msra.mxu0 %v454
  %656 = vmatprep.subr.bf16.mxu0 0
  %657 = vmatpush1.bf16.msra.mxu0 %v451
  %658 = vmatprep.subr.bf16.mxu0 0
  %659 = vmatpush1.bf16.msra.mxu0 %v448
  %660 = vmatprep.subr.bf16.mxu0 0
  %661 = vmatpush1.bf16.msra.mxu0 %v445
  %662 = vmatprep.subr.bf16.mxu0 0
  %663 = vmatpush1.bf16.msra.mxu0 %v442
  %664 = vmatprep.subr.bf16.mxu0 0
  %665 = vmatpush1.bf16.msra.mxu0 %v439
  %666 = vmatprep.subr.bf16.mxu0 0
  %667 = vmatpush1.bf16.msra.mxu0 %v436
  %668 = vmatprep.subr.bf16.mxu0 0
  %669 = vmatpush2.bf16.msra.mxu0 0
  %670 = vmatprep.subr.bf16.mxu0 0
  %671 = vmatpush2.bf16.msra.mxu0 0
  %672 = vmatprep.subr.bf16.mxu0 0
  %673 = vmatpush2.bf16.msra.mxu0 0
  %674 = vmatprep.subr.bf16.mxu0 0
  %675 = vmatpush2.bf16.msra.mxu0 0
  %676 = vmatprep.subr.bf16.mxu0 0
  %677 = vmatpush2.bf16.msra.mxu0 0
  %678 = vmatprep.subr.bf16.mxu0 0
  %679 = vmatpush2.bf16.msra.mxu0 0
  %680 = vmatprep.subr.bf16.mxu0 0
  %681 = vmatpush2.bf16.msra.mxu0 0
  %682 = vmatprep.subr.bf16.mxu0 0
  %683 = vmatpush2.bf16.msra.mxu0 0
  %684 = vmatprep.mubr.bf16.mxu0 0
  %685 = vmatmul.mubr.bf16.gmra.mxu0 %v49
  %v686 = vpop.f32.mrf.mxu0
  %v687 = vadd.f32 %v647, %v686
  %v688 = vpop.f32.mrf.mxu0
  %v689 = vpop.f32.mrf.mxu0
  %v690 = vpop.f32.mrf.mxu0
  %691 = vdwg.mxu0
  %v692 = vtanh.pop %v606
  %v693 = vtanh.pop %v608
  %v694 = vtanh.pop %v687
  %v695 = vadd.f32 %v44, %v692
  %v696 = vadd.f32 %v45, %v693
  %v697 = vadd.f32 %v46, %v694
  %v698 = vpack.c.bf16 %v695, %v695
  %v699 = vpack.c.bf16 %v696, %v696
  %v700 = vpack.c.bf16 %v697, %v697
  %v701 = vld [vmem:[%s4] sm:$0xff]
  %v702 = vld [vmem:[%s4 + $0x8] sm:$0xff]
  %v703 = vld [vmem:[%s4 + $0x10] sm:$0xff]
  %v704 = vld [vmem:[%s4 + $0x18] sm:$0xff]
  %v705 = vld [vmem:[%s4 + $0x20] sm:$0xff]
  %v706 = vld [vmem:[%s4 + $0x28] sm:$0xff]
  %v707 = vld [vmem:[%s4 + $0x30] sm:$0xff]
  %v708 = vld [vmem:[%s4 + $0x38] sm:$0xff]
  %v709 = vld [vmem:[%s4 + $0x40] sm:$0xff]
  %v710 = vld [vmem:[%s4 + $0x48] sm:$0xff]
  %v711 = vld [vmem:[%s4 + $0x50] sm:$0xff]
  %v712 = vld [vmem:[%s4 + $0x58] sm:$0xff]
  %v713 = vld [vmem:[%s4 + $0x60] sm:$0xff]
  %v714 = vld [vmem:[%s4 + $0x68] sm:$0xff]
  %v715 = vld [vmem:[%s4 + $0x70] sm:$0xff]
  %v716 = vld [vmem:[%s4 + $0x78] sm:$0xff]
  %v717 = vld [vmem:[%s4 + $0x80] sm:$0xff]
  %v718 = vld [vmem:[%s4 + $0x88] sm:$0xff]
  %v719 = vld [vmem:[%s4 + $0x90] sm:$0xff]
  %v720 = vld [vmem:[%s4 + $0x98] sm:$0xff]
  %v721 = vld [vmem:[%s4 + $0xa0] sm:$0xff]
  %v722 = vld [vmem:[%s4 + $0xa8] sm:$0xff]
  %v723 = vld [vmem:[%s4 + $0xb0] sm:$0xff]
  %v724 = vld [vmem:[%s4 + $0xb8] sm:$0xff]
  %v725 = vld [vmem:[%s4 + $0xc0] sm:$0xff]
  %v726 = vld [vmem:[%s4 + $0xc8] sm:$0xff]
  %v727 = vld [vmem:[%s4 + $0xd0] sm:$0xff]
  %v728 = vld [vmem:[%s4 + $0xd8] sm:$0xff]
  %v729 = vld [vmem:[%s4 + $0xe0] sm:$0xff]
  %v730 = vld [vmem:[%s4 + $0xe8] sm:$0xff]
  %v731 = vld [vmem:[%s4 + $0xf0] sm:$0xff]
  %v732 = vld [vmem:[%s4 + $0xf8] sm:$0xff]
  %v733 = vld [vmem:[%s4 + $0x100] sm:$0xff]
  %v734 = vld [vmem:[%s4 + $0x108] sm:$0xff]
  %v735 = vld [vmem:[%s4 + $0x110] sm:$0xff]
  %v736 = vld [vmem:[%s4 + $0x118] sm:$0xff]
  %v737 = vld [vmem:[%s4 + $0x120] sm:$0xff]
  %v738 = vld [vmem:[%s4 + $0x128] sm:$0xff]
  %v739 = vld [vmem:[%s4 + $0x130] sm:$0xff]
  %v740 = vld [vmem:[%s4 + $0x138] sm:$0xff]
  %v741 = vld [vmem:[%s4 + $0x140] sm:$0xff]
  %v742 = vld [vmem:[%s4 + $0x148] sm:$0xff]
  %v743 = vld [vmem:[%s4 + $0x150] sm:$0xff]
  %v744 = vld [vmem:[%s4 + $0x158] sm:$0xff]
  %v745 = vld [vmem:[%s4 + $0x160] sm:$0xff]
  %v746 = vld [vmem:[%s4 + $0x168] sm:$0xff]
  %v747 = vld [vmem:[%s4 + $0x170] sm:$0xff]
  %v748 = vld [vmem:[%s4 + $0x178] sm:$0xff]
  %v749 = vld [vmem:[%s5] sm:$0x3]
  %v751 = vlaneseq
  %v752 = vshrl.u32 %v751, 7
  %v753 = vsub.s32 0, %v752
  %v754 = vrot.slane %v749, %v753
  %v755 = vlaneseq
  %v756 = vshrl.u32 %v755, 7
  %v757 = vsub.s32 1, %v756
  %v758 = vrot.slane %v749, %v757
  %v809 = vunpack.c.l.b16 %v701
  %v810 = vunpack.c.h.b16 %v701
  %v811 = vunpack.c.l.b16 %v702
  %v812 = vunpack.c.h.b16 %v702
  %v813 = vunpack.c.l.b16 %v703
  %v814 = vunpack.c.h.b16 %v703
  %v815 = vunpack.c.l.b16 %v704
  %v816 = vunpack.c.h.b16 %v704
  %v817 = vunpack.c.l.b16 %v705
  %v818 = vunpack.c.h.b16 %v705
  %v819 = vunpack.c.l.b16 %v706
  %v820 = vunpack.c.h.b16 %v706
  %v821 = vunpack.c.l.b16 %v707
  %v822 = vunpack.c.h.b16 %v707
  %v823 = vunpack.c.l.b16 %v708
  %v824 = vunpack.c.h.b16 %v708
  %v825 = vunpack.c.l.b16 %v709
  %v826 = vunpack.c.h.b16 %v709
  %v827 = vunpack.c.l.b16 %v710
  %v828 = vunpack.c.h.b16 %v710
  %v829 = vunpack.c.l.b16 %v711
  %v830 = vunpack.c.h.b16 %v711
  %v831 = vunpack.c.l.b16 %v712
  %v832 = vunpack.c.h.b16 %v712
  %v833 = vunpack.c.l.b16 %v713
  %v834 = vunpack.c.h.b16 %v713
  %v835 = vunpack.c.l.b16 %v714
  %v836 = vunpack.c.h.b16 %v714
  %v837 = vunpack.c.l.b16 %v715
  %v838 = vunpack.c.h.b16 %v715
  %v839 = vunpack.c.l.b16 %v716
  %v840 = vunpack.c.h.b16 %v716
  %v841 = vunpack.c.l.b16 %v717
  %v842 = vunpack.c.h.b16 %v717
  %v843 = vunpack.c.l.b16 %v718
  %v844 = vunpack.c.h.b16 %v718
  %v845 = vunpack.c.l.b16 %v719
  %v846 = vunpack.c.h.b16 %v719
  %v847 = vunpack.c.l.b16 %v720
  %v848 = vunpack.c.h.b16 %v720
  %v849 = vunpack.c.l.b16 %v721
  %v850 = vunpack.c.h.b16 %v721
  %v851 = vunpack.c.l.b16 %v722
  %v852 = vunpack.c.h.b16 %v722
  %v853 = vunpack.c.l.b16 %v723
  %v854 = vunpack.c.h.b16 %v723
  %v855 = vunpack.c.l.b16 %v724
  %v856 = vunpack.c.h.b16 %v724
  %v857 = vunpack.c.l.b16 %v725
  %v858 = vunpack.c.h.b16 %v725
  %v859 = vunpack.c.l.b16 %v726
  %v860 = vunpack.c.h.b16 %v726
  %v861 = vunpack.c.l.b16 %v727
  %v862 = vunpack.c.h.b16 %v727
  %v863 = vunpack.c.l.b16 %v728
  %v864 = vunpack.c.h.b16 %v728
  %v865 = vunpack.c.l.b16 %v729
  %v866 = vunpack.c.h.b16 %v729
  %v867 = vunpack.c.l.b16 %v730
  %v868 = vunpack.c.h.b16 %v730
  %v869 = vunpack.c.l.b16 %v731
  %v870 = vunpack.c.h.b16 %v731
  %v871 = vunpack.c.l.b16 %v732
  %v872 = vunpack.c.h.b16 %v732
  %v873 = vunpack.c.l.b16 %v733
  %v874 = vunpack.c.h.b16 %v733
  %v875 = vunpack.c.l.b16 %v734
  %v876 = vunpack.c.h.b16 %v734
  %v877 = vunpack.c.l.b16 %v735
  %v878 = vunpack.c.h.b16 %v735
  %v879 = vunpack.c.l.b16 %v736
  %v880 = vunpack.c.h.b16 %v736
  %v881 = vunpack.c.l.b16 %v737
  %v882 = vunpack.c.h.b16 %v737
  %v883 = vunpack.c.l.b16 %v738
  %v884 = vunpack.c.h.b16 %v738
  %v885 = vunpack.c.l.b16 %v739
  %v886 = vunpack.c.h.b16 %v739
  %v887 = vunpack.c.l.b16 %v740
  %v888 = vunpack.c.h.b16 %v740
  %v889 = vunpack.c.l.b16 %v741
  %v890 = vunpack.c.h.b16 %v741
  %v891 = vunpack.c.l.b16 %v742
  %v892 = vunpack.c.h.b16 %v742
  %v893 = vunpack.c.l.b16 %v743
  %v894 = vunpack.c.h.b16 %v743
  %v895 = vunpack.c.l.b16 %v744
  %v896 = vunpack.c.h.b16 %v744
  %v897 = vunpack.c.l.b16 %v745
  %v898 = vunpack.c.h.b16 %v745
  %v899 = vunpack.c.l.b16 %v746
  %v900 = vunpack.c.h.b16 %v746
  %v901 = vunpack.c.l.b16 %v747
  %v902 = vunpack.c.h.b16 %v747
  %v903 = vunpack.c.l.b16 %v748
  %v904 = vunpack.c.h.b16 %v748
  %v905 = vpack.c.b16 %v811, %v809
  %v906 = vpack.c.b16 %v812, %v810
  %v907 = vpack.c.b16 %v815, %v813
  %v908 = vpack.c.b16 %v816, %v814
  %v909 = vpack.c.b16 %v819, %v817
  %v910 = vpack.c.b16 %v820, %v818
  %v911 = vpack.c.b16 %v823, %v821
  %v912 = vpack.c.b16 %v824, %v822
  %v913 = vpack.c.b16 %v827, %v825
  %v914 = vpack.c.b16 %v828, %v826
  %v915 = vpack.c.b16 %v831, %v829
  %v916 = vpack.c.b16 %v832, %v830
  %v917 = vpack.c.b16 %v835, %v833
  %v918 = vpack.c.b16 %v836, %v834
  %v919 = vpack.c.b16 %v839, %v837
  %v920 = vpack.c.b16 %v840, %v838
  %v921 = vpack.c.b16 %v843, %v841
  %v922 = vpack.c.b16 %v844, %v842
  %v923 = vpack.c.b16 %v847, %v845
  %v924 = vpack.c.b16 %v848, %v846
  %v925 = vpack.c.b16 %v851, %v849
  %v926 = vpack.c.b16 %v852, %v850
  %v927 = vpack.c.b16 %v855, %v853
  %v928 = vpack.c.b16 %v856, %v854
  %v929 = vpack.c.b16 %v859, %v857
  %v930 = vpack.c.b16 %v860, %v858
  %v931 = vpack.c.b16 %v863, %v861
  %v932 = vpack.c.b16 %v864, %v862
  %v933 = vpack.c.b16 %v867, %v865
  %v934 = vpack.c.b16 %v868, %v866
  %v935 = vpack.c.b16 %v871, %v869
  %v936 = vpack.c.b16 %v872, %v870
  %v937 = vpack.c.b16 %v875, %v873
  %v938 = vpack.c.b16 %v876, %v874
  %v939 = vpack.c.b16 %v879, %v877
  %v940 = vpack.c.b16 %v880, %v878
  %v941 = vpack.c.b16 %v883, %v881
  %v942 = vpack.c.b16 %v884, %v882
  %v943 = vpack.c.b16 %v887, %v885
  %v944 = vpack.c.b16 %v888, %v886
  %v945 = vpack.c.b16 %v891, %v889
  %v946 = vpack.c.b16 %v892, %v890
  %v947 = vpack.c.b16 %v895, %v893
  %v948 = vpack.c.b16 %v896, %v894
  %v949 = vpack.c.b16 %v899, %v897
  %v950 = vpack.c.b16 %v900, %v898
  %v951 = vpack.c.b16 %v903, %v901
  %v952 = vpack.c.b16 %v904, %v902
  %1001 = vmatprep.subr.bf16.mxu0 %v920
  %1002 = vmatpush1.bf16.msra.mxu0 %v919
  %1003 = vmatprep.subr.bf16.mxu0 %v918
  %1004 = vmatpush1.bf16.msra.mxu0 %v917
  %1005 = vmatprep.subr.bf16.mxu0 %v916
  %1006 = vmatpush1.bf16.msra.mxu0 %v915
  %1007 = vmatprep.subr.bf16.mxu0 %v914
  %1008 = vmatpush1.bf16.msra.mxu0 %v913
  %1009 = vmatprep.subr.bf16.mxu0 %v912
  %1010 = vmatpush1.bf16.msra.mxu0 %v911
  %1011 = vmatprep.subr.bf16.mxu0 %v910
  %1012 = vmatpush1.bf16.msra.mxu0 %v909
  %1013 = vmatprep.subr.bf16.mxu0 %v908
  %1014 = vmatpush1.bf16.msra.mxu0 %v907
  %1015 = vmatprep.subr.bf16.mxu0 %v906
  %1016 = vmatpush1.bf16.msra.mxu0 %v905
  %1017 = vmatprep.subr.bf16.mxu0 %v936
  %1018 = vmatpush2.bf16.msra.mxu0 %v935
  %1019 = vmatprep.subr.bf16.mxu0 %v934
  %1020 = vmatpush2.bf16.msra.mxu0 %v933
  %1021 = vmatprep.subr.bf16.mxu0 %v932
  %1022 = vmatpush2.bf16.msra.mxu0 %v931
  %1023 = vmatprep.subr.bf16.mxu0 %v930
  %1024 = vmatpush2.bf16.msra.mxu0 %v929
  %1025 = vmatprep.subr.bf16.mxu0 %v928
  %1026 = vmatpush2.bf16.msra.mxu0 %v927
  %1027 = vmatprep.subr.bf16.mxu0 %v926
  %1028 = vmatpush2.bf16.msra.mxu0 %v925
  %1029 = vmatprep.subr.bf16.mxu0 %v924
  %1030 = vmatpush2.bf16.msra.mxu0 %v923
  %1031 = vmatprep.subr.bf16.mxu0 %v922
  %1032 = vmatpush2.bf16.msra.mxu0 %v921
  %1033 = vmatprep.mubr.bf16.mxu0 %v699
  %1034 = vmatmul.mubr.bf16.gmra.mxu0 %v698
  %v1035 = vpop.f32.mrf.mxu0
  %v1036 = vadd.f32 %v754, %v1035
  %v1037 = vpop.f32.mrf.mxu0
  %v1038 = vadd.f32 %v758, %v1037
  %v1039 = vpop.f32.mrf.mxu0
  %v1040 = vpop.f32.mrf.mxu0
  %1041 = vdwg.mxu0
  %1042 = vmatprep.subr.bf16.mxu0 %v952
  %1043 = vmatpush1.bf16.msra.mxu0 %v951
  %1044 = vmatprep.subr.bf16.mxu0 %v950
  %1045 = vmatpush1.bf16.msra.mxu0 %v949
  %1046 = vmatprep.subr.bf16.mxu0 %v948
  %1047 = vmatpush1.bf16.msra.mxu0 %v947
  %1048 = vmatprep.subr.bf16.mxu0 %v946
  %1049 = vmatpush1.bf16.msra.mxu0 %v945
  %1050 = vmatprep.subr.bf16.mxu0 %v944
  %1051 = vmatpush1.bf16.msra.mxu0 %v943
  %1052 = vmatprep.subr.bf16.mxu0 %v942
  %1053 = vmatpush1.bf16.msra.mxu0 %v941
  %1054 = vmatprep.subr.bf16.mxu0 %v940
  %1055 = vmatpush1.bf16.msra.mxu0 %v939
  %1056 = vmatprep.subr.bf16.mxu0 %v938
  %1057 = vmatpush1.bf16.msra.mxu0 %v937
  %1058 = vmatprep.subr.bf16.mxu0 0
  %1059 = vmatpush2.bf16.msra.mxu0 0
  %1060 = vmatprep.subr.bf16.mxu0 0
  %1061 = vmatpush2.bf16.msra.mxu0 0
  %1062 = vmatprep.subr.bf16.mxu0 0
  %1063 = vmatpush2.bf16.msra.mxu0 0
  %1064 = vmatprep.subr.bf16.mxu0 0
  %1065 = vmatpush2.bf16.msra.mxu0 0
  %1066 = vmatprep.subr.bf16.mxu0 0
  %1067 = vmatpush2.bf16.msra.mxu0 0
  %1068 = vmatprep.subr.bf16.mxu0 0
  %1069 = vmatpush2.bf16.msra.mxu0 0
  %1070 = vmatprep.subr.bf16.mxu0 0
  %1071 = vmatpush2.bf16.msra.mxu0 0
  %1072 = vmatprep.subr.bf16.mxu0 0
  %1073 = vmatpush2.bf16.msra.mxu0 0
  %1074 = vmatprep.mubr.bf16.mxu0 0
  %1075 = vmatmul.mubr.bf16.gmra.mxu0 %v700
  %v1076 = vpop.f32.mrf.mxu0
  %v1077 = vadd.f32 %v1036, %v1076
  %v1078 = vpop.f32.mrf.mxu0
  %v1079 = vadd.f32 %v1038, %v1078
  %v1080 = vpop.f32.mrf.mxu0
  %v1081 = vpop.f32.mrf.mxu0
  %1082 = vdwg.mxu0
  %v1083 = vld [vmem:[%s6] sm:$0x3]
  %vm1084 = vcmp.ge.f32.partialorder %v1077, 0.0
  %vm1085 = vcmp.ge.f32.partialorder %v1079, 0.0
  %v1087 = vlaneseq
  %v1088 = vshrl.u32 %v1087, 7
  %v1089 = vsub.s32 0, %v1088
  %v1090 = vrot.slane %v1083, %v1089
  %v1091 = vlaneseq
  %v1092 = vshrl.u32 %v1091, 7
  %v1093 = vsub.s32 1, %v1092
  %v1094 = vrot.slane %v1083, %v1093
  %v1097 = vmul.f32 %v1077, %v1090
  %v1098 = vmul.f32 %v1079, %v1094
  %v1099 = vsel %vm1084, %v1077, %v1097
  %v1100 = vsel %vm1085, %v1079, %v1098
  %v1101 = vpack.c.bf16 %v1099, %v1099
  %v1102 = vpack.c.bf16 %v1100, %v1100
  %v1103 = vld [vmem:[%s7] sm:$0xf]
  %v1104 = vld [vmem:[%s7 + $0x4] sm:$0xf]
  %v1105 = vld [vmem:[%s7 + $0x8] sm:$0xf]
  %v1106 = vld [vmem:[%s7 + $0xc] sm:$0xf]
  %v1107 = vld [vmem:[%s7 + $0x10] sm:$0xf]
  %v1108 = vld [vmem:[%s7 + $0x14] sm:$0xf]
  %v1109 = vld [vmem:[%s7 + $0x18] sm:$0xf]
  %v1110 = vld [vmem:[%s7 + $0x1c] sm:$0xf]
  %v1111 = vld [vmem:[%s7 + $0x20] sm:$0xf]
  %v1112 = vld [vmem:[%s7 + $0x24] sm:$0xf]
  %v1113 = vld [vmem:[%s7 + $0x28] sm:$0xf]
  %v1114 = vld [vmem:[%s7 + $0x2c] sm:$0xf]
  %v1115 = vld [vmem:[%s7 + $0x30] sm:$0xf]
  %v1116 = vld [vmem:[%s7 + $0x34] sm:$0xf]
  %v1117 = vld [vmem:[%s7 + $0x38] sm:$0xf]
  %v1118 = vld [vmem:[%s7 + $0x3c] sm:$0xf]
  %v1119 = vld [vmem:[%s7 + $0x40] sm:$0xf]
  %v1120 = vld [vmem:[%s7 + $0x44] sm:$0xf]
  %v1121 = vld [vmem:[%s7 + $0x48] sm:$0xf]
  %v1122 = vld [vmem:[%s7 + $0x4c] sm:$0xf]
  %v1123 = vld [vmem:[%s7 + $0x50] sm:$0xf]
  %v1124 = vld [vmem:[%s7 + $0x54] sm:$0xf]
  %v1125 = vld [vmem:[%s7 + $0x58] sm:$0xf]
  %v1126 = vld [vmem:[%s7 + $0x5c] sm:$0xf]
  %v1127 = vld [vmem:[%s7 + $0x60] sm:$0xf]
  %v1128 = vld [vmem:[%s7 + $0x64] sm:$0xf]
  %v1129 = vld [vmem:[%s7 + $0x68] sm:$0xf]
  %v1130 = vld [vmem:[%s7 + $0x6c] sm:$0xf]
  %v1131 = vld [vmem:[%s7 + $0x70] sm:$0xf]
  %v1132 = vld [vmem:[%s7 + $0x74] sm:$0xf]
  %v1133 = vld [vmem:[%s7 + $0x78] sm:$0xf]
  %v1134 = vld [vmem:[%s7 + $0x7c] sm:$0xf]
  %v1135 = vld [vmem:[%s8] sm:$0x1]
  %v1137 = vlaneseq
  %v1138 = vshrl.u32 %v1137, 7
  %v1139 = vsub.s32 0, %v1138
  %v1140 = vrot.slane %v1135, %v1139
  %v1174 = vunpack.c.l.b16 %v1103
  %v1175 = vunpack.c.l.b16 %v1104
  %v1176 = vunpack.c.l.b16 %v1105
  %v1177 = vunpack.c.l.b16 %v1106
  %v1178 = vunpack.c.l.b16 %v1107
  %v1179 = vunpack.c.l.b16 %v1108
  %v1180 = vunpack.c.l.b16 %v1109
  %v1181 = vunpack.c.l.b16 %v1110
  %v1182 = vunpack.c.l.b16 %v1111
  %v1183 = vunpack.c.l.b16 %v1112
  %v1184 = vunpack.c.l.b16 %v1113
  %v1185 = vunpack.c.l.b16 %v1114
  %v1186 = vunpack.c.l.b16 %v1115
  %v1187 = vunpack.c.l.b16 %v1116
  %v1188 = vunpack.c.l.b16 %v1117
  %v1189 = vunpack.c.l.b16 %v1118
  %v1190 = vunpack.c.l.b16 %v1119
  %v1191 = vunpack.c.l.b16 %v1120
  %v1192 = vunpack.c.l.b16 %v1121
  %v1193 = vunpack.c.l.b16 %v1122
  %v1194 = vunpack.c.l.b16 %v1123
  %v1195 = vunpack.c.l.b16 %v1124
  %v1196 = vunpack.c.l.b16 %v1125
  %v1197 = vunpack.c.l.b16 %v1126
  %v1198 = vunpack.c.l.b16 %v1127
  %v1199 = vunpack.c.l.b16 %v1128
  %v1200 = vunpack.c.l.b16 %v1129
  %v1201 = vunpack.c.l.b16 %v1130
  %v1202 = vunpack.c.l.b16 %v1131
  %v1203 = vunpack.c.l.b16 %v1132
  %v1204 = vunpack.c.l.b16 %v1133
  %v1205 = vunpack.c.l.b16 %v1134
  %v1206 = vpack.c.b16 %v1175, %v1174
  %v1207 = vpack.c.b16 %v1177, %v1176
  %v1208 = vpack.c.b16 %v1179, %v1178
  %v1209 = vpack.c.b16 %v1181, %v1180
  %v1210 = vpack.c.b16 %v1183, %v1182
  %v1211 = vpack.c.b16 %v1185, %v1184
  %v1212 = vpack.c.b16 %v1187, %v1186
  %v1213 = vpack.c.b16 %v1189, %v1188
  %v1214 = vpack.c.b16 %v1191, %v1190
  %v1215 = vpack.c.b16 %v1193, %v1192
  %v1216 = vpack.c.b16 %v1195, %v1194
  %v1217 = vpack.c.b16 %v1197, %v1196
  %v1218 = vpack.c.b16 %v1199, %v1198
  %v1219 = vpack.c.b16 %v1201, %v1200
  %v1220 = vpack.c.b16 %v1203, %v1202
  %v1221 = vpack.c.b16 %v1205, %v1204
  %1238 = vmatprep.subr.bf16.mxu0 0
  %1239 = vmatpush1.bf16.msra.mxu0 %v1213
  %1240 = vmatprep.subr.bf16.mxu0 0
  %1241 = vmatpush1.bf16.msra.mxu0 %v1212
  %1242 = vmatprep.subr.bf16.mxu0 0
  %1243 = vmatpush1.bf16.msra.mxu0 %v1211
  %1244 = vmatprep.subr.bf16.mxu0 0
  %1245 = vmatpush1.bf16.msra.mxu0 %v1210
  %1246 = vmatprep.subr.bf16.mxu0 0
  %1247 = vmatpush1.bf16.msra.mxu0 %v1209
  %1248 = vmatprep.subr.bf16.mxu0 0
  %1249 = vmatpush1.bf16.msra.mxu0 %v1208
  %1250 = vmatprep.subr.bf16.mxu0 0
  %1251 = vmatpush1.bf16.msra.mxu0 %v1207
  %1252 = vmatprep.subr.bf16.mxu0 0
  %1253 = vmatpush1.bf16.msra.mxu0 %v1206
  %1254 = vmatprep.subr.bf16.mxu0 0
  %1255 = vmatpush2.bf16.msra.mxu0 %v1221
  %1256 = vmatprep.subr.bf16.mxu0 0
  %1257 = vmatpush2.bf16.msra.mxu0 %v1220
  %1258 = vmatprep.subr.bf16.mxu0 0
  %1259 = vmatpush2.bf16.msra.mxu0 %v1219
  %1260 = vmatprep.subr.bf16.mxu0 0
  %1261 = vmatpush2.bf16.msra.mxu0 %v1218
  %1262 = vmatprep.subr.bf16.mxu0 0
  %1263 = vmatpush2.bf16.msra.mxu0 %v1217
  %1264 = vmatprep.subr.bf16.mxu0 0
  %1265 = vmatpush2.bf16.msra.mxu0 %v1216
  %1266 = vmatprep.subr.bf16.mxu0 0
  %1267 = vmatpush2.bf16.msra.mxu0 %v1215
  %1268 = vmatprep.subr.bf16.mxu0 0
  %1269 = vmatpush2.bf16.msra.mxu0 %v1214
  %1270 = vmatprep.mubr.bf16.mxu0 %v1102
  %1271 = vmatmul.mubr.bf16.gmra.mxu0 %v1101
  %v1272 = vpop.f32.mrf.mxu0
  %v1273 = vadd.f32 %v1140, %v1272
  %v1274 = vpop.f32.mrf.mxu0
  %v1275 = vpop.f32.mrf.mxu0
  %v1276 = vpop.f32.mrf.mxu0
  %1277 = vdwg.mxu0
  %v1278 = vld [vmem:[%s9] sm:$0x1]
  %vm1279 = vcmp.ge.f32.partialorder %v1273, 0.0
  %v1281 = vlaneseq
  %v1282 = vshrl.u32 %v1281, 7
  %v1283 = vsub.s32 0, %v1282
  %v1284 = vrot.slane %v1278, %v1283
  %v1286 = vmul.f32 %v1273, %v1284
  %v1287 = vsel %vm1279, %v1273, %v1286
  %v1288 = vpack.c.bf16 %v1287, %v1287
  %v1289 = vld [vmem:[%s10] sm:$0xf]
  %v1290 = vld [vmem:[%s10 + $0x4] sm:$0xf]
  %v1291 = vld [vmem:[%s10 + $0x8] sm:$0xf]
  %v1292 = vld [vmem:[%s10 + $0xc] sm:$0xf]
  %v1293 = vld [vmem:[%s10 + $0x10] sm:$0xf]
  %v1294 = vld [vmem:[%s10 + $0x14] sm:$0xf]
  %v1295 = vld [vmem:[%s10 + $0x18] sm:$0xf]
  %v1296 = vld [vmem:[%s10 + $0x1c] sm:$0xf]
  %v1297 = vld [vmem:[%s10 + $0x20] sm:$0xf]
  %v1298 = vld [vmem:[%s10 + $0x24] sm:$0xf]
  %v1299 = vld [vmem:[%s10 + $0x28] sm:$0xf]
  %v1300 = vld [vmem:[%s10 + $0x2c] sm:$0xf]
  %v1301 = vld [vmem:[%s10 + $0x30] sm:$0xf]
  %v1302 = vld [vmem:[%s10 + $0x34] sm:$0xf]
  %v1303 = vld [vmem:[%s10 + $0x38] sm:$0xf]
  %v1304 = vld [vmem:[%s10 + $0x3c] sm:$0xf]
  %v1305 = vld [vmem:[#allocation2] sm:$0x1]
  %v1307 = vlaneseq
  %v1308 = vshrl.u32 %v1307, 7
  %v1309 = vsub.s32 0, %v1308
  %v1310 = vrot.slane %v1305, %v1309
  %v1328 = vunpack.c.l.b16 %v1289
  %v1329 = vunpack.c.l.b16 %v1290
  %v1330 = vunpack.c.l.b16 %v1291
  %v1331 = vunpack.c.l.b16 %v1292
  %v1332 = vunpack.c.l.b16 %v1293
  %v1333 = vunpack.c.l.b16 %v1294
  %v1334 = vunpack.c.l.b16 %v1295
  %v1335 = vunpack.c.l.b16 %v1296
  %v1336 = vunpack.c.l.b16 %v1297
  %v1337 = vunpack.c.l.b16 %v1298
  %v1338 = vunpack.c.l.b16 %v1299
  %v1339 = vunpack.c.l.b16 %v1300
  %v1340 = vunpack.c.l.b16 %v1301
  %v1341 = vunpack.c.l.b16 %v1302
  %v1342 = vunpack.c.l.b16 %v1303
  %v1343 = vunpack.c.l.b16 %v1304
  %v1344 = vpack.c.b16 %v1329, %v1328
  %v1345 = vpack.c.b16 %v1331, %v1330
  %v1346 = vpack.c.b16 %v1333, %v1332
  %v1347 = vpack.c.b16 %v1335, %v1334
  %v1348 = vpack.c.b16 %v1337, %v1336
  %v1349 = vpack.c.b16 %v1339, %v1338
  %v1350 = vpack.c.b16 %v1341, %v1340
  %v1351 = vpack.c.b16 %v1343, %v1342
  %1360 = vmatprep.subr.bf16.mxu0 0
  %1361 = vmatpush1.bf16.msra.mxu0 %v1351
  %1362 = vmatprep.subr.bf16.mxu0 0
  %1363 = vmatpush1.bf16.msra.mxu0 %v1350
  %1364 = vmatprep.subr.bf16.mxu0 0
  %1365 = vmatpush1.bf16.msra.mxu0 %v1349
  %1366 = vmatprep.subr.bf16.mxu0 0
  %1367 = vmatpush1.bf16.msra.mxu0 %v1348
  %1368 = vmatprep.subr.bf16.mxu0 0
  %1369 = vmatpush1.bf16.msra.mxu0 %v1347
  %1370 = vmatprep.subr.bf16.mxu0 0
  %1371 = vmatpush1.bf16.msra.mxu0 %v1346
  %1372 = vmatprep.subr.bf16.mxu0 0
  %1373 = vmatpush1.bf16.msra.mxu0 %v1345
  %1374 = vmatprep.subr.bf16.mxu0 0
  %1375 = vmatpush1.bf16.msra.mxu0 %v1344
  %1376 = vmatprep.subr.bf16.mxu0 0
  %1377 = vmatpush2.bf16.msra.mxu0 0
  %1378 = vmatprep.subr.bf16.mxu0 0
  %1379 = vmatpush2.bf16.msra.mxu0 0
  %1380 = vmatprep.subr.bf16.mxu0 0
  %1381 = vmatpush2.bf16.msra.mxu0 0
  %1382 = vmatprep.subr.bf16.mxu0 0
  %1383 = vmatpush2.bf16.msra.mxu0 0
  %1384 = vmatprep.subr.bf16.mxu0 0
  %1385 = vmatpush2.bf16.msra.mxu0 0
  %1386 = vmatprep.subr.bf16.mxu0 0
  %1387 = vmatpush2.bf16.msra.mxu0 0
  %1388 = vmatprep.subr.bf16.mxu0 0
  %1389 = vmatpush2.bf16.msra.mxu0 0
  %1390 = vmatprep.subr.bf16.mxu0 0
  %1391 = vmatpush2.bf16.msra.mxu0 0
  %1392 = vmatprep.mubr.bf16.mxu0 0
  %1393 = vmatmul.mubr.bf16.gmra.mxu0 %v1288
  %v1394 = vpop.f32.mrf.mxu0
  %v1395 = vadd.f32 %v1310, %v1394
  %v1396 = vpop.f32.mrf.mxu0
  %v1397 = vpop.f32.mrf.mxu0
  %v1398 = vpop.f32.mrf.mxu0
  %1399 = vdwg.mxu0
  %vm1400 = vcmask 1024
  %1401 = vst.msk [vmem:[%s12] sm:$0x3] %vm1400, %v1395
  // Predicated region
  $region50: #{forward.7} parent=0 // pred_check
    _
  $region51: #{forward.7} parent=0 // pred_check_branch
    %1403 = sbr.rel (0) target = $region53
  $region52: #{forward.7} parent=0 // pred_region
    _
  $region53: #{forward.7} parent=0 // pred_fallthru
    _
  // Predicated region
  $region54: #{forward.7} parent=0 // pred_check
    _
  $region55: #{forward.7} parent=0 // pred_check_branch
    %1405 = sbr.rel (0) target = $region57
  $region56: #{forward.7} parent=0 // pred_region
    _
  $region57: #{forward.7} parent=0 // pred_fallthru
    _

// kernel: forward.5
$region0: #{forward.5}
  #allocation0 [shape = 'u32[]', space=smem, size = 0x4, offset = 0x4, fixed_abs, tag = 'smem constant byte address 0x4 - core index']
  #allocation1 [shape = 'u32[144,128]{1,0:T(1,128)}', space=vmem, size = 0x12000, scoped, tag = 'internal scratch']
  %s0 = inlined_call_operand.vmem [shape: f32[2,72,40], index: 0, kind: input, shape index: {}]
  %s1 = inlined_call_operand.vmem [shape: bf16[40,128], index: 1, kind: input, shape index: {}]
  %s2 = inlined_call_operand.vmem [shape: f32[1,128], index: 2, kind: input, shape index: {}]
  %s3 = inlined_call_operand.vmem [shape: bf16[512,128], index: 3, kind: input, shape index: {}]
  %s4 = inlined_call_operand.vmem [shape: f32[1,128], index: 4, kind: input, shape index: {}]
  %s5 = inlined_call_operand.vmem [shape: bf16[768,128], index: 5, kind: input, shape index: {}]
  %s6 = inlined_call_operand.vmem [shape: f32[1,128], index: 6, kind: input, shape index: {}]
  %s7 = inlined_call_operand.vmem [shape: bf16[1024,128], index: 7, kind: input, shape index: {}]
  %s8 = inlined_call_operand.vmem [shape: f32[1,128], index: 8, kind: input, shape index: {}]
  %s9 = inlined_call_operand.vmem [shape: f32[3,128], index: 9, kind: input, shape index: {}]
  %s10 = inlined_call_operand.vmem [shape: f32[2,1,128], index: 10, kind: output, shape index: {}]
  %s11 = sld [smem:[#allocation0]]
  $region73: #{forward.5} parent=0
    _
  %s13 = ssub.s32 1, %s11
  %s14 = scalar_select 0, %s13, %s11
  loop: start=0, step=1, limit=4
  $region2: #{forward.5} parent=0 // loop_pre_header
    _
  $region3: #{forward.5} parent=0 // loop_header
    %s16 = sphi 0, %s20
    %p17 = scmp.ge.s32.totalorder %s16, 4
    %s26 = sphi 0, %s28
    %s29 = sphi 0, %s26
    %s30 = sphi 0, %s29
    %s46 = sphi 0, %s30
    %s50 = sphi 0, %s50
    %s52 = sphi 0, %s50
    %s53 = sphi 0, %s52
    %s67 = sphi 0, %s53
    %s71 = sphi 0, %s71
    %s73 = sphi 0, %s71
    %s74 = sphi 0, %s73
    %s88 = sphi 0, %s74
    %s92 = sphi 0, %s92
    %s94 = sphi 0, %s92
    %s95 = sphi 0, %s94
    %s109 = sphi 0, %s95
    %s113 = sphi 0, %s113
    %s115 = sphi 0, %s113
    %s116 = sphi 0, %s115
    %s130 = sphi 0, %s116
    %s134 = sphi 0, %s134
    %s136 = sphi 0, %s134
    %s137 = sphi 0, %s136
    %s151 = sphi 0, %s137
    %s155 = sphi 0, %s155
    %s157 = sphi 0, %s155
    %s158 = sphi 0, %s157
    %s172 = sphi 0, %s158
    %s176 = sphi 0, %s176
    %s178 = sphi 0, %s176
    %s179 = sphi 0, %s178
    %s193 = sphi 0, %s179
    %s197 = sphi 0, %s197
    %s199 = sphi 0, %s197
    %s200 = sphi 0, %s199
    %s214 = sphi 0, %s200
    %s218 = sphi 0, %s218
    %s220 = sphi 0, %s218
    %s221 = sphi 0, %s220
    %s235 = sphi 0, %s221
    %s241 = sphi 0, %s243
    %s244 = sphi 0, %s241
    %s245 = sphi 0, %s244
    %s261 = sphi 0, %s245
  $region4: #{forward.5} parent=0 // loop_header_branch
    %19 = sbr.rel (%p17) target = $region8
  $region5: #{forward.5} parent=0 // loop_body
    %s21 = ssub.s32 %s16, 1
    %s22 = ssub.s32 %s16, 2
    %s23 = sadd.s32 %s16, 1
    %s24 = ssub.s32 %s16, %s23
    %p25 = scmp.eq.s32.totalorder %s24, 0
    %s27 = sadd.s32 %s26, 1
    %s28 = scalar_select %p25, %s26, %s27
    %p31 = pneg %p25
    %p32 = scmp.eq.s32.totalorder %s16, 1
    %p33 = por %p31, %p32
    %p34 = scmp.ne.s32.totalorder %s26, %s29
    %p35 = scmp.eq.s32.totalorder %s16, 0
    %p36 = por %p34, %p35
    %p37 = scmp.ne.s32.totalorder %s26, %s29
    %p38 = scmp.eq.s32.totalorder %s21, 1
    %p39 = por %p37, %p38
    %p40 = scmp.ne.s32.totalorder %s29, %s30
    %p41 = scmp.eq.s32.totalorder %s21, 0
    %p42 = por %p40, %p41
    %p43 = scmp.ne.s32.totalorder %s29, %s30
    %p44 = scmp.eq.s32.totalorder %s22, 1
    %p45 = por %p43, %p44
    %p47 = scmp.ne.s32.totalorder %s30, %s46
    %p48 = scmp.eq.s32.totalorder %s22, 0
    %p49 = por %p47, %p48
    %s51 = sadd.s32 %s50, 1
    %p54 = scmp.eq.s32.totalorder %s16, 1
    %p55 = scmp.ne.s32.totalorder %s50, %s52
    %p56 = scmp.eq.s32.totalorder %s16, 0
    %p57 = por %p55, %p56
    %p58 = scmp.ne.s32.totalorder %s50, %s52
    %p59 = scmp.eq.s32.totalorder %s21, 1
    %p60 = por %p58, %p59
    %p61 = scmp.ne.s32.totalorder %s52, %s53
    %p62 = scmp.eq.s32.totalorder %s21, 0
    %p63 = por %p61, %p62
    %p64 = scmp.ne.s32.totalorder %s52, %s53
    %p65 = scmp.eq.s32.totalorder %s22, 1
    %p66 = por %p64, %p65
    %p68 = scmp.ne.s32.totalorder %s53, %s67
    %p69 = scmp.eq.s32.totalorder %s22, 0
    %p70 = por %p68, %p69
    %s72 = sadd.s32 %s71, 1
    %p75 = scmp.eq.s32.totalorder %s16, 1
    %p76 = scmp.ne.s32.totalorder %s71, %s73
    %p77 = scmp.eq.s32.totalorder %s16, 0
    %p78 = por %p76, %p77
    %p79 = scmp.ne.s32.totalorder %s71, %s73
    %p80 = scmp.eq.s32.totalorder %s21, 1
    %p81 = por %p79, %p80
    %p82 = scmp.ne.s32.totalorder %s73, %s74
    %p83 = scmp.eq.s32.totalorder %s21, 0
    %p84 = por %p82, %p83
    %p85 = scmp.ne.s32.totalorder %s73, %s74
    %p86 = scmp.eq.s32.totalorder %s22, 1
    %p87 = por %p85, %p86
    %p89 = scmp.ne.s32.totalorder %s74, %s88
    %p90 = scmp.eq.s32.totalorder %s22, 0
    %p91 = por %p89, %p90
    %s93 = sadd.s32 %s92, 1
    %p96 = scmp.eq.s32.totalorder %s16, 1
    %p97 = scmp.ne.s32.totalorder %s92, %s94
    %p98 = scmp.eq.s32.totalorder %s16, 0
    %p99 = por %p97, %p98
    %p100 = scmp.ne.s32.totalorder %s92, %s94
    %p101 = scmp.eq.s32.totalorder %s21, 1
    %p102 = por %p100, %p101
    %p103 = scmp.ne.s32.totalorder %s94, %s95
    %p104 = scmp.eq.s32.totalorder %s21, 0
    %p105 = por %p103, %p104
    %p106 = scmp.ne.s32.totalorder %s94, %s95
    %p107 = scmp.eq.s32.totalorder %s22, 1
    %p108 = por %p106, %p107
    %p110 = scmp.ne.s32.totalorder %s95, %s109
    %p111 = scmp.eq.s32.totalorder %s22, 0
    %p112 = por %p110, %p111
    %s114 = sadd.s32 %s113, 1
    %p117 = scmp.eq.s32.totalorder %s16, 1
    %p118 = scmp.ne.s32.totalorder %s113, %s115
    %p119 = scmp.eq.s32.totalorder %s16, 0
    %p120 = por %p118, %p119
    %p121 = scmp.ne.s32.totalorder %s113, %s115
    %p122 = scmp.eq.s32.totalorder %s21, 1
    %p123 = por %p121, %p122
    %p124 = scmp.ne.s32.totalorder %s115, %s116
    %p125 = scmp.eq.s32.totalorder %s21, 0
    %p126 = por %p124, %p125
    %p127 = scmp.ne.s32.totalorder %s115, %s116
    %p128 = scmp.eq.s32.totalorder %s22, 1
    %p129 = por %p127, %p128
    %p131 = scmp.ne.s32.totalorder %s116, %s130
    %p132 = scmp.eq.s32.totalorder %s22, 0
    %p133 = por %p131, %p132
    %s135 = sadd.s32 %s134, 1
    %p138 = scmp.eq.s32.totalorder %s16, 1
    %p139 = scmp.ne.s32.totalorder %s134, %s136
    %p140 = scmp.eq.s32.totalorder %s16, 0
    %p141 = por %p139, %p140
    %p142 = scmp.ne.s32.totalorder %s134, %s136
    %p143 = scmp.eq.s32.totalorder %s21, 1
    %p144 = por %p142, %p143
    %p145 = scmp.ne.s32.totalorder %s136, %s137
    %p146 = scmp.eq.s32.totalorder %s21, 0
    %p147 = por %p145, %p146
    %p148 = scmp.ne.s32.totalorder %s136, %s137
    %p149 = scmp.eq.s32.totalorder %s22, 1
    %p150 = por %p148, %p149
    %p152 = scmp.ne.s32.totalorder %s137, %s151
    %p153 = scmp.eq.s32.totalorder %s22, 0
    %p154 = por %p152, %p153
    %s156 = sadd.s32 %s155, 1
    %p159 = scmp.eq.s32.totalorder %s16, 1
    %p160 = scmp.ne.s32.totalorder %s155, %s157
    %p161 = scmp.eq.s32.totalorder %s16, 0
    %p162 = por %p160, %p161
    %p163 = scmp.ne.s32.totalorder %s155, %s157
    %p164 = scmp.eq.s32.totalorder %s21, 1
    %p165 = por %p163, %p164
    %p166 = scmp.ne.s32.totalorder %s157, %s158
    %p167 = scmp.eq.s32.totalorder %s21, 0
    %p168 = por %p166, %p167
    %p169 = scmp.ne.s32.totalorder %s157, %s158
    %p170 = scmp.eq.s32.totalorder %s22, 1
    %p171 = por %p169, %p170
    %p173 = scmp.ne.s32.totalorder %s158, %s172
    %p174 = scmp.eq.s32.totalorder %s22, 0
    %p175 = por %p173, %p174
    %s177 = sadd.s32 %s176, 1
    %p180 = scmp.eq.s32.totalorder %s16, 1
    %p181 = scmp.ne.s32.totalorder %s176, %s178
    %p182 = scmp.eq.s32.totalorder %s16, 0
    %p183 = por %p181, %p182
    %p184 = scmp.ne.s32.totalorder %s176, %s178
    %p185 = scmp.eq.s32.totalorder %s21, 1
    %p186 = por %p184, %p185
    %p187 = scmp.ne.s32.totalorder %s178, %s179
    %p188 = scmp.eq.s32.totalorder %s21, 0
    %p189 = por %p187, %p188
    %p190 = scmp.ne.s32.totalorder %s178, %s179
    %p191 = scmp.eq.s32.totalorder %s22, 1
    %p192 = por %p190, %p191
    %p194 = scmp.ne.s32.totalorder %s179, %s193
    %p195 = scmp.eq.s32.totalorder %s22, 0
    %p196 = por %p194, %p195
    %s198 = sadd.s32 %s197, 1
    %p201 = scmp.eq.s32.totalorder %s16, 1
    %p202 = scmp.ne.s32.totalorder %s197, %s199
    %p203 = scmp.eq.s32.totalorder %s16, 0
    %p204 = por %p202, %p203
    %p205 = scmp.ne.s32.totalorder %s197, %s199
    %p206 = scmp.eq.s32.totalorder %s21, 1
    %p207 = por %p205, %p206
    %p208 = scmp.ne.s32.totalorder %s199, %s200
    %p209 = scmp.eq.s32.totalorder %s21, 0
    %p210 = por %p208, %p209
    %p211 = scmp.ne.s32.totalorder %s199, %s200
    %p212 = scmp.eq.s32.totalorder %s22, 1
    %p213 = por %p211, %p212
    %p215 = scmp.ne.s32.totalorder %s200, %s214
    %p216 = scmp.eq.s32.totalorder %s22, 0
    %p217 = por %p215, %p216
    %s219 = sadd.s32 %s218, 1
    %p222 = scmp.eq.s32.totalorder %s16, 1
    %p223 = scmp.ne.s32.totalorder %s218, %s220
    %p224 = scmp.eq.s32.totalorder %s16, 0
    %p225 = por %p223, %p224
    %p226 = scmp.ne.s32.totalorder %s218, %s220
    %p227 = scmp.eq.s32.totalorder %s21, 1
    %p228 = por %p226, %p227
    %p229 = scmp.ne.s32.totalorder %s220, %s221
    %p230 = scmp.eq.s32.totalorder %s21, 0
    %p231 = por %p229, %p230
    %p232 = scmp.ne.s32.totalorder %s220, %s221
    %p233 = scmp.eq.s32.totalorder %s22, 1
    %p234 = por %p232, %p233
    %p236 = scmp.ne.s32.totalorder %s221, %s235
    %p237 = scmp.eq.s32.totalorder %s22, 0
    %p238 = por %p236, %p237
    %s239 = ssub.s32 %s16, %s23
    %p240 = scmp.eq.s32.totalorder %s239, 0
    %s242 = sadd.s32 %s241, 1
    %s243 = scalar_select %p240, %s241, %s242
    %p246 = pneg %p240
    %p247 = scmp.eq.s32.totalorder %s16, 1
    %p248 = por %p246, %p247
    %p249 = scmp.ne.s32.totalorder %s241, %s244
    %p250 = scmp.eq.s32.totalorder %s16, 0
    %p251 = por %p249, %p250
    %p252 = scmp.ne.s32.totalorder %s241, %s244
    %p253 = scmp.eq.s32.totalorder %s21, 1
    %p254 = por %p252, %p253
    %p255 = scmp.ne.s32.totalorder %s244, %s245
    %p256 = scmp.eq.s32.totalorder %s21, 0
    %p257 = por %p255, %p256
    %p258 = scmp.ne.s32.totalorder %s244, %s245
    %p259 = scmp.eq.s32.totalorder %s22, 1
    %p260 = por %p258, %p259
    %p262 = scmp.ne.s32.totalorder %s245, %s261
    %p263 = scmp.eq.s32.totalorder %s22, 0
    %p264 = por %p262, %p263
    %p265 = scmp.le.s32.totalorder 1, %s16
    %p266 = scmp.lt.s32.totalorder %s16, 3
    %p267 = pnand %p265, %p266
    %p268 = pneg %p267
    // Predicated region
    $region9: #{forward.5} parent=5 // pred_check
      _
    $region10: #{forward.5} parent=5 // pred_check_branch
      %270 = sbr.rel (%p267) target = $region12
    $region11: #{forward.5} parent=5 // pred_region
      %s271 = ssub.s32 %s16, 1
      // Predicated region
      $region13: #{forward.5} parent=11 // pred_check
        %p272 = pneg %p63
      $region14: #{forward.5} parent=11 // pred_check_branch
        %274 = sbr.rel (%p272) target = $region16
      $region15: #{forward.5} parent=11 // pred_region
        _
      $region16: #{forward.5} parent=11 // pred_fallthru
        _
      // Predicated region
      $region17: #{forward.5} parent=11 // pred_check
        %p275 = pneg %p84
      $region18: #{forward.5} parent=11 // pred_check_branch
        %277 = sbr.rel (%p275) target = $region20
      $region19: #{forward.5} parent=11 // pred_region
        _
      $region20: #{forward.5} parent=11 // pred_fallthru
        _
      // Predicated region
      $region21: #{forward.5} parent=11 // pred_check
        %p278 = pneg %p105
      $region22: #{forward.5} parent=11 // pred_check_branch
        %280 = sbr.rel (%p278) target = $region24
      $region23: #{forward.5} parent=11 // pred_region
        _
      $region24: #{forward.5} parent=11 // pred_fallthru
        _
      // Predicated region
      $region25: #{forward.5} parent=11 // pred_check
        %p281 = pneg %p126
      $region26: #{forward.5} parent=11 // pred_check_branch
        %283 = sbr.rel (%p281) target = $region28
      $region27: #{forward.5} parent=11 // pred_region
        _
      $region28: #{forward.5} parent=11 // pred_fallthru
        _
      // Predicated region
      $region29: #{forward.5} parent=11 // pred_check
        %p284 = pneg %p147
      $region30: #{forward.5} parent=11 // pred_check_branch
        %286 = sbr.rel (%p284) target = $region32
      $region31: #{forward.5} parent=11 // pred_region
        _
      $region32: #{forward.5} parent=11 // pred_fallthru
        _
      // Predicated region
      $region33: #{forward.5} parent=11 // pred_check
        %p287 = pneg %p168
      $region34: #{forward.5} parent=11 // pred_check_branch
        %289 = sbr.rel (%p287) target = $region36
      $region35: #{forward.5} parent=11 // pred_region
        _
      $region36: #{forward.5} parent=11 // pred_fallthru
        _
      // Predicated region
      $region37: #{forward.5} parent=11 // pred_check
        %p290 = pneg %p189
      $region38: #{forward.5} parent=11 // pred_check_branch
        %292 = sbr.rel (%p290) target = $region40
      $region39: #{forward.5} parent=11 // pred_region
        _
      $region40: #{forward.5} parent=11 // pred_fallthru
        _
      // Predicated region
      $region41: #{forward.5} parent=11 // pred_check
        %p293 = pneg %p210
      $region42: #{forward.5} parent=11 // pred_check_branch
        %295 = sbr.rel (%p293) target = $region44
      $region43: #{forward.5} parent=11 // pred_region
        _
      $region44: #{forward.5} parent=11 // pred_fallthru
        _
      // Predicated region
      $region45: #{forward.5} parent=11 // pred_check
        %p296 = pneg %p231
      $region46: #{forward.5} parent=11 // pred_check_branch
        %298 = sbr.rel (%p296) target = $region48
      $region47: #{forward.5} parent=11 // pred_region
        _
      $region48: #{forward.5} parent=11 // pred_fallthru
        _
    $region12: #{forward.5} parent=5 // pred_fallthru
      _
    %p299 = scmp.lt.s32.totalorder %s16, 2
    // Predicated region
    $region49: #{forward.5} parent=5 // pred_check
      %p300 = pneg %p299
    $region50: #{forward.5} parent=5 // pred_check_branch
      %302 = sbr.rel (%p300) target = $region52
    $region51: #{forward.5} parent=5 // pred_region
      // Predicated region
      $region53: #{forward.5} parent=51 // pred_check
        %p303 = pneg %p36
      $region54: #{forward.5} parent=51 // pred_check_branch
        %305 = sbr.rel (%p303) target = $region56
      $region55: #{forward.5} parent=51 // pred_region
        %p306 = scmp.lt.s32.totalorder %s16, 1
        %s307 = scalar_select %p306, %s16, 1
        %s308 = smul.addr %s307, 9
        %s309 = smul.addr %s308, 8
        %s310 = scalar_lea.vmem %s0, %s309
      $region56: #{forward.5} parent=51 // pred_fallthru
        _
    $region52: #{forward.5} parent=5 // pred_fallthru
      _
    %p311 = scmp.le.s32.totalorder 1, %s16
    %p312 = scmp.lt.s32.totalorder %s16, 3
    %p313 = pnand %p311, %p312
    %p314 = pneg %p313
    // Predicated region
    $region57: #{forward.5} parent=5 // pred_check
      _
    $region58: #{forward.5} parent=5 // pred_check_branch
      %316 = sbr.rel (%p313) target = $region60
    $region59: #{forward.5} parent=5 // pred_region
      %s317 = ssub.s32 %s16, 1
      %p318 = scmp.lt.s32.totalorder %s21, 1
      %s319 = scalar_select %p318, %s21, 1
      %s320 = smul.addr %s319, 9
      %s321 = smul.addr %s320, 8
      %s322 = scalar_lea.vmem %s0, %s321
      %p323 = pneg %p42
      %p324 = pneg %p39
      %p325 = pneg %p63
      %p326 = pneg %p60
      %p327 = pneg %p84
      %p328 = pneg %p81
      %p329 = pneg %p105
      %p330 = pneg %p102
      %p331 = pneg %p126
      %p332 = pneg %p123
      %p333 = pneg %p147
      %p334 = pneg %p144
      %p335 = pneg %p168
      %p336 = pneg %p165
      %p337 = pneg %p189
      %p338 = pneg %p186
      %p339 = pneg %p210
      %p340 = pneg %p207
      %p341 = pneg %p231
      %p342 = pneg %p228
      %p343 = pneg %p257
      %p344 = pneg %p254
      %p345 = scmp.lt.s32.totalorder %s21, 1
      %s346 = scalar_select %p345, %s21, 1
      %s347 = scalar_lea.vmem %s10, %s346
      %p348 = scmp.lt.s32.totalorder %s21, 1
      %s349 = scalar_select %p348, %s21, 1
      %s350 = smul.addr %s349, 9
      %s351 = smul.addr %s350, 8
      %s352 = scalar_lea.vmem %s0, %s351
      %p353 = scmp.lt.s32.totalorder %s21, 1
      %s354 = scalar_select %p353, %s21, 1
      %s355 = scalar_lea.vmem %s10, %s354
      %v357 = vld [vmem:[%s352] sm:$0xff]
      %v358 = vld [vmem:[%s352 + $0x8] sm:$0xff]
      %v359 = vld [vmem:[%s352 + $0x10] sm:$0xff]
      %v360 = vld [vmem:[%s352 + $0x18] sm:$0xff]
      %v361 = vld [vmem:[%s352 + $0x20] sm:$0xff]
      %v362 = vld [vmem:[%s352 + $0x28] sm:$0xff]
      %v363 = vld [vmem:[%s352 + $0x30] sm:$0xff]
      %v364 = vld [vmem:[%s352 + $0x38] sm:$0xff]
      %v365 = vld [vmem:[%s352 + $0x40] sm:$0xff]
      %v366 = vpack.c.bf16 %v358, %v357
      %v367 = vpack.c.bf16 %v360, %v359
      %v368 = vpack.c.bf16 %v362, %v361
      %v369 = vpack.c.bf16 %v364, %v363
      %v370 = vpack.c.bf16 %v365, %v365
      %v371 = vld [vmem:[%s1] sm:$0xf]
      %v372 = vld [vmem:[%s1 + $0x4] sm:$0xf]
      %v373 = vld [vmem:[%s1 + $0x8] sm:$0xf]
      %v374 = vld [vmem:[%s1 + $0xc] sm:$0xf]
      %v375 = vld [vmem:[%s1 + $0x10] sm:$0xf]
      %v376 = vld [vmem:[%s2] sm:$0x1]
      %v378 = vlaneseq
      %v379 = vshrl.u32 %v378, 7
      %v380 = vsub.s32 0, %v379
      %v381 = vrot.slane %v376, %v380
      %v388 = vunpack.c.l.b16 %v371
      %v389 = vunpack.c.l.b16 %v372
      %v390 = vunpack.c.l.b16 %v373
      %v391 = vunpack.c.l.b16 %v374
      %v392 = vunpack.c.l.b16 %v375
      %v393 = vpack.c.b16 %v389, %v388
      %v394 = vpack.c.b16 %v391, %v390
      %v395 = vpack.c.b16 %v392, %v392
      %vm398 = vcmask 326656
      %v400 = vsel %vm398, %v366, 0
      %v403 = vsel %vm398, %v367, 0
      %v406 = vsel %vm398, %v368, 0
      %v409 = vsel %vm398, %v369, 0
      %v412 = vsel %vm398, %v370, 0
      %vm414 = vcmask 1043456
      %v416 = vsel %vm414, %v395, 0
      %418 = vmatprep.subr.bf16.mxu0 0
      %419 = vmatpush1.bf16.msra.mxu0 0
      %420 = vmatprep.subr.bf16.mxu0 0
      %421 = vmatpush1.bf16.msra.mxu0 0
      %422 = vmatprep.subr.bf16.mxu0 0
      %423 = vmatpush1.bf16.msra.mxu0 0
      %424 = vmatprep.subr.bf16.mxu0 0
      %425 = vmatpush1.bf16.msra.mxu0 0
      %426 = vmatprep.subr.bf16.mxu0 0
      %427 = vmatpush1.bf16.msra.mxu0 0
      %428 = vmatprep.subr.bf16.mxu0 0
      %429 = vmatpush1.bf16.msra.mxu0 %v416
      %430 = vmatprep.subr.bf16.mxu0 0
      %431 = vmatpush1.bf16.msra.mxu0 %v394
      %432 = vmatprep.subr.bf16.mxu0 0
      %433 = vmatpush1.bf16.msra.mxu0 %v393
      %434 = vmatprep.subr.bf16.mxu0 0
      %435 = vmatpush2.bf16.msra.mxu0 0
      %436 = vmatprep.subr.bf16.mxu0 0
      %437 = vmatpush2.bf16.msra.mxu0 0
      %438 = vmatprep.subr.bf16.mxu0 0
      %439 = vmatpush2.bf16.msra.mxu0 0
      %440 = vmatprep.subr.bf16.mxu0 0
      %441 = vmatpush2.bf16.msra.mxu0 0
      %442 = vmatprep.subr.bf16.mxu0 0
      %443 = vmatpush2.bf16.msra.mxu0 0
      %444 = vmatprep.subr.bf16.mxu0 0
      %445 = vmatpush2.bf16.msra.mxu0 0
      %446 = vmatprep.subr.bf16.mxu0 0
      %447 = vmatpush2.bf16.msra.mxu0 0
      %448 = vmatprep.subr.bf16.mxu0 0
      %449 = vmatpush2.bf16.msra.mxu0 0
      %450 = vmatprep.mubr.bf16.mxu0 0
      %451 = vmatmul.mubr.bf16.gmra.mxu0 %v400
      %v452 = vpop.f32.mrf.mxu0
      %v453 = vadd.f32 %v381, %v452
      %v454 = vpop.f32.mrf.mxu0
      %v455 = vpop.f32.mrf.mxu0
      %v456 = vadd.f32 %v381, %v455
      %v457 = vpop.f32.mrf.mxu0
      %458 = vmatprep.mubr.bf16.mxu0 0
      %459 = vmatmul.mubr.bf16.gmra.mxu0 %v403
      %v460 = vpop.f32.mrf.mxu0
      %v461 = vadd.f32 %v381, %v460
      %v462 = vpop.f32.mrf.mxu0
      %v463 = vpop.f32.mrf.mxu0
      %v464 = vadd.f32 %v381, %v463
      %v465 = vpop.f32.mrf.mxu0
      %466 = vmatprep.mubr.bf16.mxu0 0
      %467 = vmatmul.mubr.bf16.gmra.mxu0 %v406
      %v468 = vpop.f32.mrf.mxu0
      %v469 = vadd.f32 %v381, %v468
      %v470 = vpop.f32.mrf.mxu0
      %v471 = vpop.f32.mrf.mxu0
      %v472 = vadd.f32 %v381, %v471
      %v473 = vpop.f32.mrf.mxu0
      %474 = vmatprep.mubr.bf16.mxu0 0
      %475 = vmatmul.mubr.bf16.gmra.mxu0 %v409
      %v476 = vpop.f32.mrf.mxu0
      %v477 = vadd.f32 %v381, %v476
      %v478 = vpop.f32.mrf.mxu0
      %v479 = vpop.f32.mrf.mxu0
      %v480 = vadd.f32 %v381, %v479
      %v481 = vpop.f32.mrf.mxu0
      %482 = vmatprep.mubr.bf16.mxu0 0
      %483 = vmatmul.mubr.bf16.gmra.mxu0 %v412
      %v484 = vpop.f32.mrf.mxu0
      %v485 = vadd.f32 %v381, %v484
      %v486 = vpop.f32.mrf.mxu0
      %v487 = vpop.f32.mrf.mxu0
      %v488 = vpop.f32.mrf.mxu0
      %489 = vdwg.mxu0
      %v490 = vld [vmem:[%s9] sm:$0x7]
      %vm500 = vcmask 1046528
      %v501 = vrot.slane %v453, 1
      %v502 = vrot.slane %v456, 1
      %v503 = vsel %vm500, %v501, %v502
      %v504 = vrot.slane %v461, 1
      %v505 = vsel %vm500, %v502, %v504
      %v506 = vrot.slane %v464, 1
      %v507 = vsel %vm500, %v504, %v506
      %v508 = vrot.slane %v469, 1
      %v509 = vsel %vm500, %v506, %v508
      %v510 = vrot.slane %v472, 1
      %v511 = vsel %vm500, %v508, %v510
      %v512 = vrot.slane %v477, 1
      %v513 = vsel %vm500, %v510, %v512
      %v514 = vrot.slane %v480, 1
      %v515 = vsel %vm500, %v512, %v514
      %v516 = vrot.slane %v485, 1
      %v517 = vsel %vm500, %v514, %v516
      %vm527 = vcmask 1045504
      %v528 = vrot.slane %v453, 2
      %v529 = vrot.slane %v456, 2
      %v530 = vsel %vm527, %v528, %v529
      %v531 = vrot.slane %v461, 2
      %v532 = vsel %vm527, %v529, %v531
      %v533 = vrot.slane %v464, 2
      %v534 = vsel %vm527, %v531, %v533
      %v535 = vrot.slane %v469, 2
      %v536 = vsel %vm527, %v533, %v535
      %v537 = vrot.slane %v472, 2
      %v538 = vsel %vm527, %v535, %v537
      %v539 = vrot.slane %v477, 2
      %v540 = vsel %vm527, %v537, %v539
      %v541 = vrot.slane %v480, 2
      %v542 = vsel %vm527, %v539, %v541
      %v543 = vrot.slane %v485, 2
      %v544 = vsel %vm527, %v541, %v543
      %vm554 = vcmask 1044480
      %v555 = vrot.slane %v453, 3
      %v556 = vrot.slane %v456, 3
      %v557 = vsel %vm554, %v555, %v556
      %v558 = vrot.slane %v461, 3
      %v559 = vsel %vm554, %v556, %v558
      %v560 = vrot.slane %v464, 3
      %v561 = vsel %vm554, %v558, %v560
      %v562 = vrot.slane %v469, 3
      %v563 = vsel %vm554, %v560, %v562
      %v564 = vrot.slane %v472, 3
      %v565 = vsel %vm554, %v562, %v564
      %v566 = vrot.slane %v477, 3
      %v567 = vsel %vm554, %v564, %v566
      %v568 = vrot.slane %v480, 3
      %v569 = vsel %vm554, %v566, %v568
      %v570 = vrot.slane %v485, 3
      %v571 = vsel %vm554, %v568, %v570
      %v581 = vpack.c.bf16 %v456, %v453
      %v582 = vpack.c.bf16 %v505, %v503
      %v583 = vpack.c.bf16 %v532, %v530
      %v584 = vpack.c.bf16 %v559, %v557
      %v585 = vpack.c.bf16 %v464, %v461
      %v586 = vpack.c.bf16 %v509, %v507
      %v587 = vpack.c.bf16 %v536, %v534
      %v588 = vpack.c.bf16 %v563, %v561
      %v589 = vpack.c.bf16 %v472, %v469
      %v590 = vpack.c.bf16 %v513, %v511
      %v591 = vpack.c.bf16 %v540, %v538
      %v592 = vpack.c.bf16 %v567, %v565
      %v593 = vpack.c.bf16 %v480, %v477
      %v594 = vpack.c.bf16 %v517, %v515
      %v595 = vpack.c.bf16 %v544, %v542
      %v596 = vpack.c.bf16 %v571, %v569
      %v597 = vpack.c.bf16 %v485, %v485
      %v598 = vpack.c.bf16 %v516, %v516
      %v599 = vpack.c.bf16 %v543, %v543
      %v600 = vpack.c.bf16 %v570, %v570
      %v601 = vld [vmem:[%s3] sm:$0xf]
      %v602 = vld [vmem:[%s3 + $0x4] sm:$0xf]
      %v603 = vld [vmem:[%s3 + $0x8] sm:$0xf]
      %v604 = vld [vmem:[%s3 + $0xc] sm:$0xf]
      %v605 = vld [vmem:[%s3 + $0x10] sm:$0xf]
      %v606 = vld [vmem:[%s3 + $0x14] sm:$0xf]
      %v607 = vld [vmem:[%s3 + $0x18] sm:$0xf]
      %v608 = vld [vmem:[%s3 + $0x1c] sm:$0xf]
      %v609 = vld [vmem:[%s3 + $0x20] sm:$0xf]
      %v610 = vld [vmem:[%s3 + $0x24] sm:$0xf]
      %v611 = vld [vmem:[%s3 + $0x28] sm:$0xf]
      %v612 = vld [vmem:[%s3 + $0x2c] sm:$0xf]
      %v613 = vld [vmem:[%s3 + $0x30] sm:$0xf]
      %v614 = vld [vmem:[%s3 + $0x34] sm:$0xf]
      %v615 = vld [vmem:[%s3 + $0x38] sm:$0xf]
      %v616 = vld [vmem:[%s3 + $0x3c] sm:$0xf]
      %v617 = vld [vmem:[%s3 + $0x40] sm:$0xf]
      %v618 = vld [vmem:[%s3 + $0x44] sm:$0xf]
      %v619 = vld [vmem:[%s3 + $0x48] sm:$0xf]
      %v620 = vld [vmem:[%s3 + $0x4c] sm:$0xf]
      %v621 = vld [vmem:[%s3 + $0x50] sm:$0xf]
      %v622 = vld [vmem:[%s3 + $0x54] sm:$0xf]
      %v623 = vld [vmem:[%s3 + $0x58] sm:$0xf]
      %v624 = vld [vmem:[%s3 + $0x5c] sm:$0xf]
      %v625 = vld [vmem:[%s3 + $0x60] sm:$0xf]
      %v626 = vld [vmem:[%s3 + $0x64] sm:$0xf]
      %v627 = vld [vmem:[%s3 + $0x68] sm:$0xf]
      %v628 = vld [vmem:[%s3 + $0x6c] sm:$0xf]
      %v629 = vld [vmem:[%s3 + $0x70] sm:$0xf]
      %v630 = vld [vmem:[%s3 + $0x74] sm:$0xf]
      %v631 = vld [vmem:[%s3 + $0x78] sm:$0xf]
      %v632 = vld [vmem:[%s3 + $0x7c] sm:$0xf]
      %v633 = vld [vmem:[%s3 + $0x80] sm:$0xf]
      %v634 = vld [vmem:[%s3 + $0x84] sm:$0xf]
      %v635 = vld [vmem:[%s3 + $0x88] sm:$0xf]
      %v636 = vld [vmem:[%s3 + $0x8c] sm:$0xf]
      %v637 = vld [vmem:[%s3 + $0x90] sm:$0xf]
      %v638 = vld [vmem:[%s3 + $0x94] sm:$0xf]
      %v639 = vld [vmem:[%s3 + $0x98] sm:$0xf]
      %v640 = vld [vmem:[%s3 + $0x9c] sm:$0xf]
      %v641 = vld [vmem:[%s3 + $0xa0] sm:$0xf]
      %v642 = vld [vmem:[%s3 + $0xa4] sm:$0xf]
      %v643 = vld [vmem:[%s3 + $0xa8] sm:$0xf]
      %v644 = vld [vmem:[%s3 + $0xac] sm:$0xf]
      %v645 = vld [vmem:[%s3 + $0xb0] sm:$0xf]
      %v646 = vld [vmem:[%s3 + $0xb4] sm:$0xf]
      %v647 = vld [vmem:[%s3 + $0xb8] sm:$0xf]
      %v648 = vld [vmem:[%s3 + $0xbc] sm:$0xf]
      %v649 = vld [vmem:[%s3 + $0xc0] sm:$0xf]
      %v650 = vld [vmem:[%s3 + $0xc4] sm:$0xf]
      %v651 = vld [vmem:[%s3 + $0xc8] sm:$0xf]
      %v652 = vld [vmem:[%s3 + $0xcc] sm:$0xf]
      %v653 = vld [vmem:[%s3 + $0xd0] sm:$0xf]
      %v654 = vld [vmem:[%s3 + $0xd4] sm:$0xf]
      %v655 = vld [vmem:[%s3 + $0xd8] sm:$0xf]
      %v656 = vld [vmem:[%s3 + $0xdc] sm:$0xf]
      %v657 = vld [vmem:[%s3 + $0xe0] sm:$0xf]
      %v658 = vld [vmem:[%s3 + $0xe4] sm:$0xf]
      %v659 = vld [vmem:[%s3 + $0xe8] sm:$0xf]
      %v660 = vld [vmem:[%s3 + $0xec] sm:$0xf]
      %v661 = vld [vmem:[%s3 + $0xf0] sm:$0xf]
      %v662 = vld [vmem:[%s3 + $0xf4] sm:$0xf]
      %v663 = vld [vmem:[%s3 + $0xf8] sm:$0xf]
      %v664 = vld [vmem:[%s3 + $0xfc] sm:$0xf]
      %v665 = vld [vmem:[%s4] sm:$0x1]
      %v667 = vlaneseq
      %v668 = vshrl.u32 %v667, 7
      %v669 = vsub.s32 0, %v668
      %v670 = vrot.slane %v665, %v669
      %v736 = vunpack.c.l.b16 %v601
      %v737 = vunpack.c.l.b16 %v602
      %v738 = vunpack.c.l.b16 %v603
      %v739 = vunpack.c.l.b16 %v604
      %v740 = vunpack.c.l.b16 %v605
      %v741 = vunpack.c.l.b16 %v606
      %v742 = vunpack.c.l.b16 %v607
      %v743 = vunpack.c.l.b16 %v608
      %v744 = vunpack.c.l.b16 %v609
      %v745 = vunpack.c.l.b16 %v610
      %v746 = vunpack.c.l.b16 %v611
      %v747 = vunpack.c.l.b16 %v612
      %v748 = vunpack.c.l.b16 %v613
      %v749 = vunpack.c.l.b16 %v614
      %v750 = vunpack.c.l.b16 %v615
      %v751 = vunpack.c.l.b16 %v616
      %v752 = vunpack.c.l.b16 %v617
      %v753 = vunpack.c.l.b16 %v618
      %v754 = vunpack.c.l.b16 %v619
      %v755 = vunpack.c.l.b16 %v620
      %v756 = vunpack.c.l.b16 %v621
      %v757 = vunpack.c.l.b16 %v622
      %v758 = vunpack.c.l.b16 %v623
      %v759 = vunpack.c.l.b16 %v624
      %v760 = vunpack.c.l.b16 %v625
      %v761 = vunpack.c.l.b16 %v626
      %v762 = vunpack.c.l.b16 %v627
      %v763 = vunpack.c.l.b16 %v628
      %v764 = vunpack.c.l.b16 %v629
      %v765 = vunpack.c.l.b16 %v630
      %v766 = vunpack.c.l.b16 %v631
      %v767 = vunpack.c.l.b16 %v632
      %v768 = vunpack.c.l.b16 %v633
      %v769 = vunpack.c.l.b16 %v634
      %v770 = vunpack.c.l.b16 %v635
      %v771 = vunpack.c.l.b16 %v636
      %v772 = vunpack.c.l.b16 %v637
      %v773 = vunpack.c.l.b16 %v638
      %v774 = vunpack.c.l.b16 %v639
      %v775 = vunpack.c.l.b16 %v640
      %v776 = vunpack.c.l.b16 %v641
      %v777 = vunpack.c.l.b16 %v642
      %v778 = vunpack.c.l.b16 %v643
      %v779 = vunpack.c.l.b16 %v644
      %v780 = vunpack.c.l.b16 %v645
      %v781 = vunpack.c.l.b16 %v646
      %v782 = vunpack.c.l.b16 %v647
      %v783 = vunpack.c.l.b16 %v648
      %v784 = vunpack.c.l.b16 %v649
      %v785 = vunpack.c.l.b16 %v650
      %v786 = vunpack.c.l.b16 %v651
      %v787 = vunpack.c.l.b16 %v652
      %v788 = vunpack.c.l.b16 %v653
      %v789 = vunpack.c.l.b16 %v654
      %v790 = vunpack.c.l.b16 %v655
      %v791 = vunpack.c.l.b16 %v656
      %v792 = vunpack.c.l.b16 %v657
      %v793 = vunpack.c.l.b16 %v658
      %v794 = vunpack.c.l.b16 %v659
      %v795 = vunpack.c.l.b16 %v660
      %v796 = vunpack.c.l.b16 %v661
      %v797 = vunpack.c.l.b16 %v662
      %v798 = vunpack.c.l.b16 %v663
      %v799 = vunpack.c.l.b16 %v664
      %v800 = vpack.c.b16 %v737, %v736
      %v801 = vpack.c.b16 %v739, %v738
      %v802 = vpack.c.b16 %v741, %v740
      %v803 = vpack.c.b16 %v743, %v742
      %v804 = vpack.c.b16 %v745, %v744
      %v805 = vpack.c.b16 %v747, %v746
      %v806 = vpack.c.b16 %v749, %v748
      %v807 = vpack.c.b16 %v751, %v750
      %v808 = vpack.c.b16 %v753, %v752
      %v809 = vpack.c.b16 %v755, %v754
      %v810 = vpack.c.b16 %v757, %v756
      %v811 = vpack.c.b16 %v759, %v758
      %v812 = vpack.c.b16 %v761, %v760
      %v813 = vpack.c.b16 %v763, %v762
      %v814 = vpack.c.b16 %v765, %v764
      %v815 = vpack.c.b16 %v767, %v766
      %v816 = vpack.c.b16 %v769, %v768
      %v817 = vpack.c.b16 %v771, %v770
      %v818 = vpack.c.b16 %v773, %v772
      %v819 = vpack.c.b16 %v775, %v774
      %v820 = vpack.c.b16 %v777, %v776
      %v821 = vpack.c.b16 %v779, %v778
      %v822 = vpack.c.b16 %v781, %v780
      %v823 = vpack.c.b16 %v783, %v782
      %v824 = vpack.c.b16 %v785, %v784
      %v825 = vpack.c.b16 %v787, %v786
      %v826 = vpack.c.b16 %v789, %v788
      %v827 = vpack.c.b16 %v791, %v790
      %v828 = vpack.c.b16 %v793, %v792
      %v829 = vpack.c.b16 %v795, %v794
      %v830 = vpack.c.b16 %v797, %v796
      %v831 = vpack.c.b16 %v799, %v798
      %864 = vmatprep.subr.bf16.mxu0 0
      %865 = vmatpush1.bf16.msra.mxu0 %v807
      %866 = vmatprep.subr.bf16.mxu0 0
      %867 = vmatpush1.bf16.msra.mxu0 %v806
      %868 = vmatprep.subr.bf16.mxu0 0
      %869 = vmatpush1.bf16.msra.mxu0 %v805
      %870 = vmatprep.subr.bf16.mxu0 0
      %871 = vmatpush1.bf16.msra.mxu0 %v804
      %872 = vmatprep.subr.bf16.mxu0 0
      %873 = vmatpush1.bf16.msra.mxu0 %v803
      %874 = vmatprep.subr.bf16.mxu0 0
      %875 = vmatpush1.bf16.msra.mxu0 %v802
      %876 = vmatprep.subr.bf16.mxu0 0
      %877 = vmatpush1.bf16.msra.mxu0 %v801
      %878 = vmatprep.subr.bf16.mxu0 0
      %879 = vmatpush1.bf16.msra.mxu0 %v800
      %880 = vmatprep.subr.bf16.mxu0 0
      %881 = vmatpush2.bf16.msra.mxu0 %v815
      %882 = vmatprep.subr.bf16.mxu0 0
      %883 = vmatpush2.bf16.msra.mxu0 %v814
      %884 = vmatprep.subr.bf16.mxu0 0
      %885 = vmatpush2.bf16.msra.mxu0 %v813
      %886 = vmatprep.subr.bf16.mxu0 0
      %887 = vmatpush2.bf16.msra.mxu0 %v812
      %888 = vmatprep.subr.bf16.mxu0 0
      %889 = vmatpush2.bf16.msra.mxu0 %v811
      %890 = vmatprep.subr.bf16.mxu0 0
      %891 = vmatpush2.bf16.msra.mxu0 %v810
      %892 = vmatprep.subr.bf16.mxu0 0
      %893 = vmatpush2.bf16.msra.mxu0 %v809
      %894 = vmatprep.subr.bf16.mxu0 0
      %895 = vmatpush2.bf16.msra.mxu0 %v808
      %896 = vmatprep.mubr.bf16.mxu0 %v582
      %897 = vmatmul.mubr.bf16.gmra.mxu0 %v581
      %v898 = vpop.f32.mrf.mxu0
      %v899 = vadd.f32 %v670, %v898
      %v900 = vpop.f32.mrf.mxu0
      %v901 = vpop.f32.mrf.mxu0
      %v902 = vadd.f32 %v670, %v901
      %v903 = vpop.f32.mrf.mxu0
      %904 = vmatprep.mubr.bf16.mxu0 %v586
      %905 = vmatmul.mubr.bf16.gmra.mxu0 %v585
      %v906 = vpop.f32.mrf.mxu0
      %v907 = vadd.f32 %v670, %v906
      %v908 = vpop.f32.mrf.mxu0
      %v909 = vpop.f32.mrf.mxu0
      %v910 = vadd.f32 %v670, %v909
      %v911 = vpop.f32.mrf.mxu0
      %912 = vmatprep.mubr.bf16.mxu0 %v590
      %913 = vmatmul.mubr.bf16.gmra.mxu0 %v589
      %v914 = vpop.f32.mrf.mxu0
      %v915 = vadd.f32 %v670, %v914
      %v916 = vpop.f32.mrf.mxu0
      %v917 = vpop.f32.mrf.mxu0
      %v918 = vadd.f32 %v670, %v917
      %v919 = vpop.f32.mrf.mxu0
      %920 = vmatprep.mubr.bf16.mxu0 %v594
      %921 = vmatmul.mubr.bf16.gmra.mxu0 %v593
      %v922 = vpop.f32.mrf.mxu0
      %v923 = vadd.f32 %v670, %v922
      %v924 = vpop.f32.mrf.mxu0
      %v925 = vpop.f32.mrf.mxu0
      %v926 = vadd.f32 %v670, %v925
      %v927 = vpop.f32.mrf.mxu0
      %928 = vmatprep.mubr.bf16.mxu0 %v598
      %929 = vmatmul.mubr.bf16.gmra.mxu0 %v597
      %v930 = vpop.f32.mrf.mxu0
      %v931 = vadd.f32 %v670, %v930
      %v932 = vpop.f32.mrf.mxu0
      %v933 = vpop.f32.mrf.mxu0
      %v934 = vpop.f32.mrf.mxu0
      %935 = vdwg.mxu0
      %936 = vmatprep.subr.bf16.mxu0 0
      %937 = vmatpush1.bf16.msra.mxu0 %v823
      %938 = vmatprep.subr.bf16.mxu0 0
      %939 = vmatpush1.bf16.msra.mxu0 %v822
      %940 = vmatprep.subr.bf16.mxu0 0
      %941 = vmatpush1.bf16.msra.mxu0 %v821
      %942 = vmatprep.subr.bf16.mxu0 0
      %943 = vmatpush1.bf16.msra.mxu0 %v820
      %944 = vmatprep.subr.bf16.mxu0 0
      %945 = vmatpush1.bf16.msra.mxu0 %v819
      %946 = vmatprep.subr.bf16.mxu0 0
      %947 = vmatpush1.bf16.msra.mxu0 %v818
      %948 = vmatprep.subr.bf16.mxu0 0
      %949 = vmatpush1.bf16.msra.mxu0 %v817
      %950 = vmatprep.subr.bf16.mxu0 0
      %951 = vmatpush1.bf16.msra.mxu0 %v816
      %952 = vmatprep.subr.bf16.mxu0 0
      %953 = vmatpush2.bf16.msra.mxu0 %v831
      %954 = vmatprep.subr.bf16.mxu0 0
      %955 = vmatpush2.bf16.msra.mxu0 %v830
      %956 = vmatprep.subr.bf16.mxu0 0
      %957 = vmatpush2.bf16.msra.mxu0 %v829
      %958 = vmatprep.subr.bf16.mxu0 0
      %959 = vmatpush2.bf16.msra.mxu0 %v828
      %960 = vmatprep.subr.bf16.mxu0 0
      %961 = vmatpush2.bf16.msra.mxu0 %v827
      %962 = vmatprep.subr.bf16.mxu0 0
      %963 = vmatpush2.bf16.msra.mxu0 %v826
      %964 = vmatprep.subr.bf16.mxu0 0
      %965 = vmatpush2.bf16.msra.mxu0 %v825
      %966 = vmatprep.subr.bf16.mxu0 0
      %967 = vmatpush2.bf16.msra.mxu0 %v824
      %968 = vmatprep.mubr.bf16.mxu0 %v584
      %969 = vmatmul.mubr.bf16.gmra.mxu0 %v583
      %v970 = vpop.f32.mrf.mxu0
      %v971 = vadd.f32 %v899, %v970
      %v972 = vpop.f32.mrf.mxu0
      %v973 = vpop.f32.mrf.mxu0
      %v974 = vadd.f32 %v902, %v973
      %v975 = vpop.f32.mrf.mxu0
      %976 = vmatprep.mubr.bf16.mxu0 %v588
      %977 = vmatmul.mubr.bf16.gmra.mxu0 %v587
      %v978 = vpop.f32.mrf.mxu0
      %v979 = vadd.f32 %v907, %v978
      %v980 = vpop.f32.mrf.mxu0
      %v981 = vpop.f32.mrf.mxu0
      %v982 = vadd.f32 %v910, %v981
      %v983 = vpop.f32.mrf.mxu0
      %984 = vmatprep.mubr.bf16.mxu0 %v592
      %985 = vmatmul.mubr.bf16.gmra.mxu0 %v591
      %v986 = vpop.f32.mrf.mxu0
      %v987 = vadd.f32 %v915, %v986
      %v988 = vpop.f32.mrf.mxu0
      %v989 = vpop.f32.mrf.mxu0
      %v990 = vadd.f32 %v918, %v989
      %v991 = vpop.f32.mrf.mxu0
      %992 = vmatprep.mubr.bf16.mxu0 %v596
      %993 = vmatmul.mubr.bf16.gmra.mxu0 %v595
      %v994 = vpop.f32.mrf.mxu0
      %v995 = vadd.f32 %v923, %v994
      %v996 = vpop.f32.mrf.mxu0
      %v997 = vpop.f32.mrf.mxu0
      %v998 = vadd.f32 %v926, %v997
      %v999 = vpop.f32.mrf.mxu0
      %1000 = vmatprep.mubr.bf16.mxu0 %v600
      %1001 = vmatmul.mubr.bf16.gmra.mxu0 %v599
      %v1002 = vpop.f32.mrf.mxu0
      %v1003 = vadd.f32 %v931, %v1002
      %v1004 = vpop.f32.mrf.mxu0
      %v1005 = vpop.f32.mrf.mxu0
      %v1006 = vpop.f32.mrf.mxu0
      %1007 = vdwg.mxu0
      %vm1008 = vcmp.ge.f32.partialorder %v971, 0.0
      %vm1009 = vcmp.ge.f32.partialorder %v974, 0.0
      %vm1010 = vcmp.ge.f32.partialorder %v979, 0.0
      %vm1011 = vcmp.ge.f32.partialorder %v982, 0.0
      %vm1012 = vcmp.ge.f32.partialorder %v987, 0.0
      %vm1013 = vcmp.ge.f32.partialorder %v990, 0.0
      %vm1014 = vcmp.ge.f32.partialorder %v995, 0.0
      %vm1015 = vcmp.ge.f32.partialorder %v998, 0.0
      %vm1016 = vcmp.ge.f32.partialorder %v1003, 0.0
      %v1017 = vlaneseq
      %v1018 = vshrl.u32 %v1017, 7
      %v1019 = vsub.s32 0, %v1018
      %v1020 = vrot.slane %v490, %v1019
      %v1021 = vmul.f32 %v971, %v1020
      %v1022 = vmul.f32 %v974, %v1020
      %v1023 = vmul.f32 %v979, %v1020
      %v1024 = vmul.f32 %v982, %v1020
      %v1025 = vmul.f32 %v987, %v1020
      %v1026 = vmul.f32 %v990, %v1020
      %v1027 = vmul.f32 %v995, %v1020
      %v1028 = vmul.f32 %v998, %v1020
      %v1029 = vmul.f32 %v1003, %v1020
      %v1030 = vsel %vm1008, %v971, %v1021
      %v1031 = vsel %vm1009, %v974, %v1022
      %v1032 = vsel %vm1010, %v979, %v1023
      %v1033 = vsel %vm1011, %v982, %v1024
      %v1034 = vsel %vm1012, %v987, %v1025
      %v1035 = vsel %vm1013, %v990, %v1026
      %v1036 = vsel %vm1014, %v995, %v1027
      %v1037 = vsel %vm1015, %v998, %v1028
      %v1038 = vsel %vm1016, %v1003, %v1029
      %v1039 = vlaneseq
      %v1040 = vshrl.u32 %v1039, 7
      %v1041 = vadd.s32 %v1040, 8
      %v1042 = vadd.s32 %v1040, 16
      %v1043 = vadd.s32 %v1040, 24
      %v1044 = vadd.s32 %v1040, 32
      %v1045 = vlaneseq
      %v1046 = vand.u32 %v1045, 127
      %v1047 = vmul.u32 %v1040, 2
      %v1048 = vmul.u32 %v1041, 2
      %v1049 = vmul.u32 %v1042, 2
      %v1050 = vmul.u32 %v1043, 2
      %v1051 = vmul.u32 %v1044, 2
      %vm1052 = vcmp.eq.s32.totalorder %v1046, %v1047
      %vm1053 = vcmp.eq.s32.totalorder %v1046, %v1048
      %vm1054 = vcmp.eq.s32.totalorder %v1046, %v1049
      %vm1055 = vcmp.eq.s32.totalorder %v1046, %v1050
      %vm1056 = vcmp.eq.s32.totalorder %v1046, %v1051
      %v1057 = vsel %vm1052, 1, 0
      %v1058 = vsel %vm1053, 1, 0
      %v1059 = vsel %vm1054, 1, 0
      %v1060 = vsel %vm1055, 1, 0
      %v1061 = vsel %vm1056, 1, 0
      %v1062 = vcvt.s32.f32 %v1057
      %v1063 = vcvt.s32.f32 %v1058
      %v1064 = vcvt.s32.f32 %v1059
      %v1065 = vcvt.s32.f32 %v1060
      %v1066 = vcvt.s32.f32 %v1061
      %v1067 = vadd.s32 %v1047, 1
      %v1068 = vadd.s32 %v1048, 1
      %v1069 = vadd.s32 %v1049, 1
      %v1070 = vadd.s32 %v1050, 1
      %v1071 = vadd.s32 %v1051, 1
      %vm1072 = vcmp.eq.s32.totalorder %v1046, %v1067
      %vm1073 = vcmp.eq.s32.totalorder %v1046, %v1068
      %vm1074 = vcmp.eq.s32.totalorder %v1046, %v1069
      %vm1075 = vcmp.eq.s32.totalorder %v1046, %v1070
      %vm1076 = vcmp.eq.s32.totalorder %v1046, %v1071
      %v1077 = vsel %vm1072, 1, 0
      %v1078 = vsel %vm1073, 1, 0
      %v1079 = vsel %vm1074, 1, 0
      %v1080 = vsel %vm1075, 1, 0
      %v1081 = vsel %vm1076, 1, 0
      %v1082 = vcvt.s32.f32 %v1077
      %v1083 = vcvt.s32.f32 %v1078
      %v1084 = vcvt.s32.f32 %v1079
      %v1085 = vcvt.s32.f32 %v1080
      %v1086 = vcvt.s32.f32 %v1081
      %vm1087 = vcmask 564224
      %v1089 = vsel %vm1087, %v1062, 0
      %v1092 = vsel %vm1087, %v1063, 0
      %v1095 = vsel %vm1087, %v1064, 0
      %v1098 = vsel %vm1087, %v1065, 0
      %v1101 = vsel %vm1087, %v1066, 0
      %v1104 = vsel %vm554, %v1038, 0
      %1106 = vmatprep.subr.mxu0 0.0
      %1107 = vmatpush1.msra.mxu0 0.0
      %1108 = vmatprep.subr.mxu0 0.0
      %1109 = vmatpush1.msra.mxu0 0.0
      %1110 = vmatprep.subr.mxu0 0.0
      %1111 = vmatpush1.msra.mxu0 0.0
      %1112 = vmatprep.subr.mxu0 0.0
      %1113 = vmatpush1.msra.mxu0 0.0
      %1114 = vmatprep.subr.mxu0 0.0
      %1115 = vmatpush1.msra.mxu0 0.0
      %1116 = vmatprep.subr.mxu0 0.0
      %1117 = vmatpush1.msra.mxu0 0.0
      %1118 = vmatprep.subr.mxu0 0.0
      %1119 = vmatpush1.msra.mxu0 0.0
      %1120 = vmatprep.subr.mxu0 0.0
      %1121 = vmatpush1.msra.mxu0 %v1104
      %1122 = vmatprep.subr.mxu0 0.0
      %1123 = vmatpush1.msra.mxu0 %v1037
      %1124 = vmatprep.subr.mxu0 0.0
      %1125 = vmatpush1.msra.mxu0 %v1036
      %1126 = vmatprep.subr.mxu0 0.0
      %1127 = vmatpush1.msra.mxu0 %v1035
      %1128 = vmatprep.subr.mxu0 0.0
      %1129 = vmatpush1.msra.mxu0 %v1034
      %1130 = vmatprep.subr.mxu0 0.0
      %1131 = vmatpush1.msra.mxu0 %v1033
      %1132 = vmatprep.subr.mxu0 0.0
      %1133 = vmatpush1.msra.mxu0 %v1032
      %1134 = vmatprep.subr.mxu0 0.0
      %1135 = vmatpush1.msra.mxu0 %v1031
      %1136 = vmatprep.subr.mxu0 0.0
      %1137 = vmatpush1.msra.mxu0 %v1030
      %1138 = vmatprep.subr.mxu0 0.0
      %1139 = vmatpush2.msra.mxu0 0.0
      %1140 = vmatprep.subr.mxu0 0.0
      %1141 = vmatpush2.msra.mxu0 0.0
      %1142 = vmatprep.subr.mxu0 0.0
      %1143 = vmatpush2.msra.mxu0 0.0
      %1144 = vmatprep.subr.mxu0 0.0
      %1145 = vmatpush2.msra.mxu0 0.0
      %1146 = vmatprep.subr.mxu0 0.0
      %1147 = vmatpush2.msra.mxu0 0.0
      %1148 = vmatprep.subr.mxu0 0.0
      %1149 = vmatpush2.msra.mxu0 0.0
      %1150 = vmatprep.subr.mxu0 0.0
      %1151 = vmatpush2.msra.mxu0 0.0
      %1152 = vmatprep.subr.mxu0 0.0
      %1153 = vmatpush2.msra.mxu0 0.0
      %1154 = vmatprep.subr.mxu0 0.0
      %1155 = vmatpush2.msra.mxu0 0.0
      %1156 = vmatprep.subr.mxu0 0.0
      %1157 = vmatpush2.msra.mxu0 0.0
      %1158 = vmatprep.subr.mxu0 0.0
      %1159 = vmatpush2.msra.mxu0 0.0
      %1160 = vmatprep.subr.mxu0 0.0
      %1161 = vmatpush2.msra.mxu0 0.0
      %1162 = vmatprep.subr.mxu0 0.0
      %1163 = vmatpush2.msra.mxu0 0.0
      %1164 = vmatprep.subr.mxu0 0.0
      %1165 = vmatpush2.msra.mxu0 0.0
      %1166 = vmatprep.subr.mxu0 0.0
      %1167 = vmatpush2.msra.mxu0 0.0
      %1168 = vmatprep.subr.mxu0 0.0
      %1169 = vmatpush2.msra.mxu0 0.0
      %1170 = vmatprep.mubr.f32.mxu0 0.0
      %1171 = vmatmul.mubr.f32.gmra.mxu0 %v1089
      %v1172 = vpop.f32.mrf.mxu0
      %v1173 = vadd.f32 0.0, %v1172
      %v1174 = vpop.f32.mrf.mxu0
      %1175 = vmatprep.mubr.f32.mxu0 0.0
      %1176 = vmatmul.mubr.f32.gmra.mxu0 %v1092
      %v1177 = vpop.f32.mrf.mxu0
      %v1178 = vadd.f32 0.0, %v1177
      %v1179 = vpop.f32.mrf.mxu0
      %1180 = vmatprep.mubr.f32.mxu0 0.0
      %1181 = vmatmul.mubr.f32.gmra.mxu0 %v1095
      %v1182 = vpop.f32.mrf.mxu0
      %v1183 = vadd.f32 0.0, %v1182
      %v1184 = vpop.f32.mrf.mxu0
      %1185 = vmatprep.mubr.f32.mxu0 0.0
      %1186 = vmatmul.mubr.f32.gmra.mxu0 %v1098
      %v1187 = vpop.f32.mrf.mxu0
      %v1188 = vadd.f32 0.0, %v1187
      %v1189 = vpop.f32.mrf.mxu0
      %1190 = vmatprep.mubr.f32.mxu0 0.0
      %1191 = vmatmul.mubr.f32.gmra.mxu0 %v1101
      %v1192 = vpop.f32.mrf.mxu0
      %v1193 = vadd.f32 0.0, %v1192
      %v1194 = vpop.f32.mrf.mxu0
      %1195 = vdwg.mxu0
      %v1197 = vsel %vm1087, %v1082, 0
      %v1200 = vsel %vm1087, %v1083, 0
      %v1203 = vsel %vm1087, %v1084, 0
      %v1206 = vsel %vm1087, %v1085, 0
      %v1209 = vsel %vm1087, %v1086, 0
      %1211 = vmatprep.subr.mxu0 0.0
      %1212 = vmatpush1.msra.mxu0 0.0
      %1213 = vmatprep.subr.mxu0 0.0
      %1214 = vmatpush1.msra.mxu0 0.0
      %1215 = vmatprep.subr.mxu0 0.0
      %1216 = vmatpush1.msra.mxu0 0.0
      %1217 = vmatprep.subr.mxu0 0.0
      %1218 = vmatpush1.msra.mxu0 0.0
      %1219 = vmatprep.subr.mxu0 0.0
      %1220 = vmatpush1.msra.mxu0 0.0
      %1221 = vmatprep.subr.mxu0 0.0
      %1222 = vmatpush1.msra.mxu0 0.0
      %1223 = vmatprep.subr.mxu0 0.0
      %1224 = vmatpush1.msra.mxu0 0.0
      %1225 = vmatprep.subr.mxu0 0.0
      %1226 = vmatpush1.msra.mxu0 %v1104
      %1227 = vmatprep.subr.mxu0 0.0
      %1228 = vmatpush1.msra.mxu0 %v1037
      %1229 = vmatprep.subr.mxu0 0.0
      %1230 = vmatpush1.msra.mxu0 %v1036
      %1231 = vmatprep.subr.mxu0 0.0
      %1232 = vmatpush1.msra.mxu0 %v1035
      %1233 = vmatprep.subr.mxu0 0.0
      %1234 = vmatpush1.msra.mxu0 %v1034
      %1235 = vmatprep.subr.mxu0 0.0
      %1236 = vmatpush1.msra.mxu0 %v1033
      %1237 = vmatprep.subr.mxu0 0.0
      %1238 = vmatpush1.msra.mxu0 %v1032
      %1239 = vmatprep.subr.mxu0 0.0
      %1240 = vmatpush1.msra.mxu0 %v1031
      %1241 = vmatprep.subr.mxu0 0.0
      %1242 = vmatpush1.msra.mxu0 %v1030
      %1243 = vmatprep.subr.mxu0 0.0
      %1244 = vmatpush2.msra.mxu0 0.0
      %1245 = vmatprep.subr.mxu0 0.0
      %1246 = vmatpush2.msra.mxu0 0.0
      %1247 = vmatprep.subr.mxu0 0.0
      %1248 = vmatpush2.msra.mxu0 0.0
      %1249 = vmatprep.subr.mxu0 0.0
      %1250 = vmatpush2.msra.mxu0 0.0
      %1251 = vmatprep.subr.mxu0 0.0
      %1252 = vmatpush2.msra.mxu0 0.0
      %1253 = vmatprep.subr.mxu0 0.0
      %1254 = vmatpush2.msra.mxu0 0.0
      %1255 = vmatprep.subr.mxu0 0.0
      %1256 = vmatpush2.msra.mxu0 0.0
      %1257 = vmatprep.subr.mxu0 0.0
      %1258 = vmatpush2.msra.mxu0 0.0
      %1259 = vmatprep.subr.mxu0 0.0
      %1260 = vmatpush2.msra.mxu0 0.0
      %1261 = vmatprep.subr.mxu0 0.0
      %1262 = vmatpush2.msra.mxu0 0.0
      %1263 = vmatprep.subr.mxu0 0.0
      %1264 = vmatpush2.msra.mxu0 0.0
      %1265 = vmatprep.subr.mxu0 0.0
      %1266 = vmatpush2.msra.mxu0 0.0
      %1267 = vmatprep.subr.mxu0 0.0
      %1268 = vmatpush2.msra.mxu0 0.0
      %1269 = vmatprep.subr.mxu0 0.0
      %1270 = vmatpush2.msra.mxu0 0.0
      %1271 = vmatprep.subr.mxu0 0.0
      %1272 = vmatpush2.msra.mxu0 0.0
      %1273 = vmatprep.subr.mxu0 0.0
      %1274 = vmatpush2.msra.mxu0 0.0
      %1275 = vmatprep.mubr.f32.mxu0 0.0
      %1276 = vmatmul.mubr.f32.gmra.mxu0 %v1197
      %v1277 = vpop.f32.mrf.mxu0
      %v1278 = vadd.f32 0.0, %v1277
      %v1279 = vpop.f32.mrf.mxu0
      %1280 = vmatprep.mubr.f32.mxu0 0.0
      %1281 = vmatmul.mubr.f32.gmra.mxu0 %v1200
      %v1282 = vpop.f32.mrf.mxu0
      %v1283 = vadd.f32 0.0, %v1282
      %v1284 = vpop.f32.mrf.mxu0
      %1285 = vmatprep.mubr.f32.mxu0 0.0
      %1286 = vmatmul.mubr.f32.gmra.mxu0 %v1203
      %v1287 = vpop.f32.mrf.mxu0
      %v1288 = vadd.f32 0.0, %v1287
      %v1289 = vpop.f32.mrf.mxu0
      %1290 = vmatprep.mubr.f32.mxu0 0.0
      %1291 = vmatmul.mubr.f32.gmra.mxu0 %v1206
      %v1292 = vpop.f32.mrf.mxu0
      %v1293 = vadd.f32 0.0, %v1292
      %v1294 = vpop.f32.mrf.mxu0
      %1295 = vmatprep.mubr.f32.mxu0 0.0
      %1296 = vmatmul.mubr.f32.gmra.mxu0 %v1209
      %v1297 = vpop.f32.mrf.mxu0
      %v1298 = vadd.f32 0.0, %v1297
      %v1299 = vpop.f32.mrf.mxu0
      %1300 = vdwg.mxu0
      %v1301 = vmax.f32 %v1173, %v1278
      %v1302 = vmax.f32 %v1178, %v1283
      %v1303 = vmax.f32 %v1183, %v1288
      %v1304 = vmax.f32 %v1188, %v1293
      %v1305 = vmax.f32 %v1193, %v1298
      %v1310 = vrot.slane %v1301, 1
      %v1311 = vrot.slane %v1302, 1
      %v1312 = vsel %vm500, %v1310, %v1311
      %v1313 = vrot.slane %v1303, 1
      %v1314 = vsel %vm500, %v1311, %v1313
      %v1315 = vrot.slane %v1304, 1
      %v1316 = vsel %vm500, %v1313, %v1315
      %v1321 = vrot.slane %v1301, 2
      %v1322 = vrot.slane %v1302, 2
      %v1323 = vsel %vm527, %v1321, %v1322
      %v1324 = vrot.slane %v1303, 2
      %v1325 = vsel %vm527, %v1322, %v1324
      %v1326 = vrot.slane %v1304, 2
      %v1327 = vsel %vm527, %v1324, %v1326
      %v1332 = vrot.slane %v1301, 3
      %v1333 = vrot.slane %v1302, 3
      %v1334 = vsel %vm554, %v1332, %v1333
      %v1335 = vrot.slane %v1303, 3
      %v1336 = vsel %vm554, %v1333, %v1335
      %v1337 = vrot.slane %v1304, 3
      %v1338 = vsel %vm554, %v1335, %v1337
      %v1344 = vrot.slane %v1301, 4
      %v1345 = vrot.slane %v1302, 4
      %v1346 = vsel %vm414, %v1344, %v1345
      %v1347 = vrot.slane %v1303, 4
      %v1348 = vsel %vm414, %v1345, %v1347
      %v1349 = vrot.slane %v1304, 4
      %v1350 = vsel %vm414, %v1347, %v1349
      %v1351 = vrot.slane %v1305, 4
      %v1352 = vsel %vm414, %v1349, %v1351
      %vm1357 = vcmask 1042432
      %v1358 = vrot.slane %v1301, 5
      %v1359 = vrot.slane %v1302, 5
      %v1360 = vsel %vm1357, %v1358, %v1359
      %v1361 = vrot.slane %v1303, 5
      %v1362 = vsel %vm1357, %v1359, %v1361
      %v1363 = vrot.slane %v1304, 5
      %v1364 = vsel %vm1357, %v1361, %v1363
      %v1365 = vrot.slane %v1305, 5
      %v1366 = vsel %vm1357, %v1363, %v1365
      %v1371 = vpack.c.bf16 %v1302, %v1301
      %v1372 = vpack.c.bf16 %v1314, %v1312
      %v1373 = vpack.c.bf16 %v1325, %v1323
      %v1374 = vpack.c.bf16 %v1336, %v1334
      %v1375 = vpack.c.bf16 %v1348, %v1346
      %v1376 = vpack.c.bf16 %v1362, %v1360
      %v1377 = vpack.c.bf16 %v1304, %v1303
      %v1378 = vpack.c.bf16 %v1315, %v1316
      %v1379 = vpack.c.bf16 %v1326, %v1327
      %v1380 = vpack.c.bf16 %v1337, %v1338
      %v1381 = vpack.c.bf16 %v1352, %v1350
      %v1382 = vpack.c.bf16 %v1366, %v1364
      %v1383 = vld [vmem:[%s5] sm:$0xf]
      %v1384 = vld [vmem:[%s5 + $0x4] sm:$0xf]
      %v1385 = vld [vmem:[%s5 + $0x8] sm:$0xf]
      %v1386 = vld [vmem:[%s5 + $0xc] sm:$0xf]
      %v1387 = vld [vmem:[%s5 + $0x10] sm:$0xf]
      %v1388 = vld [vmem:[%s5 + $0x14] sm:$0xf]
      %v1389 = vld [vmem:[%s5 + $0x18] sm:$0xf]
      %v1390 = vld [vmem:[%s5 + $0x1c] sm:$0xf]
      %v1391 = vld [vmem:[%s5 + $0x20] sm:$0xf]
      %v1392 = vld [vmem:[%s5 + $0x24] sm:$0xf]
      %v1393 = vld [vmem:[%s5 + $0x28] sm:$0xf]
      %v1394 = vld [vmem:[%s5 + $0x2c] sm:$0xf]
      %v1395 = vld [vmem:[%s5 + $0x30] sm:$0xf]
      %v1396 = vld [vmem:[%s5 + $0x34] sm:$0xf]
      %v1397 = vld [vmem:[%s5 + $0x38] sm:$0xf]
      %v1398 = vld [vmem:[%s5 + $0x3c] sm:$0xf]
      %v1399 = vld [vmem:[%s5 + $0x40] sm:$0xf]
      %v1400 = vld [vmem:[%s5 + $0x44] sm:$0xf]
      %v1401 = vld [vmem:[%s5 + $0x48] sm:$0xf]
      %v1402 = vld [vmem:[%s5 + $0x4c] sm:$0xf]
      %v1403 = vld [vmem:[%s5 + $0x50] sm:$0xf]
      %v1404 = vld [vmem:[%s5 + $0x54] sm:$0xf]
      %v1405 = vld [vmem:[%s5 + $0x58] sm:$0xf]
      %v1406 = vld [vmem:[%s5 + $0x5c] sm:$0xf]
      %v1407 = vld [vmem:[%s5 + $0x60] sm:$0xf]
      %v1408 = vld [vmem:[%s5 + $0x64] sm:$0xf]
      %v1409 = vld [vmem:[%s5 + $0x68] sm:$0xf]
      %v1410 = vld [vmem:[%s5 + $0x6c] sm:$0xf]
      %v1411 = vld [vmem:[%s5 + $0x70] sm:$0xf]
      %v1412 = vld [vmem:[%s5 + $0x74] sm:$0xf]
      %v1413 = vld [vmem:[%s5 + $0x78] sm:$0xf]
      %v1414 = vld [vmem:[%s5 + $0x7c] sm:$0xf]
      %v1415 = vld [vmem:[%s5 + $0x80] sm:$0xf]
      %v1416 = vld [vmem:[%s5 + $0x84] sm:$0xf]
      %v1417 = vld [vmem:[%s5 + $0x88] sm:$0xf]
      %v1418 = vld [vmem:[%s5 + $0x8c] sm:$0xf]
      %v1419 = vld [vmem:[%s5 + $0x90] sm:$0xf]
      %v1420 = vld [vmem:[%s5 + $0x94] sm:$0xf]
      %v1421 = vld [vmem:[%s5 + $0x98] sm:$0xf]
      %v1422 = vld [vmem:[%s5 + $0x9c] sm:$0xf]
      %v1423 = vld [vmem:[%s5 + $0xa0] sm:$0xf]
      %v1424 = vld [vmem:[%s5 + $0xa4] sm:$0xf]
      %v1425 = vld [vmem:[%s5 + $0xa8] sm:$0xf]
      %v1426 = vld [vmem:[%s5 + $0xac] sm:$0xf]
      %v1427 = vld [vmem:[%s5 + $0xb0] sm:$0xf]
      %v1428 = vld [vmem:[%s5 + $0xb4] sm:$0xf]
      %v1429 = vld [vmem:[%s5 + $0xb8] sm:$0xf]
      %v1430 = vld [vmem:[%s5 + $0xbc] sm:$0xf]
      %v1431 = vld [vmem:[%s5 + $0xc0] sm:$0xf]
      %v1432 = vld [vmem:[%s5 + $0xc4] sm:$0xf]
      %v1433 = vld [vmem:[%s5 + $0xc8] sm:$0xf]
      %v1434 = vld [vmem:[%s5 + $0xcc] sm:$0xf]
      %v1435 = vld [vmem:[%s5 + $0xd0] sm:$0xf]
      %v1436 = vld [vmem:[%s5 + $0xd4] sm:$0xf]
      %v1437 = vld [vmem:[%s5 + $0xd8] sm:$0xf]
      %v1438 = vld [vmem:[%s5 + $0xdc] sm:$0xf]
      %v1439 = vld [vmem:[%s5 + $0xe0] sm:$0xf]
      %v1440 = vld [vmem:[%s5 + $0xe4] sm:$0xf]
      %v1441 = vld [vmem:[%s5 + $0xe8] sm:$0xf]
      %v1442 = vld [vmem:[%s5 + $0xec] sm:$0xf]
      %v1443 = vld [vmem:[%s5 + $0xf0] sm:$0xf]
      %v1444 = vld [vmem:[%s5 + $0xf4] sm:$0xf]
      %v1445 = vld [vmem:[%s5 + $0xf8] sm:$0xf]
      %v1446 = vld [vmem:[%s5 + $0xfc] sm:$0xf]
      %v1447 = vld [vmem:[%s5 + $0x100] sm:$0xf]
      %v1448 = vld [vmem:[%s5 + $0x104] sm:$0xf]
      %v1449 = vld [vmem:[%s5 + $0x108] sm:$0xf]
      %v1450 = vld [vmem:[%s5 + $0x10c] sm:$0xf]
      %v1451 = vld [vmem:[%s5 + $0x110] sm:$0xf]
      %v1452 = vld [vmem:[%s5 + $0x114] sm:$0xf]
      %v1453 = vld [vmem:[%s5 + $0x118] sm:$0xf]
      %v1454 = vld [vmem:[%s5 + $0x11c] sm:$0xf]
      %v1455 = vld [vmem:[%s5 + $0x120] sm:$0xf]
      %v1456 = vld [vmem:[%s5 + $0x124] sm:$0xf]
      %v1457 = vld [vmem:[%s5 + $0x128] sm:$0xf]
      %v1458 = vld [vmem:[%s5 + $0x12c] sm:$0xf]
      %v1459 = vld [vmem:[%s5 + $0x130] sm:$0xf]
      %v1460 = vld [vmem:[%s5 + $0x134] sm:$0xf]
      %v1461 = vld [vmem:[%s5 + $0x138] sm:$0xf]
      %v1462 = vld [vmem:[%s5 + $0x13c] sm:$0xf]
      %v1463 = vld [vmem:[%s5 + $0x140] sm:$0xf]
      %v1464 = vld [vmem:[%s5 + $0x144] sm:$0xf]
      %v1465 = vld [vmem:[%s5 + $0x148] sm:$0xf]
      %v1466 = vld [vmem:[%s5 + $0x14c] sm:$0xf]
      %v1467 = vld [vmem:[%s5 + $0x150] sm:$0xf]
      %v1468 = vld [vmem:[%s5 + $0x154] sm:$0xf]
      %v1469 = vld [vmem:[%s5 + $0x158] sm:$0xf]
      %v1470 = vld [vmem:[%s5 + $0x15c] sm:$0xf]
      %v1471 = vld [vmem:[%s5 + $0x160] sm:$0xf]
      %v1472 = vld [vmem:[%s5 + $0x164] sm:$0xf]
      %v1473 = vld [vmem:[%s5 + $0x168] sm:$0xf]
      %v1474 = vld [vmem:[%s5 + $0x16c] sm:$0xf]
      %v1475 = vld [vmem:[%s5 + $0x170] sm:$0xf]
      %v1476 = vld [vmem:[%s5 + $0x174] sm:$0xf]
      %v1477 = vld [vmem:[%s5 + $0x178] sm:$0xf]
      %v1478 = vld [vmem:[%s5 + $0x17c] sm:$0xf]
      %v1479 = vld [vmem:[%s6] sm:$0x1]
      %v1481 = vlaneseq
      %v1482 = vshrl.u32 %v1481, 7
      %v1483 = vsub.s32 0, %v1482
      %v1484 = vrot.slane %v1479, %v1483
      %v1582 = vunpack.c.l.b16 %v1383
      %v1583 = vunpack.c.l.b16 %v1384
      %v1584 = vunpack.c.l.b16 %v1385
      %v1585 = vunpack.c.l.b16 %v1386
      %v1586 = vunpack.c.l.b16 %v1387
      %v1587 = vunpack.c.l.b16 %v1388
      %v1588 = vunpack.c.l.b16 %v1389
      %v1589 = vunpack.c.l.b16 %v1390
      %v1590 = vunpack.c.l.b16 %v1391
      %v1591 = vunpack.c.l.b16 %v1392
      %v1592 = vunpack.c.l.b16 %v1393
      %v1593 = vunpack.c.l.b16 %v1394
      %v1594 = vunpack.c.l.b16 %v1395
      %v1595 = vunpack.c.l.b16 %v1396
      %v1596 = vunpack.c.l.b16 %v1397
      %v1597 = vunpack.c.l.b16 %v1398
      %v1598 = vunpack.c.l.b16 %v1399
      %v1599 = vunpack.c.l.b16 %v1400
      %v1600 = vunpack.c.l.b16 %v1401
      %v1601 = vunpack.c.l.b16 %v1402
      %v1602 = vunpack.c.l.b16 %v1403
      %v1603 = vunpack.c.l.b16 %v1404
      %v1604 = vunpack.c.l.b16 %v1405
      %v1605 = vunpack.c.l.b16 %v1406
      %v1606 = vunpack.c.l.b16 %v1407
      %v1607 = vunpack.c.l.b16 %v1408
      %v1608 = vunpack.c.l.b16 %v1409
      %v1609 = vunpack.c.l.b16 %v1410
      %v1610 = vunpack.c.l.b16 %v1411
      %v1611 = vunpack.c.l.b16 %v1412
      %v1612 = vunpack.c.l.b16 %v1413
      %v1613 = vunpack.c.l.b16 %v1414
      %v1614 = vunpack.c.l.b16 %v1415
      %v1615 = vunpack.c.l.b16 %v1416
      %v1616 = vunpack.c.l.b16 %v1417
      %v1617 = vunpack.c.l.b16 %v1418
      %v1618 = vunpack.c.l.b16 %v1419
      %v1619 = vunpack.c.l.b16 %v1420
      %v1620 = vunpack.c.l.b16 %v1421
      %v1621 = vunpack.c.l.b16 %v1422
      %v1622 = vunpack.c.l.b16 %v1423
      %v1623 = vunpack.c.l.b16 %v1424
      %v1624 = vunpack.c.l.b16 %v1425
      %v1625 = vunpack.c.l.b16 %v1426
      %v1626 = vunpack.c.l.b16 %v1427
      %v1627 = vunpack.c.l.b16 %v1428
      %v1628 = vunpack.c.l.b16 %v1429
      %v1629 = vunpack.c.l.b16 %v1430
      %v1630 = vunpack.c.l.b16 %v1431
      %v1631 = vunpack.c.l.b16 %v1432
      %v1632 = vunpack.c.l.b16 %v1433
      %v1633 = vunpack.c.l.b16 %v1434
      %v1634 = vunpack.c.l.b16 %v1435
      %v1635 = vunpack.c.l.b16 %v1436
      %v1636 = vunpack.c.l.b16 %v1437
      %v1637 = vunpack.c.l.b16 %v1438
      %v1638 = vunpack.c.l.b16 %v1439
      %v1639 = vunpack.c.l.b16 %v1440
      %v1640 = vunpack.c.l.b16 %v1441
      %v1641 = vunpack.c.l.b16 %v1442
      %v1642 = vunpack.c.l.b16 %v1443
      %v1643 = vunpack.c.l.b16 %v1444
      %v1644 = vunpack.c.l.b16 %v1445
      %v1645 = vunpack.c.l.b16 %v1446
      %v1646 = vunpack.c.l.b16 %v1447
      %v1647 = vunpack.c.l.b16 %v1448
      %v1648 = vunpack.c.l.b16 %v1449
      %v1649 = vunpack.c.l.b16 %v1450
      %v1650 = vunpack.c.l.b16 %v1451
      %v1651 = vunpack.c.l.b16 %v1452
      %v1652 = vunpack.c.l.b16 %v1453
      %v1653 = vunpack.c.l.b16 %v1454
      %v1654 = vunpack.c.l.b16 %v1455
      %v1655 = vunpack.c.l.b16 %v1456
      %v1656 = vunpack.c.l.b16 %v1457
      %v1657 = vunpack.c.l.b16 %v1458
      %v1658 = vunpack.c.l.b16 %v1459
      %v1659 = vunpack.c.l.b16 %v1460
      %v1660 = vunpack.c.l.b16 %v1461
      %v1661 = vunpack.c.l.b16 %v1462
      %v1662 = vunpack.c.l.b16 %v1463
      %v1663 = vunpack.c.l.b16 %v1464
      %v1664 = vunpack.c.l.b16 %v1465
      %v1665 = vunpack.c.l.b16 %v1466
      %v1666 = vunpack.c.l.b16 %v1467
      %v1667 = vunpack.c.l.b16 %v1468
      %v1668 = vunpack.c.l.b16 %v1469
      %v1669 = vunpack.c.l.b16 %v1470
      %v1670 = vunpack.c.l.b16 %v1471
      %v1671 = vunpack.c.l.b16 %v1472
      %v1672 = vunpack.c.l.b16 %v1473
      %v1673 = vunpack.c.l.b16 %v1474
      %v1674 = vunpack.c.l.b16 %v1475
      %v1675 = vunpack.c.l.b16 %v1476
      %v1676 = vunpack.c.l.b16 %v1477
      %v1677 = vunpack.c.l.b16 %v1478
      %v1678 = vpack.c.b16 %v1583, %v1582
      %v1679 = vpack.c.b16 %v1585, %v1584
      %v1680 = vpack.c.b16 %v1587, %v1586
      %v1681 = vpack.c.b16 %v1589, %v1588
      %v1682 = vpack.c.b16 %v1591, %v1590
      %v1683 = vpack.c.b16 %v1593, %v1592
      %v1684 = vpack.c.b16 %v1595, %v1594
      %v1685 = vpack.c.b16 %v1597, %v1596
      %v1686 = vpack.c.b16 %v1599, %v1598
      %v1687 = vpack.c.b16 %v1601, %v1600
      %v1688 = vpack.c.b16 %v1603, %v1602
      %v1689 = vpack.c.b16 %v1605, %v1604
      %v1690 = vpack.c.b16 %v1607, %v1606
      %v1691 = vpack.c.b16 %v1609, %v1608
      %v1692 = vpack.c.b16 %v1611, %v1610
      %v1693 = vpack.c.b16 %v1613, %v1612
      %v1694 = vpack.c.b16 %v1615, %v1614
      %v1695 = vpack.c.b16 %v1617, %v1616
      %v1696 = vpack.c.b16 %v1619, %v1618
      %v1697 = vpack.c.b16 %v1621, %v1620
      %v1698 = vpack.c.b16 %v1623, %v1622
      %v1699 = vpack.c.b16 %v1625, %v1624
      %v1700 = vpack.c.b16 %v1627, %v1626
      %v1701 = vpack.c.b16 %v1629, %v1628
      %v1702 = vpack.c.b16 %v1631, %v1630
      %v1703 = vpack.c.b16 %v1633, %v1632
      %v1704 = vpack.c.b16 %v1635, %v1634
      %v1705 = vpack.c.b16 %v1637, %v1636
      %v1706 = vpack.c.b16 %v1639, %v1638
      %v1707 = vpack.c.b16 %v1641, %v1640
      %v1708 = vpack.c.b16 %v1643, %v1642
      %v1709 = vpack.c.b16 %v1645, %v1644
      %v1710 = vpack.c.b16 %v1647, %v1646
      %v1711 = vpack.c.b16 %v1649, %v1648
      %v1712 = vpack.c.b16 %v1651, %v1650
      %v1713 = vpack.c.b16 %v1653, %v1652
      %v1714 = vpack.c.b16 %v1655, %v1654
      %v1715 = vpack.c.b16 %v1657, %v1656
      %v1716 = vpack.c.b16 %v1659, %v1658
      %v1717 = vpack.c.b16 %v1661, %v1660
      %v1718 = vpack.c.b16 %v1663, %v1662
      %v1719 = vpack.c.b16 %v1665, %v1664
      %v1720 = vpack.c.b16 %v1667, %v1666
      %v1721 = vpack.c.b16 %v1669, %v1668
      %v1722 = vpack.c.b16 %v1671, %v1670
      %v1723 = vpack.c.b16 %v1673, %v1672
      %v1724 = vpack.c.b16 %v1675, %v1674
      %v1725 = vpack.c.b16 %v1677, %v1676
      %1774 = vmatprep.subr.bf16.mxu0 0
      %1775 = vmatpush1.bf16.msra.mxu0 %v1685
      %1776 = vmatprep.subr.bf16.mxu0 0
      %1777 = vmatpush1.bf16.msra.mxu0 %v1684
      %1778 = vmatprep.subr.bf16.mxu0 0
      %1779 = vmatpush1.bf16.msra.mxu0 %v1683
      %1780 = vmatprep.subr.bf16.mxu0 0
      %1781 = vmatpush1.bf16.msra.mxu0 %v1682
      %1782 = vmatprep.subr.bf16.mxu0 0
      %1783 = vmatpush1.bf16.msra.mxu0 %v1681
      %1784 = vmatprep.subr.bf16.mxu0 0
      %1785 = vmatpush1.bf16.msra.mxu0 %v1680
      %1786 = vmatprep.subr.bf16.mxu0 0
      %1787 = vmatpush1.bf16.msra.mxu0 %v1679
      %1788 = vmatprep.subr.bf16.mxu0 0
      %1789 = vmatpush1.bf16.msra.mxu0 %v1678
      %1790 = vmatprep.subr.bf16.mxu0 0
      %1791 = vmatpush2.bf16.msra.mxu0 %v1693
      %1792 = vmatprep.subr.bf16.mxu0 0
      %1793 = vmatpush2.bf16.msra.mxu0 %v1692
      %1794 = vmatprep.subr.bf16.mxu0 0
      %1795 = vmatpush2.bf16.msra.mxu0 %v1691
      %1796 = vmatprep.subr.bf16.mxu0 0
      %1797 = vmatpush2.bf16.msra.mxu0 %v1690
      %1798 = vmatprep.subr.bf16.mxu0 0
      %1799 = vmatpush2.bf16.msra.mxu0 %v1689
      %1800 = vmatprep.subr.bf16.mxu0 0
      %1801 = vmatpush2.bf16.msra.mxu0 %v1688
      %1802 = vmatprep.subr.bf16.mxu0 0
      %1803 = vmatpush2.bf16.msra.mxu0 %v1687
      %1804 = vmatprep.subr.bf16.mxu0 0
      %1805 = vmatpush2.bf16.msra.mxu0 %v1686
      %1806 = vmatprep.mubr.bf16.mxu0 %v1372
      %1807 = vmatmul.mubr.bf16.gmra.mxu0 %v1371
      %v1808 = vpop.f32.mrf.mxu0
      %v1809 = vadd.f32 %v1484, %v1808
      %v1810 = vpop.f32.mrf.mxu0
      %v1811 = vpop.f32.mrf.mxu0
      %v1812 = vadd.f32 %v1484, %v1811
      %v1813 = vpop.f32.mrf.mxu0
      %1814 = vmatprep.mubr.bf16.mxu0 %v1378
      %1815 = vmatmul.mubr.bf16.gmra.mxu0 %v1377
      %v1816 = vpop.f32.mrf.mxu0
      %v1817 = vadd.f32 %v1484, %v1816
      %v1818 = vpop.f32.mrf.mxu0
      %v1819 = vpop.f32.mrf.mxu0
      %v1820 = vadd.f32 %v1484, %v1819
      %v1821 = vpop.f32.mrf.mxu0
      %1822 = vdwg.mxu0
      %1823 = vmatprep.subr.bf16.mxu0 0
      %1824 = vmatpush1.bf16.msra.mxu0 %v1701
      %1825 = vmatprep.subr.bf16.mxu0 0
      %1826 = vmatpush1.bf16.msra.mxu0 %v1700
      %1827 = vmatprep.subr.bf16.mxu0 0
      %1828 = vmatpush1.bf16.msra.mxu0 %v1699
      %1829 = vmatprep.subr.bf16.mxu0 0
      %1830 = vmatpush1.bf16.msra.mxu0 %v1698
      %1831 = vmatprep.subr.bf16.mxu0 0
      %1832 = vmatpush1.bf16.msra.mxu0 %v1697
      %1833 = vmatprep.subr.bf16.mxu0 0
      %1834 = vmatpush1.bf16.msra.mxu0 %v1696
      %1835 = vmatprep.subr.bf16.mxu0 0
      %1836 = vmatpush1.bf16.msra.mxu0 %v1695
      %1837 = vmatprep.subr.bf16.mxu0 0
      %1838 = vmatpush1.bf16.msra.mxu0 %v1694
      %1839 = vmatprep.subr.bf16.mxu0 0
      %1840 = vmatpush2.bf16.msra.mxu0 %v1709
      %1841 = vmatprep.subr.bf16.mxu0 0
      %1842 = vmatpush2.bf16.msra.mxu0 %v1708
      %1843 = vmatprep.subr.bf16.mxu0 0
      %1844 = vmatpush2.bf16.msra.mxu0 %v1707
      %1845 = vmatprep.subr.bf16.mxu0 0
      %1846 = vmatpush2.bf16.msra.mxu0 %v1706
      %1847 = vmatprep.subr.bf16.mxu0 0
      %1848 = vmatpush2.bf16.msra.mxu0 %v1705
      %1849 = vmatprep.subr.bf16.mxu0 0
      %1850 = vmatpush2.bf16.msra.mxu0 %v1704
      %1851 = vmatprep.subr.bf16.mxu0 0
      %1852 = vmatpush2.bf16.msra.mxu0 %v1703
      %1853 = vmatprep.subr.bf16.mxu0 0
      %1854 = vmatpush2.bf16.msra.mxu0 %v1702
      %1855 = vmatprep.mubr.bf16.mxu0 %v1374
      %1856 = vmatmul.mubr.bf16.gmra.mxu0 %v1373
      %v1857 = vpop.f32.mrf.mxu0
      %v1858 = vadd.f32 %v1809, %v1857
      %v1859 = vpop.f32.mrf.mxu0
      %v1860 = vpop.f32.mrf.mxu0
      %v1861 = vadd.f32 %v1812, %v1860
      %v1862 = vpop.f32.mrf.mxu0
      %1863 = vmatprep.mubr.bf16.mxu0 %v1380
      %1864 = vmatmul.mubr.bf16.gmra.mxu0 %v1379
      %v1865 = vpop.f32.mrf.mxu0
      %v1866 = vadd.f32 %v1817, %v1865
      %v1867 = vpop.f32.mrf.mxu0
      %v1868 = vpop.f32.mrf.mxu0
      %v1869 = vadd.f32 %v1820, %v1868
      %v1870 = vpop.f32.mrf.mxu0
      %1871 = vdwg.mxu0
      %1872 = vmatprep.subr.bf16.mxu0 0
      %1873 = vmatpush1.bf16.msra.mxu0 %v1717
      %1874 = vmatprep.subr.bf16.mxu0 0
      %1875 = vmatpush1.bf16.msra.mxu0 %v1716
      %1876 = vmatprep.subr.bf16.mxu0 0
      %1877 = vmatpush1.bf16.msra.mxu0 %v1715
      %1878 = vmatprep.subr.bf16.mxu0 0
      %1879 = vmatpush1.bf16.msra.mxu0 %v1714
      %1880 = vmatprep.subr.bf16.mxu0 0
      %1881 = vmatpush1.bf16.msra.mxu0 %v1713
      %1882 = vmatprep.subr.bf16.mxu0 0
      %1883 = vmatpush1.bf16.msra.mxu0 %v1712
      %1884 = vmatprep.subr.bf16.mxu0 0
      %1885 = vmatpush1.bf16.msra.mxu0 %v1711
      %1886 = vmatprep.subr.bf16.mxu0 0
      %1887 = vmatpush1.bf16.msra.mxu0 %v1710
      %1888 = vmatprep.subr.bf16.mxu0 0
      %1889 = vmatpush2.bf16.msra.mxu0 %v1725
      %1890 = vmatprep.subr.bf16.mxu0 0
      %1891 = vmatpush2.bf16.msra.mxu0 %v1724
      %1892 = vmatprep.subr.bf16.mxu0 0
      %1893 = vmatpush2.bf16.msra.mxu0 %v1723
      %1894 = vmatprep.subr.bf16.mxu0 0
      %1895 = vmatpush2.bf16.msra.mxu0 %v1722
      %1896 = vmatprep.subr.bf16.mxu0 0
      %1897 = vmatpush2.bf16.msra.mxu0 %v1721
      %1898 = vmatprep.subr.bf16.mxu0 0
      %1899 = vmatpush2.bf16.msra.mxu0 %v1720
      %1900 = vmatprep.subr.bf16.mxu0 0
      %1901 = vmatpush2.bf16.msra.mxu0 %v1719
      %1902 = vmatprep.subr.bf16.mxu0 0
      %1903 = vmatpush2.bf16.msra.mxu0 %v1718
      %1904 = vmatprep.mubr.bf16.mxu0 %v1376
      %1905 = vmatmul.mubr.bf16.gmra.mxu0 %v1375
      %v1906 = vpop.f32.mrf.mxu0
      %v1907 = vadd.f32 %v1858, %v1906
      %v1908 = vpop.f32.mrf.mxu0
      %v1909 = vpop.f32.mrf.mxu0
      %v1910 = vadd.f32 %v1861, %v1909
      %v1911 = vpop.f32.mrf.mxu0
      %1912 = vmatprep.mubr.bf16.mxu0 %v1382
      %1913 = vmatmul.mubr.bf16.gmra.mxu0 %v1381
      %v1914 = vpop.f32.mrf.mxu0
      %v1915 = vadd.f32 %v1866, %v1914
      %v1916 = vpop.f32.mrf.mxu0
      %v1917 = vpop.f32.mrf.mxu0
      %v1918 = vadd.f32 %v1869, %v1917
      %v1919 = vpop.f32.mrf.mxu0
      %1920 = vdwg.mxu0
      %vm1921 = vcmp.ge.f32.partialorder %v1907, 0.0
      %vm1922 = vcmp.ge.f32.partialorder %v1910, 0.0
      %vm1923 = vcmp.ge.f32.partialorder %v1915, 0.0
      %vm1924 = vcmp.ge.f32.partialorder %v1918, 0.0
      %v1925 = vlaneseq
      %v1926 = vshrl.u32 %v1925, 7
      %v1927 = vsub.s32 1, %v1926
      %v1928 = vrot.slane %v490, %v1927
      %v1929 = vmul.f32 %v1907, %v1928
      %v1930 = vmul.f32 %v1910, %v1928
      %v1931 = vmul.f32 %v1915, %v1928
      %v1932 = vmul.f32 %v1918, %v1928
      %v1933 = vsel %vm1921, %v1907, %v1929
      %v1934 = vsel %vm1922, %v1910, %v1930
      %v1935 = vsel %vm1923, %v1915, %v1931
      %v1936 = vsel %vm1924, %v1918, %v1932
      %vm1937 = vcmask 236544
      %v1938 = vsel %vm1937, %v1062, 0
      %v1940 = vsel %vm1937, %v1063, 0
      %v1943 = vsel %vm554, %v1936, 0
      %1945 = vmatprep.subr.mxu0 0.0
      %1946 = vmatpush1.msra.mxu0 0.0
      %1947 = vmatprep.subr.mxu0 0.0
      %1948 = vmatpush1.msra.mxu0 0.0
      %1949 = vmatprep.subr.mxu0 0.0
      %1950 = vmatpush1.msra.mxu0 0.0
      %1951 = vmatprep.subr.mxu0 0.0
      %1952 = vmatpush1.msra.mxu0 0.0
      %1953 = vmatprep.subr.mxu0 0.0
      %1954 = vmatpush1.msra.mxu0 0.0
      %1955 = vmatprep.subr.mxu0 0.0
      %1956 = vmatpush1.msra.mxu0 0.0
      %1957 = vmatprep.subr.mxu0 0.0
      %1958 = vmatpush1.msra.mxu0 0.0
      %1959 = vmatprep.subr.mxu0 0.0
      %1960 = vmatpush1.msra.mxu0 0.0
      %1961 = vmatprep.subr.mxu0 0.0
      %1962 = vmatpush1.msra.mxu0 0.0
      %1963 = vmatprep.subr.mxu0 0.0
      %1964 = vmatpush1.msra.mxu0 0.0
      %1965 = vmatprep.subr.mxu0 0.0
      %1966 = vmatpush1.msra.mxu0 0.0
      %1967 = vmatprep.subr.mxu0 0.0
      %1968 = vmatpush1.msra.mxu0 0.0
      %1969 = vmatprep.subr.mxu0 0.0
      %1970 = vmatpush1.msra.mxu0 %v1943
      %1971 = vmatprep.subr.mxu0 0.0
      %1972 = vmatpush1.msra.mxu0 %v1935
      %1973 = vmatprep.subr.mxu0 0.0
      %1974 = vmatpush1.msra.mxu0 %v1934
      %1975 = vmatprep.subr.mxu0 0.0
      %1976 = vmatpush1.msra.mxu0 %v1933
      %1977 = vmatprep.subr.mxu0 0.0
      %1978 = vmatpush2.msra.mxu0 0.0
      %1979 = vmatprep.subr.mxu0 0.0
      %1980 = vmatpush2.msra.mxu0 0.0
      %1981 = vmatprep.subr.mxu0 0.0
      %1982 = vmatpush2.msra.mxu0 0.0
      %1983 = vmatprep.subr.mxu0 0.0
      %1984 = vmatpush2.msra.mxu0 0.0
      %1985 = vmatprep.subr.mxu0 0.0
      %1986 = vmatpush2.msra.mxu0 0.0
      %1987 = vmatprep.subr.mxu0 0.0
      %1988 = vmatpush2.msra.mxu0 0.0
      %1989 = vmatprep.subr.mxu0 0.0
      %1990 = vmatpush2.msra.mxu0 0.0
      %1991 = vmatprep.subr.mxu0 0.0
      %1992 = vmatpush2.msra.mxu0 0.0
      %1993 = vmatprep.subr.mxu0 0.0
      %1994 = vmatpush2.msra.mxu0 0.0
      %1995 = vmatprep.subr.mxu0 0.0
      %1996 = vmatpush2.msra.mxu0 0.0
      %1997 = vmatprep.subr.mxu0 0.0
      %1998 = vmatpush2.msra.mxu0 0.0
      %1999 = vmatprep.subr.mxu0 0.0
      %2000 = vmatpush2.msra.mxu0 0.0
      %2001 = vmatprep.subr.mxu0 0.0
      %2002 = vmatpush2.msra.mxu0 0.0
      %2003 = vmatprep.subr.mxu0 0.0
      %2004 = vmatpush2.msra.mxu0 0.0
      %2005 = vmatprep.subr.mxu0 0.0
      %2006 = vmatpush2.msra.mxu0 0.0
      %2007 = vmatprep.subr.mxu0 0.0
      %2008 = vmatpush2.msra.mxu0 0.0
      %2009 = vmatprep.mubr.f32.mxu0 0.0
      %2010 = vmatmul.mubr.f32.gmra.mxu0 %v1938
      %v2011 = vpop.f32.mrf.mxu0
      %v2012 = vadd.f32 0.0, %v2011
      %v2013 = vpop.f32.mrf.mxu0
      %2014 = vmatprep.mubr.f32.mxu0 0.0
      %2015 = vmatmul.mubr.f32.gmra.mxu0 %v1940
      %v2016 = vpop.f32.mrf.mxu0
      %v2017 = vadd.f32 0.0, %v2016
      %v2018 = vpop.f32.mrf.mxu0
      %2019 = vdwg.mxu0
      %v2020 = vsel %vm1937, %v1082, 0
      %v2022 = vsel %vm1937, %v1083, 0
      %2024 = vmatprep.subr.mxu0 0.0
      %2025 = vmatpush1.msra.mxu0 0.0
      %2026 = vmatprep.subr.mxu0 0.0
      %2027 = vmatpush1.msra.mxu0 0.0
      %2028 = vmatprep.subr.mxu0 0.0
      %2029 = vmatpush1.msra.mxu0 0.0
      %2030 = vmatprep.subr.mxu0 0.0
      %2031 = vmatpush1.msra.mxu0 0.0
      %2032 = vmatprep.subr.mxu0 0.0
      %2033 = vmatpush1.msra.mxu0 0.0
      %2034 = vmatprep.subr.mxu0 0.0
      %2035 = vmatpush1.msra.mxu0 0.0
      %2036 = vmatprep.subr.mxu0 0.0
      %2037 = vmatpush1.msra.mxu0 0.0
      %2038 = vmatprep.subr.mxu0 0.0
      %2039 = vmatpush1.msra.mxu0 0.0
      %2040 = vmatprep.subr.mxu0 0.0
      %2041 = vmatpush1.msra.mxu0 0.0
      %2042 = vmatprep.subr.mxu0 0.0
      %2043 = vmatpush1.msra.mxu0 0.0
      %2044 = vmatprep.subr.mxu0 0.0
      %2045 = vmatpush1.msra.mxu0 0.0
      %2046 = vmatprep.subr.mxu0 0.0
      %2047 = vmatpush1.msra.mxu0 0.0
      %2048 = vmatprep.subr.mxu0 0.0
      %2049 = vmatpush1.msra.mxu0 %v1943
      %2050 = vmatprep.subr.mxu0 0.0
      %2051 = vmatpush1.msra.mxu0 %v1935
      %2052 = vmatprep.subr.mxu0 0.0
      %2053 = vmatpush1.msra.mxu0 %v1934
      %2054 = vmatprep.subr.mxu0 0.0
      %2055 = vmatpush1.msra.mxu0 %v1933
      %2056 = vmatprep.subr.mxu0 0.0
      %2057 = vmatpush2.msra.mxu0 0.0
      %2058 = vmatprep.subr.mxu0 0.0
      %2059 = vmatpush2.msra.mxu0 0.0
      %2060 = vmatprep.subr.mxu0 0.0
      %2061 = vmatpush2.msra.mxu0 0.0
      %2062 = vmatprep.subr.mxu0 0.0
      %2063 = vmatpush2.msra.mxu0 0.0
      %2064 = vmatprep.subr.mxu0 0.0
      %2065 = vmatpush2.msra.mxu0 0.0
      %2066 = vmatprep.subr.mxu0 0.0
      %2067 = vmatpush2.msra.mxu0 0.0
      %2068 = vmatprep.subr.mxu0 0.0
      %2069 = vmatpush2.msra.mxu0 0.0
      %2070 = vmatprep.subr.mxu0 0.0
      %2071 = vmatpush2.msra.mxu0 0.0
      %2072 = vmatprep.subr.mxu0 0.0
      %2073 = vmatpush2.msra.mxu0 0.0
      %2074 = vmatprep.subr.mxu0 0.0
      %2075 = vmatpush2.msra.mxu0 0.0
      %2076 = vmatprep.subr.mxu0 0.0
      %2077 = vmatpush2.msra.mxu0 0.0
      %2078 = vmatprep.subr.mxu0 0.0
      %2079 = vmatpush2.msra.mxu0 0.0
      %2080 = vmatprep.subr.mxu0 0.0
      %2081 = vmatpush2.msra.mxu0 0.0
      %2082 = vmatprep.subr.mxu0 0.0
      %2083 = vmatpush2.msra.mxu0 0.0
      %2084 = vmatprep.subr.mxu0 0.0
      %2085 = vmatpush2.msra.mxu0 0.0
      %2086 = vmatprep.subr.mxu0 0.0
      %2087 = vmatpush2.msra.mxu0 0.0
      %2088 = vmatprep.mubr.f32.mxu0 0.0
      %2089 = vmatmul.mubr.f32.gmra.mxu0 %v2020
      %v2090 = vpop.f32.mrf.mxu0
      %v2091 = vadd.f32 0.0, %v2090
      %v2092 = vpop.f32.mrf.mxu0
      %2093 = vmatprep.mubr.f32.mxu0 0.0
      %2094 = vmatmul.mubr.f32.gmra.mxu0 %v2022
      %v2095 = vpop.f32.mrf.mxu0
      %v2096 = vadd.f32 0.0, %v2095
      %v2097 = vpop.f32.mrf.mxu0
      %2098 = vdwg.mxu0
      %v2099 = vmax.f32 %v2012, %v2091
      %v2100 = vmax.f32 %v2017, %v2096
      %v2102 = vrot.slane %v2099, 1
      %v2105 = vrot.slane %v2099, 2
      %v2106 = vrot.slane %v2100, 2
      %v2107 = vsel %vm527, %v2105, %v2106
      %v2109 = vrot.slane %v2099, 3
      %v2110 = vrot.slane %v2100, 3
      %v2111 = vsel %vm554, %v2109, %v2110
      %v2113 = vrot.slane %v2099, 4
      %v2114 = vrot.slane %v2100, 4
      %v2115 = vsel %vm414, %v2113, %v2114
      %v2117 = vrot.slane %v2099, 5
      %v2118 = vrot.slane %v2100, 5
      %v2119 = vsel %vm1357, %v2117, %v2118
      %vm2121 = vcmask 1041408
      %v2122 = vrot.slane %v2099, 6
      %v2123 = vrot.slane %v2100, 6
      %v2124 = vsel %vm2121, %v2122, %v2123
      %vm2126 = vcmask 1040384
      %v2127 = vrot.slane %v2099, 7
      %v2128 = vrot.slane %v2100, 7
      %v2129 = vsel %vm2126, %v2127, %v2128
      %v2131 = vpack.c.bf16 %v2099, %v2099
      %v2132 = vpack.c.bf16 %v2102, %v2102
      %v2133 = vpack.c.bf16 %v2107, %v2107
      %v2134 = vpack.c.bf16 %v2111, %v2111
      %v2135 = vpack.c.bf16 %v2115, %v2115
      %v2136 = vpack.c.bf16 %v2119, %v2119
      %v2137 = vpack.c.bf16 %v2124, %v2124
      %v2138 = vpack.c.bf16 %v2129, %v2129
      %v2139 = vld [vmem:[%s7] sm:$0xf]
      %v2140 = vld [vmem:[%s7 + $0x4] sm:$0xf]
      %v2141 = vld [vmem:[%s7 + $0x8] sm:$0xf]
      %v2142 = vld [vmem:[%s7 + $0xc] sm:$0xf]
      %v2143 = vld [vmem:[%s7 + $0x10] sm:$0xf]
      %v2144 = vld [vmem:[%s7 + $0x14] sm:$0xf]
      %v2145 = vld [vmem:[%s7 + $0x18] sm:$0xf]
      %v2146 = vld [vmem:[%s7 + $0x1c] sm:$0xf]
      %v2147 = vld [vmem:[%s7 + $0x20] sm:$0xf]
      %v2148 = vld [vmem:[%s7 + $0x24] sm:$0xf]
      %v2149 = vld [vmem:[%s7 + $0x28] sm:$0xf]
      %v2150 = vld [vmem:[%s7 + $0x2c] sm:$0xf]
      %v2151 = vld [vmem:[%s7 + $0x30] sm:$0xf]
      %v2152 = vld [vmem:[%s7 + $0x34] sm:$0xf]
      %v2153 = vld [vmem:[%s7 + $0x38] sm:$0xf]
      %v2154 = vld [vmem:[%s7 + $0x3c] sm:$0xf]
      %v2155 = vld [vmem:[%s7 + $0x40] sm:$0xf]
      %v2156 = vld [vmem:[%s7 + $0x44] sm:$0xf]
      %v2157 = vld [vmem:[%s7 + $0x48] sm:$0xf]
      %v2158 = vld [vmem:[%s7 + $0x4c] sm:$0xf]
      %v2159 = vld [vmem:[%s7 + $0x50] sm:$0xf]
      %v2160 = vld [vmem:[%s7 + $0x54] sm:$0xf]
      %v2161 = vld [vmem:[%s7 + $0x58] sm:$0xf]
      %v2162 = vld [vmem:[%s7 + $0x5c] sm:$0xf]
      %v2163 = vld [vmem:[%s7 + $0x60] sm:$0xf]
      %v2164 = vld [vmem:[%s7 + $0x64] sm:$0xf]
      %v2165 = vld [vmem:[%s7 + $0x68] sm:$0xf]
      %v2166 = vld [vmem:[%s7 + $0x6c] sm:$0xf]
      %v2167 = vld [vmem:[%s7 + $0x70] sm:$0xf]
      %v2168 = vld [vmem:[%s7 + $0x74] sm:$0xf]
      %v2169 = vld [vmem:[%s7 + $0x78] sm:$0xf]
      %v2170 = vld [vmem:[%s7 + $0x7c] sm:$0xf]
      %v2171 = vld [vmem:[%s7 + $0x80] sm:$0xf]
      %v2172 = vld [vmem:[%s7 + $0x84] sm:$0xf]
      %v2173 = vld [vmem:[%s7 + $0x88] sm:$0xf]
      %v2174 = vld [vmem:[%s7 + $0x8c] sm:$0xf]
      %v2175 = vld [vmem:[%s7 + $0x90] sm:$0xf]
      %v2176 = vld [vmem:[%s7 + $0x94] sm:$0xf]
      %v2177 = vld [vmem:[%s7 + $0x98] sm:$0xf]
      %v2178 = vld [vmem:[%s7 + $0x9c] sm:$0xf]
      %v2179 = vld [vmem:[%s7 + $0xa0] sm:$0xf]
      %v2180 = vld [vmem:[%s7 + $0xa4] sm:$0xf]
      %v2181 = vld [vmem:[%s7 + $0xa8] sm:$0xf]
      %v2182 = vld [vmem:[%s7 + $0xac] sm:$0xf]
      %v2183 = vld [vmem:[%s7 + $0xb0] sm:$0xf]
      %v2184 = vld [vmem:[%s7 + $0xb4] sm:$0xf]
      %v2185 = vld [vmem:[%s7 + $0xb8] sm:$0xf]
      %v2186 = vld [vmem:[%s7 + $0xbc] sm:$0xf]
      %v2187 = vld [vmem:[%s7 + $0xc0] sm:$0xf]
      %v2188 = vld [vmem:[%s7 + $0xc4] sm:$0xf]
      %v2189 = vld [vmem:[%s7 + $0xc8] sm:$0xf]
      %v2190 = vld [vmem:[%s7 + $0xcc] sm:$0xf]
      %v2191 = vld [vmem:[%s7 + $0xd0] sm:$0xf]
      %v2192 = vld [vmem:[%s7 + $0xd4] sm:$0xf]
      %v2193 = vld [vmem:[%s7 + $0xd8] sm:$0xf]
      %v2194 = vld [vmem:[%s7 + $0xdc] sm:$0xf]
      %v2195 = vld [vmem:[%s7 + $0xe0] sm:$0xf]
      %v2196 = vld [vmem:[%s7 + $0xe4] sm:$0xf]
      %v2197 = vld [vmem:[%s7 + $0xe8] sm:$0xf]
      %v2198 = vld [vmem:[%s7 + $0xec] sm:$0xf]
      %v2199 = vld [vmem:[%s7 + $0xf0] sm:$0xf]
      %v2200 = vld [vmem:[%s7 + $0xf4] sm:$0xf]
      %v2201 = vld [vmem:[%s7 + $0xf8] sm:$0xf]
      %v2202 = vld [vmem:[%s7 + $0xfc] sm:$0xf]
      %v2203 = vld [vmem:[%s7 + $0x100] sm:$0xf]
      %v2204 = vld [vmem:[%s7 + $0x104] sm:$0xf]
      %v2205 = vld [vmem:[%s7 + $0x108] sm:$0xf]
      %v2206 = vld [vmem:[%s7 + $0x10c] sm:$0xf]
      %v2207 = vld [vmem:[%s7 + $0x110] sm:$0xf]
      %v2208 = vld [vmem:[%s7 + $0x114] sm:$0xf]
      %v2209 = vld [vmem:[%s7 + $0x118] sm:$0xf]
      %v2210 = vld [vmem:[%s7 + $0x11c] sm:$0xf]
      %v2211 = vld [vmem:[%s7 + $0x120] sm:$0xf]
      %v2212 = vld [vmem:[%s7 + $0x124] sm:$0xf]
      %v2213 = vld [vmem:[%s7 + $0x128] sm:$0xf]
      %v2214 = vld [vmem:[%s7 + $0x12c] sm:$0xf]
      %v2215 = vld [vmem:[%s7 + $0x130] sm:$0xf]
      %v2216 = vld [vmem:[%s7 + $0x134] sm:$0xf]
      %v2217 = vld [vmem:[%s7 + $0x138] sm:$0xf]
      %v2218 = vld [vmem:[%s7 + $0x13c] sm:$0xf]
      %v2219 = vld [vmem:[%s7 + $0x140] sm:$0xf]
      %v2220 = vld [vmem:[%s7 + $0x144] sm:$0xf]
      %v2221 = vld [vmem:[%s7 + $0x148] sm:$0xf]
      %v2222 = vld [vmem:[%s7 + $0x14c] sm:$0xf]
      %v2223 = vld [vmem:[%s7 + $0x150] sm:$0xf]
      %v2224 = vld [vmem:[%s7 + $0x154] sm:$0xf]
      %v2225 = vld [vmem:[%s7 + $0x158] sm:$0xf]
      %v2226 = vld [vmem:[%s7 + $0x15c] sm:$0xf]
      %v2227 = vld [vmem:[%s7 + $0x160] sm:$0xf]
      %v2228 = vld [vmem:[%s7 + $0x164] sm:$0xf]
      %v2229 = vld [vmem:[%s7 + $0x168] sm:$0xf]
      %v2230 = vld [vmem:[%s7 + $0x16c] sm:$0xf]
      %v2231 = vld [vmem:[%s7 + $0x170] sm:$0xf]
      %v2232 = vld [vmem:[%s7 + $0x174] sm:$0xf]
      %v2233 = vld [vmem:[%s7 + $0x178] sm:$0xf]
      %v2234 = vld [vmem:[%s7 + $0x17c] sm:$0xf]
      %v2235 = vld [vmem:[%s7 + $0x180] sm:$0xf]
      %v2236 = vld [vmem:[%s7 + $0x184] sm:$0xf]
      %v2237 = vld [vmem:[%s7 + $0x188] sm:$0xf]
      %v2238 = vld [vmem:[%s7 + $0x18c] sm:$0xf]
      %v2239 = vld [vmem:[%s7 + $0x190] sm:$0xf]
      %v2240 = vld [vmem:[%s7 + $0x194] sm:$0xf]
      %v2241 = vld [vmem:[%s7 + $0x198] sm:$0xf]
      %v2242 = vld [vmem:[%s7 + $0x19c] sm:$0xf]
      %v2243 = vld [vmem:[%s7 + $0x1a0] sm:$0xf]
      %v2244 = vld [vmem:[%s7 + $0x1a4] sm:$0xf]
      %v2245 = vld [vmem:[%s7 + $0x1a8] sm:$0xf]
      %v2246 = vld [vmem:[%s7 + $0x1ac] sm:$0xf]
      %v2247 = vld [vmem:[%s7 + $0x1b0] sm:$0xf]
      %v2248 = vld [vmem:[%s7 + $0x1b4] sm:$0xf]
      %v2249 = vld [vmem:[%s7 + $0x1b8] sm:$0xf]
      %v2250 = vld [vmem:[%s7 + $0x1bc] sm:$0xf]
      %v2251 = vld [vmem:[%s7 + $0x1c0] sm:$0xf]
      %v2252 = vld [vmem:[%s7 + $0x1c4] sm:$0xf]
      %v2253 = vld [vmem:[%s7 + $0x1c8] sm:$0xf]
      %v2254 = vld [vmem:[%s7 + $0x1cc] sm:$0xf]
      %v2255 = vld [vmem:[%s7 + $0x1d0] sm:$0xf]
      %v2256 = vld [vmem:[%s7 + $0x1d4] sm:$0xf]
      %v2257 = vld [vmem:[%s7 + $0x1d8] sm:$0xf]
      %v2258 = vld [vmem:[%s7 + $0x1dc] sm:$0xf]
      %v2259 = vld [vmem:[%s7 + $0x1e0] sm:$0xf]
      %v2260 = vld [vmem:[%s7 + $0x1e4] sm:$0xf]
      %v2261 = vld [vmem:[%s7 + $0x1e8] sm:$0xf]
      %v2262 = vld [vmem:[%s7 + $0x1ec] sm:$0xf]
      %v2263 = vld [vmem:[%s7 + $0x1f0] sm:$0xf]
      %v2264 = vld [vmem:[%s7 + $0x1f4] sm:$0xf]
      %v2265 = vld [vmem:[%s7 + $0x1f8] sm:$0xf]
      %v2266 = vld [vmem:[%s7 + $0x1fc] sm:$0xf]
      %v2267 = vld [vmem:[%s8] sm:$0x1]
      %v2269 = vlaneseq
      %v2270 = vshrl.u32 %v2269, 7
      %v2271 = vsub.s32 0, %v2270
      %v2272 = vrot.slane %v2267, %v2271
      %v2402 = vunpack.c.l.b16 %v2139
      %v2403 = vunpack.c.l.b16 %v2140
      %v2404 = vunpack.c.l.b16 %v2141
      %v2405 = vunpack.c.l.b16 %v2142
      %v2406 = vunpack.c.l.b16 %v2143
      %v2407 = vunpack.c.l.b16 %v2144
      %v2408 = vunpack.c.l.b16 %v2145
      %v2409 = vunpack.c.l.b16 %v2146
      %v2410 = vunpack.c.l.b16 %v2147
      %v2411 = vunpack.c.l.b16 %v2148
      %v2412 = vunpack.c.l.b16 %v2149
      %v2413 = vunpack.c.l.b16 %v2150
      %v2414 = vunpack.c.l.b16 %v2151
      %v2415 = vunpack.c.l.b16 %v2152
      %v2416 = vunpack.c.l.b16 %v2153
      %v2417 = vunpack.c.l.b16 %v2154
      %v2418 = vunpack.c.l.b16 %v2155
      %v2419 = vunpack.c.l.b16 %v2156
      %v2420 = vunpack.c.l.b16 %v2157
      %v2421 = vunpack.c.l.b16 %v2158
      %v2422 = vunpack.c.l.b16 %v2159
      %v2423 = vunpack.c.l.b16 %v2160
      %v2424 = vunpack.c.l.b16 %v2161
      %v2425 = vunpack.c.l.b16 %v2162
      %v2426 = vunpack.c.l.b16 %v2163
      %v2427 = vunpack.c.l.b16 %v2164
      %v2428 = vunpack.c.l.b16 %v2165
      %v2429 = vunpack.c.l.b16 %v2166
      %v2430 = vunpack.c.l.b16 %v2167
      %v2431 = vunpack.c.l.b16 %v2168
      %v2432 = vunpack.c.l.b16 %v2169
      %v2433 = vunpack.c.l.b16 %v2170
      %v2434 = vunpack.c.l.b16 %v2171
      %v2435 = vunpack.c.l.b16 %v2172
      %v2436 = vunpack.c.l.b16 %v2173
      %v2437 = vunpack.c.l.b16 %v2174
      %v2438 = vunpack.c.l.b16 %v2175
      %v2439 = vunpack.c.l.b16 %v2176
      %v2440 = vunpack.c.l.b16 %v2177
      %v2441 = vunpack.c.l.b16 %v2178
      %v2442 = vunpack.c.l.b16 %v2179
      %v2443 = vunpack.c.l.b16 %v2180
      %v2444 = vunpack.c.l.b16 %v2181
      %v2445 = vunpack.c.l.b16 %v2182
      %v2446 = vunpack.c.l.b16 %v2183
      %v2447 = vunpack.c.l.b16 %v2184
      %v2448 = vunpack.c.l.b16 %v2185
      %v2449 = vunpack.c.l.b16 %v2186
      %v2450 = vunpack.c.l.b16 %v2187
      %v2451 = vunpack.c.l.b16 %v2188
      %v2452 = vunpack.c.l.b16 %v2189
      %v2453 = vunpack.c.l.b16 %v2190
      %v2454 = vunpack.c.l.b16 %v2191
      %v2455 = vunpack.c.l.b16 %v2192
      %v2456 = vunpack.c.l.b16 %v2193
      %v2457 = vunpack.c.l.b16 %v2194
      %v2458 = vunpack.c.l.b16 %v2195
      %v2459 = vunpack.c.l.b16 %v2196
      %v2460 = vunpack.c.l.b16 %v2197
      %v2461 = vunpack.c.l.b16 %v2198
      %v2462 = vunpack.c.l.b16 %v2199
      %v2463 = vunpack.c.l.b16 %v2200
      %v2464 = vunpack.c.l.b16 %v2201
      %v2465 = vunpack.c.l.b16 %v2202
      %v2466 = vunpack.c.l.b16 %v2203
      %v2467 = vunpack.c.l.b16 %v2204
      %v2468 = vunpack.c.l.b16 %v2205
      %v2469 = vunpack.c.l.b16 %v2206
      %v2470 = vunpack.c.l.b16 %v2207
      %v2471 = vunpack.c.l.b16 %v2208
      %v2472 = vunpack.c.l.b16 %v2209
      %v2473 = vunpack.c.l.b16 %v2210
      %v2474 = vunpack.c.l.b16 %v2211
      %v2475 = vunpack.c.l.b16 %v2212
      %v2476 = vunpack.c.l.b16 %v2213
      %v2477 = vunpack.c.l.b16 %v2214
      %v2478 = vunpack.c.l.b16 %v2215
      %v2479 = vunpack.c.l.b16 %v2216
      %v2480 = vunpack.c.l.b16 %v2217
      %v2481 = vunpack.c.l.b16 %v2218
      %v2482 = vunpack.c.l.b16 %v2219
      %v2483 = vunpack.c.l.b16 %v2220
      %v2484 = vunpack.c.l.b16 %v2221
      %v2485 = vunpack.c.l.b16 %v2222
      %v2486 = vunpack.c.l.b16 %v2223
      %v2487 = vunpack.c.l.b16 %v2224
      %v2488 = vunpack.c.l.b16 %v2225
      %v2489 = vunpack.c.l.b16 %v2226
      %v2490 = vunpack.c.l.b16 %v2227
      %v2491 = vunpack.c.l.b16 %v2228
      %v2492 = vunpack.c.l.b16 %v2229
      %v2493 = vunpack.c.l.b16 %v2230
      %v2494 = vunpack.c.l.b16 %v2231
      %v2495 = vunpack.c.l.b16 %v2232
      %v2496 = vunpack.c.l.b16 %v2233
      %v2497 = vunpack.c.l.b16 %v2234
      %v2498 = vunpack.c.l.b16 %v2235
      %v2499 = vunpack.c.l.b16 %v2236
      %v2500 = vunpack.c.l.b16 %v2237
      %v2501 = vunpack.c.l.b16 %v2238
      %v2502 = vunpack.c.l.b16 %v2239
      %v2503 = vunpack.c.l.b16 %v2240
      %v2504 = vunpack.c.l.b16 %v2241
      %v2505 = vunpack.c.l.b16 %v2242
      %v2506 = vunpack.c.l.b16 %v2243
      %v2507 = vunpack.c.l.b16 %v2244
      %v2508 = vunpack.c.l.b16 %v2245
      %v2509 = vunpack.c.l.b16 %v2246
      %v2510 = vunpack.c.l.b16 %v2247
      %v2511 = vunpack.c.l.b16 %v2248
      %v2512 = vunpack.c.l.b16 %v2249
      %v2513 = vunpack.c.l.b16 %v2250
      %v2514 = vunpack.c.l.b16 %v2251
      %v2515 = vunpack.c.l.b16 %v2252
      %v2516 = vunpack.c.l.b16 %v2253
      %v2517 = vunpack.c.l.b16 %v2254
      %v2518 = vunpack.c.l.b16 %v2255
      %v2519 = vunpack.c.l.b16 %v2256
      %v2520 = vunpack.c.l.b16 %v2257
      %v2521 = vunpack.c.l.b16 %v2258
      %v2522 = vunpack.c.l.b16 %v2259
      %v2523 = vunpack.c.l.b16 %v2260
      %v2524 = vunpack.c.l.b16 %v2261
      %v2525 = vunpack.c.l.b16 %v2262
      %v2526 = vunpack.c.l.b16 %v2263
      %v2527 = vunpack.c.l.b16 %v2264
      %v2528 = vunpack.c.l.b16 %v2265
      %v2529 = vunpack.c.l.b16 %v2266
      %v2530 = vpack.c.b16 %v2403, %v2402
      %v2531 = vpack.c.b16 %v2405, %v2404
      %v2532 = vpack.c.b16 %v2407, %v2406
      %v2533 = vpack.c.b16 %v2409, %v2408
      %v2534 = vpack.c.b16 %v2411, %v2410
      %v2535 = vpack.c.b16 %v2413, %v2412
      %v2536 = vpack.c.b16 %v2415, %v2414
      %v2537 = vpack.c.b16 %v2417, %v2416
      %v2538 = vpack.c.b16 %v2419, %v2418
      %v2539 = vpack.c.b16 %v2421, %v2420
      %v2540 = vpack.c.b16 %v2423, %v2422
      %v2541 = vpack.c.b16 %v2425, %v2424
      %v2542 = vpack.c.b16 %v2427, %v2426
      %v2543 = vpack.c.b16 %v2429, %v2428
      %v2544 = vpack.c.b16 %v2431, %v2430
      %v2545 = vpack.c.b16 %v2433, %v2432
      %v2546 = vpack.c.b16 %v2435, %v2434
      %v2547 = vpack.c.b16 %v2437, %v2436
      %v2548 = vpack.c.b16 %v2439, %v2438
      %v2549 = vpack.c.b16 %v2441, %v2440
      %v2550 = vpack.c.b16 %v2443, %v2442
      %v2551 = vpack.c.b16 %v2445, %v2444
      %v2552 = vpack.c.b16 %v2447, %v2446
      %v2553 = vpack.c.b16 %v2449, %v2448
      %v2554 = vpack.c.b16 %v2451, %v2450
      %v2555 = vpack.c.b16 %v2453, %v2452
      %v2556 = vpack.c.b16 %v2455, %v2454
      %v2557 = vpack.c.b16 %v2457, %v2456
      %v2558 = vpack.c.b16 %v2459, %v2458
      %v2559 = vpack.c.b16 %v2461, %v2460
      %v2560 = vpack.c.b16 %v2463, %v2462
      %v2561 = vpack.c.b16 %v2465, %v2464
      %v2562 = vpack.c.b16 %v2467, %v2466
      %v2563 = vpack.c.b16 %v2469, %v2468
      %v2564 = vpack.c.b16 %v2471, %v2470
      %v2565 = vpack.c.b16 %v2473, %v2472
      %v2566 = vpack.c.b16 %v2475, %v2474
      %v2567 = vpack.c.b16 %v2477, %v2476
      %v2568 = vpack.c.b16 %v2479, %v2478
      %v2569 = vpack.c.b16 %v2481, %v2480
      %v2570 = vpack.c.b16 %v2483, %v2482
      %v2571 = vpack.c.b16 %v2485, %v2484
      %v2572 = vpack.c.b16 %v2487, %v2486
      %v2573 = vpack.c.b16 %v2489, %v2488
      %v2574 = vpack.c.b16 %v2491, %v2490
      %v2575 = vpack.c.b16 %v2493, %v2492
      %v2576 = vpack.c.b16 %v2495, %v2494
      %v2577 = vpack.c.b16 %v2497, %v2496
      %v2578 = vpack.c.b16 %v2499, %v2498
      %v2579 = vpack.c.b16 %v2501, %v2500
      %v2580 = vpack.c.b16 %v2503, %v2502
      %v2581 = vpack.c.b16 %v2505, %v2504
      %v2582 = vpack.c.b16 %v2507, %v2506
      %v2583 = vpack.c.b16 %v2509, %v2508
      %v2584 = vpack.c.b16 %v2511, %v2510
      %v2585 = vpack.c.b16 %v2513, %v2512
      %v2586 = vpack.c.b16 %v2515, %v2514
      %v2587 = vpack.c.b16 %v2517, %v2516
      %v2588 = vpack.c.b16 %v2519, %v2518
      %v2589 = vpack.c.b16 %v2521, %v2520
      %v2590 = vpack.c.b16 %v2523, %v2522
      %v2591 = vpack.c.b16 %v2525, %v2524
      %v2592 = vpack.c.b16 %v2527, %v2526
      %v2593 = vpack.c.b16 %v2529, %v2528
      %2658 = vmatprep.subr.bf16.mxu0 0
      %2659 = vmatpush1.bf16.msra.mxu0 %v2537
      %2660 = vmatprep.subr.bf16.mxu0 0
      %2661 = vmatpush1.bf16.msra.mxu0 %v2536
      %2662 = vmatprep.subr.bf16.mxu0 0
      %2663 = vmatpush1.bf16.msra.mxu0 %v2535
      %2664 = vmatprep.subr.bf16.mxu0 0
      %2665 = vmatpush1.bf16.msra.mxu0 %v2534
      %2666 = vmatprep.subr.bf16.mxu0 0
      %2667 = vmatpush1.bf16.msra.mxu0 %v2533
      %2668 = vmatprep.subr.bf16.mxu0 0
      %2669 = vmatpush1.bf16.msra.mxu0 %v2532
      %2670 = vmatprep.subr.bf16.mxu0 0
      %2671 = vmatpush1.bf16.msra.mxu0 %v2531
      %2672 = vmatprep.subr.bf16.mxu0 0
      %2673 = vmatpush1.bf16.msra.mxu0 %v2530
      %2674 = vmatprep.subr.bf16.mxu0 0
      %2675 = vmatpush2.bf16.msra.mxu0 %v2545
      %2676 = vmatprep.subr.bf16.mxu0 0
      %2677 = vmatpush2.bf16.msra.mxu0 %v2544
      %2678 = vmatprep.subr.bf16.mxu0 0
      %2679 = vmatpush2.bf16.msra.mxu0 %v2543
      %2680 = vmatprep.subr.bf16.mxu0 0
      %2681 = vmatpush2.bf16.msra.mxu0 %v2542
      %2682 = vmatprep.subr.bf16.mxu0 0
      %2683 = vmatpush2.bf16.msra.mxu0 %v2541
      %2684 = vmatprep.subr.bf16.mxu0 0
      %2685 = vmatpush2.bf16.msra.mxu0 %v2540
      %2686 = vmatprep.subr.bf16.mxu0 0
      %2687 = vmatpush2.bf16.msra.mxu0 %v2539
      %2688 = vmatprep.subr.bf16.mxu0 0
      %2689 = vmatpush2.bf16.msra.mxu0 %v2538
      %2690 = vmatprep.mubr.bf16.mxu0 %v2132
      %2691 = vmatmul.mubr.bf16.gmra.mxu0 %v2131
      %v2692 = vpop.f32.mrf.mxu0
      %v2693 = vadd.f32 %v2272, %v2692
      %v2694 = vpop.f32.mrf.mxu0
      %v2695 = vpop.f32.mrf.mxu0
      %v2696 = vpop.f32.mrf.mxu0
      %2697 = vdwg.mxu0
      %2698 = vmatprep.subr.bf16.mxu0 0
      %2699 = vmatpush1.bf16.msra.mxu0 %v2553
      %2700 = vmatprep.subr.bf16.mxu0 0
      %2701 = vmatpush1.bf16.msra.mxu0 %v2552
      %2702 = vmatprep.subr.bf16.mxu0 0
      %2703 = vmatpush1.bf16.msra.mxu0 %v2551
      %2704 = vmatprep.subr.bf16.mxu0 0
      %2705 = vmatpush1.bf16.msra.mxu0 %v2550
      %2706 = vmatprep.subr.bf16.mxu0 0
      %2707 = vmatpush1.bf16.msra.mxu0 %v2549
      %2708 = vmatprep.subr.bf16.mxu0 0
      %2709 = vmatpush1.bf16.msra.mxu0 %v2548
      %2710 = vmatprep.subr.bf16.mxu0 0
      %2711 = vmatpush1.bf16.msra.mxu0 %v2547
      %2712 = vmatprep.subr.bf16.mxu0 0
      %2713 = vmatpush1.bf16.msra.mxu0 %v2546
      %2714 = vmatprep.subr.bf16.mxu0 0
      %2715 = vmatpush2.bf16.msra.mxu0 %v2561
      %2716 = vmatprep.subr.bf16.mxu0 0
      %2717 = vmatpush2.bf16.msra.mxu0 %v2560
      %2718 = vmatprep.subr.bf16.mxu0 0
      %2719 = vmatpush2.bf16.msra.mxu0 %v2559
      %2720 = vmatprep.subr.bf16.mxu0 0
      %2721 = vmatpush2.bf16.msra.mxu0 %v2558
      %2722 = vmatprep.subr.bf16.mxu0 0
      %2723 = vmatpush2.bf16.msra.mxu0 %v2557
      %2724 = vmatprep.subr.bf16.mxu0 0
      %2725 = vmatpush2.bf16.msra.mxu0 %v2556
      %2726 = vmatprep.subr.bf16.mxu0 0
      %2727 = vmatpush2.bf16.msra.mxu0 %v2555
      %2728 = vmatprep.subr.bf16.mxu0 0
      %2729 = vmatpush2.bf16.msra.mxu0 %v2554
      %2730 = vmatprep.mubr.bf16.mxu0 %v2134
      %2731 = vmatmul.mubr.bf16.gmra.mxu0 %v2133
      %v2732 = vpop.f32.mrf.mxu0
      %v2733 = vadd.f32 %v2693, %v2732
      %v2734 = vpop.f32.mrf.mxu0
      %v2735 = vpop.f32.mrf.mxu0
      %v2736 = vpop.f32.mrf.mxu0
      %2737 = vdwg.mxu0
      %2738 = vmatprep.subr.bf16.mxu0 0
      %2739 = vmatpush1.bf16.msra.mxu0 %v2569
      %2740 = vmatprep.subr.bf16.mxu0 0
      %2741 = vmatpush1.bf16.msra.mxu0 %v2568
      %2742 = vmatprep.subr.bf16.mxu0 0
      %2743 = vmatpush1.bf16.msra.mxu0 %v2567
      %2744 = vmatprep.subr.bf16.mxu0 0
      %2745 = vmatpush1.bf16.msra.mxu0 %v2566
      %2746 = vmatprep.subr.bf16.mxu0 0
      %2747 = vmatpush1.bf16.msra.mxu0 %v2565
      %2748 = vmatprep.subr.bf16.mxu0 0
      %2749 = vmatpush1.bf16.msra.mxu0 %v2564
      %2750 = vmatprep.subr.bf16.mxu0 0
      %2751 = vmatpush1.bf16.msra.mxu0 %v2563
      %2752 = vmatprep.subr.bf16.mxu0 0
      %2753 = vmatpush1.bf16.msra.mxu0 %v2562
      %2754 = vmatprep.subr.bf16.mxu0 0
      %2755 = vmatpush2.bf16.msra.mxu0 %v2577
      %2756 = vmatprep.subr.bf16.mxu0 0
      %2757 = vmatpush2.bf16.msra.mxu0 %v2576
      %2758 = vmatprep.subr.bf16.mxu0 0
      %2759 = vmatpush2.bf16.msra.mxu0 %v2575
      %2760 = vmatprep.subr.bf16.mxu0 0
      %2761 = vmatpush2.bf16.msra.mxu0 %v2574
      %2762 = vmatprep.subr.bf16.mxu0 0
      %2763 = vmatpush2.bf16.msra.mxu0 %v2573
      %2764 = vmatprep.subr.bf16.mxu0 0
      %2765 = vmatpush2.bf16.msra.mxu0 %v2572
      %2766 = vmatprep.subr.bf16.mxu0 0
      %2767 = vmatpush2.bf16.msra.mxu0 %v2571
      %2768 = vmatprep.subr.bf16.mxu0 0
      %2769 = vmatpush2.bf16.msra.mxu0 %v2570
      %2770 = vmatprep.mubr.bf16.mxu0 %v2136
      %2771 = vmatmul.mubr.bf16.gmra.mxu0 %v2135
      %v2772 = vpop.f32.mrf.mxu0
      %v2773 = vadd.f32 %v2733, %v2772
      %v2774 = vpop.f32.mrf.mxu0
      %v2775 = vpop.f32.mrf.mxu0
      %v2776 = vpop.f32.mrf.mxu0
      %2777 = vdwg.mxu0
      %2778 = vmatprep.subr.bf16.mxu0 0
      %2779 = vmatpush1.bf16.msra.mxu0 %v2585
      %2780 = vmatprep.subr.bf16.mxu0 0
      %2781 = vmatpush1.bf16.msra.mxu0 %v2584
      %2782 = vmatprep.subr.bf16.mxu0 0
      %2783 = vmatpush1.bf16.msra.mxu0 %v2583
      %2784 = vmatprep.subr.bf16.mxu0 0
      %2785 = vmatpush1.bf16.msra.mxu0 %v2582
      %2786 = vmatprep.subr.bf16.mxu0 0
      %2787 = vmatpush1.bf16.msra.mxu0 %v2581
      %2788 = vmatprep.subr.bf16.mxu0 0
      %2789 = vmatpush1.bf16.msra.mxu0 %v2580
      %2790 = vmatprep.subr.bf16.mxu0 0
      %2791 = vmatpush1.bf16.msra.mxu0 %v2579
      %2792 = vmatprep.subr.bf16.mxu0 0
      %2793 = vmatpush1.bf16.msra.mxu0 %v2578
      %2794 = vmatprep.subr.bf16.mxu0 0
      %2795 = vmatpush2.bf16.msra.mxu0 %v2593
      %2796 = vmatprep.subr.bf16.mxu0 0
      %2797 = vmatpush2.bf16.msra.mxu0 %v2592
      %2798 = vmatprep.subr.bf16.mxu0 0
      %2799 = vmatpush2.bf16.msra.mxu0 %v2591
      %2800 = vmatprep.subr.bf16.mxu0 0
      %2801 = vmatpush2.bf16.msra.mxu0 %v2590
      %2802 = vmatprep.subr.bf16.mxu0 0
      %2803 = vmatpush2.bf16.msra.mxu0 %v2589
      %2804 = vmatprep.subr.bf16.mxu0 0
      %2805 = vmatpush2.bf16.msra.mxu0 %v2588
      %2806 = vmatprep.subr.bf16.mxu0 0
      %2807 = vmatpush2.bf16.msra.mxu0 %v2587
      %2808 = vmatprep.subr.bf16.mxu0 0
      %2809 = vmatpush2.bf16.msra.mxu0 %v2586
      %2810 = vmatprep.mubr.bf16.mxu0 %v2138
      %2811 = vmatmul.mubr.bf16.gmra.mxu0 %v2137
      %v2812 = vpop.f32.mrf.mxu0
      %v2813 = vadd.f32 %v2773, %v2812
      %v2814 = vpop.f32.mrf.mxu0
      %v2815 = vpop.f32.mrf.mxu0
      %v2816 = vpop.f32.mrf.mxu0
      %2817 = vdwg.mxu0
      %vm2818 = vcmp.ge.f32.partialorder %v2813, 0.0
      %v2819 = vlaneseq
      %v2820 = vshrl.u32 %v2819, 7
      %v2821 = vsub.s32 2, %v2820
      %v2822 = vrot.slane %v490, %v2821
      %v2823 = vmul.f32 %v2813, %v2822
      %v2824 = vsel %vm2818, %v2813, %v2823
      %v2825 = vsel %vm500, %v2824, -inf
      %v2826 = vrot.slane %v2825, 4
      %v2827 = vmax.f32 %v2825, %v2826
      %v2828 = vrot.slane %v2827, 2
      %v2829 = vmax.f32 %v2827, %v2828
      %v2830 = vrot.slane %v2829, 1
      %v2831 = vmax.f32 %v2829, %v2830
      %2832 = vst [vmem:[%s355] sm:$0x1] %v2831
      %p2833 = scmp.lt.s32.totalorder %s21, 1
      %s2834 = scalar_select %p2833, %s21, 1
      %s2835 = scalar_lea.vmem %s10, %s2834
      // Predicated region
      $region61: #{forward.5} parent=59 // pred_check
        %p2836 = pneg %p254
      $region62: #{forward.5} parent=59 // pred_check_branch
        %2838 = sbr.rel (%p2836) target = $region64
      $region63: #{forward.5} parent=59 // pred_region
        _
      $region64: #{forward.5} parent=59 // pred_fallthru
        _
    $region60: #{forward.5} parent=5 // pred_fallthru
      _
    %p2839 = scmp.le.s32.totalorder 2, %s16
    // Predicated region
    $region65: #{forward.5} parent=5 // pred_check
      %p2840 = pneg %p2839
    $region66: #{forward.5} parent=5 // pred_check_branch
      %2842 = sbr.rel (%p2840) target = $region68
    $region67: #{forward.5} parent=5 // pred_region
      %s2843 = ssub.s32 %s16, 2
      // Predicated region
      $region69: #{forward.5} parent=67 // pred_check
        %p2844 = pneg %p260
      $region70: #{forward.5} parent=67 // pred_check_branch
        %2846 = sbr.rel (%p2844) target = $region72
      $region71: #{forward.5} parent=67 // pred_region
        %p2847 = scmp.lt.s32.totalorder %s22, 1
        %s2848 = scalar_select %p2847, %s22, 1
        %s2849 = scalar_lea.vmem %s10, %s2848
      $region72: #{forward.5} parent=67 // pred_fallthru
        _
    $region68: #{forward.5} parent=5 // pred_fallthru
      _
  $region6: #{forward.5} parent=0 // loop_footer
    %s20 = sadd.s32 1, %s16
  $region7: #{forward.5} parent=0 // loop_footer_branch
    %15 = sbr.rel target = $region3
  $region8: #{forward.5} parent=0 // loop_exit
    _

// kernel: forward.4
$region0: #{forward.4}
  #allocation0 [shape = 'u32[]', space=smem, size = 0x4, offset = 0x4, fixed_abs, tag = 'smem constant byte address 0x4 - core index']
  #allocation1 [shape = 'u32[144,128]{1,0:T(1,128)}', space=vmem, size = 0x12000, scoped, tag = 'internal scratch']
  %s0 = inlined_call_operand.vmem [shape: f32[2,72,40], index: 0, kind: input, shape index: {}]
  %s1 = inlined_call_operand.vmem [shape: bf16[40,128], index: 1, kind: input, shape index: {}]
  %s2 = inlined_call_operand.vmem [shape: f32[1,128], index: 2, kind: input, shape index: {}]
  %s3 = inlined_call_operand.vmem [shape: bf16[512,128], index: 3, kind: input, shape index: {}]
  %s4 = inlined_call_operand.vmem [shape: f32[1,128], index: 4, kind: input, shape index: {}]
  %s5 = inlined_call_operand.hbm [shape: bf16[1024,128], index: 5, kind: input, shape index: {}]
  %s6 = inlined_call_operand.vmem [shape: f32[1,128], index: 6, kind: input, shape index: {}]
  %s7 = inlined_call_operand.hbm [shape: bf16[1536,128], index: 7, kind: input, shape index: {}]
  %s8 = inlined_call_operand.vmem [shape: f32[1,128], index: 8, kind: input, shape index: {}]
  %s9 = inlined_call_operand.vmem [shape: f32[3,128], index: 9, kind: input, shape index: {}]
  %s10 = inlined_call_operand.vmem [shape: f32[2,1,128], index: 10, kind: output, shape index: {}]
  %s11 = sld [smem:[#allocation0]]
  $region81: #{forward.4} parent=0
    _
  %s13 = ssub.s32 1, %s11
  %s14 = scalar_select 0, %s13, %s11
  $region1: #{forward.4} parent=0
    #allocation2 [shape = 'u8[262144]{0}', space=vmem, size = 0x40000, scoped, tag = 'input window, operand 5, single buffered']
    #allocation3 [shape = 's32[2]{0}', space=sflag, size = 0x8, scoped, tag = 'scoped memory for forward.4']
    #allocation4 [shape = 'u8[393216]{0}', space=vmem, size = 0x60000, scoped, tag = 'input window, operand 7, single buffered']
    #allocation5 [shape = 's32[1]{0}', space=sflag, size = 0x4, scoped, tag = 'scoped memory for forward.4']
    %15 = vsyncpa [#allocation3], 0
    %16 = vsyncpa [#allocation5], 0
    loop: start=0, step=1, limit=4
    $region2: #{forward.4} parent=1 // loop_pre_header
      _
    $region3: #{forward.4} parent=1 // loop_header
      %s18 = sphi 0, %s22
      %p19 = scmp.ge.s32.totalorder %s18, 4
      %s28 = sphi 0, %s30
      %s31 = sphi 0, %s28
      %s32 = sphi 0, %s31
      %s48 = sphi 0, %s32
      %s52 = sphi 0, %s52
      %s54 = sphi 0, %s52
      %s55 = sphi 0, %s54
      %s69 = sphi 0, %s55
      %s73 = sphi 0, %s73
      %s75 = sphi 0, %s73
      %s76 = sphi 0, %s75
      %s90 = sphi 0, %s76
      %s94 = sphi 0, %s94
      %s96 = sphi 0, %s94
      %s97 = sphi 0, %s96
      %s111 = sphi 0, %s97
      %s115 = sphi 0, %s115
      %s117 = sphi 0, %s115
      %s118 = sphi 0, %s117
      %s132 = sphi 0, %s118
      %s136 = sphi 0, %s136
      %s138 = sphi 0, %s136
      %s139 = sphi 0, %s138
      %s153 = sphi 0, %s139
      %s157 = sphi 0, %s157
      %s159 = sphi 0, %s157
      %s160 = sphi 0, %s159
      %s174 = sphi 0, %s160
      %s178 = sphi 0, %s178
      %s180 = sphi 0, %s178
      %s181 = sphi 0, %s180
      %s195 = sphi 0, %s181
      %s199 = sphi 0, %s199
      %s201 = sphi 0, %s199
      %s202 = sphi 0, %s201
      %s216 = sphi 0, %s202
      %s220 = sphi 0, %s220
      %s222 = sphi 0, %s220
      %s223 = sphi 0, %s222
      %s237 = sphi 0, %s223
      %s243 = sphi 0, %s245
      %s246 = sphi 0, %s243
      %s247 = sphi 0, %s246
      %s263 = sphi 0, %s247
    $region4: #{forward.4} parent=1 // loop_header_branch
      %21 = sbr.rel (%p19) target = $region8
    $region5: #{forward.4} parent=1 // loop_body
      %s23 = ssub.s32 %s18, 1
      %s24 = ssub.s32 %s18, 2
      %s25 = sadd.s32 %s18, 1
      %s26 = ssub.s32 %s18, %s25
      %p27 = scmp.eq.s32.totalorder %s26, 0
      %s29 = sadd.s32 %s28, 1
      %s30 = scalar_select %p27, %s28, %s29
      %p33 = pneg %p27
      %p34 = scmp.eq.s32.totalorder %s18, 1
      %p35 = por %p33, %p34
      %p36 = scmp.ne.s32.totalorder %s28, %s31
      %p37 = scmp.eq.s32.totalorder %s18, 0
      %p38 = por %p36, %p37
      %p39 = scmp.ne.s32.totalorder %s28, %s31
      %p40 = scmp.eq.s32.totalorder %s23, 1
      %p41 = por %p39, %p40
      %p42 = scmp.ne.s32.totalorder %s31, %s32
      %p43 = scmp.eq.s32.totalorder %s23, 0
      %p44 = por %p42, %p43
      %p45 = scmp.ne.s32.totalorder %s31, %s32
      %p46 = scmp.eq.s32.totalorder %s24, 1
      %p47 = por %p45, %p46
      %p49 = scmp.ne.s32.totalorder %s32, %s48
      %p50 = scmp.eq.s32.totalorder %s24, 0
      %p51 = por %p49, %p50
      %s53 = sadd.s32 %s52, 1
      %p56 = scmp.eq.s32.totalorder %s18, 1
      %p57 = scmp.ne.s32.totalorder %s52, %s54
      %p58 = scmp.eq.s32.totalorder %s18, 0
      %p59 = por %p57, %p58
      %p60 = scmp.ne.s32.totalorder %s52, %s54
      %p61 = scmp.eq.s32.totalorder %s23, 1
      %p62 = por %p60, %p61
      %p63 = scmp.ne.s32.totalorder %s54, %s55
      %p64 = scmp.eq.s32.totalorder %s23, 0
      %p65 = por %p63, %p64
      %p66 = scmp.ne.s32.totalorder %s54, %s55
      %p67 = scmp.eq.s32.totalorder %s24, 1
      %p68 = por %p66, %p67
      %p70 = scmp.ne.s32.totalorder %s55, %s69
      %p71 = scmp.eq.s32.totalorder %s24, 0
      %p72 = por %p70, %p71
      %s74 = sadd.s32 %s73, 1
      %p77 = scmp.eq.s32.totalorder %s18, 1
      %p78 = scmp.ne.s32.totalorder %s73, %s75
      %p79 = scmp.eq.s32.totalorder %s18, 0
      %p80 = por %p78, %p79
      %p81 = scmp.ne.s32.totalorder %s73, %s75
      %p82 = scmp.eq.s32.totalorder %s23, 1
      %p83 = por %p81, %p82
      %p84 = scmp.ne.s32.totalorder %s75, %s76
      %p85 = scmp.eq.s32.totalorder %s23, 0
      %p86 = por %p84, %p85
      %p87 = scmp.ne.s32.totalorder %s75, %s76
      %p88 = scmp.eq.s32.totalorder %s24, 1
      %p89 = por %p87, %p88
      %p91 = scmp.ne.s32.totalorder %s76, %s90
      %p92 = scmp.eq.s32.totalorder %s24, 0
      %p93 = por %p91, %p92
      %s95 = sadd.s32 %s94, 1
      %p98 = scmp.eq.s32.totalorder %s18, 1
      %p99 = scmp.ne.s32.totalorder %s94, %s96
      %p100 = scmp.eq.s32.totalorder %s18, 0
      %p101 = por %p99, %p100
      %p102 = scmp.ne.s32.totalorder %s94, %s96
      %p103 = scmp.eq.s32.totalorder %s23, 1
      %p104 = por %p102, %p103
      %p105 = scmp.ne.s32.totalorder %s96, %s97
      %p106 = scmp.eq.s32.totalorder %s23, 0
      %p107 = por %p105, %p106
      %p108 = scmp.ne.s32.totalorder %s96, %s97
      %p109 = scmp.eq.s32.totalorder %s24, 1
      %p110 = por %p108, %p109
      %p112 = scmp.ne.s32.totalorder %s97, %s111
      %p113 = scmp.eq.s32.totalorder %s24, 0
      %p114 = por %p112, %p113
      %s116 = sadd.s32 %s115, 1
      %p119 = scmp.eq.s32.totalorder %s18, 1
      %p120 = scmp.ne.s32.totalorder %s115, %s117
      %p121 = scmp.eq.s32.totalorder %s18, 0
      %p122 = por %p120, %p121
      %p123 = scmp.ne.s32.totalorder %s115, %s117
      %p124 = scmp.eq.s32.totalorder %s23, 1
      %p125 = por %p123, %p124
      %p126 = scmp.ne.s32.totalorder %s117, %s118
      %p127 = scmp.eq.s32.totalorder %s23, 0
      %p128 = por %p126, %p127
      %p129 = scmp.ne.s32.totalorder %s117, %s118
      %p130 = scmp.eq.s32.totalorder %s24, 1
      %p131 = por %p129, %p130
      %p133 = scmp.ne.s32.totalorder %s118, %s132
      %p134 = scmp.eq.s32.totalorder %s24, 0
      %p135 = por %p133, %p134
      %s137 = sadd.s32 %s136, 1
      %p140 = scmp.eq.s32.totalorder %s18, 1
      %p141 = scmp.ne.s32.totalorder %s136, %s138
      %p142 = scmp.eq.s32.totalorder %s18, 0
      %p143 = por %p141, %p142
      %p144 = scmp.ne.s32.totalorder %s136, %s138
      %p145 = scmp.eq.s32.totalorder %s23, 1
      %p146 = por %p144, %p145
      %p147 = scmp.ne.s32.totalorder %s138, %s139
      %p148 = scmp.eq.s32.totalorder %s23, 0
      %p149 = por %p147, %p148
      %p150 = scmp.ne.s32.totalorder %s138, %s139
      %p151 = scmp.eq.s32.totalorder %s24, 1
      %p152 = por %p150, %p151
      %p154 = scmp.ne.s32.totalorder %s139, %s153
      %p155 = scmp.eq.s32.totalorder %s24, 0
      %p156 = por %p154, %p155
      %s158 = sadd.s32 %s157, 1
      %p161 = scmp.eq.s32.totalorder %s18, 1
      %p162 = scmp.ne.s32.totalorder %s157, %s159
      %p163 = scmp.eq.s32.totalorder %s18, 0
      %p164 = por %p162, %p163
      %p165 = scmp.ne.s32.totalorder %s157, %s159
      %p166 = scmp.eq.s32.totalorder %s23, 1
      %p167 = por %p165, %p166
      %p168 = scmp.ne.s32.totalorder %s159, %s160
      %p169 = scmp.eq.s32.totalorder %s23, 0
      %p170 = por %p168, %p169
      %p171 = scmp.ne.s32.totalorder %s159, %s160
      %p172 = scmp.eq.s32.totalorder %s24, 1
      %p173 = por %p171, %p172
      %p175 = scmp.ne.s32.totalorder %s160, %s174
      %p176 = scmp.eq.s32.totalorder %s24, 0
      %p177 = por %p175, %p176
      %s179 = sadd.s32 %s178, 1
      %p182 = scmp.eq.s32.totalorder %s18, 1
      %p183 = scmp.ne.s32.totalorder %s178, %s180
      %p184 = scmp.eq.s32.totalorder %s18, 0
      %p185 = por %p183, %p184
      %p186 = scmp.ne.s32.totalorder %s178, %s180
      %p187 = scmp.eq.s32.totalorder %s23, 1
      %p188 = por %p186, %p187
      %p189 = scmp.ne.s32.totalorder %s180, %s181
      %p190 = scmp.eq.s32.totalorder %s23, 0
      %p191 = por %p189, %p190
      %p192 = scmp.ne.s32.totalorder %s180, %s181
      %p193 = scmp.eq.s32.totalorder %s24, 1
      %p194 = por %p192, %p193
      %p196 = scmp.ne.s32.totalorder %s181, %s195
      %p197 = scmp.eq.s32.totalorder %s24, 0
      %p198 = por %p196, %p197
      %s200 = sadd.s32 %s199, 1
      %p203 = scmp.eq.s32.totalorder %s18, 1
      %p204 = scmp.ne.s32.totalorder %s199, %s201
      %p205 = scmp.eq.s32.totalorder %s18, 0
      %p206 = por %p204, %p205
      %p207 = scmp.ne.s32.totalorder %s199, %s201
      %p208 = scmp.eq.s32.totalorder %s23, 1
      %p209 = por %p207, %p208
      %p210 = scmp.ne.s32.totalorder %s201, %s202
      %p211 = scmp.eq.s32.totalorder %s23, 0
      %p212 = por %p210, %p211
      %p213 = scmp.ne.s32.totalorder %s201, %s202
      %p214 = scmp.eq.s32.totalorder %s24, 1
      %p215 = por %p213, %p214
      %p217 = scmp.ne.s32.totalorder %s202, %s216
      %p218 = scmp.eq.s32.totalorder %s24, 0
      %p219 = por %p217, %p218
      %s221 = sadd.s32 %s220, 1
      %p224 = scmp.eq.s32.totalorder %s18, 1
      %p225 = scmp.ne.s32.totalorder %s220, %s222
      %p226 = scmp.eq.s32.totalorder %s18, 0
      %p227 = por %p225, %p226
      %p228 = scmp.ne.s32.totalorder %s220, %s222
      %p229 = scmp.eq.s32.totalorder %s23, 1
      %p230 = por %p228, %p229
      %p231 = scmp.ne.s32.totalorder %s222, %s223
      %p232 = scmp.eq.s32.totalorder %s23, 0
      %p233 = por %p231, %p232
      %p234 = scmp.ne.s32.totalorder %s222, %s223
      %p235 = scmp.eq.s32.totalorder %s24, 1
      %p236 = por %p234, %p235
      %p238 = scmp.ne.s32.totalorder %s223, %s237
      %p239 = scmp.eq.s32.totalorder %s24, 0
      %p240 = por %p238, %p239
      %s241 = ssub.s32 %s18, %s25
      %p242 = scmp.eq.s32.totalorder %s241, 0
      %s244 = sadd.s32 %s243, 1
      %s245 = scalar_select %p242, %s243, %s244
      %p248 = pneg %p242
      %p249 = scmp.eq.s32.totalorder %s18, 1
      %p250 = por %p248, %p249
      %p251 = scmp.ne.s32.totalorder %s243, %s246
      %p252 = scmp.eq.s32.totalorder %s18, 0
      %p253 = por %p251, %p252
      %p254 = scmp.ne.s32.totalorder %s243, %s246
      %p255 = scmp.eq.s32.totalorder %s23, 1
      %p256 = por %p254, %p255
      %p257 = scmp.ne.s32.totalorder %s246, %s247
      %p258 = scmp.eq.s32.totalorder %s23, 0
      %p259 = por %p257, %p258
      %p260 = scmp.ne.s32.totalorder %s246, %s247
      %p261 = scmp.eq.s32.totalorder %s24, 1
      %p262 = por %p260, %p261
      %p264 = scmp.ne.s32.totalorder %s247, %s263
      %p265 = scmp.eq.s32.totalorder %s24, 0
      %p266 = por %p264, %p265
      %p267 = scmp.le.s32.totalorder 1, %s18
      %p268 = scmp.lt.s32.totalorder %s18, 3
      %p269 = pnand %p267, %p268
      %p270 = pneg %p269
      // Predicated region
      $region9: #{forward.4} parent=5 // pred_check
        _
      $region10: #{forward.4} parent=5 // pred_check_branch
        %272 = sbr.rel (%p269) target = $region12
      $region11: #{forward.4} parent=5 // pred_region
        %s273 = ssub.s32 %s18, 1
        // Predicated region
        $region13: #{forward.4} parent=11 // pred_check
          %p274 = pneg %p65
        $region14: #{forward.4} parent=11 // pred_check_branch
          %276 = sbr.rel (%p274) target = $region16
        $region15: #{forward.4} parent=11 // pred_region
          _
        $region16: #{forward.4} parent=11 // pred_fallthru
          _
        // Predicated region
        $region17: #{forward.4} parent=11 // pred_check
          %p277 = pneg %p86
        $region18: #{forward.4} parent=11 // pred_check_branch
          %279 = sbr.rel (%p277) target = $region20
        $region19: #{forward.4} parent=11 // pred_region
          _
        $region20: #{forward.4} parent=11 // pred_fallthru
          _
        // Predicated region
        $region21: #{forward.4} parent=11 // pred_check
          %p280 = pneg %p107
        $region22: #{forward.4} parent=11 // pred_check_branch
          %282 = sbr.rel (%p280) target = $region24
        $region23: #{forward.4} parent=11 // pred_region
          _
        $region24: #{forward.4} parent=11 // pred_fallthru
          _
        // Predicated region
        $region25: #{forward.4} parent=11 // pred_check
          %p283 = pneg %p128
        $region26: #{forward.4} parent=11 // pred_check_branch
          %285 = sbr.rel (%p283) target = $region28
        $region27: #{forward.4} parent=11 // pred_region
          _
        $region28: #{forward.4} parent=11 // pred_fallthru
          _
        // Predicated region
        $region29: #{forward.4} parent=11 // pred_check
          %p286 = pneg %p149
        $region30: #{forward.4} parent=11 // pred_check_branch
          %288 = sbr.rel (%p286) target = $region32
        $region31: #{forward.4} parent=11 // pred_region
          %s290 = ssub.s32 8192, 8192
          %291 = vsyncadd [#allocation3], %s290
          %s292 = sshll.u32 [#allocation2], 4
          %s293 = int_to_ptr.vmem [resolvable:$true] %s292
          %298 = dma.hbm_to_vmem [thread:$0]  %s5, 8192, %s293, [#allocation3], 64, 64, 4
        $region32: #{forward.4} parent=11 // pred_fallthru
          _
        // Predicated region
        $region33: #{forward.4} parent=11 // pred_check
          %p299 = pneg %p170
        $region34: #{forward.4} parent=11 // pred_check_branch
          %301 = sbr.rel (%p299) target = $region36
        $region35: #{forward.4} parent=11 // pred_region
          _
        $region36: #{forward.4} parent=11 // pred_fallthru
          _
        // Predicated region
        $region37: #{forward.4} parent=11 // pred_check
          %p302 = pneg %p191
        $region38: #{forward.4} parent=11 // pred_check_branch
          %304 = sbr.rel (%p302) target = $region40
        $region39: #{forward.4} parent=11 // pred_region
          %s306 = ssub.s32 12288, 12288
          %307 = vsyncadd [#allocation5], %s306
          %s308 = sshll.u32 [#allocation4], 4
          %s309 = int_to_ptr.vmem [resolvable:$true] %s308
          %314 = dma.hbm_to_vmem [thread:$0]  %s7, 12288, %s309, [#allocation5], 64, 64, 4
        $region40: #{forward.4} parent=11 // pred_fallthru
          _
        // Predicated region
        $region41: #{forward.4} parent=11 // pred_check
          %p315 = pneg %p212
        $region42: #{forward.4} parent=11 // pred_check_branch
          %317 = sbr.rel (%p315) target = $region44
        $region43: #{forward.4} parent=11 // pred_region
          _
        $region44: #{forward.4} parent=11 // pred_fallthru
          _
        // Predicated region
        $region45: #{forward.4} parent=11 // pred_check
          %p318 = pneg %p233
        $region46: #{forward.4} parent=11 // pred_check_branch
          %320 = sbr.rel (%p318) target = $region48
        $region47: #{forward.4} parent=11 // pred_region
          _
        $region48: #{forward.4} parent=11 // pred_fallthru
          _
      $region12: #{forward.4} parent=5 // pred_fallthru
        _
      %p321 = scmp.lt.s32.totalorder %s18, 2
      // Predicated region
      $region49: #{forward.4} parent=5 // pred_check
        %p322 = pneg %p321
      $region50: #{forward.4} parent=5 // pred_check_branch
        %324 = sbr.rel (%p322) target = $region52
      $region51: #{forward.4} parent=5 // pred_region
        // Predicated region
        $region53: #{forward.4} parent=51 // pred_check
          %p325 = pneg %p38
        $region54: #{forward.4} parent=51 // pred_check_branch
          %327 = sbr.rel (%p325) target = $region56
        $region55: #{forward.4} parent=51 // pred_region
          %p328 = scmp.lt.s32.totalorder %s18, 1
          %s329 = scalar_select %p328, %s18, 1
          %s330 = smul.addr %s329, 9
          %s331 = smul.addr %s330, 8
          %s332 = scalar_lea.vmem %s0, %s331
        $region56: #{forward.4} parent=51 // pred_fallthru
          _
      $region52: #{forward.4} parent=5 // pred_fallthru
        _
      %p333 = scmp.le.s32.totalorder 1, %s18
      %p334 = scmp.lt.s32.totalorder %s18, 3
      %p335 = pnand %p333, %p334
      %p336 = pneg %p335
      // Predicated region
      $region57: #{forward.4} parent=5 // pred_check
        _
      $region58: #{forward.4} parent=5 // pred_check_branch
        %338 = sbr.rel (%p335) target = $region60
      $region59: #{forward.4} parent=5 // pred_region
        %s339 = ssub.s32 %s18, 1
        // Predicated region
        $region61: #{forward.4} parent=59 // pred_check
          %p340 = pneg %p149
        $region62: #{forward.4} parent=59 // pred_check_branch
          %342 = sbr.rel (%p340) target = $region64
        $region63: #{forward.4} parent=59 // pred_region
          %343 = dma.done [#allocation3], 8192
        $region64: #{forward.4} parent=59 // pred_fallthru
          _
        // Predicated region
        $region65: #{forward.4} parent=59 // pred_check
          %p344 = pneg %p191
        $region66: #{forward.4} parent=59 // pred_check_branch
          %346 = sbr.rel (%p344) target = $region68
        $region67: #{forward.4} parent=59 // pred_region
          %347 = dma.done [#allocation5], 12288
        $region68: #{forward.4} parent=59 // pred_fallthru
          _
        %p348 = scmp.lt.s32.totalorder %s23, 1
        %s349 = scalar_select %p348, %s23, 1
        %s350 = smul.addr %s349, 9
        %s351 = smul.addr %s350, 8
        %s352 = scalar_lea.vmem %s0, %s351
        %p353 = pneg %p44
        %p354 = pneg %p41
        %p355 = pneg %p65
        %p356 = pneg %p62
        %p357 = pneg %p86
        %p358 = pneg %p83
        %p359 = pneg %p107
        %p360 = pneg %p104
        %p361 = pneg %p128
        %p362 = pneg %p125
        %p363 = pneg %p149
        %p364 = pneg %p146
        %p365 = pneg %p170
        %p366 = pneg %p167
        %p367 = pneg %p191
        %p368 = pneg %p188
        %p369 = pneg %p212
        %p370 = pneg %p209
        %p371 = pneg %p233
        %p372 = pneg %p230
        %p373 = pneg %p259
        %p374 = pneg %p256
        %p375 = scmp.lt.s32.totalorder %s23, 1
        %s376 = scalar_select %p375, %s23, 1
        %s377 = scalar_lea.vmem %s10, %s376
        %p378 = scmp.lt.s32.totalorder %s23, 1
        %s379 = scalar_select %p378, %s23, 1
        %s380 = smul.addr %s379, 9
        %s381 = smul.addr %s380, 8
        %s382 = scalar_lea.vmem %s0, %s381
        %p383 = scmp.lt.s32.totalorder %s23, 1
        %s384 = scalar_select %p383, %s23, 1
        %s385 = scalar_lea.vmem %s10, %s384
        %v387 = vld [vmem:[%s382] sm:$0xff]
        %v388 = vld [vmem:[%s382 + $0x8] sm:$0xff]
        %v389 = vld [vmem:[%s382 + $0x10] sm:$0xff]
        %v390 = vld [vmem:[%s382 + $0x18] sm:$0xff]
        %v391 = vld [vmem:[%s382 + $0x20] sm:$0xff]
        %v392 = vld [vmem:[%s382 + $0x28] sm:$0xff]
        %v393 = vld [vmem:[%s382 + $0x30] sm:$0xff]
        %v394 = vld [vmem:[%s382 + $0x38] sm:$0xff]
        %v395 = vld [vmem:[%s382 + $0x40] sm:$0xff]
        %v396 = vpack.c.bf16 %v388, %v387
        %v397 = vpack.c.bf16 %v390, %v389
        %v398 = vpack.c.bf16 %v392, %v391
        %v399 = vpack.c.bf16 %v394, %v393
        %v400 = vpack.c.bf16 %v395, %v395
        %v401 = vld [vmem:[%s1] sm:$0xf]
        %v402 = vld [vmem:[%s1 + $0x4] sm:$0xf]
        %v403 = vld [vmem:[%s1 + $0x8] sm:$0xf]
        %v404 = vld [vmem:[%s1 + $0xc] sm:$0xf]
        %v405 = vld [vmem:[%s1 + $0x10] sm:$0xf]
        %v406 = vld [vmem:[%s2] sm:$0x1]
        %v408 = vlaneseq
        %v409 = vshrl.u32 %v408, 7
        %v410 = vsub.s32 0, %v409
        %v411 = vrot.slane %v406, %v410
        %v418 = vunpack.c.l.b16 %v401
        %v419 = vunpack.c.l.b16 %v402
        %v420 = vunpack.c.l.b16 %v403
        %v421 = vunpack.c.l.b16 %v404
        %v422 = vunpack.c.l.b16 %v405
        %v423 = vpack.c.b16 %v419, %v418
        %v424 = vpack.c.b16 %v421, %v420
        %v425 = vpack.c.b16 %v422, %v422
        %vm428 = vcmask 326656
        %v430 = vsel %vm428, %v396, 0
        %v433 = vsel %vm428, %v397, 0
        %v436 = vsel %vm428, %v398, 0
        %v439 = vsel %vm428, %v399, 0
        %v442 = vsel %vm428, %v400, 0
        %vm444 = vcmask 1043456
        %v446 = vsel %vm444, %v425, 0
        %448 = vmatprep.subr.bf16.mxu0 0
        %449 = vmatpush1.bf16.msra.mxu0 0
        %450 = vmatprep.subr.bf16.mxu0 0
        %451 = vmatpush1.bf16.msra.mxu0 0
        %452 = vmatprep.subr.bf16.mxu0 0
        %453 = vmatpush1.bf16.msra.mxu0 0
        %454 = vmatprep.subr.bf16.mxu0 0
        %455 = vmatpush1.bf16.msra.mxu0 0
        %456 = vmatprep.subr.bf16.mxu0 0
        %457 = vmatpush1.bf16.msra.mxu0 0
        %458 = vmatprep.subr.bf16.mxu0 0
        %459 = vmatpush1.bf16.msra.mxu0 %v446
        %460 = vmatprep.subr.bf16.mxu0 0
        %461 = vmatpush1.bf16.msra.mxu0 %v424
        %462 = vmatprep.subr.bf16.mxu0 0
        %463 = vmatpush1.bf16.msra.mxu0 %v423
        %464 = vmatprep.subr.bf16.mxu0 0
        %465 = vmatpush2.bf16.msra.mxu0 0
        %466 = vmatprep.subr.bf16.mxu0 0
        %467 = vmatpush2.bf16.msra.mxu0 0
        %468 = vmatprep.subr.bf16.mxu0 0
        %469 = vmatpush2.bf16.msra.mxu0 0
        %470 = vmatprep.subr.bf16.mxu0 0
        %471 = vmatpush2.bf16.msra.mxu0 0
        %472 = vmatprep.subr.bf16.mxu0 0
        %473 = vmatpush2.bf16.msra.mxu0 0
        %474 = vmatprep.subr.bf16.mxu0 0
        %475 = vmatpush2.bf16.msra.mxu0 0
        %476 = vmatprep.subr.bf16.mxu0 0
        %477 = vmatpush2.bf16.msra.mxu0 0
        %478 = vmatprep.subr.bf16.mxu0 0
        %479 = vmatpush2.bf16.msra.mxu0 0
        %480 = vmatprep.mubr.bf16.mxu0 0
        %481 = vmatmul.mubr.bf16.gmra.mxu0 %v430
        %v482 = vpop.f32.mrf.mxu0
        %v483 = vadd.f32 %v411, %v482
        %v484 = vpop.f32.mrf.mxu0
        %v485 = vpop.f32.mrf.mxu0
        %v486 = vadd.f32 %v411, %v485
        %v487 = vpop.f32.mrf.mxu0
        %488 = vmatprep.mubr.bf16.mxu0 0
        %489 = vmatmul.mubr.bf16.gmra.mxu0 %v433
        %v490 = vpop.f32.mrf.mxu0
        %v491 = vadd.f32 %v411, %v490
        %v492 = vpop.f32.mrf.mxu0
        %v493 = vpop.f32.mrf.mxu0
        %v494 = vadd.f32 %v411, %v493
        %v495 = vpop.f32.mrf.mxu0
        %496 = vmatprep.mubr.bf16.mxu0 0
        %497 = vmatmul.mubr.bf16.gmra.mxu0 %v436
        %v498 = vpop.f32.mrf.mxu0
        %v499 = vadd.f32 %v411, %v498
        %v500 = vpop.f32.mrf.mxu0
        %v501 = vpop.f32.mrf.mxu0
        %v502 = vadd.f32 %v411, %v501
        %v503 = vpop.f32.mrf.mxu0
        %504 = vmatprep.mubr.bf16.mxu0 0
        %505 = vmatmul.mubr.bf16.gmra.mxu0 %v439
        %v506 = vpop.f32.mrf.mxu0
        %v507 = vadd.f32 %v411, %v506
        %v508 = vpop.f32.mrf.mxu0
        %v509 = vpop.f32.mrf.mxu0
        %v510 = vadd.f32 %v411, %v509
        %v511 = vpop.f32.mrf.mxu0
        %512 = vmatprep.mubr.bf16.mxu0 0
        %513 = vmatmul.mubr.bf16.gmra.mxu0 %v442
        %v514 = vpop.f32.mrf.mxu0
        %v515 = vadd.f32 %v411, %v514
        %v516 = vpop.f32.mrf.mxu0
        %v517 = vpop.f32.mrf.mxu0
        %v518 = vpop.f32.mrf.mxu0
        %519 = vdwg.mxu0
        %v520 = vld [vmem:[%s9] sm:$0x7]
        %vm530 = vcmask 1046528
        %v531 = vrot.slane %v483, 1
        %v532 = vrot.slane %v486, 1
        %v533 = vsel %vm530, %v531, %v532
        %v534 = vrot.slane %v491, 1
        %v535 = vsel %vm530, %v532, %v534
        %v536 = vrot.slane %v494, 1
        %v537 = vsel %vm530, %v534, %v536
        %v538 = vrot.slane %v499, 1
        %v539 = vsel %vm530, %v536, %v538
        %v540 = vrot.slane %v502, 1
        %v541 = vsel %vm530, %v538, %v540
        %v542 = vrot.slane %v507, 1
        %v543 = vsel %vm530, %v540, %v542
        %v544 = vrot.slane %v510, 1
        %v545 = vsel %vm530, %v542, %v544
        %v546 = vrot.slane %v515, 1
        %v547 = vsel %vm530, %v544, %v546
        %vm557 = vcmask 1045504
        %v558 = vrot.slane %v483, 2
        %v559 = vrot.slane %v486, 2
        %v560 = vsel %vm557, %v558, %v559
        %v561 = vrot.slane %v491, 2
        %v562 = vsel %vm557, %v559, %v561
        %v563 = vrot.slane %v494, 2
        %v564 = vsel %vm557, %v561, %v563
        %v565 = vrot.slane %v499, 2
        %v566 = vsel %vm557, %v563, %v565
        %v567 = vrot.slane %v502, 2
        %v568 = vsel %vm557, %v565, %v567
        %v569 = vrot.slane %v507, 2
        %v570 = vsel %vm557, %v567, %v569
        %v571 = vrot.slane %v510, 2
        %v572 = vsel %vm557, %v569, %v571
        %v573 = vrot.slane %v515, 2
        %v574 = vsel %vm557, %v571, %v573
        %vm584 = vcmask 1044480
        %v585 = vrot.slane %v483, 3
        %v586 = vrot.slane %v486, 3
        %v587 = vsel %vm584, %v585, %v586
        %v588 = vrot.slane %v491, 3
        %v589 = vsel %vm584, %v586, %v588
        %v590 = vrot.slane %v494, 3
        %v591 = vsel %vm584, %v588, %v590
        %v592 = vrot.slane %v499, 3
        %v593 = vsel %vm584, %v590, %v592
        %v594 = vrot.slane %v502, 3
        %v595 = vsel %vm584, %v592, %v594
        %v596 = vrot.slane %v507, 3
        %v597 = vsel %vm584, %v594, %v596
        %v598 = vrot.slane %v510, 3
        %v599 = vsel %vm584, %v596, %v598
        %v600 = vrot.slane %v515, 3
        %v601 = vsel %vm584, %v598, %v600
        %v611 = vpack.c.bf16 %v486, %v483
        %v612 = vpack.c.bf16 %v535, %v533
        %v613 = vpack.c.bf16 %v562, %v560
        %v614 = vpack.c.bf16 %v589, %v587
        %v615 = vpack.c.bf16 %v494, %v491
        %v616 = vpack.c.bf16 %v539, %v537
        %v617 = vpack.c.bf16 %v566, %v564
        %v618 = vpack.c.bf16 %v593, %v591
        %v619 = vpack.c.bf16 %v502, %v499
        %v620 = vpack.c.bf16 %v543, %v541
        %v621 = vpack.c.bf16 %v570, %v568
        %v622 = vpack.c.bf16 %v597, %v595
        %v623 = vpack.c.bf16 %v510, %v507
        %v624 = vpack.c.bf16 %v547, %v545
        %v625 = vpack.c.bf16 %v574, %v572
        %v626 = vpack.c.bf16 %v601, %v599
        %v627 = vpack.c.bf16 %v515, %v515
        %v628 = vpack.c.bf16 %v546, %v546
        %v629 = vpack.c.bf16 %v573, %v573
        %v630 = vpack.c.bf16 %v600, %v600
        %v631 = vld [vmem:[%s3] sm:$0xf]
        %v632 = vld [vmem:[%s3 + $0x4] sm:$0xf]
        %v633 = vld [vmem:[%s3 + $0x8] sm:$0xf]
        %v634 = vld [vmem:[%s3 + $0xc] sm:$0xf]
        %v635 = vld [vmem:[%s3 + $0x10] sm:$0xf]
        %v636 = vld [vmem:[%s3 + $0x14] sm:$0xf]
        %v637 = vld [vmem:[%s3 + $0x18] sm:$0xf]
        %v638 = vld [vmem:[%s3 + $0x1c] sm:$0xf]
        %v639 = vld [vmem:[%s3 + $0x20] sm:$0xf]
        %v640 = vld [vmem:[%s3 + $0x24] sm:$0xf]
        %v641 = vld [vmem:[%s3 + $0x28] sm:$0xf]
        %v642 = vld [vmem:[%s3 + $0x2c] sm:$0xf]
        %v643 = vld [vmem:[%s3 + $0x30] sm:$0xf]
        %v644 = vld [vmem:[%s3 + $0x34] sm:$0xf]
        %v645 = vld [vmem:[%s3 + $0x38] sm:$0xf]
        %v646 = vld [vmem:[%s3 + $0x3c] sm:$0xf]
        %v647 = vld [vmem:[%s3 + $0x40] sm:$0xf]
        %v648 = vld [vmem:[%s3 + $0x44] sm:$0xf]
        %v649 = vld [vmem:[%s3 + $0x48] sm:$0xf]
        %v650 = vld [vmem:[%s3 + $0x4c] sm:$0xf]
        %v651 = vld [vmem:[%s3 + $0x50] sm:$0xf]
        %v652 = vld [vmem:[%s3 + $0x54] sm:$0xf]
        %v653 = vld [vmem:[%s3 + $0x58] sm:$0xf]
        %v654 = vld [vmem:[%s3 + $0x5c] sm:$0xf]
        %v655 = vld [vmem:[%s3 + $0x60] sm:$0xf]
        %v656 = vld [vmem:[%s3 + $0x64] sm:$0xf]
        %v657 = vld [vmem:[%s3 + $0x68] sm:$0xf]
        %v658 = vld [vmem:[%s3 + $0x6c] sm:$0xf]
        %v659 = vld [vmem:[%s3 + $0x70] sm:$0xf]
        %v660 = vld [vmem:[%s3 + $0x74] sm:$0xf]
        %v661 = vld [vmem:[%s3 + $0x78] sm:$0xf]
        %v662 = vld [vmem:[%s3 + $0x7c] sm:$0xf]
        %v663 = vld [vmem:[%s3 + $0x80] sm:$0xf]
        %v664 = vld [vmem:[%s3 + $0x84] sm:$0xf]
        %v665 = vld [vmem:[%s3 + $0x88] sm:$0xf]
        %v666 = vld [vmem:[%s3 + $0x8c] sm:$0xf]
        %v667 = vld [vmem:[%s3 + $0x90] sm:$0xf]
        %v668 = vld [vmem:[%s3 + $0x94] sm:$0xf]
        %v669 = vld [vmem:[%s3 + $0x98] sm:$0xf]
        %v670 = vld [vmem:[%s3 + $0x9c] sm:$0xf]
        %v671 = vld [vmem:[%s3 + $0xa0] sm:$0xf]
        %v672 = vld [vmem:[%s3 + $0xa4] sm:$0xf]
        %v673 = vld [vmem:[%s3 + $0xa8] sm:$0xf]
        %v674 = vld [vmem:[%s3 + $0xac] sm:$0xf]
        %v675 = vld [vmem:[%s3 + $0xb0] sm:$0xf]
        %v676 = vld [vmem:[%s3 + $0xb4] sm:$0xf]
        %v677 = vld [vmem:[%s3 + $0xb8] sm:$0xf]
        %v678 = vld [vmem:[%s3 + $0xbc] sm:$0xf]
        %v679 = vld [vmem:[%s3 + $0xc0] sm:$0xf]
        %v680 = vld [vmem:[%s3 + $0xc4] sm:$0xf]
        %v681 = vld [vmem:[%s3 + $0xc8] sm:$0xf]
        %v682 = vld [vmem:[%s3 + $0xcc] sm:$0xf]
        %v683 = vld [vmem:[%s3 + $0xd0] sm:$0xf]
        %v684 = vld [vmem:[%s3 + $0xd4] sm:$0xf]
        %v685 = vld [vmem:[%s3 + $0xd8] sm:$0xf]
        %v686 = vld [vmem:[%s3 + $0xdc] sm:$0xf]
        %v687 = vld [vmem:[%s3 + $0xe0] sm:$0xf]
        %v688 = vld [vmem:[%s3 + $0xe4] sm:$0xf]
        %v689 = vld [vmem:[%s3 + $0xe8] sm:$0xf]
        %v690 = vld [vmem:[%s3 + $0xec] sm:$0xf]
        %v691 = vld [vmem:[%s3 + $0xf0] sm:$0xf]
        %v692 = vld [vmem:[%s3 + $0xf4] sm:$0xf]
        %v693 = vld [vmem:[%s3 + $0xf8] sm:$0xf]
        %v694 = vld [vmem:[%s3 + $0xfc] sm:$0xf]
        %v695 = vld [vmem:[%s4] sm:$0x1]
        %v697 = vlaneseq
        %v698 = vshrl.u32 %v697, 7
        %v699 = vsub.s32 0, %v698
        %v700 = vrot.slane %v695, %v699
        %v766 = vunpack.c.l.b16 %v631
        %v767 = vunpack.c.l.b16 %v632
        %v768 = vunpack.c.l.b16 %v633
        %v769 = vunpack.c.l.b16 %v634
        %v770 = vunpack.c.l.b16 %v635
        %v771 = vunpack.c.l.b16 %v636
        %v772 = vunpack.c.l.b16 %v637
        %v773 = vunpack.c.l.b16 %v638
        %v774 = vunpack.c.l.b16 %v639
        %v775 = vunpack.c.l.b16 %v640
        %v776 = vunpack.c.l.b16 %v641
        %v777 = vunpack.c.l.b16 %v642
        %v778 = vunpack.c.l.b16 %v643
        %v779 = vunpack.c.l.b16 %v644
        %v780 = vunpack.c.l.b16 %v645
        %v781 = vunpack.c.l.b16 %v646
        %v782 = vunpack.c.l.b16 %v647
        %v783 = vunpack.c.l.b16 %v648
        %v784 = vunpack.c.l.b16 %v649
        %v785 = vunpack.c.l.b16 %v650
        %v786 = vunpack.c.l.b16 %v651
        %v787 = vunpack.c.l.b16 %v652
        %v788 = vunpack.c.l.b16 %v653
        %v789 = vunpack.c.l.b16 %v654
        %v790 = vunpack.c.l.b16 %v655
        %v791 = vunpack.c.l.b16 %v656
        %v792 = vunpack.c.l.b16 %v657
        %v793 = vunpack.c.l.b16 %v658
        %v794 = vunpack.c.l.b16 %v659
        %v795 = vunpack.c.l.b16 %v660
        %v796 = vunpack.c.l.b16 %v661
        %v797 = vunpack.c.l.b16 %v662
        %v798 = vunpack.c.l.b16 %v663
        %v799 = vunpack.c.l.b16 %v664
        %v800 = vunpack.c.l.b16 %v665
        %v801 = vunpack.c.l.b16 %v666
        %v802 = vunpack.c.l.b16 %v667
        %v803 = vunpack.c.l.b16 %v668
        %v804 = vunpack.c.l.b16 %v669
        %v805 = vunpack.c.l.b16 %v670
        %v806 = vunpack.c.l.b16 %v671
        %v807 = vunpack.c.l.b16 %v672
        %v808 = vunpack.c.l.b16 %v673
        %v809 = vunpack.c.l.b16 %v674
        %v810 = vunpack.c.l.b16 %v675
        %v811 = vunpack.c.l.b16 %v676
        %v812 = vunpack.c.l.b16 %v677
        %v813 = vunpack.c.l.b16 %v678
        %v814 = vunpack.c.l.b16 %v679
        %v815 = vunpack.c.l.b16 %v680
        %v816 = vunpack.c.l.b16 %v681
        %v817 = vunpack.c.l.b16 %v682
        %v818 = vunpack.c.l.b16 %v683
        %v819 = vunpack.c.l.b16 %v684
        %v820 = vunpack.c.l.b16 %v685
        %v821 = vunpack.c.l.b16 %v686
        %v822 = vunpack.c.l.b16 %v687
        %v823 = vunpack.c.l.b16 %v688
        %v824 = vunpack.c.l.b16 %v689
        %v825 = vunpack.c.l.b16 %v690
        %v826 = vunpack.c.l.b16 %v691
        %v827 = vunpack.c.l.b16 %v692
        %v828 = vunpack.c.l.b16 %v693
        %v829 = vunpack.c.l.b16 %v694
        %v830 = vpack.c.b16 %v767, %v766
        %v831 = vpack.c.b16 %v769, %v768
        %v832 = vpack.c.b16 %v771, %v770
        %v833 = vpack.c.b16 %v773, %v772
        %v834 = vpack.c.b16 %v775, %v774
        %v835 = vpack.c.b16 %v777, %v776
        %v836 = vpack.c.b16 %v779, %v778
        %v837 = vpack.c.b16 %v781, %v780
        %v838 = vpack.c.b16 %v783, %v782
        %v839 = vpack.c.b16 %v785, %v784
        %v840 = vpack.c.b16 %v787, %v786
        %v841 = vpack.c.b16 %v789, %v788
        %v842 = vpack.c.b16 %v791, %v790
        %v843 = vpack.c.b16 %v793, %v792
        %v844 = vpack.c.b16 %v795, %v794
        %v845 = vpack.c.b16 %v797, %v796
        %v846 = vpack.c.b16 %v799, %v798
        %v847 = vpack.c.b16 %v801, %v800
        %v848 = vpack.c.b16 %v803, %v802
        %v849 = vpack.c.b16 %v805, %v804
        %v850 = vpack.c.b16 %v807, %v806
        %v851 = vpack.c.b16 %v809, %v808
        %v852 = vpack.c.b16 %v811, %v810
        %v853 = vpack.c.b16 %v813, %v812
        %v854 = vpack.c.b16 %v815, %v814
        %v855 = vpack.c.b16 %v817, %v816
        %v856 = vpack.c.b16 %v819, %v818
        %v857 = vpack.c.b16 %v821, %v820
        %v858 = vpack.c.b16 %v823, %v822
        %v859 = vpack.c.b16 %v825, %v824
        %v860 = vpack.c.b16 %v827, %v826
        %v861 = vpack.c.b16 %v829, %v828
        %894 = vmatprep.subr.bf16.mxu0 0
        %895 = vmatpush1.bf16.msra.mxu0 %v837
        %896 = vmatprep.subr.bf16.mxu0 0
        %897 = vmatpush1.bf16.msra.mxu0 %v836
        %898 = vmatprep.subr.bf16.mxu0 0
        %899 = vmatpush1.bf16.msra.mxu0 %v835
        %900 = vmatprep.subr.bf16.mxu0 0
        %901 = vmatpush1.bf16.msra.mxu0 %v834
        %902 = vmatprep.subr.bf16.mxu0 0
        %903 = vmatpush1.bf16.msra.mxu0 %v833
        %904 = vmatprep.subr.bf16.mxu0 0
        %905 = vmatpush1.bf16.msra.mxu0 %v832
        %906 = vmatprep.subr.bf16.mxu0 0
        %907 = vmatpush1.bf16.msra.mxu0 %v831
        %908 = vmatprep.subr.bf16.mxu0 0
        %909 = vmatpush1.bf16.msra.mxu0 %v830
        %910 = vmatprep.subr.bf16.mxu0 0
        %911 = vmatpush2.bf16.msra.mxu0 %v845
        %912 = vmatprep.subr.bf16.mxu0 0
        %913 = vmatpush2.bf16.msra.mxu0 %v844
        %914 = vmatprep.subr.bf16.mxu0 0
        %915 = vmatpush2.bf16.msra.mxu0 %v843
        %916 = vmatprep.subr.bf16.mxu0 0
        %917 = vmatpush2.bf16.msra.mxu0 %v842
        %918 = vmatprep.subr.bf16.mxu0 0
        %919 = vmatpush2.bf16.msra.mxu0 %v841
        %920 = vmatprep.subr.bf16.mxu0 0
        %921 = vmatpush2.bf16.msra.mxu0 %v840
        %922 = vmatprep.subr.bf16.mxu0 0
        %923 = vmatpush2.bf16.msra.mxu0 %v839
        %924 = vmatprep.subr.bf16.mxu0 0
        %925 = vmatpush2.bf16.msra.mxu0 %v838
        %926 = vmatprep.mubr.bf16.mxu0 %v612
        %927 = vmatmul.mubr.bf16.gmra.mxu0 %v611
        %v928 = vpop.f32.mrf.mxu0
        %v929 = vadd.f32 %v700, %v928
        %v930 = vpop.f32.mrf.mxu0
        %v931 = vpop.f32.mrf.mxu0
        %v932 = vadd.f32 %v700, %v931
        %v933 = vpop.f32.mrf.mxu0
        %934 = vmatprep.mubr.bf16.mxu0 %v616
        %935 = vmatmul.mubr.bf16.gmra.mxu0 %v615
        %v936 = vpop.f32.mrf.mxu0
        %v937 = vadd.f32 %v700, %v936
        %v938 = vpop.f32.mrf.mxu0
        %v939 = vpop.f32.mrf.mxu0
        %v940 = vadd.f32 %v700, %v939
        %v941 = vpop.f32.mrf.mxu0
        %942 = vmatprep.mubr.bf16.mxu0 %v620
        %943 = vmatmul.mubr.bf16.gmra.mxu0 %v619
        %v944 = vpop.f32.mrf.mxu0
        %v945 = vadd.f32 %v700, %v944
        %v946 = vpop.f32.mrf.mxu0
        %v947 = vpop.f32.mrf.mxu0
        %v948 = vadd.f32 %v700, %v947
        %v949 = vpop.f32.mrf.mxu0
        %950 = vmatprep.mubr.bf16.mxu0 %v624
        %951 = vmatmul.mubr.bf16.gmra.mxu0 %v623
        %v952 = vpop.f32.mrf.mxu0
        %v953 = vadd.f32 %v700, %v952
        %v954 = vpop.f32.mrf.mxu0
        %v955 = vpop.f32.mrf.mxu0
        %v956 = vadd.f32 %v700, %v955
        %v957 = vpop.f32.mrf.mxu0
        %958 = vmatprep.mubr.bf16.mxu0 %v628
        %959 = vmatmul.mubr.bf16.gmra.mxu0 %v627
        %v960 = vpop.f32.mrf.mxu0
        %v961 = vadd.f32 %v700, %v960
        %v962 = vpop.f32.mrf.mxu0
        %v963 = vpop.f32.mrf.mxu0
        %v964 = vpop.f32.mrf.mxu0
        %965 = vdwg.mxu0
        %966 = vmatprep.subr.bf16.mxu0 0
        %967 = vmatpush1.bf16.msra.mxu0 %v853
        %968 = vmatprep.subr.bf16.mxu0 0
        %969 = vmatpush1.bf16.msra.mxu0 %v852
        %970 = vmatprep.subr.bf16.mxu0 0
        %971 = vmatpush1.bf16.msra.mxu0 %v851
        %972 = vmatprep.subr.bf16.mxu0 0
        %973 = vmatpush1.bf16.msra.mxu0 %v850
        %974 = vmatprep.subr.bf16.mxu0 0
        %975 = vmatpush1.bf16.msra.mxu0 %v849
        %976 = vmatprep.subr.bf16.mxu0 0
        %977 = vmatpush1.bf16.msra.mxu0 %v848
        %978 = vmatprep.subr.bf16.mxu0 0
        %979 = vmatpush1.bf16.msra.mxu0 %v847
        %980 = vmatprep.subr.bf16.mxu0 0
        %981 = vmatpush1.bf16.msra.mxu0 %v846
        %982 = vmatprep.subr.bf16.mxu0 0
        %983 = vmatpush2.bf16.msra.mxu0 %v861
        %984 = vmatprep.subr.bf16.mxu0 0
        %985 = vmatpush2.bf16.msra.mxu0 %v860
        %986 = vmatprep.subr.bf16.mxu0 0
        %987 = vmatpush2.bf16.msra.mxu0 %v859
        %988 = vmatprep.subr.bf16.mxu0 0
        %989 = vmatpush2.bf16.msra.mxu0 %v858
        %990 = vmatprep.subr.bf16.mxu0 0
        %991 = vmatpush2.bf16.msra.mxu0 %v857
        %992 = vmatprep.subr.bf16.mxu0 0
        %993 = vmatpush2.bf16.msra.mxu0 %v856
        %994 = vmatprep.subr.bf16.mxu0 0
        %995 = vmatpush2.bf16.msra.mxu0 %v855
        %996 = vmatprep.subr.bf16.mxu0 0
        %997 = vmatpush2.bf16.msra.mxu0 %v854
        %998 = vmatprep.mubr.bf16.mxu0 %v614
        %999 = vmatmul.mubr.bf16.gmra.mxu0 %v613
        %v1000 = vpop.f32.mrf.mxu0
        %v1001 = vadd.f32 %v929, %v1000
        %v1002 = vpop.f32.mrf.mxu0
        %v1003 = vpop.f32.mrf.mxu0
        %v1004 = vadd.f32 %v932, %v1003
        %v1005 = vpop.f32.mrf.mxu0
        %1006 = vmatprep.mubr.bf16.mxu0 %v618
        %1007 = vmatmul.mubr.bf16.gmra.mxu0 %v617
        %v1008 = vpop.f32.mrf.mxu0
        %v1009 = vadd.f32 %v937, %v1008
        %v1010 = vpop.f32.mrf.mxu0
        %v1011 = vpop.f32.mrf.mxu0
        %v1012 = vadd.f32 %v940, %v1011
        %v1013 = vpop.f32.mrf.mxu0
        %1014 = vmatprep.mubr.bf16.mxu0 %v622
        %1015 = vmatmul.mubr.bf16.gmra.mxu0 %v621
        %v1016 = vpop.f32.mrf.mxu0
        %v1017 = vadd.f32 %v945, %v1016
        %v1018 = vpop.f32.mrf.mxu0
        %v1019 = vpop.f32.mrf.mxu0
        %v1020 = vadd.f32 %v948, %v1019
        %v1021 = vpop.f32.mrf.mxu0
        %1022 = vmatprep.mubr.bf16.mxu0 %v626
        %1023 = vmatmul.mubr.bf16.gmra.mxu0 %v625
        %v1024 = vpop.f32.mrf.mxu0
        %v1025 = vadd.f32 %v953, %v1024
        %v1026 = vpop.f32.mrf.mxu0
        %v1027 = vpop.f32.mrf.mxu0
        %v1028 = vadd.f32 %v956, %v1027
        %v1029 = vpop.f32.mrf.mxu0
        %1030 = vmatprep.mubr.bf16.mxu0 %v630
        %1031 = vmatmul.mubr.bf16.gmra.mxu0 %v629
        %v1032 = vpop.f32.mrf.mxu0
        %v1033 = vadd.f32 %v961, %v1032
        %v1034 = vpop.f32.mrf.mxu0
        %v1035 = vpop.f32.mrf.mxu0
        %v1036 = vpop.f32.mrf.mxu0
        %1037 = vdwg.mxu0
        %vm1038 = vcmp.ge.f32.partialorder %v1001, 0.0
        %vm1039 = vcmp.ge.f32.partialorder %v1004, 0.0
        %vm1040 = vcmp.ge.f32.partialorder %v1009, 0.0
        %vm1041 = vcmp.ge.f32.partialorder %v1012, 0.0
        %vm1042 = vcmp.ge.f32.partialorder %v1017, 0.0
        %vm1043 = vcmp.ge.f32.partialorder %v1020, 0.0
        %vm1044 = vcmp.ge.f32.partialorder %v1025, 0.0
        %vm1045 = vcmp.ge.f32.partialorder %v1028, 0.0
        %vm1046 = vcmp.ge.f32.partialorder %v1033, 0.0
        %v1047 = vlaneseq
        %v1048 = vshrl.u32 %v1047, 7
        %v1049 = vsub.s32 0, %v1048
        %v1050 = vrot.slane %v520, %v1049
        %v1051 = vmul.f32 %v1001, %v1050
        %v1052 = vmul.f32 %v1004, %v1050
        %v1053 = vmul.f32 %v1009, %v1050
        %v1054 = vmul.f32 %v1012, %v1050
        %v1055 = vmul.f32 %v1017, %v1050
        %v1056 = vmul.f32 %v1020, %v1050
        %v1057 = vmul.f32 %v1025, %v1050
        %v1058 = vmul.f32 %v1028, %v1050
        %v1059 = vmul.f32 %v1033, %v1050
        %v1060 = vsel %vm1038, %v1001, %v1051
        %v1061 = vsel %vm1039, %v1004, %v1052
        %v1062 = vsel %vm1040, %v1009, %v1053
        %v1063 = vsel %vm1041, %v1012, %v1054
        %v1064 = vsel %vm1042, %v1017, %v1055
        %v1065 = vsel %vm1043, %v1020, %v1056
        %v1066 = vsel %vm1044, %v1025, %v1057
        %v1067 = vsel %vm1045, %v1028, %v1058
        %v1068 = vsel %vm1046, %v1033, %v1059
        %v1069 = vlaneseq
        %v1070 = vshrl.u32 %v1069, 7
        %v1071 = vadd.s32 %v1070, 8
        %v1072 = vadd.s32 %v1070, 16
        %v1073 = vadd.s32 %v1070, 24
        %v1074 = vadd.s32 %v1070, 32
        %v1075 = vlaneseq
        %v1076 = vand.u32 %v1075, 127
        %v1077 = vmul.u32 %v1070, 2
        %v1078 = vmul.u32 %v1071, 2
        %v1079 = vmul.u32 %v1072, 2
        %v1080 = vmul.u32 %v1073, 2
        %v1081 = vmul.u32 %v1074, 2
        %vm1082 = vcmp.eq.s32.totalorder %v1076, %v1077
        %vm1083 = vcmp.eq.s32.totalorder %v1076, %v1078
        %vm1084 = vcmp.eq.s32.totalorder %v1076, %v1079
        %vm1085 = vcmp.eq.s32.totalorder %v1076, %v1080
        %vm1086 = vcmp.eq.s32.totalorder %v1076, %v1081
        %v1087 = vsel %vm1082, 1, 0
        %v1088 = vsel %vm1083, 1, 0
        %v1089 = vsel %vm1084, 1, 0
        %v1090 = vsel %vm1085, 1, 0
        %v1091 = vsel %vm1086, 1, 0
        %v1092 = vcvt.s32.f32 %v1087
        %v1093 = vcvt.s32.f32 %v1088
        %v1094 = vcvt.s32.f32 %v1089
        %v1095 = vcvt.s32.f32 %v1090
        %v1096 = vcvt.s32.f32 %v1091
        %v1097 = vadd.s32 %v1077, 1
        %v1098 = vadd.s32 %v1078, 1
        %v1099 = vadd.s32 %v1079, 1
        %v1100 = vadd.s32 %v1080, 1
        %v1101 = vadd.s32 %v1081, 1
        %vm1102 = vcmp.eq.s32.totalorder %v1076, %v1097
        %vm1103 = vcmp.eq.s32.totalorder %v1076, %v1098
        %vm1104 = vcmp.eq.s32.totalorder %v1076, %v1099
        %vm1105 = vcmp.eq.s32.totalorder %v1076, %v1100
        %vm1106 = vcmp.eq.s32.totalorder %v1076, %v1101
        %v1107 = vsel %vm1102, 1, 0
        %v1108 = vsel %vm1103, 1, 0
        %v1109 = vsel %vm1104, 1, 0
        %v1110 = vsel %vm1105, 1, 0
        %v1111 = vsel %vm1106, 1, 0
        %v1112 = vcvt.s32.f32 %v1107
        %v1113 = vcvt.s32.f32 %v1108
        %v1114 = vcvt.s32.f32 %v1109
        %v1115 = vcvt.s32.f32 %v1110
        %v1116 = vcvt.s32.f32 %v1111
        %vm1117 = vcmask 564224
        %v1119 = vsel %vm1117, %v1092, 0
        %v1122 = vsel %vm1117, %v1093, 0
        %v1125 = vsel %vm1117, %v1094, 0
        %v1128 = vsel %vm1117, %v1095, 0
        %v1131 = vsel %vm1117, %v1096, 0
        %v1134 = vsel %vm584, %v1068, 0
        %1136 = vmatprep.subr.mxu0 0.0
        %1137 = vmatpush1.msra.mxu0 0.0
        %1138 = vmatprep.subr.mxu0 0.0
        %1139 = vmatpush1.msra.mxu0 0.0
        %1140 = vmatprep.subr.mxu0 0.0
        %1141 = vmatpush1.msra.mxu0 0.0
        %1142 = vmatprep.subr.mxu0 0.0
        %1143 = vmatpush1.msra.mxu0 0.0
        %1144 = vmatprep.subr.mxu0 0.0
        %1145 = vmatpush1.msra.mxu0 0.0
        %1146 = vmatprep.subr.mxu0 0.0
        %1147 = vmatpush1.msra.mxu0 0.0
        %1148 = vmatprep.subr.mxu0 0.0
        %1149 = vmatpush1.msra.mxu0 0.0
        %1150 = vmatprep.subr.mxu0 0.0
        %1151 = vmatpush1.msra.mxu0 %v1134
        %1152 = vmatprep.subr.mxu0 0.0
        %1153 = vmatpush1.msra.mxu0 %v1067
        %1154 = vmatprep.subr.mxu0 0.0
        %1155 = vmatpush1.msra.mxu0 %v1066
        %1156 = vmatprep.subr.mxu0 0.0
        %1157 = vmatpush1.msra.mxu0 %v1065
        %1158 = vmatprep.subr.mxu0 0.0
        %1159 = vmatpush1.msra.mxu0 %v1064
        %1160 = vmatprep.subr.mxu0 0.0
        %1161 = vmatpush1.msra.mxu0 %v1063
        %1162 = vmatprep.subr.mxu0 0.0
        %1163 = vmatpush1.msra.mxu0 %v1062
        %1164 = vmatprep.subr.mxu0 0.0
        %1165 = vmatpush1.msra.mxu0 %v1061
        %1166 = vmatprep.subr.mxu0 0.0
        %1167 = vmatpush1.msra.mxu0 %v1060
        %1168 = vmatprep.subr.mxu0 0.0
        %1169 = vmatpush2.msra.mxu0 0.0
        %1170 = vmatprep.subr.mxu0 0.0
        %1171 = vmatpush2.msra.mxu0 0.0
        %1172 = vmatprep.subr.mxu0 0.0
        %1173 = vmatpush2.msra.mxu0 0.0
        %1174 = vmatprep.subr.mxu0 0.0
        %1175 = vmatpush2.msra.mxu0 0.0
        %1176 = vmatprep.subr.mxu0 0.0
        %1177 = vmatpush2.msra.mxu0 0.0
        %1178 = vmatprep.subr.mxu0 0.0
        %1179 = vmatpush2.msra.mxu0 0.0
        %1180 = vmatprep.subr.mxu0 0.0
        %1181 = vmatpush2.msra.mxu0 0.0
        %1182 = vmatprep.subr.mxu0 0.0
        %1183 = vmatpush2.msra.mxu0 0.0
        %1184 = vmatprep.subr.mxu0 0.0
        %1185 = vmatpush2.msra.mxu0 0.0
        %1186 = vmatprep.subr.mxu0 0.0
        %1187 = vmatpush2.msra.mxu0 0.0
        %1188 = vmatprep.subr.mxu0 0.0
        %1189 = vmatpush2.msra.mxu0 0.0
        %1190 = vmatprep.subr.mxu0 0.0
        %1191 = vmatpush2.msra.mxu0 0.0
        %1192 = vmatprep.subr.mxu0 0.0
        %1193 = vmatpush2.msra.mxu0 0.0
        %1194 = vmatprep.subr.mxu0 0.0
        %1195 = vmatpush2.msra.mxu0 0.0
        %1196 = vmatprep.subr.mxu0 0.0
        %1197 = vmatpush2.msra.mxu0 0.0
        %1198 = vmatprep.subr.mxu0 0.0
        %1199 = vmatpush2.msra.mxu0 0.0
        %1200 = vmatprep.mubr.f32.mxu0 0.0
        %1201 = vmatmul.mubr.f32.gmra.mxu0 %v1119
        %v1202 = vpop.f32.mrf.mxu0
        %v1203 = vadd.f32 0.0, %v1202
        %v1204 = vpop.f32.mrf.mxu0
        %1205 = vmatprep.mubr.f32.mxu0 0.0
        %1206 = vmatmul.mubr.f32.gmra.mxu0 %v1122
        %v1207 = vpop.f32.mrf.mxu0
        %v1208 = vadd.f32 0.0, %v1207
        %v1209 = vpop.f32.mrf.mxu0
        %1210 = vmatprep.mubr.f32.mxu0 0.0
        %1211 = vmatmul.mubr.f32.gmra.mxu0 %v1125
        %v1212 = vpop.f32.mrf.mxu0
        %v1213 = vadd.f32 0.0, %v1212
        %v1214 = vpop.f32.mrf.mxu0
        %1215 = vmatprep.mubr.f32.mxu0 0.0
        %1216 = vmatmul.mubr.f32.gmra.mxu0 %v1128
        %v1217 = vpop.f32.mrf.mxu0
        %v1218 = vadd.f32 0.0, %v1217
        %v1219 = vpop.f32.mrf.mxu0
        %1220 = vmatprep.mubr.f32.mxu0 0.0
        %1221 = vmatmul.mubr.f32.gmra.mxu0 %v1131
        %v1222 = vpop.f32.mrf.mxu0
        %v1223 = vadd.f32 0.0, %v1222
        %v1224 = vpop.f32.mrf.mxu0
        %1225 = vdwg.mxu0
        %v1227 = vsel %vm1117, %v1112, 0
        %v1230 = vsel %vm1117, %v1113, 0
        %v1233 = vsel %vm1117, %v1114, 0
        %v1236 = vsel %vm1117, %v1115, 0
        %v1239 = vsel %vm1117, %v1116, 0
        %1241 = vmatprep.subr.mxu0 0.0
        %1242 = vmatpush1.msra.mxu0 0.0
        %1243 = vmatprep.subr.mxu0 0.0
        %1244 = vmatpush1.msra.mxu0 0.0
        %1245 = vmatprep.subr.mxu0 0.0
        %1246 = vmatpush1.msra.mxu0 0.0
        %1247 = vmatprep.subr.mxu0 0.0
        %1248 = vmatpush1.msra.mxu0 0.0
        %1249 = vmatprep.subr.mxu0 0.0
        %1250 = vmatpush1.msra.mxu0 0.0
        %1251 = vmatprep.subr.mxu0 0.0
        %1252 = vmatpush1.msra.mxu0 0.0
        %1253 = vmatprep.subr.mxu0 0.0
        %1254 = vmatpush1.msra.mxu0 0.0
        %1255 = vmatprep.subr.mxu0 0.0
        %1256 = vmatpush1.msra.mxu0 %v1134
        %1257 = vmatprep.subr.mxu0 0.0
        %1258 = vmatpush1.msra.mxu0 %v1067
        %1259 = vmatprep.subr.mxu0 0.0
        %1260 = vmatpush1.msra.mxu0 %v1066
        %1261 = vmatprep.subr.mxu0 0.0
        %1262 = vmatpush1.msra.mxu0 %v1065
        %1263 = vmatprep.subr.mxu0 0.0
        %1264 = vmatpush1.msra.mxu0 %v1064
        %1265 = vmatprep.subr.mxu0 0.0
        %1266 = vmatpush1.msra.mxu0 %v1063
        %1267 = vmatprep.subr.mxu0 0.0
        %1268 = vmatpush1.msra.mxu0 %v1062
        %1269 = vmatprep.subr.mxu0 0.0
        %1270 = vmatpush1.msra.mxu0 %v1061
        %1271 = vmatprep.subr.mxu0 0.0
        %1272 = vmatpush1.msra.mxu0 %v1060
        %1273 = vmatprep.subr.mxu0 0.0
        %1274 = vmatpush2.msra.mxu0 0.0
        %1275 = vmatprep.subr.mxu0 0.0
        %1276 = vmatpush2.msra.mxu0 0.0
        %1277 = vmatprep.subr.mxu0 0.0
        %1278 = vmatpush2.msra.mxu0 0.0
        %1279 = vmatprep.subr.mxu0 0.0
        %1280 = vmatpush2.msra.mxu0 0.0
        %1281 = vmatprep.subr.mxu0 0.0
        %1282 = vmatpush2.msra.mxu0 0.0
        %1283 = vmatprep.subr.mxu0 0.0
        %1284 = vmatpush2.msra.mxu0 0.0
        %1285 = vmatprep.subr.mxu0 0.0
        %1286 = vmatpush2.msra.mxu0 0.0
        %1287 = vmatprep.subr.mxu0 0.0
        %1288 = vmatpush2.msra.mxu0 0.0
        %1289 = vmatprep.subr.mxu0 0.0
        %1290 = vmatpush2.msra.mxu0 0.0
        %1291 = vmatprep.subr.mxu0 0.0
        %1292 = vmatpush2.msra.mxu0 0.0
        %1293 = vmatprep.subr.mxu0 0.0
        %1294 = vmatpush2.msra.mxu0 0.0
        %1295 = vmatprep.subr.mxu0 0.0
        %1296 = vmatpush2.msra.mxu0 0.0
        %1297 = vmatprep.subr.mxu0 0.0
        %1298 = vmatpush2.msra.mxu0 0.0
        %1299 = vmatprep.subr.mxu0 0.0
        %1300 = vmatpush2.msra.mxu0 0.0
        %1301 = vmatprep.subr.mxu0 0.0
        %1302 = vmatpush2.msra.mxu0 0.0
        %1303 = vmatprep.subr.mxu0 0.0
        %1304 = vmatpush2.msra.mxu0 0.0
        %1305 = vmatprep.mubr.f32.mxu0 0.0
        %1306 = vmatmul.mubr.f32.gmra.mxu0 %v1227
        %v1307 = vpop.f32.mrf.mxu0
        %v1308 = vadd.f32 0.0, %v1307
        %v1309 = vpop.f32.mrf.mxu0
        %1310 = vmatprep.mubr.f32.mxu0 0.0
        %1311 = vmatmul.mubr.f32.gmra.mxu0 %v1230
        %v1312 = vpop.f32.mrf.mxu0
        %v1313 = vadd.f32 0.0, %v1312
        %v1314 = vpop.f32.mrf.mxu0
        %1315 = vmatprep.mubr.f32.mxu0 0.0
        %1316 = vmatmul.mubr.f32.gmra.mxu0 %v1233
        %v1317 = vpop.f32.mrf.mxu0
        %v1318 = vadd.f32 0.0, %v1317
        %v1319 = vpop.f32.mrf.mxu0
        %1320 = vmatprep.mubr.f32.mxu0 0.0
        %1321 = vmatmul.mubr.f32.gmra.mxu0 %v1236
        %v1322 = vpop.f32.mrf.mxu0
        %v1323 = vadd.f32 0.0, %v1322
        %v1324 = vpop.f32.mrf.mxu0
        %1325 = vmatprep.mubr.f32.mxu0 0.0
        %1326 = vmatmul.mubr.f32.gmra.mxu0 %v1239
        %v1327 = vpop.f32.mrf.mxu0
        %v1328 = vadd.f32 0.0, %v1327
        %v1329 = vpop.f32.mrf.mxu0
        %1330 = vdwg.mxu0
        %v1331 = vmax.f32 %v1203, %v1308
        %v1332 = vmax.f32 %v1208, %v1313
        %v1333 = vmax.f32 %v1213, %v1318
        %v1334 = vmax.f32 %v1218, %v1323
        %v1335 = vmax.f32 %v1223, %v1328
        %v1340 = vrot.slane %v1331, 1
        %v1341 = vrot.slane %v1332, 1
        %v1342 = vsel %vm530, %v1340, %v1341
        %v1343 = vrot.slane %v1333, 1
        %v1344 = vsel %vm530, %v1341, %v1343
        %v1345 = vrot.slane %v1334, 1
        %v1346 = vsel %vm530, %v1343, %v1345
        %v1351 = vrot.slane %v1331, 2
        %v1352 = vrot.slane %v1332, 2
        %v1353 = vsel %vm557, %v1351, %v1352
        %v1354 = vrot.slane %v1333, 2
        %v1355 = vsel %vm557, %v1352, %v1354
        %v1356 = vrot.slane %v1334, 2
        %v1357 = vsel %vm557, %v1354, %v1356
        %v1362 = vrot.slane %v1331, 3
        %v1363 = vrot.slane %v1332, 3
        %v1364 = vsel %vm584, %v1362, %v1363
        %v1365 = vrot.slane %v1333, 3
        %v1366 = vsel %vm584, %v1363, %v1365
        %v1367 = vrot.slane %v1334, 3
        %v1368 = vsel %vm584, %v1365, %v1367
        %v1373 = vrot.slane %v1331, 4
        %v1374 = vrot.slane %v1332, 4
        %v1375 = vsel %vm444, %v1373, %v1374
        %v1376 = vrot.slane %v1333, 4
        %v1377 = vsel %vm444, %v1374, %v1376
        %v1378 = vrot.slane %v1334, 4
        %v1379 = vsel %vm444, %v1376, %v1378
        %vm1384 = vcmask 1042432
        %v1385 = vrot.slane %v1331, 5
        %v1386 = vrot.slane %v1332, 5
        %v1387 = vsel %vm1384, %v1385, %v1386
        %v1388 = vrot.slane %v1333, 5
        %v1389 = vsel %vm1384, %v1386, %v1388
        %v1390 = vrot.slane %v1334, 5
        %v1391 = vsel %vm1384, %v1388, %v1390
        %vm1397 = vcmask 1041408
        %v1398 = vrot.slane %v1331, 6
        %v1399 = vrot.slane %v1332, 6
        %v1400 = vsel %vm1397, %v1398, %v1399
        %v1401 = vrot.slane %v1333, 6
        %v1402 = vsel %vm1397, %v1399, %v1401
        %v1403 = vrot.slane %v1334, 6
        %v1404 = vsel %vm1397, %v1401, %v1403
        %v1405 = vrot.slane %v1335, 6
        %v1406 = vsel %vm1397, %v1403, %v1405
        %vm1411 = vcmask 1040384
        %v1412 = vrot.slane %v1331, 7
        %v1413 = vrot.slane %v1332, 7
        %v1414 = vsel %vm1411, %v1412, %v1413
        %v1415 = vrot.slane %v1333, 7
        %v1416 = vsel %vm1411, %v1413, %v1415
        %v1417 = vrot.slane %v1334, 7
        %v1418 = vsel %vm1411, %v1415, %v1417
        %v1419 = vrot.slane %v1335, 7
        %v1420 = vsel %vm1411, %v1417, %v1419
        %v1425 = vpack.c.bf16 %v1332, %v1331
        %v1426 = vpack.c.bf16 %v1344, %v1342
        %v1427 = vpack.c.bf16 %v1355, %v1353
        %v1428 = vpack.c.bf16 %v1366, %v1364
        %v1429 = vpack.c.bf16 %v1377, %v1375
        %v1430 = vpack.c.bf16 %v1389, %v1387
        %v1431 = vpack.c.bf16 %v1402, %v1400
        %v1432 = vpack.c.bf16 %v1416, %v1414
        %v1433 = vpack.c.bf16 %v1334, %v1333
        %v1434 = vpack.c.bf16 %v1345, %v1346
        %v1435 = vpack.c.bf16 %v1356, %v1357
        %v1436 = vpack.c.bf16 %v1367, %v1368
        %v1437 = vpack.c.bf16 %v1378, %v1379
        %v1438 = vpack.c.bf16 %v1390, %v1391
        %v1439 = vpack.c.bf16 %v1406, %v1404
        %v1440 = vpack.c.bf16 %v1420, %v1418
        %v1441 = vld [vmem:[#allocation2] sm:$0xf]
        %v1442 = vld [vmem:[#allocation2 + $0x4] sm:$0xf]
        %v1443 = vld [vmem:[#allocation2 + $0x8] sm:$0xf]
        %v1444 = vld [vmem:[#allocation2 + $0xc] sm:$0xf]
        %v1445 = vld [vmem:[#allocation2 + $0x10] sm:$0xf]
        %v1446 = vld [vmem:[#allocation2 + $0x14] sm:$0xf]
        %v1447 = vld [vmem:[#allocation2 + $0x18] sm:$0xf]
        %v1448 = vld [vmem:[#allocation2 + $0x1c] sm:$0xf]
        %v1449 = vld [vmem:[#allocation2 + $0x20] sm:$0xf]
        %v1450 = vld [vmem:[#allocation2 + $0x24] sm:$0xf]
        %v1451 = vld [vmem:[#allocation2 + $0x28] sm:$0xf]
        %v1452 = vld [vmem:[#allocation2 + $0x2c] sm:$0xf]
        %v1453 = vld [vmem:[#allocation2 + $0x30] sm:$0xf]
        %v1454 = vld [vmem:[#allocation2 + $0x34] sm:$0xf]
        %v1455 = vld [vmem:[#allocation2 + $0x38] sm:$0xf]
        %v1456 = vld [vmem:[#allocation2 + $0x3c] sm:$0xf]
        %v1457 = vld [vmem:[#allocation2 + $0x40] sm:$0xf]
        %v1458 = vld [vmem:[#allocation2 + $0x44] sm:$0xf]
        %v1459 = vld [vmem:[#allocation2 + $0x48] sm:$0xf]
        %v1460 = vld [vmem:[#allocation2 + $0x4c] sm:$0xf]
        %v1461 = vld [vmem:[#allocation2 + $0x50] sm:$0xf]
        %v1462 = vld [vmem:[#allocation2 + $0x54] sm:$0xf]
        %v1463 = vld [vmem:[#allocation2 + $0x58] sm:$0xf]
        %v1464 = vld [vmem:[#allocation2 + $0x5c] sm:$0xf]
        %v1465 = vld [vmem:[#allocation2 + $0x60] sm:$0xf]
        %v1466 = vld [vmem:[#allocation2 + $0x64] sm:$0xf]
        %v1467 = vld [vmem:[#allocation2 + $0x68] sm:$0xf]
        %v1468 = vld [vmem:[#allocation2 + $0x6c] sm:$0xf]
        %v1469 = vld [vmem:[#allocation2 + $0x70] sm:$0xf]
        %v1470 = vld [vmem:[#allocation2 + $0x74] sm:$0xf]
        %v1471 = vld [vmem:[#allocation2 + $0x78] sm:$0xf]
        %v1472 = vld [vmem:[#allocation2 + $0x7c] sm:$0xf]
        %v1473 = vld [vmem:[#allocation2 + $0x80] sm:$0xf]
        %v1474 = vld [vmem:[#allocation2 + $0x84] sm:$0xf]
        %v1475 = vld [vmem:[#allocation2 + $0x88] sm:$0xf]
        %v1476 = vld [vmem:[#allocation2 + $0x8c] sm:$0xf]
        %v1477 = vld [vmem:[#allocation2 + $0x90] sm:$0xf]
        %v1478 = vld [vmem:[#allocation2 + $0x94] sm:$0xf]
        %v1479 = vld [vmem:[#allocation2 + $0x98] sm:$0xf]
        %v1480 = vld [vmem:[#allocation2 + $0x9c] sm:$0xf]
        %v1481 = vld [vmem:[#allocation2 + $0xa0] sm:$0xf]
        %v1482 = vld [vmem:[#allocation2 + $0xa4] sm:$0xf]
        %v1483 = vld [vmem:[#allocation2 + $0xa8] sm:$0xf]
        %v1484 = vld [vmem:[#allocation2 + $0xac] sm:$0xf]
        %v1485 = vld [vmem:[#allocation2 + $0xb0] sm:$0xf]
        %v1486 = vld [vmem:[#allocation2 + $0xb4] sm:$0xf]
        %v1487 = vld [vmem:[#allocation2 + $0xb8] sm:$0xf]
        %v1488 = vld [vmem:[#allocation2 + $0xbc] sm:$0xf]
        %v1489 = vld [vmem:[#allocation2 + $0xc0] sm:$0xf]
        %v1490 = vld [vmem:[#allocation2 + $0xc4] sm:$0xf]
        %v1491 = vld [vmem:[#allocation2 + $0xc8] sm:$0xf]
        %v1492 = vld [vmem:[#allocation2 + $0xcc] sm:$0xf]
        %v1493 = vld [vmem:[#allocation2 + $0xd0] sm:$0xf]
        %v1494 = vld [vmem:[#allocation2 + $0xd4] sm:$0xf]
        %v1495 = vld [vmem:[#allocation2 + $0xd8] sm:$0xf]
        %v1496 = vld [vmem:[#allocation2 + $0xdc] sm:$0xf]
        %v1497 = vld [vmem:[#allocation2 + $0xe0] sm:$0xf]
        %v1498 = vld [vmem:[#allocation2 + $0xe4] sm:$0xf]
        %v1499 = vld [vmem:[#allocation2 + $0xe8] sm:$0xf]
        %v1500 = vld [vmem:[#allocation2 + $0xec] sm:$0xf]
        %v1501 = vld [vmem:[#allocation2 + $0xf0] sm:$0xf]
        %v1502 = vld [vmem:[#allocation2 + $0xf4] sm:$0xf]
        %v1503 = vld [vmem:[#allocation2 + $0xf8] sm:$0xf]
        %v1504 = vld [vmem:[#allocation2 + $0xfc] sm:$0xf]
        %v1505 = vld [vmem:[#allocation2 + $0x100] sm:$0xf]
        %v1506 = vld [vmem:[#allocation2 + $0x104] sm:$0xf]
        %v1507 = vld [vmem:[#allocation2 + $0x108] sm:$0xf]
        %v1508 = vld [vmem:[#allocation2 + $0x10c] sm:$0xf]
        %v1509 = vld [vmem:[#allocation2 + $0x110] sm:$0xf]
        %v1510 = vld [vmem:[#allocation2 + $0x114] sm:$0xf]
        %v1511 = vld [vmem:[#allocation2 + $0x118] sm:$0xf]
        %v1512 = vld [vmem:[#allocation2 + $0x11c] sm:$0xf]
        %v1513 = vld [vmem:[#allocation2 + $0x120] sm:$0xf]
        %v1514 = vld [vmem:[#allocation2 + $0x124] sm:$0xf]
        %v1515 = vld [vmem:[#allocation2 + $0x128] sm:$0xf]
        %v1516 = vld [vmem:[#allocation2 + $0x12c] sm:$0xf]
        %v1517 = vld [vmem:[#allocation2 + $0x130] sm:$0xf]
        %v1518 = vld [vmem:[#allocation2 + $0x134] sm:$0xf]
        %v1519 = vld [vmem:[#allocation2 + $0x138] sm:$0xf]
        %v1520 = vld [vmem:[#allocation2 + $0x13c] sm:$0xf]
        %v1521 = vld [vmem:[#allocation2 + $0x140] sm:$0xf]
        %v1522 = vld [vmem:[#allocation2 + $0x144] sm:$0xf]
        %v1523 = vld [vmem:[#allocation2 + $0x148] sm:$0xf]
        %v1524 = vld [vmem:[#allocation2 + $0x14c] sm:$0xf]
        %v1525 = vld [vmem:[#allocation2 + $0x150] sm:$0xf]
        %v1526 = vld [vmem:[#allocation2 + $0x154] sm:$0xf]
        %v1527 = vld [vmem:[#allocation2 + $0x158] sm:$0xf]
        %v1528 = vld [vmem:[#allocation2 + $0x15c] sm:$0xf]
        %v1529 = vld [vmem:[#allocation2 + $0x160] sm:$0xf]
        %v1530 = vld [vmem:[#allocation2 + $0x164] sm:$0xf]
        %v1531 = vld [vmem:[#allocation2 + $0x168] sm:$0xf]
        %v1532 = vld [vmem:[#allocation2 + $0x16c] sm:$0xf]
        %v1533 = vld [vmem:[#allocation2 + $0x170] sm:$0xf]
        %v1534 = vld [vmem:[#allocation2 + $0x174] sm:$0xf]
        %v1535 = vld [vmem:[#allocation2 + $0x178] sm:$0xf]
        %v1536 = vld [vmem:[#allocation2 + $0x17c] sm:$0xf]
        %v1537 = vld [vmem:[#allocation2 + $0x180] sm:$0xf]
        %v1538 = vld [vmem:[#allocation2 + $0x184] sm:$0xf]
        %v1539 = vld [vmem:[#allocation2 + $0x188] sm:$0xf]
        %v1540 = vld [vmem:[#allocation2 + $0x18c] sm:$0xf]
        %v1541 = vld [vmem:[#allocation2 + $0x190] sm:$0xf]
        %v1542 = vld [vmem:[#allocation2 + $0x194] sm:$0xf]
        %v1543 = vld [vmem:[#allocation2 + $0x198] sm:$0xf]
        %v1544 = vld [vmem:[#allocation2 + $0x19c] sm:$0xf]
        %v1545 = vld [vmem:[#allocation2 + $0x1a0] sm:$0xf]
        %v1546 = vld [vmem:[#allocation2 + $0x1a4] sm:$0xf]
        %v1547 = vld [vmem:[#allocation2 + $0x1a8] sm:$0xf]
        %v1548 = vld [vmem:[#allocation2 + $0x1ac] sm:$0xf]
        %v1549 = vld [vmem:[#allocation2 + $0x1b0] sm:$0xf]
        %v1550 = vld [vmem:[#allocation2 + $0x1b4] sm:$0xf]
        %v1551 = vld [vmem:[#allocation2 + $0x1b8] sm:$0xf]
        %v1552 = vld [vmem:[#allocation2 + $0x1bc] sm:$0xf]
        %v1553 = vld [vmem:[#allocation2 + $0x1c0] sm:$0xf]
        %v1554 = vld [vmem:[#allocation2 + $0x1c4] sm:$0xf]
        %v1555 = vld [vmem:[#allocation2 + $0x1c8] sm:$0xf]
        %v1556 = vld [vmem:[#allocation2 + $0x1cc] sm:$0xf]
        %v1557 = vld [vmem:[#allocation2 + $0x1d0] sm:$0xf]
        %v1558 = vld [vmem:[#allocation2 + $0x1d4] sm:$0xf]
        %v1559 = vld [vmem:[#allocation2 + $0x1d8] sm:$0xf]
        %v1560 = vld [vmem:[#allocation2 + $0x1dc] sm:$0xf]
        %v1561 = vld [vmem:[#allocation2 + $0x1e0] sm:$0xf]
        %v1562 = vld [vmem:[#allocation2 + $0x1e4] sm:$0xf]
        %v1563 = vld [vmem:[#allocation2 + $0x1e8] sm:$0xf]
        %v1564 = vld [vmem:[#allocation2 + $0x1ec] sm:$0xf]
        %v1565 = vld [vmem:[#allocation2 + $0x1f0] sm:$0xf]
        %v1566 = vld [vmem:[#allocation2 + $0x1f4] sm:$0xf]
        %v1567 = vld [vmem:[#allocation2 + $0x1f8] sm:$0xf]
        %v1568 = vld [vmem:[#allocation2 + $0x1fc] sm:$0xf]
        %v1569 = vld [vmem:[%s6] sm:$0x1]
        %v1571 = vlaneseq
        %v1572 = vshrl.u32 %v1571, 7
        %v1573 = vsub.s32 0, %v1572
        %v1574 = vrot.slane %v1569, %v1573
        %v1704 = vunpack.c.l.b16 %v1441
        %v1705 = vunpack.c.l.b16 %v1442
        %v1706 = vunpack.c.l.b16 %v1443
        %v1707 = vunpack.c.l.b16 %v1444
        %v1708 = vunpack.c.l.b16 %v1445
        %v1709 = vunpack.c.l.b16 %v1446
        %v1710 = vunpack.c.l.b16 %v1447
        %v1711 = vunpack.c.l.b16 %v1448
        %v1712 = vunpack.c.l.b16 %v1449
        %v1713 = vunpack.c.l.b16 %v1450
        %v1714 = vunpack.c.l.b16 %v1451
        %v1715 = vunpack.c.l.b16 %v1452
        %v1716 = vunpack.c.l.b16 %v1453
        %v1717 = vunpack.c.l.b16 %v1454
        %v1718 = vunpack.c.l.b16 %v1455
        %v1719 = vunpack.c.l.b16 %v1456
        %v1720 = vunpack.c.l.b16 %v1457
        %v1721 = vunpack.c.l.b16 %v1458
        %v1722 = vunpack.c.l.b16 %v1459
        %v1723 = vunpack.c.l.b16 %v1460
        %v1724 = vunpack.c.l.b16 %v1461
        %v1725 = vunpack.c.l.b16 %v1462
        %v1726 = vunpack.c.l.b16 %v1463
        %v1727 = vunpack.c.l.b16 %v1464
        %v1728 = vunpack.c.l.b16 %v1465
        %v1729 = vunpack.c.l.b16 %v1466
        %v1730 = vunpack.c.l.b16 %v1467
        %v1731 = vunpack.c.l.b16 %v1468
        %v1732 = vunpack.c.l.b16 %v1469
        %v1733 = vunpack.c.l.b16 %v1470
        %v1734 = vunpack.c.l.b16 %v1471
        %v1735 = vunpack.c.l.b16 %v1472
        %v1736 = vunpack.c.l.b16 %v1473
        %v1737 = vunpack.c.l.b16 %v1474
        %v1738 = vunpack.c.l.b16 %v1475
        %v1739 = vunpack.c.l.b16 %v1476
        %v1740 = vunpack.c.l.b16 %v1477
        %v1741 = vunpack.c.l.b16 %v1478
        %v1742 = vunpack.c.l.b16 %v1479
        %v1743 = vunpack.c.l.b16 %v1480
        %v1744 = vunpack.c.l.b16 %v1481
        %v1745 = vunpack.c.l.b16 %v1482
        %v1746 = vunpack.c.l.b16 %v1483
        %v1747 = vunpack.c.l.b16 %v1484
        %v1748 = vunpack.c.l.b16 %v1485
        %v1749 = vunpack.c.l.b16 %v1486
        %v1750 = vunpack.c.l.b16 %v1487
        %v1751 = vunpack.c.l.b16 %v1488
        %v1752 = vunpack.c.l.b16 %v1489
        %v1753 = vunpack.c.l.b16 %v1490
        %v1754 = vunpack.c.l.b16 %v1491
        %v1755 = vunpack.c.l.b16 %v1492
        %v1756 = vunpack.c.l.b16 %v1493
        %v1757 = vunpack.c.l.b16 %v1494
        %v1758 = vunpack.c.l.b16 %v1495
        %v1759 = vunpack.c.l.b16 %v1496
        %v1760 = vunpack.c.l.b16 %v1497
        %v1761 = vunpack.c.l.b16 %v1498
        %v1762 = vunpack.c.l.b16 %v1499
        %v1763 = vunpack.c.l.b16 %v1500
        %v1764 = vunpack.c.l.b16 %v1501
        %v1765 = vunpack.c.l.b16 %v1502
        %v1766 = vunpack.c.l.b16 %v1503
        %v1767 = vunpack.c.l.b16 %v1504
        %v1768 = vunpack.c.l.b16 %v1505
        %v1769 = vunpack.c.l.b16 %v1506
        %v1770 = vunpack.c.l.b16 %v1507
        %v1771 = vunpack.c.l.b16 %v1508
        %v1772 = vunpack.c.l.b16 %v1509
        %v1773 = vunpack.c.l.b16 %v1510
        %v1774 = vunpack.c.l.b16 %v1511
        %v1775 = vunpack.c.l.b16 %v1512
        %v1776 = vunpack.c.l.b16 %v1513
        %v1777 = vunpack.c.l.b16 %v1514
        %v1778 = vunpack.c.l.b16 %v1515
        %v1779 = vunpack.c.l.b16 %v1516
        %v1780 = vunpack.c.l.b16 %v1517
        %v1781 = vunpack.c.l.b16 %v1518
        %v1782 = vunpack.c.l.b16 %v1519
        %v1783 = vunpack.c.l.b16 %v1520
        %v1784 = vunpack.c.l.b16 %v1521
        %v1785 = vunpack.c.l.b16 %v1522
        %v1786 = vunpack.c.l.b16 %v1523
        %v1787 = vunpack.c.l.b16 %v1524
        %v1788 = vunpack.c.l.b16 %v1525
        %v1789 = vunpack.c.l.b16 %v1526
        %v1790 = vunpack.c.l.b16 %v1527
        %v1791 = vunpack.c.l.b16 %v1528
        %v1792 = vunpack.c.l.b16 %v1529
        %v1793 = vunpack.c.l.b16 %v1530
        %v1794 = vunpack.c.l.b16 %v1531
        %v1795 = vunpack.c.l.b16 %v1532
        %v1796 = vunpack.c.l.b16 %v1533
        %v1797 = vunpack.c.l.b16 %v1534
        %v1798 = vunpack.c.l.b16 %v1535
        %v1799 = vunpack.c.l.b16 %v1536
        %v1800 = vunpack.c.l.b16 %v1537
        %v1801 = vunpack.c.l.b16 %v1538
        %v1802 = vunpack.c.l.b16 %v1539
        %v1803 = vunpack.c.l.b16 %v1540
        %v1804 = vunpack.c.l.b16 %v1541
        %v1805 = vunpack.c.l.b16 %v1542
        %v1806 = vunpack.c.l.b16 %v1543
        %v1807 = vunpack.c.l.b16 %v1544
        %v1808 = vunpack.c.l.b16 %v1545
        %v1809 = vunpack.c.l.b16 %v1546
        %v1810 = vunpack.c.l.b16 %v1547
        %v1811 = vunpack.c.l.b16 %v1548
        %v1812 = vunpack.c.l.b16 %v1549
        %v1813 = vunpack.c.l.b16 %v1550
        %v1814 = vunpack.c.l.b16 %v1551
        %v1815 = vunpack.c.l.b16 %v1552
        %v1816 = vunpack.c.l.b16 %v1553
        %v1817 = vunpack.c.l.b16 %v1554
        %v1818 = vunpack.c.l.b16 %v1555
        %v1819 = vunpack.c.l.b16 %v1556
        %v1820 = vunpack.c.l.b16 %v1557
        %v1821 = vunpack.c.l.b16 %v1558
        %v1822 = vunpack.c.l.b16 %v1559
        %v1823 = vunpack.c.l.b16 %v1560
        %v1824 = vunpack.c.l.b16 %v1561
        %v1825 = vunpack.c.l.b16 %v1562
        %v1826 = vunpack.c.l.b16 %v1563
        %v1827 = vunpack.c.l.b16 %v1564
        %v1828 = vunpack.c.l.b16 %v1565
        %v1829 = vunpack.c.l.b16 %v1566
        %v1830 = vunpack.c.l.b16 %v1567
        %v1831 = vunpack.c.l.b16 %v1568
        %v1832 = vpack.c.b16 %v1705, %v1704
        %v1833 = vpack.c.b16 %v1707, %v1706
        %v1834 = vpack.c.b16 %v1709, %v1708
        %v1835 = vpack.c.b16 %v1711, %v1710
        %v1836 = vpack.c.b16 %v1713, %v1712
        %v1837 = vpack.c.b16 %v1715, %v1714
        %v1838 = vpack.c.b16 %v1717, %v1716
        %v1839 = vpack.c.b16 %v1719, %v1718
        %v1840 = vpack.c.b16 %v1721, %v1720
        %v1841 = vpack.c.b16 %v1723, %v1722
        %v1842 = vpack.c.b16 %v1725, %v1724
        %v1843 = vpack.c.b16 %v1727, %v1726
        %v1844 = vpack.c.b16 %v1729, %v1728
        %v1845 = vpack.c.b16 %v1731, %v1730
        %v1846 = vpack.c.b16 %v1733, %v1732
        %v1847 = vpack.c.b16 %v1735, %v1734
        %v1848 = vpack.c.b16 %v1737, %v1736
        %v1849 = vpack.c.b16 %v1739, %v1738
        %v1850 = vpack.c.b16 %v1741, %v1740
        %v1851 = vpack.c.b16 %v1743, %v1742
        %v1852 = vpack.c.b16 %v1745, %v1744
        %v1853 = vpack.c.b16 %v1747, %v1746
        %v1854 = vpack.c.b16 %v1749, %v1748
        %v1855 = vpack.c.b16 %v1751, %v1750
        %v1856 = vpack.c.b16 %v1753, %v1752
        %v1857 = vpack.c.b16 %v1755, %v1754
        %v1858 = vpack.c.b16 %v1757, %v1756
        %v1859 = vpack.c.b16 %v1759, %v1758
        %v1860 = vpack.c.b16 %v1761, %v1760
        %v1861 = vpack.c.b16 %v1763, %v1762
        %v1862 = vpack.c.b16 %v1765, %v1764
        %v1863 = vpack.c.b16 %v1767, %v1766
        %v1864 = vpack.c.b16 %v1769, %v1768
        %v1865 = vpack.c.b16 %v1771, %v1770
        %v1866 = vpack.c.b16 %v1773, %v1772
        %v1867 = vpack.c.b16 %v1775, %v1774
        %v1868 = vpack.c.b16 %v1777, %v1776
        %v1869 = vpack.c.b16 %v1779, %v1778
        %v1870 = vpack.c.b16 %v1781, %v1780
        %v1871 = vpack.c.b16 %v1783, %v1782
        %v1872 = vpack.c.b16 %v1785, %v1784
        %v1873 = vpack.c.b16 %v1787, %v1786
        %v1874 = vpack.c.b16 %v1789, %v1788
        %v1875 = vpack.c.b16 %v1791, %v1790
        %v1876 = vpack.c.b16 %v1793, %v1792
        %v1877 = vpack.c.b16 %v1795, %v1794
        %v1878 = vpack.c.b16 %v1797, %v1796
        %v1879 = vpack.c.b16 %v1799, %v1798
        %v1880 = vpack.c.b16 %v1801, %v1800
        %v1881 = vpack.c.b16 %v1803, %v1802
        %v1882 = vpack.c.b16 %v1805, %v1804
        %v1883 = vpack.c.b16 %v1807, %v1806
        %v1884 = vpack.c.b16 %v1809, %v1808
        %v1885 = vpack.c.b16 %v1811, %v1810
        %v1886 = vpack.c.b16 %v1813, %v1812
        %v1887 = vpack.c.b16 %v1815, %v1814
        %v1888 = vpack.c.b16 %v1817, %v1816
        %v1889 = vpack.c.b16 %v1819, %v1818
        %v1890 = vpack.c.b16 %v1821, %v1820
        %v1891 = vpack.c.b16 %v1823, %v1822
        %v1892 = vpack.c.b16 %v1825, %v1824
        %v1893 = vpack.c.b16 %v1827, %v1826
        %v1894 = vpack.c.b16 %v1829, %v1828
        %v1895 = vpack.c.b16 %v1831, %v1830
        %1960 = vmatprep.subr.bf16.mxu0 0
        %1961 = vmatpush1.bf16.msra.mxu0 %v1839
        %1962 = vmatprep.subr.bf16.mxu0 0
        %1963 = vmatpush1.bf16.msra.mxu0 %v1838
        %1964 = vmatprep.subr.bf16.mxu0 0
        %1965 = vmatpush1.bf16.msra.mxu0 %v1837
        %1966 = vmatprep.subr.bf16.mxu0 0
        %1967 = vmatpush1.bf16.msra.mxu0 %v1836
        %1968 = vmatprep.subr.bf16.mxu0 0
        %1969 = vmatpush1.bf16.msra.mxu0 %v1835
        %1970 = vmatprep.subr.bf16.mxu0 0
        %1971 = vmatpush1.bf16.msra.mxu0 %v1834
        %1972 = vmatprep.subr.bf16.mxu0 0
        %1973 = vmatpush1.bf16.msra.mxu0 %v1833
        %1974 = vmatprep.subr.bf16.mxu0 0
        %1975 = vmatpush1.bf16.msra.mxu0 %v1832
        %1976 = vmatprep.subr.bf16.mxu0 0
        %1977 = vmatpush2.bf16.msra.mxu0 %v1847
        %1978 = vmatprep.subr.bf16.mxu0 0
        %1979 = vmatpush2.bf16.msra.mxu0 %v1846
        %1980 = vmatprep.subr.bf16.mxu0 0
        %1981 = vmatpush2.bf16.msra.mxu0 %v1845
        %1982 = vmatprep.subr.bf16.mxu0 0
        %1983 = vmatpush2.bf16.msra.mxu0 %v1844
        %1984 = vmatprep.subr.bf16.mxu0 0
        %1985 = vmatpush2.bf16.msra.mxu0 %v1843
        %1986 = vmatprep.subr.bf16.mxu0 0
        %1987 = vmatpush2.bf16.msra.mxu0 %v1842
        %1988 = vmatprep.subr.bf16.mxu0 0
        %1989 = vmatpush2.bf16.msra.mxu0 %v1841
        %1990 = vmatprep.subr.bf16.mxu0 0
        %1991 = vmatpush2.bf16.msra.mxu0 %v1840
        %1992 = vmatprep.mubr.bf16.mxu0 %v1426
        %1993 = vmatmul.mubr.bf16.gmra.mxu0 %v1425
        %v1994 = vpop.f32.mrf.mxu0
        %v1995 = vadd.f32 %v1574, %v1994
        %v1996 = vpop.f32.mrf.mxu0
        %v1997 = vpop.f32.mrf.mxu0
        %v1998 = vadd.f32 %v1574, %v1997
        %v1999 = vpop.f32.mrf.mxu0
        %2000 = vmatprep.mubr.bf16.mxu0 %v1434
        %2001 = vmatmul.mubr.bf16.gmra.mxu0 %v1433
        %v2002 = vpop.f32.mrf.mxu0
        %v2003 = vadd.f32 %v1574, %v2002
        %v2004 = vpop.f32.mrf.mxu0
        %v2005 = vpop.f32.mrf.mxu0
        %v2006 = vadd.f32 %v1574, %v2005
        %v2007 = vpop.f32.mrf.mxu0
        %2008 = vdwg.mxu0
        %2009 = vmatprep.subr.bf16.mxu0 0
        %2010 = vmatpush1.bf16.msra.mxu0 %v1855
        %2011 = vmatprep.subr.bf16.mxu0 0
        %2012 = vmatpush1.bf16.msra.mxu0 %v1854
        %2013 = vmatprep.subr.bf16.mxu0 0
        %2014 = vmatpush1.bf16.msra.mxu0 %v1853
        %2015 = vmatprep.subr.bf16.mxu0 0
        %2016 = vmatpush1.bf16.msra.mxu0 %v1852
        %2017 = vmatprep.subr.bf16.mxu0 0
        %2018 = vmatpush1.bf16.msra.mxu0 %v1851
        %2019 = vmatprep.subr.bf16.mxu0 0
        %2020 = vmatpush1.bf16.msra.mxu0 %v1850
        %2021 = vmatprep.subr.bf16.mxu0 0
        %2022 = vmatpush1.bf16.msra.mxu0 %v1849
        %2023 = vmatprep.subr.bf16.mxu0 0
        %2024 = vmatpush1.bf16.msra.mxu0 %v1848
        %2025 = vmatprep.subr.bf16.mxu0 0
        %2026 = vmatpush2.bf16.msra.mxu0 %v1863
        %2027 = vmatprep.subr.bf16.mxu0 0
        %2028 = vmatpush2.bf16.msra.mxu0 %v1862
        %2029 = vmatprep.subr.bf16.mxu0 0
        %2030 = vmatpush2.bf16.msra.mxu0 %v1861
        %2031 = vmatprep.subr.bf16.mxu0 0
        %2032 = vmatpush2.bf16.msra.mxu0 %v1860
        %2033 = vmatprep.subr.bf16.mxu0 0
        %2034 = vmatpush2.bf16.msra.mxu0 %v1859
        %2035 = vmatprep.subr.bf16.mxu0 0
        %2036 = vmatpush2.bf16.msra.mxu0 %v1858
        %2037 = vmatprep.subr.bf16.mxu0 0
        %2038 = vmatpush2.bf16.msra.mxu0 %v1857
        %2039 = vmatprep.subr.bf16.mxu0 0
        %2040 = vmatpush2.bf16.msra.mxu0 %v1856
        %2041 = vmatprep.mubr.bf16.mxu0 %v1428
        %2042 = vmatmul.mubr.bf16.gmra.mxu0 %v1427
        %v2043 = vpop.f32.mrf.mxu0
        %v2044 = vadd.f32 %v1995, %v2043
        %v2045 = vpop.f32.mrf.mxu0
        %v2046 = vpop.f32.mrf.mxu0
        %v2047 = vadd.f32 %v1998, %v2046
        %v2048 = vpop.f32.mrf.mxu0
        %2049 = vmatprep.mubr.bf16.mxu0 %v1436
        %2050 = vmatmul.mubr.bf16.gmra.mxu0 %v1435
        %v2051 = vpop.f32.mrf.mxu0
        %v2052 = vadd.f32 %v2003, %v2051
        %v2053 = vpop.f32.mrf.mxu0
        %v2054 = vpop.f32.mrf.mxu0
        %v2055 = vadd.f32 %v2006, %v2054
        %v2056 = vpop.f32.mrf.mxu0
        %2057 = vdwg.mxu0
        %2058 = vmatprep.subr.bf16.mxu0 0
        %2059 = vmatpush1.bf16.msra.mxu0 %v1871
        %2060 = vmatprep.subr.bf16.mxu0 0
        %2061 = vmatpush1.bf16.msra.mxu0 %v1870
        %2062 = vmatprep.subr.bf16.mxu0 0
        %2063 = vmatpush1.bf16.msra.mxu0 %v1869
        %2064 = vmatprep.subr.bf16.mxu0 0
        %2065 = vmatpush1.bf16.msra.mxu0 %v1868
        %2066 = vmatprep.subr.bf16.mxu0 0
        %2067 = vmatpush1.bf16.msra.mxu0 %v1867
        %2068 = vmatprep.subr.bf16.mxu0 0
        %2069 = vmatpush1.bf16.msra.mxu0 %v1866
        %2070 = vmatprep.subr.bf16.mxu0 0
        %2071 = vmatpush1.bf16.msra.mxu0 %v1865
        %2072 = vmatprep.subr.bf16.mxu0 0
        %2073 = vmatpush1.bf16.msra.mxu0 %v1864
        %2074 = vmatprep.subr.bf16.mxu0 0
        %2075 = vmatpush2.bf16.msra.mxu0 %v1879
        %2076 = vmatprep.subr.bf16.mxu0 0
        %2077 = vmatpush2.bf16.msra.mxu0 %v1878
        %2078 = vmatprep.subr.bf16.mxu0 0
        %2079 = vmatpush2.bf16.msra.mxu0 %v1877
        %2080 = vmatprep.subr.bf16.mxu0 0
        %2081 = vmatpush2.bf16.msra.mxu0 %v1876
        %2082 = vmatprep.subr.bf16.mxu0 0
        %2083 = vmatpush2.bf16.msra.mxu0 %v1875
        %2084 = vmatprep.subr.bf16.mxu0 0
        %2085 = vmatpush2.bf16.msra.mxu0 %v1874
        %2086 = vmatprep.subr.bf16.mxu0 0
        %2087 = vmatpush2.bf16.msra.mxu0 %v1873
        %2088 = vmatprep.subr.bf16.mxu0 0
        %2089 = vmatpush2.bf16.msra.mxu0 %v1872
        %2090 = vmatprep.mubr.bf16.mxu0 %v1430
        %2091 = vmatmul.mubr.bf16.gmra.mxu0 %v1429
        %v2092 = vpop.f32.mrf.mxu0
        %v2093 = vadd.f32 %v2044, %v2092
        %v2094 = vpop.f32.mrf.mxu0
        %v2095 = vpop.f32.mrf.mxu0
        %v2096 = vadd.f32 %v2047, %v2095
        %v2097 = vpop.f32.mrf.mxu0
        %2098 = vmatprep.mubr.bf16.mxu0 %v1438
        %2099 = vmatmul.mubr.bf16.gmra.mxu0 %v1437
        %v2100 = vpop.f32.mrf.mxu0
        %v2101 = vadd.f32 %v2052, %v2100
        %v2102 = vpop.f32.mrf.mxu0
        %v2103 = vpop.f32.mrf.mxu0
        %v2104 = vadd.f32 %v2055, %v2103
        %v2105 = vpop.f32.mrf.mxu0
        %2106 = vdwg.mxu0
        %2107 = vmatprep.subr.bf16.mxu0 0
        %2108 = vmatpush1.bf16.msra.mxu0 %v1887
        %2109 = vmatprep.subr.bf16.mxu0 0
        %2110 = vmatpush1.bf16.msra.mxu0 %v1886
        %2111 = vmatprep.subr.bf16.mxu0 0
        %2112 = vmatpush1.bf16.msra.mxu0 %v1885
        %2113 = vmatprep.subr.bf16.mxu0 0
        %2114 = vmatpush1.bf16.msra.mxu0 %v1884
        %2115 = vmatprep.subr.bf16.mxu0 0
        %2116 = vmatpush1.bf16.msra.mxu0 %v1883
        %2117 = vmatprep.subr.bf16.mxu0 0
        %2118 = vmatpush1.bf16.msra.mxu0 %v1882
        %2119 = vmatprep.subr.bf16.mxu0 0
        %2120 = vmatpush1.bf16.msra.mxu0 %v1881
        %2121 = vmatprep.subr.bf16.mxu0 0
        %2122 = vmatpush1.bf16.msra.mxu0 %v1880
        %2123 = vmatprep.subr.bf16.mxu0 0
        %2124 = vmatpush2.bf16.msra.mxu0 %v1895
        %2125 = vmatprep.subr.bf16.mxu0 0
        %2126 = vmatpush2.bf16.msra.mxu0 %v1894
        %2127 = vmatprep.subr.bf16.mxu0 0
        %2128 = vmatpush2.bf16.msra.mxu0 %v1893
        %2129 = vmatprep.subr.bf16.mxu0 0
        %2130 = vmatpush2.bf16.msra.mxu0 %v1892
        %2131 = vmatprep.subr.bf16.mxu0 0
        %2132 = vmatpush2.bf16.msra.mxu0 %v1891
        %2133 = vmatprep.subr.bf16.mxu0 0
        %2134 = vmatpush2.bf16.msra.mxu0 %v1890
        %2135 = vmatprep.subr.bf16.mxu0 0
        %2136 = vmatpush2.bf16.msra.mxu0 %v1889
        %2137 = vmatprep.subr.bf16.mxu0 0
        %2138 = vmatpush2.bf16.msra.mxu0 %v1888
        %2139 = vmatprep.mubr.bf16.mxu0 %v1432
        %2140 = vmatmul.mubr.bf16.gmra.mxu0 %v1431
        %v2141 = vpop.f32.mrf.mxu0
        %v2142 = vadd.f32 %v2093, %v2141
        %v2143 = vpop.f32.mrf.mxu0
        %v2144 = vpop.f32.mrf.mxu0
        %v2145 = vadd.f32 %v2096, %v2144
        %v2146 = vpop.f32.mrf.mxu0
        %2147 = vmatprep.mubr.bf16.mxu0 %v1440
        %2148 = vmatmul.mubr.bf16.gmra.mxu0 %v1439
        %v2149 = vpop.f32.mrf.mxu0
        %v2150 = vadd.f32 %v2101, %v2149
        %v2151 = vpop.f32.mrf.mxu0
        %v2152 = vpop.f32.mrf.mxu0
        %v2153 = vadd.f32 %v2104, %v2152
        %v2154 = vpop.f32.mrf.mxu0
        %2155 = vdwg.mxu0
        %vm2156 = vcmp.ge.f32.partialorder %v2142, 0.0
        %vm2157 = vcmp.ge.f32.partialorder %v2145, 0.0
        %vm2158 = vcmp.ge.f32.partialorder %v2150, 0.0
        %vm2159 = vcmp.ge.f32.partialorder %v2153, 0.0
        %v2160 = vlaneseq
        %v2161 = vshrl.u32 %v2160, 7
        %v2162 = vsub.s32 1, %v2161
        %v2163 = vrot.slane %v520, %v2162
        %v2164 = vmul.f32 %v2142, %v2163
        %v2165 = vmul.f32 %v2145, %v2163
        %v2166 = vmul.f32 %v2150, %v2163
        %v2167 = vmul.f32 %v2153, %v2163
        %v2168 = vsel %vm2156, %v2142, %v2164
        %v2169 = vsel %vm2157, %v2145, %v2165
        %v2170 = vsel %vm2158, %v2150, %v2166
        %v2171 = vsel %vm2159, %v2153, %v2167
        %vm2172 = vcmask 220160
        %v2173 = vsel %vm2172, %v1092, 0
        %v2175 = vsel %vm2172, %v1093, 0
        %v2178 = vsel %vm1384, %v2171, 0
        %2180 = vmatprep.subr.mxu0 0.0
        %2181 = vmatpush1.msra.mxu0 0.0
        %2182 = vmatprep.subr.mxu0 0.0
        %2183 = vmatpush1.msra.mxu0 0.0
        %2184 = vmatprep.subr.mxu0 0.0
        %2185 = vmatpush1.msra.mxu0 0.0
        %2186 = vmatprep.subr.mxu0 0.0
        %2187 = vmatpush1.msra.mxu0 0.0
        %2188 = vmatprep.subr.mxu0 0.0
        %2189 = vmatpush1.msra.mxu0 0.0
        %2190 = vmatprep.subr.mxu0 0.0
        %2191 = vmatpush1.msra.mxu0 0.0
        %2192 = vmatprep.subr.mxu0 0.0
        %2193 = vmatpush1.msra.mxu0 0.0
        %2194 = vmatprep.subr.mxu0 0.0
        %2195 = vmatpush1.msra.mxu0 0.0
        %2196 = vmatprep.subr.mxu0 0.0
        %2197 = vmatpush1.msra.mxu0 0.0
        %2198 = vmatprep.subr.mxu0 0.0
        %2199 = vmatpush1.msra.mxu0 0.0
        %2200 = vmatprep.subr.mxu0 0.0
        %2201 = vmatpush1.msra.mxu0 0.0
        %2202 = vmatprep.subr.mxu0 0.0
        %2203 = vmatpush1.msra.mxu0 0.0
        %2204 = vmatprep.subr.mxu0 0.0
        %2205 = vmatpush1.msra.mxu0 %v2178
        %2206 = vmatprep.subr.mxu0 0.0
        %2207 = vmatpush1.msra.mxu0 %v2170
        %2208 = vmatprep.subr.mxu0 0.0
        %2209 = vmatpush1.msra.mxu0 %v2169
        %2210 = vmatprep.subr.mxu0 0.0
        %2211 = vmatpush1.msra.mxu0 %v2168
        %2212 = vmatprep.subr.mxu0 0.0
        %2213 = vmatpush2.msra.mxu0 0.0
        %2214 = vmatprep.subr.mxu0 0.0
        %2215 = vmatpush2.msra.mxu0 0.0
        %2216 = vmatprep.subr.mxu0 0.0
        %2217 = vmatpush2.msra.mxu0 0.0
        %2218 = vmatprep.subr.mxu0 0.0
        %2219 = vmatpush2.msra.mxu0 0.0
        %2220 = vmatprep.subr.mxu0 0.0
        %2221 = vmatpush2.msra.mxu0 0.0
        %2222 = vmatprep.subr.mxu0 0.0
        %2223 = vmatpush2.msra.mxu0 0.0
        %2224 = vmatprep.subr.mxu0 0.0
        %2225 = vmatpush2.msra.mxu0 0.0
        %2226 = vmatprep.subr.mxu0 0.0
        %2227 = vmatpush2.msra.mxu0 0.0
        %2228 = vmatprep.subr.mxu0 0.0
        %2229 = vmatpush2.msra.mxu0 0.0
        %2230 = vmatprep.subr.mxu0 0.0
        %2231 = vmatpush2.msra.mxu0 0.0
        %2232 = vmatprep.subr.mxu0 0.0
        %2233 = vmatpush2.msra.mxu0 0.0
        %2234 = vmatprep.subr.mxu0 0.0
        %2235 = vmatpush2.msra.mxu0 0.0
        %2236 = vmatprep.subr.mxu0 0.0
        %2237 = vmatpush2.msra.mxu0 0.0
        %2238 = vmatprep.subr.mxu0 0.0
        %2239 = vmatpush2.msra.mxu0 0.0
        %2240 = vmatprep.subr.mxu0 0.0
        %2241 = vmatpush2.msra.mxu0 0.0
        %2242 = vmatprep.subr.mxu0 0.0
        %2243 = vmatpush2.msra.mxu0 0.0
        %2244 = vmatprep.mubr.f32.mxu0 0.0
        %2245 = vmatmul.mubr.f32.gmra.mxu0 %v2173
        %v2246 = vpop.f32.mrf.mxu0
        %v2247 = vadd.f32 0.0, %v2246
        %v2248 = vpop.f32.mrf.mxu0
        %2249 = vmatprep.mubr.f32.mxu0 0.0
        %2250 = vmatmul.mubr.f32.gmra.mxu0 %v2175
        %v2251 = vpop.f32.mrf.mxu0
        %v2252 = vadd.f32 0.0, %v2251
        %v2253 = vpop.f32.mrf.mxu0
        %2254 = vdwg.mxu0
        %v2255 = vsel %vm2172, %v1112, 0
        %v2257 = vsel %vm2172, %v1113, 0
        %2259 = vmatprep.subr.mxu0 0.0
        %2260 = vmatpush1.msra.mxu0 0.0
        %2261 = vmatprep.subr.mxu0 0.0
        %2262 = vmatpush1.msra.mxu0 0.0
        %2263 = vmatprep.subr.mxu0 0.0
        %2264 = vmatpush1.msra.mxu0 0.0
        %2265 = vmatprep.subr.mxu0 0.0
        %2266 = vmatpush1.msra.mxu0 0.0
        %2267 = vmatprep.subr.mxu0 0.0
        %2268 = vmatpush1.msra.mxu0 0.0
        %2269 = vmatprep.subr.mxu0 0.0
        %2270 = vmatpush1.msra.mxu0 0.0
        %2271 = vmatprep.subr.mxu0 0.0
        %2272 = vmatpush1.msra.mxu0 0.0
        %2273 = vmatprep.subr.mxu0 0.0
        %2274 = vmatpush1.msra.mxu0 0.0
        %2275 = vmatprep.subr.mxu0 0.0
        %2276 = vmatpush1.msra.mxu0 0.0
        %2277 = vmatprep.subr.mxu0 0.0
        %2278 = vmatpush1.msra.mxu0 0.0
        %2279 = vmatprep.subr.mxu0 0.0
        %2280 = vmatpush1.msra.mxu0 0.0
        %2281 = vmatprep.subr.mxu0 0.0
        %2282 = vmatpush1.msra.mxu0 0.0
        %2283 = vmatprep.subr.mxu0 0.0
        %2284 = vmatpush1.msra.mxu0 %v2178
        %2285 = vmatprep.subr.mxu0 0.0
        %2286 = vmatpush1.msra.mxu0 %v2170
        %2287 = vmatprep.subr.mxu0 0.0
        %2288 = vmatpush1.msra.mxu0 %v2169
        %2289 = vmatprep.subr.mxu0 0.0
        %2290 = vmatpush1.msra.mxu0 %v2168
        %2291 = vmatprep.subr.mxu0 0.0
        %2292 = vmatpush2.msra.mxu0 0.0
        %2293 = vmatprep.subr.mxu0 0.0
        %2294 = vmatpush2.msra.mxu0 0.0
        %2295 = vmatprep.subr.mxu0 0.0
        %2296 = vmatpush2.msra.mxu0 0.0
        %2297 = vmatprep.subr.mxu0 0.0
        %2298 = vmatpush2.msra.mxu0 0.0
        %2299 = vmatprep.subr.mxu0 0.0
        %2300 = vmatpush2.msra.mxu0 0.0
        %2301 = vmatprep.subr.mxu0 0.0
        %2302 = vmatpush2.msra.mxu0 0.0
        %2303 = vmatprep.subr.mxu0 0.0
        %2304 = vmatpush2.msra.mxu0 0.0
        %2305 = vmatprep.subr.mxu0 0.0
        %2306 = vmatpush2.msra.mxu0 0.0
        %2307 = vmatprep.subr.mxu0 0.0
        %2308 = vmatpush2.msra.mxu0 0.0
        %2309 = vmatprep.subr.mxu0 0.0
        %2310 = vmatpush2.msra.mxu0 0.0
        %2311 = vmatprep.subr.mxu0 0.0
        %2312 = vmatpush2.msra.mxu0 0.0
        %2313 = vmatprep.subr.mxu0 0.0
        %2314 = vmatpush2.msra.mxu0 0.0
        %2315 = vmatprep.subr.mxu0 0.0
        %2316 = vmatpush2.msra.mxu0 0.0
        %2317 = vmatprep.subr.mxu0 0.0
        %2318 = vmatpush2.msra.mxu0 0.0
        %2319 = vmatprep.subr.mxu0 0.0
        %2320 = vmatpush2.msra.mxu0 0.0
        %2321 = vmatprep.subr.mxu0 0.0
        %2322 = vmatpush2.msra.mxu0 0.0
        %2323 = vmatprep.mubr.f32.mxu0 0.0
        %2324 = vmatmul.mubr.f32.gmra.mxu0 %v2255
        %v2325 = vpop.f32.mrf.mxu0
        %v2326 = vadd.f32 0.0, %v2325
        %v2327 = vpop.f32.mrf.mxu0
        %2328 = vmatprep.mubr.f32.mxu0 0.0
        %2329 = vmatmul.mubr.f32.gmra.mxu0 %v2257
        %v2330 = vpop.f32.mrf.mxu0
        %v2331 = vadd.f32 0.0, %v2330
        %v2332 = vpop.f32.mrf.mxu0
        %2333 = vdwg.mxu0
        %v2334 = vmax.f32 %v2247, %v2326
        %v2335 = vmax.f32 %v2252, %v2331
        %v2337 = vrot.slane %v2334, 1
        %v2339 = vrot.slane %v2334, 2
        %v2341 = vrot.slane %v2334, 3
        %v2343 = vrot.slane %v2334, 4
        %v2345 = vrot.slane %v2334, 5
        %v2347 = vrot.slane %v2334, 6
        %v2350 = vrot.slane %v2334, 7
        %v2351 = vrot.slane %v2335, 7
        %v2352 = vsel %vm1411, %v2350, %v2351
        %v2354 = vrot.slane %v2335, 1
        %v2356 = vrot.slane %v2335, 2
        %v2358 = vrot.slane %v2335, 3
        %v2360 = vpack.c.bf16 %v2334, %v2334
        %v2361 = vpack.c.bf16 %v2337, %v2337
        %v2362 = vpack.c.bf16 %v2339, %v2339
        %v2363 = vpack.c.bf16 %v2341, %v2341
        %v2364 = vpack.c.bf16 %v2343, %v2343
        %v2365 = vpack.c.bf16 %v2345, %v2345
        %v2366 = vpack.c.bf16 %v2347, %v2347
        %v2367 = vpack.c.bf16 %v2352, %v2352
        %v2368 = vpack.c.bf16 %v2335, %v2335
        %v2369 = vpack.c.bf16 %v2354, %v2354
        %v2370 = vpack.c.bf16 %v2356, %v2356
        %v2371 = vpack.c.bf16 %v2358, %v2358
        %v2372 = vld [vmem:[#allocation4] sm:$0xf]
        %v2373 = vld [vmem:[#allocation4 + $0x4] sm:$0xf]
        %v2374 = vld [vmem:[#allocation4 + $0x8] sm:$0xf]
        %v2375 = vld [vmem:[#allocation4 + $0xc] sm:$0xf]
        %v2376 = vld [vmem:[#allocation4 + $0x10] sm:$0xf]
        %v2377 = vld [vmem:[#allocation4 + $0x14] sm:$0xf]
        %v2378 = vld [vmem:[#allocation4 + $0x18] sm:$0xf]
        %v2379 = vld [vmem:[#allocation4 + $0x1c] sm:$0xf]
        %v2380 = vld [vmem:[#allocation4 + $0x20] sm:$0xf]
        %v2381 = vld [vmem:[#allocation4 + $0x24] sm:$0xf]
        %v2382 = vld [vmem:[#allocation4 + $0x28] sm:$0xf]
        %v2383 = vld [vmem:[#allocation4 + $0x2c] sm:$0xf]
        %v2384 = vld [vmem:[#allocation4 + $0x30] sm:$0xf]
        %v2385 = vld [vmem:[#allocation4 + $0x34] sm:$0xf]
        %v2386 = vld [vmem:[#allocation4 + $0x38] sm:$0xf]
        %v2387 = vld [vmem:[#allocation4 + $0x3c] sm:$0xf]
        %v2388 = vld [vmem:[#allocation4 + $0x40] sm:$0xf]
        %v2389 = vld [vmem:[#allocation4 + $0x44] sm:$0xf]
        %v2390 = vld [vmem:[#allocation4 + $0x48] sm:$0xf]
        %v2391 = vld [vmem:[#allocation4 + $0x4c] sm:$0xf]
        %v2392 = vld [vmem:[#allocation4 + $0x50] sm:$0xf]
        %v2393 = vld [vmem:[#allocation4 + $0x54] sm:$0xf]
        %v2394 = vld [vmem:[#allocation4 + $0x58] sm:$0xf]
        %v2395 = vld [vmem:[#allocation4 + $0x5c] sm:$0xf]
        %v2396 = vld [vmem:[#allocation4 + $0x60] sm:$0xf]
        %v2397 = vld [vmem:[#allocation4 + $0x64] sm:$0xf]
        %v2398 = vld [vmem:[#allocation4 + $0x68] sm:$0xf]
        %v2399 = vld [vmem:[#allocation4 + $0x6c] sm:$0xf]
        %v2400 = vld [vmem:[#allocation4 + $0x70] sm:$0xf]
        %v2401 = vld [vmem:[#allocation4 + $0x74] sm:$0xf]
        %v2402 = vld [vmem:[#allocation4 + $0x78] sm:$0xf]
        %v2403 = vld [vmem:[#allocation4 + $0x7c] sm:$0xf]
        %v2404 = vld [vmem:[#allocation4 + $0x80] sm:$0xf]
        %v2405 = vld [vmem:[#allocation4 + $0x84] sm:$0xf]
        %v2406 = vld [vmem:[#allocation4 + $0x88] sm:$0xf]
        %v2407 = vld [vmem:[#allocation4 + $0x8c] sm:$0xf]
        %v2408 = vld [vmem:[#allocation4 + $0x90] sm:$0xf]
        %v2409 = vld [vmem:[#allocation4 + $0x94] sm:$0xf]
        %v2410 = vld [vmem:[#allocation4 + $0x98] sm:$0xf]
        %v2411 = vld [vmem:[#allocation4 + $0x9c] sm:$0xf]
        %v2412 = vld [vmem:[#allocation4 + $0xa0] sm:$0xf]
        %v2413 = vld [vmem:[#allocation4 + $0xa4] sm:$0xf]
        %v2414 = vld [vmem:[#allocation4 + $0xa8] sm:$0xf]
        %v2415 = vld [vmem:[#allocation4 + $0xac] sm:$0xf]
        %v2416 = vld [vmem:[#allocation4 + $0xb0] sm:$0xf]
        %v2417 = vld [vmem:[#allocation4 + $0xb4] sm:$0xf]
        %v2418 = vld [vmem:[#allocation4 + $0xb8] sm:$0xf]
        %v2419 = vld [vmem:[#allocation4 + $0xbc] sm:$0xf]
        %v2420 = vld [vmem:[#allocation4 + $0xc0] sm:$0xf]
        %v2421 = vld [vmem:[#allocation4 + $0xc4] sm:$0xf]
        %v2422 = vld [vmem:[#allocation4 + $0xc8] sm:$0xf]
        %v2423 = vld [vmem:[#allocation4 + $0xcc] sm:$0xf]
        %v2424 = vld [vmem:[#allocation4 + $0xd0] sm:$0xf]
        %v2425 = vld [vmem:[#allocation4 + $0xd4] sm:$0xf]
        %v2426 = vld [vmem:[#allocation4 + $0xd8] sm:$0xf]
        %v2427 = vld [vmem:[#allocation4 + $0xdc] sm:$0xf]
        %v2428 = vld [vmem:[#allocation4 + $0xe0] sm:$0xf]
        %v2429 = vld [vmem:[#allocation4 + $0xe4] sm:$0xf]
        %v2430 = vld [vmem:[#allocation4 + $0xe8] sm:$0xf]
        %v2431 = vld [vmem:[#allocation4 + $0xec] sm:$0xf]
        %v2432 = vld [vmem:[#allocation4 + $0xf0] sm:$0xf]
        %v2433 = vld [vmem:[#allocation4 + $0xf4] sm:$0xf]
        %v2434 = vld [vmem:[#allocation4 + $0xf8] sm:$0xf]
        %v2435 = vld [vmem:[#allocation4 + $0xfc] sm:$0xf]
        %v2436 = vld [vmem:[#allocation4 + $0x100] sm:$0xf]
        %v2437 = vld [vmem:[#allocation4 + $0x104] sm:$0xf]
        %v2438 = vld [vmem:[#allocation4 + $0x108] sm:$0xf]
        %v2439 = vld [vmem:[#allocation4 + $0x10c] sm:$0xf]
        %v2440 = vld [vmem:[#allocation4 + $0x110] sm:$0xf]
        %v2441 = vld [vmem:[#allocation4 + $0x114] sm:$0xf]
        %v2442 = vld [vmem:[#allocation4 + $0x118] sm:$0xf]
        %v2443 = vld [vmem:[#allocation4 + $0x11c] sm:$0xf]
        %v2444 = vld [vmem:[#allocation4 + $0x120] sm:$0xf]
        %v2445 = vld [vmem:[#allocation4 + $0x124] sm:$0xf]
        %v2446 = vld [vmem:[#allocation4 + $0x128] sm:$0xf]
        %v2447 = vld [vmem:[#allocation4 + $0x12c] sm:$0xf]
        %v2448 = vld [vmem:[#allocation4 + $0x130] sm:$0xf]
        %v2449 = vld [vmem:[#allocation4 + $0x134] sm:$0xf]
        %v2450 = vld [vmem:[#allocation4 + $0x138] sm:$0xf]
        %v2451 = vld [vmem:[#allocation4 + $0x13c] sm:$0xf]
        %v2452 = vld [vmem:[#allocation4 + $0x140] sm:$0xf]
        %v2453 = vld [vmem:[#allocation4 + $0x144] sm:$0xf]
        %v2454 = vld [vmem:[#allocation4 + $0x148] sm:$0xf]
        %v2455 = vld [vmem:[#allocation4 + $0x14c] sm:$0xf]
        %v2456 = vld [vmem:[#allocation4 + $0x150] sm:$0xf]
        %v2457 = vld [vmem:[#allocation4 + $0x154] sm:$0xf]
        %v2458 = vld [vmem:[#allocation4 + $0x158] sm:$0xf]
        %v2459 = vld [vmem:[#allocation4 + $0x15c] sm:$0xf]
        %v2460 = vld [vmem:[#allocation4 + $0x160] sm:$0xf]
        %v2461 = vld [vmem:[#allocation4 + $0x164] sm:$0xf]
        %v2462 = vld [vmem:[#allocation4 + $0x168] sm:$0xf]
        %v2463 = vld [vmem:[#allocation4 + $0x16c] sm:$0xf]
        %v2464 = vld [vmem:[#allocation4 + $0x170] sm:$0xf]
        %v2465 = vld [vmem:[#allocation4 + $0x174] sm:$0xf]
        %v2466 = vld [vmem:[#allocation4 + $0x178] sm:$0xf]
        %v2467 = vld [vmem:[#allocation4 + $0x17c] sm:$0xf]
        %v2468 = vld [vmem:[#allocation4 + $0x180] sm:$0xf]
        %v2469 = vld [vmem:[#allocation4 + $0x184] sm:$0xf]
        %v2470 = vld [vmem:[#allocation4 + $0x188] sm:$0xf]
        %v2471 = vld [vmem:[#allocation4 + $0x18c] sm:$0xf]
        %v2472 = vld [vmem:[#allocation4 + $0x190] sm:$0xf]
        %v2473 = vld [vmem:[#allocation4 + $0x194] sm:$0xf]
        %v2474 = vld [vmem:[#allocation4 + $0x198] sm:$0xf]
        %v2475 = vld [vmem:[#allocation4 + $0x19c] sm:$0xf]
        %v2476 = vld [vmem:[#allocation4 + $0x1a0] sm:$0xf]
        %v2477 = vld [vmem:[#allocation4 + $0x1a4] sm:$0xf]
        %v2478 = vld [vmem:[#allocation4 + $0x1a8] sm:$0xf]
        %v2479 = vld [vmem:[#allocation4 + $0x1ac] sm:$0xf]
        %v2480 = vld [vmem:[#allocation4 + $0x1b0] sm:$0xf]
        %v2481 = vld [vmem:[#allocation4 + $0x1b4] sm:$0xf]
        %v2482 = vld [vmem:[#allocation4 + $0x1b8] sm:$0xf]
        %v2483 = vld [vmem:[#allocation4 + $0x1bc] sm:$0xf]
        %v2484 = vld [vmem:[#allocation4 + $0x1c0] sm:$0xf]
        %v2485 = vld [vmem:[#allocation4 + $0x1c4] sm:$0xf]
        %v2486 = vld [vmem:[#allocation4 + $0x1c8] sm:$0xf]
        %v2487 = vld [vmem:[#allocation4 + $0x1cc] sm:$0xf]
        %v2488 = vld [vmem:[#allocation4 + $0x1d0] sm:$0xf]
        %v2489 = vld [vmem:[#allocation4 + $0x1d4] sm:$0xf]
        %v2490 = vld [vmem:[#allocation4 + $0x1d8] sm:$0xf]
        %v2491 = vld [vmem:[#allocation4 + $0x1dc] sm:$0xf]
        %v2492 = vld [vmem:[#allocation4 + $0x1e0] sm:$0xf]
        %v2493 = vld [vmem:[#allocation4 + $0x1e4] sm:$0xf]
        %v2494 = vld [vmem:[#allocation4 + $0x1e8] sm:$0xf]
        %v2495 = vld [vmem:[#allocation4 + $0x1ec] sm:$0xf]
        %v2496 = vld [vmem:[#allocation4 + $0x1f0] sm:$0xf]
        %v2497 = vld [vmem:[#allocation4 + $0x1f4] sm:$0xf]
        %v2498 = vld [vmem:[#allocation4 + $0x1f8] sm:$0xf]
        %v2499 = vld [vmem:[#allocation4 + $0x1fc] sm:$0xf]
        %v2500 = vld [vmem:[#allocation4 + $0x200] sm:$0xf]
        %v2501 = vld [vmem:[#allocation4 + $0x204] sm:$0xf]
        %v2502 = vld [vmem:[#allocation4 + $0x208] sm:$0xf]
        %v2503 = vld [vmem:[#allocation4 + $0x20c] sm:$0xf]
        %v2504 = vld [vmem:[#allocation4 + $0x210] sm:$0xf]
        %v2505 = vld [vmem:[#allocation4 + $0x214] sm:$0xf]
        %v2506 = vld [vmem:[#allocation4 + $0x218] sm:$0xf]
        %v2507 = vld [vmem:[#allocation4 + $0x21c] sm:$0xf]
        %v2508 = vld [vmem:[#allocation4 + $0x220] sm:$0xf]
        %v2509 = vld [vmem:[#allocation4 + $0x224] sm:$0xf]
        %v2510 = vld [vmem:[#allocation4 + $0x228] sm:$0xf]
        %v2511 = vld [vmem:[#allocation4 + $0x22c] sm:$0xf]
        %v2512 = vld [vmem:[#allocation4 + $0x230] sm:$0xf]
        %v2513 = vld [vmem:[#allocation4 + $0x234] sm:$0xf]
        %v2514 = vld [vmem:[#allocation4 + $0x238] sm:$0xf]
        %v2515 = vld [vmem:[#allocation4 + $0x23c] sm:$0xf]
        %v2516 = vld [vmem:[#allocation4 + $0x240] sm:$0xf]
        %v2517 = vld [vmem:[#allocation4 + $0x244] sm:$0xf]
        %v2518 = vld [vmem:[#allocation4 + $0x248] sm:$0xf]
        %v2519 = vld [vmem:[#allocation4 + $0x24c] sm:$0xf]
        %v2520 = vld [vmem:[#allocation4 + $0x250] sm:$0xf]
        %v2521 = vld [vmem:[#allocation4 + $0x254] sm:$0xf]
        %v2522 = vld [vmem:[#allocation4 + $0x258] sm:$0xf]
        %v2523 = vld [vmem:[#allocation4 + $0x25c] sm:$0xf]
        %v2524 = vld [vmem:[#allocation4 + $0x260] sm:$0xf]
        %v2525 = vld [vmem:[#allocation4 + $0x264] sm:$0xf]
        %v2526 = vld [vmem:[#allocation4 + $0x268] sm:$0xf]
        %v2527 = vld [vmem:[#allocation4 + $0x26c] sm:$0xf]
        %v2528 = vld [vmem:[#allocation4 + $0x270] sm:$0xf]
        %v2529 = vld [vmem:[#allocation4 + $0x274] sm:$0xf]
        %v2530 = vld [vmem:[#allocation4 + $0x278] sm:$0xf]
        %v2531 = vld [vmem:[#allocation4 + $0x27c] sm:$0xf]
        %v2532 = vld [vmem:[#allocation4 + $0x280] sm:$0xf]
        %v2533 = vld [vmem:[#allocation4 + $0x284] sm:$0xf]
        %v2534 = vld [vmem:[#allocation4 + $0x288] sm:$0xf]
        %v2535 = vld [vmem:[#allocation4 + $0x28c] sm:$0xf]
        %v2536 = vld [vmem:[#allocation4 + $0x290] sm:$0xf]
        %v2537 = vld [vmem:[#allocation4 + $0x294] sm:$0xf]
        %v2538 = vld [vmem:[#allocation4 + $0x298] sm:$0xf]
        %v2539 = vld [vmem:[#allocation4 + $0x29c] sm:$0xf]
        %v2540 = vld [vmem:[#allocation4 + $0x2a0] sm:$0xf]
        %v2541 = vld [vmem:[#allocation4 + $0x2a4] sm:$0xf]
        %v2542 = vld [vmem:[#allocation4 + $0x2a8] sm:$0xf]
        %v2543 = vld [vmem:[#allocation4 + $0x2ac] sm:$0xf]
        %v2544 = vld [vmem:[#allocation4 + $0x2b0] sm:$0xf]
        %v2545 = vld [vmem:[#allocation4 + $0x2b4] sm:$0xf]
        %v2546 = vld [vmem:[#allocation4 + $0x2b8] sm:$0xf]
        %v2547 = vld [vmem:[#allocation4 + $0x2bc] sm:$0xf]
        %v2548 = vld [vmem:[#allocation4 + $0x2c0] sm:$0xf]
        %v2549 = vld [vmem:[#allocation4 + $0x2c4] sm:$0xf]
        %v2550 = vld [vmem:[#allocation4 + $0x2c8] sm:$0xf]
        %v2551 = vld [vmem:[#allocation4 + $0x2cc] sm:$0xf]
        %v2552 = vld [vmem:[#allocation4 + $0x2d0] sm:$0xf]
        %v2553 = vld [vmem:[#allocation4 + $0x2d4] sm:$0xf]
        %v2554 = vld [vmem:[#allocation4 + $0x2d8] sm:$0xf]
        %v2555 = vld [vmem:[#allocation4 + $0x2dc] sm:$0xf]
        %v2556 = vld [vmem:[#allocation4 + $0x2e0] sm:$0xf]
        %v2557 = vld [vmem:[#allocation4 + $0x2e4] sm:$0xf]
        %v2558 = vld [vmem:[#allocation4 + $0x2e8] sm:$0xf]
        %v2559 = vld [vmem:[#allocation4 + $0x2ec] sm:$0xf]
        %v2560 = vld [vmem:[#allocation4 + $0x2f0] sm:$0xf]
        %v2561 = vld [vmem:[#allocation4 + $0x2f4] sm:$0xf]
        %v2562 = vld [vmem:[#allocation4 + $0x2f8] sm:$0xf]
        %v2563 = vld [vmem:[#allocation4 + $0x2fc] sm:$0xf]
        %v2564 = vld [vmem:[%s8] sm:$0x1]
        %v2566 = vlaneseq
        %v2567 = vshrl.u32 %v2566, 7
        %v2568 = vsub.s32 0, %v2567
        %v2569 = vrot.slane %v2564, %v2568
        %v2763 = vunpack.c.l.b16 %v2372
        %v2764 = vunpack.c.l.b16 %v2373
        %v2765 = vunpack.c.l.b16 %v2374
        %v2766 = vunpack.c.l.b16 %v2375
        %v2767 = vunpack.c.l.b16 %v2376
        %v2768 = vunpack.c.l.b16 %v2377
        %v2769 = vunpack.c.l.b16 %v2378
        %v2770 = vunpack.c.l.b16 %v2379
        %v2771 = vunpack.c.l.b16 %v2380
        %v2772 = vunpack.c.l.b16 %v2381
        %v2773 = vunpack.c.l.b16 %v2382
        %v2774 = vunpack.c.l.b16 %v2383
        %v2775 = vunpack.c.l.b16 %v2384
        %v2776 = vunpack.c.l.b16 %v2385
        %v2777 = vunpack.c.l.b16 %v2386
        %v2778 = vunpack.c.l.b16 %v2387
        %v2779 = vunpack.c.l.b16 %v2388
        %v2780 = vunpack.c.l.b16 %v2389
        %v2781 = vunpack.c.l.b16 %v2390
        %v2782 = vunpack.c.l.b16 %v2391
        %v2783 = vunpack.c.l.b16 %v2392
        %v2784 = vunpack.c.l.b16 %v2393
        %v2785 = vunpack.c.l.b16 %v2394
        %v2786 = vunpack.c.l.b16 %v2395
        %v2787 = vunpack.c.l.b16 %v2396
        %v2788 = vunpack.c.l.b16 %v2397
        %v2789 = vunpack.c.l.b16 %v2398
        %v2790 = vunpack.c.l.b16 %v2399
        %v2791 = vunpack.c.l.b16 %v2400
        %v2792 = vunpack.c.l.b16 %v2401
        %v2793 = vunpack.c.l.b16 %v2402
        %v2794 = vunpack.c.l.b16 %v2403
        %v2795 = vunpack.c.l.b16 %v2404
        %v2796 = vunpack.c.l.b16 %v2405
        %v2797 = vunpack.c.l.b16 %v2406
        %v2798 = vunpack.c.l.b16 %v2407
        %v2799 = vunpack.c.l.b16 %v2408
        %v2800 = vunpack.c.l.b16 %v2409
        %v2801 = vunpack.c.l.b16 %v2410
        %v2802 = vunpack.c.l.b16 %v2411
        %v2803 = vunpack.c.l.b16 %v2412
        %v2804 = vunpack.c.l.b16 %v2413
        %v2805 = vunpack.c.l.b16 %v2414
        %v2806 = vunpack.c.l.b16 %v2415
        %v2807 = vunpack.c.l.b16 %v2416
        %v2808 = vunpack.c.l.b16 %v2417
        %v2809 = vunpack.c.l.b16 %v2418
        %v2810 = vunpack.c.l.b16 %v2419
        %v2811 = vunpack.c.l.b16 %v2420
        %v2812 = vunpack.c.l.b16 %v2421
        %v2813 = vunpack.c.l.b16 %v2422
        %v2814 = vunpack.c.l.b16 %v2423
        %v2815 = vunpack.c.l.b16 %v2424
        %v2816 = vunpack.c.l.b16 %v2425
        %v2817 = vunpack.c.l.b16 %v2426
        %v2818 = vunpack.c.l.b16 %v2427
        %v2819 = vunpack.c.l.b16 %v2428
        %v2820 = vunpack.c.l.b16 %v2429
        %v2821 = vunpack.c.l.b16 %v2430
        %v2822 = vunpack.c.l.b16 %v2431
        %v2823 = vunpack.c.l.b16 %v2432
        %v2824 = vunpack.c.l.b16 %v2433
        %v2825 = vunpack.c.l.b16 %v2434
        %v2826 = vunpack.c.l.b16 %v2435
        %v2827 = vunpack.c.l.b16 %v2436
        %v2828 = vunpack.c.l.b16 %v2437
        %v2829 = vunpack.c.l.b16 %v2438
        %v2830 = vunpack.c.l.b16 %v2439
        %v2831 = vunpack.c.l.b16 %v2440
        %v2832 = vunpack.c.l.b16 %v2441
        %v2833 = vunpack.c.l.b16 %v2442
        %v2834 = vunpack.c.l.b16 %v2443
        %v2835 = vunpack.c.l.b16 %v2444
        %v2836 = vunpack.c.l.b16 %v2445
        %v2837 = vunpack.c.l.b16 %v2446
        %v2838 = vunpack.c.l.b16 %v2447
        %v2839 = vunpack.c.l.b16 %v2448
        %v2840 = vunpack.c.l.b16 %v2449
        %v2841 = vunpack.c.l.b16 %v2450
        %v2842 = vunpack.c.l.b16 %v2451
        %v2843 = vunpack.c.l.b16 %v2452
        %v2844 = vunpack.c.l.b16 %v2453
        %v2845 = vunpack.c.l.b16 %v2454
        %v2846 = vunpack.c.l.b16 %v2455
        %v2847 = vunpack.c.l.b16 %v2456
        %v2848 = vunpack.c.l.b16 %v2457
        %v2849 = vunpack.c.l.b16 %v2458
        %v2850 = vunpack.c.l.b16 %v2459
        %v2851 = vunpack.c.l.b16 %v2460
        %v2852 = vunpack.c.l.b16 %v2461
        %v2853 = vunpack.c.l.b16 %v2462
        %v2854 = vunpack.c.l.b16 %v2463
        %v2855 = vunpack.c.l.b16 %v2464
        %v2856 = vunpack.c.l.b16 %v2465
        %v2857 = vunpack.c.l.b16 %v2466
        %v2858 = vunpack.c.l.b16 %v2467
        %v2859 = vunpack.c.l.b16 %v2468
        %v2860 = vunpack.c.l.b16 %v2469
        %v2861 = vunpack.c.l.b16 %v2470
        %v2862 = vunpack.c.l.b16 %v2471
        %v2863 = vunpack.c.l.b16 %v2472
        %v2864 = vunpack.c.l.b16 %v2473
        %v2865 = vunpack.c.l.b16 %v2474
        %v2866 = vunpack.c.l.b16 %v2475
        %v2867 = vunpack.c.l.b16 %v2476
        %v2868 = vunpack.c.l.b16 %v2477
        %v2869 = vunpack.c.l.b16 %v2478
        %v2870 = vunpack.c.l.b16 %v2479
        %v2871 = vunpack.c.l.b16 %v2480
        %v2872 = vunpack.c.l.b16 %v2481
        %v2873 = vunpack.c.l.b16 %v2482
        %v2874 = vunpack.c.l.b16 %v2483
        %v2875 = vunpack.c.l.b16 %v2484
        %v2876 = vunpack.c.l.b16 %v2485
        %v2877 = vunpack.c.l.b16 %v2486
        %v2878 = vunpack.c.l.b16 %v2487
        %v2879 = vunpack.c.l.b16 %v2488
        %v2880 = vunpack.c.l.b16 %v2489
        %v2881 = vunpack.c.l.b16 %v2490
        %v2882 = vunpack.c.l.b16 %v2491
        %v2883 = vunpack.c.l.b16 %v2492
        %v2884 = vunpack.c.l.b16 %v2493
        %v2885 = vunpack.c.l.b16 %v2494
        %v2886 = vunpack.c.l.b16 %v2495
        %v2887 = vunpack.c.l.b16 %v2496
        %v2888 = vunpack.c.l.b16 %v2497
        %v2889 = vunpack.c.l.b16 %v2498
        %v2890 = vunpack.c.l.b16 %v2499
        %v2891 = vunpack.c.l.b16 %v2500
        %v2892 = vunpack.c.l.b16 %v2501
        %v2893 = vunpack.c.l.b16 %v2502
        %v2894 = vunpack.c.l.b16 %v2503
        %v2895 = vunpack.c.l.b16 %v2504
        %v2896 = vunpack.c.l.b16 %v2505
        %v2897 = vunpack.c.l.b16 %v2506
        %v2898 = vunpack.c.l.b16 %v2507
        %v2899 = vunpack.c.l.b16 %v2508
        %v2900 = vunpack.c.l.b16 %v2509
        %v2901 = vunpack.c.l.b16 %v2510
        %v2902 = vunpack.c.l.b16 %v2511
        %v2903 = vunpack.c.l.b16 %v2512
        %v2904 = vunpack.c.l.b16 %v2513
        %v2905 = vunpack.c.l.b16 %v2514
        %v2906 = vunpack.c.l.b16 %v2515
        %v2907 = vunpack.c.l.b16 %v2516
        %v2908 = vunpack.c.l.b16 %v2517
        %v2909 = vunpack.c.l.b16 %v2518
        %v2910 = vunpack.c.l.b16 %v2519
        %v2911 = vunpack.c.l.b16 %v2520
        %v2912 = vunpack.c.l.b16 %v2521
        %v2913 = vunpack.c.l.b16 %v2522
        %v2914 = vunpack.c.l.b16 %v2523
        %v2915 = vunpack.c.l.b16 %v2524
        %v2916 = vunpack.c.l.b16 %v2525
        %v2917 = vunpack.c.l.b16 %v2526
        %v2918 = vunpack.c.l.b16 %v2527
        %v2919 = vunpack.c.l.b16 %v2528
        %v2920 = vunpack.c.l.b16 %v2529
        %v2921 = vunpack.c.l.b16 %v2530
        %v2922 = vunpack.c.l.b16 %v2531
        %v2923 = vunpack.c.l.b16 %v2532
        %v2924 = vunpack.c.l.b16 %v2533
        %v2925 = vunpack.c.l.b16 %v2534
        %v2926 = vunpack.c.l.b16 %v2535
        %v2927 = vunpack.c.l.b16 %v2536
        %v2928 = vunpack.c.l.b16 %v2537
        %v2929 = vunpack.c.l.b16 %v2538
        %v2930 = vunpack.c.l.b16 %v2539
        %v2931 = vunpack.c.l.b16 %v2540
        %v2932 = vunpack.c.l.b16 %v2541
        %v2933 = vunpack.c.l.b16 %v2542
        %v2934 = vunpack.c.l.b16 %v2543
        %v2935 = vunpack.c.l.b16 %v2544
        %v2936 = vunpack.c.l.b16 %v2545
        %v2937 = vunpack.c.l.b16 %v2546
        %v2938 = vunpack.c.l.b16 %v2547
        %v2939 = vunpack.c.l.b16 %v2548
        %v2940 = vunpack.c.l.b16 %v2549
        %v2941 = vunpack.c.l.b16 %v2550
        %v2942 = vunpack.c.l.b16 %v2551
        %v2943 = vunpack.c.l.b16 %v2552
        %v2944 = vunpack.c.l.b16 %v2553
        %v2945 = vunpack.c.l.b16 %v2554
        %v2946 = vunpack.c.l.b16 %v2555
        %v2947 = vunpack.c.l.b16 %v2556
        %v2948 = vunpack.c.l.b16 %v2557
        %v2949 = vunpack.c.l.b16 %v2558
        %v2950 = vunpack.c.l.b16 %v2559
        %v2951 = vunpack.c.l.b16 %v2560
        %v2952 = vunpack.c.l.b16 %v2561
        %v2953 = vunpack.c.l.b16 %v2562
        %v2954 = vunpack.c.l.b16 %v2563
        %v2955 = vpack.c.b16 %v2764, %v2763
        %v2956 = vpack.c.b16 %v2766, %v2765
        %v2957 = vpack.c.b16 %v2768, %v2767
        %v2958 = vpack.c.b16 %v2770, %v2769
        %v2959 = vpack.c.b16 %v2772, %v2771
        %v2960 = vpack.c.b16 %v2774, %v2773
        %v2961 = vpack.c.b16 %v2776, %v2775
        %v2962 = vpack.c.b16 %v2778, %v2777
        %v2963 = vpack.c.b16 %v2780, %v2779
        %v2964 = vpack.c.b16 %v2782, %v2781
        %v2965 = vpack.c.b16 %v2784, %v2783
        %v2966 = vpack.c.b16 %v2786, %v2785
        %v2967 = vpack.c.b16 %v2788, %v2787
        %v2968 = vpack.c.b16 %v2790, %v2789
        %v2969 = vpack.c.b16 %v2792, %v2791
        %v2970 = vpack.c.b16 %v2794, %v2793
        %v2971 = vpack.c.b16 %v2796, %v2795
        %v2972 = vpack.c.b16 %v2798, %v2797
        %v2973 = vpack.c.b16 %v2800, %v2799
        %v2974 = vpack.c.b16 %v2802, %v2801
        %v2975 = vpack.c.b16 %v2804, %v2803
        %v2976 = vpack.c.b16 %v2806, %v2805
        %v2977 = vpack.c.b16 %v2808, %v2807
        %v2978 = vpack.c.b16 %v2810, %v2809
        %v2979 = vpack.c.b16 %v2812, %v2811
        %v2980 = vpack.c.b16 %v2814, %v2813
        %v2981 = vpack.c.b16 %v2816, %v2815
        %v2982 = vpack.c.b16 %v2818, %v2817
        %v2983 = vpack.c.b16 %v2820, %v2819
        %v2984 = vpack.c.b16 %v2822, %v2821
        %v2985 = vpack.c.b16 %v2824, %v2823
        %v2986 = vpack.c.b16 %v2826, %v2825
        %v2987 = vpack.c.b16 %v2828, %v2827
        %v2988 = vpack.c.b16 %v2830, %v2829
        %v2989 = vpack.c.b16 %v2832, %v2831
        %v2990 = vpack.c.b16 %v2834, %v2833
        %v2991 = vpack.c.b16 %v2836, %v2835
        %v2992 = vpack.c.b16 %v2838, %v2837
        %v2993 = vpack.c.b16 %v2840, %v2839
        %v2994 = vpack.c.b16 %v2842, %v2841
        %v2995 = vpack.c.b16 %v2844, %v2843
        %v2996 = vpack.c.b16 %v2846, %v2845
        %v2997 = vpack.c.b16 %v2848, %v2847
        %v2998 = vpack.c.b16 %v2850, %v2849
        %v2999 = vpack.c.b16 %v2852, %v2851
        %v3000 = vpack.c.b16 %v2854, %v2853
        %v3001 = vpack.c.b16 %v2856, %v2855
        %v3002 = vpack.c.b16 %v2858, %v2857
        %v3003 = vpack.c.b16 %v2860, %v2859
        %v3004 = vpack.c.b16 %v2862, %v2861
        %v3005 = vpack.c.b16 %v2864, %v2863
        %v3006 = vpack.c.b16 %v2866, %v2865
        %v3007 = vpack.c.b16 %v2868, %v2867
        %v3008 = vpack.c.b16 %v2870, %v2869
        %v3009 = vpack.c.b16 %v2872, %v2871
        %v3010 = vpack.c.b16 %v2874, %v2873
        %v3011 = vpack.c.b16 %v2876, %v2875
        %v3012 = vpack.c.b16 %v2878, %v2877
        %v3013 = vpack.c.b16 %v2880, %v2879
        %v3014 = vpack.c.b16 %v2882, %v2881
        %v3015 = vpack.c.b16 %v2884, %v2883
        %v3016 = vpack.c.b16 %v2886, %v2885
        %v3017 = vpack.c.b16 %v2888, %v2887
        %v3018 = vpack.c.b16 %v2890, %v2889
        %v3019 = vpack.c.b16 %v2892, %v2891
        %v3020 = vpack.c.b16 %v2894, %v2893
        %v3021 = vpack.c.b16 %v2896, %v2895
        %v3022 = vpack.c.b16 %v2898, %v2897
        %v3023 = vpack.c.b16 %v2900, %v2899
        %v3024 = vpack.c.b16 %v2902, %v2901
        %v3025 = vpack.c.b16 %v2904, %v2903
        %v3026 = vpack.c.b16 %v2906, %v2905
        %v3027 = vpack.c.b16 %v2908, %v2907
        %v3028 = vpack.c.b16 %v2910, %v2909
        %v3029 = vpack.c.b16 %v2912, %v2911
        %v3030 = vpack.c.b16 %v2914, %v2913
        %v3031 = vpack.c.b16 %v2916, %v2915
        %v3032 = vpack.c.b16 %v2918, %v2917
        %v3033 = vpack.c.b16 %v2920, %v2919
        %v3034 = vpack.c.b16 %v2922, %v2921
        %v3035 = vpack.c.b16 %v2924, %v2923
        %v3036 = vpack.c.b16 %v2926, %v2925
        %v3037 = vpack.c.b16 %v2928, %v2927
        %v3038 = vpack.c.b16 %v2930, %v2929
        %v3039 = vpack.c.b16 %v2932, %v2931
        %v3040 = vpack.c.b16 %v2934, %v2933
        %v3041 = vpack.c.b16 %v2936, %v2935
        %v3042 = vpack.c.b16 %v2938, %v2937
        %v3043 = vpack.c.b16 %v2940, %v2939
        %v3044 = vpack.c.b16 %v2942, %v2941
        %v3045 = vpack.c.b16 %v2944, %v2943
        %v3046 = vpack.c.b16 %v2946, %v2945
        %v3047 = vpack.c.b16 %v2948, %v2947
        %v3048 = vpack.c.b16 %v2950, %v2949
        %v3049 = vpack.c.b16 %v2952, %v2951
        %v3050 = vpack.c.b16 %v2954, %v2953
        %3147 = vmatprep.subr.bf16.mxu0 0
        %3148 = vmatpush1.bf16.msra.mxu0 %v2962
        %3149 = vmatprep.subr.bf16.mxu0 0
        %3150 = vmatpush1.bf16.msra.mxu0 %v2961
        %3151 = vmatprep.subr.bf16.mxu0 0
        %3152 = vmatpush1.bf16.msra.mxu0 %v2960
        %3153 = vmatprep.subr.bf16.mxu0 0
        %3154 = vmatpush1.bf16.msra.mxu0 %v2959
        %3155 = vmatprep.subr.bf16.mxu0 0
        %3156 = vmatpush1.bf16.msra.mxu0 %v2958
        %3157 = vmatprep.subr.bf16.mxu0 0
        %3158 = vmatpush1.bf16.msra.mxu0 %v2957
        %3159 = vmatprep.subr.bf16.mxu0 0
        %3160 = vmatpush1.bf16.msra.mxu0 %v2956
        %3161 = vmatprep.subr.bf16.mxu0 0
        %3162 = vmatpush1.bf16.msra.mxu0 %v2955
        %3163 = vmatprep.subr.bf16.mxu0 0
        %3164 = vmatpush2.bf16.msra.mxu0 %v2970
        %3165 = vmatprep.subr.bf16.mxu0 0
        %3166 = vmatpush2.bf16.msra.mxu0 %v2969
        %3167 = vmatprep.subr.bf16.mxu0 0
        %3168 = vmatpush2.bf16.msra.mxu0 %v2968
        %3169 = vmatprep.subr.bf16.mxu0 0
        %3170 = vmatpush2.bf16.msra.mxu0 %v2967
        %3171 = vmatprep.subr.bf16.mxu0 0
        %3172 = vmatpush2.bf16.msra.mxu0 %v2966
        %3173 = vmatprep.subr.bf16.mxu0 0
        %3174 = vmatpush2.bf16.msra.mxu0 %v2965
        %3175 = vmatprep.subr.bf16.mxu0 0
        %3176 = vmatpush2.bf16.msra.mxu0 %v2964
        %3177 = vmatprep.subr.bf16.mxu0 0
        %3178 = vmatpush2.bf16.msra.mxu0 %v2963
        %3179 = vmatprep.mubr.bf16.mxu0 %v2361
        %3180 = vmatmul.mubr.bf16.gmra.mxu0 %v2360
        %v3181 = vpop.f32.mrf.mxu0
        %v3182 = vadd.f32 %v2569, %v3181
        %v3183 = vpop.f32.mrf.mxu0
        %v3184 = vpop.f32.mrf.mxu0
        %v3185 = vpop.f32.mrf.mxu0
        %3186 = vdwg.mxu0
        %3187 = vmatprep.subr.bf16.mxu0 0
        %3188 = vmatpush1.bf16.msra.mxu0 %v2978
        %3189 = vmatprep.subr.bf16.mxu0 0
        %3190 = vmatpush1.bf16.msra.mxu0 %v2977
        %3191 = vmatprep.subr.bf16.mxu0 0
        %3192 = vmatpush1.bf16.msra.mxu0 %v2976
        %3193 = vmatprep.subr.bf16.mxu0 0
        %3194 = vmatpush1.bf16.msra.mxu0 %v2975
        %3195 = vmatprep.subr.bf16.mxu0 0
        %3196 = vmatpush1.bf16.msra.mxu0 %v2974
        %3197 = vmatprep.subr.bf16.mxu0 0
        %3198 = vmatpush1.bf16.msra.mxu0 %v2973
        %3199 = vmatprep.subr.bf16.mxu0 0
        %3200 = vmatpush1.bf16.msra.mxu0 %v2972
        %3201 = vmatprep.subr.bf16.mxu0 0
        %3202 = vmatpush1.bf16.msra.mxu0 %v2971
        %3203 = vmatprep.subr.bf16.mxu0 0
        %3204 = vmatpush2.bf16.msra.mxu0 %v2986
        %3205 = vmatprep.subr.bf16.mxu0 0
        %3206 = vmatpush2.bf16.msra.mxu0 %v2985
        %3207 = vmatprep.subr.bf16.mxu0 0
        %3208 = vmatpush2.bf16.msra.mxu0 %v2984
        %3209 = vmatprep.subr.bf16.mxu0 0
        %3210 = vmatpush2.bf16.msra.mxu0 %v2983
        %3211 = vmatprep.subr.bf16.mxu0 0
        %3212 = vmatpush2.bf16.msra.mxu0 %v2982
        %3213 = vmatprep.subr.bf16.mxu0 0
        %3214 = vmatpush2.bf16.msra.mxu0 %v2981
        %3215 = vmatprep.subr.bf16.mxu0 0
        %3216 = vmatpush2.bf16.msra.mxu0 %v2980
        %3217 = vmatprep.subr.bf16.mxu0 0
        %3218 = vmatpush2.bf16.msra.mxu0 %v2979
        %3219 = vmatprep.mubr.bf16.mxu0 %v2363
        %3220 = vmatmul.mubr.bf16.gmra.mxu0 %v2362
        %v3221 = vpop.f32.mrf.mxu0
        %v3222 = vadd.f32 %v3182, %v3221
        %v3223 = vpop.f32.mrf.mxu0
        %v3224 = vpop.f32.mrf.mxu0
        %v3225 = vpop.f32.mrf.mxu0
        %3226 = vdwg.mxu0
        %3227 = vmatprep.subr.bf16.mxu0 0
        %3228 = vmatpush1.bf16.msra.mxu0 %v2994
        %3229 = vmatprep.subr.bf16.mxu0 0
        %3230 = vmatpush1.bf16.msra.mxu0 %v2993
        %3231 = vmatprep.subr.bf16.mxu0 0
        %3232 = vmatpush1.bf16.msra.mxu0 %v2992
        %3233 = vmatprep.subr.bf16.mxu0 0
        %3234 = vmatpush1.bf16.msra.mxu0 %v2991
        %3235 = vmatprep.subr.bf16.mxu0 0
        %3236 = vmatpush1.bf16.msra.mxu0 %v2990
        %3237 = vmatprep.subr.bf16.mxu0 0
        %3238 = vmatpush1.bf16.msra.mxu0 %v2989
        %3239 = vmatprep.subr.bf16.mxu0 0
        %3240 = vmatpush1.bf16.msra.mxu0 %v2988
        %3241 = vmatprep.subr.bf16.mxu0 0
        %3242 = vmatpush1.bf16.msra.mxu0 %v2987
        %3243 = vmatprep.subr.bf16.mxu0 0
        %3244 = vmatpush2.bf16.msra.mxu0 %v3002
        %3245 = vmatprep.subr.bf16.mxu0 0
        %3246 = vmatpush2.bf16.msra.mxu0 %v3001
        %3247 = vmatprep.subr.bf16.mxu0 0
        %3248 = vmatpush2.bf16.msra.mxu0 %v3000
        %3249 = vmatprep.subr.bf16.mxu0 0
        %3250 = vmatpush2.bf16.msra.mxu0 %v2999
        %3251 = vmatprep.subr.bf16.mxu0 0
        %3252 = vmatpush2.bf16.msra.mxu0 %v2998
        %3253 = vmatprep.subr.bf16.mxu0 0
        %3254 = vmatpush2.bf16.msra.mxu0 %v2997
        %3255 = vmatprep.subr.bf16.mxu0 0
        %3256 = vmatpush2.bf16.msra.mxu0 %v2996
        %3257 = vmatprep.subr.bf16.mxu0 0
        %3258 = vmatpush2.bf16.msra.mxu0 %v2995
        %3259 = vmatprep.mubr.bf16.mxu0 %v2365
        %3260 = vmatmul.mubr.bf16.gmra.mxu0 %v2364
        %v3261 = vpop.f32.mrf.mxu0
        %v3262 = vadd.f32 %v3222, %v3261
        %v3263 = vpop.f32.mrf.mxu0
        %v3264 = vpop.f32.mrf.mxu0
        %v3265 = vpop.f32.mrf.mxu0
        %3266 = vdwg.mxu0
        %3267 = vmatprep.subr.bf16.mxu0 0
        %3268 = vmatpush1.bf16.msra.mxu0 %v3010
        %3269 = vmatprep.subr.bf16.mxu0 0
        %3270 = vmatpush1.bf16.msra.mxu0 %v3009
        %3271 = vmatprep.subr.bf16.mxu0 0
        %3272 = vmatpush1.bf16.msra.mxu0 %v3008
        %3273 = vmatprep.subr.bf16.mxu0 0
        %3274 = vmatpush1.bf16.msra.mxu0 %v3007
        %3275 = vmatprep.subr.bf16.mxu0 0
        %3276 = vmatpush1.bf16.msra.mxu0 %v3006
        %3277 = vmatprep.subr.bf16.mxu0 0
        %3278 = vmatpush1.bf16.msra.mxu0 %v3005
        %3279 = vmatprep.subr.bf16.mxu0 0
        %3280 = vmatpush1.bf16.msra.mxu0 %v3004
        %3281 = vmatprep.subr.bf16.mxu0 0
        %3282 = vmatpush1.bf16.msra.mxu0 %v3003
        %3283 = vmatprep.subr.bf16.mxu0 0
        %3284 = vmatpush2.bf16.msra.mxu0 %v3018
        %3285 = vmatprep.subr.bf16.mxu0 0
        %3286 = vmatpush2.bf16.msra.mxu0 %v3017
        %3287 = vmatprep.subr.bf16.mxu0 0
        %3288 = vmatpush2.bf16.msra.mxu0 %v3016
        %3289 = vmatprep.subr.bf16.mxu0 0
        %3290 = vmatpush2.bf16.msra.mxu0 %v3015
        %3291 = vmatprep.subr.bf16.mxu0 0
        %3292 = vmatpush2.bf16.msra.mxu0 %v3014
        %3293 = vmatprep.subr.bf16.mxu0 0
        %3294 = vmatpush2.bf16.msra.mxu0 %v3013
        %3295 = vmatprep.subr.bf16.mxu0 0
        %3296 = vmatpush2.bf16.msra.mxu0 %v3012
        %3297 = vmatprep.subr.bf16.mxu0 0
        %3298 = vmatpush2.bf16.msra.mxu0 %v3011
        %3299 = vmatprep.mubr.bf16.mxu0 %v2367
        %3300 = vmatmul.mubr.bf16.gmra.mxu0 %v2366
        %v3301 = vpop.f32.mrf.mxu0
        %v3302 = vadd.f32 %v3262, %v3301
        %v3303 = vpop.f32.mrf.mxu0
        %v3304 = vpop.f32.mrf.mxu0
        %v3305 = vpop.f32.mrf.mxu0
        %3306 = vdwg.mxu0
        %3307 = vmatprep.subr.bf16.mxu0 0
        %3308 = vmatpush1.bf16.msra.mxu0 %v3026
        %3309 = vmatprep.subr.bf16.mxu0 0
        %3310 = vmatpush1.bf16.msra.mxu0 %v3025
        %3311 = vmatprep.subr.bf16.mxu0 0
        %3312 = vmatpush1.bf16.msra.mxu0 %v3024
        %3313 = vmatprep.subr.bf16.mxu0 0
        %3314 = vmatpush1.bf16.msra.mxu0 %v3023
        %3315 = vmatprep.subr.bf16.mxu0 0
        %3316 = vmatpush1.bf16.msra.mxu0 %v3022
        %3317 = vmatprep.subr.bf16.mxu0 0
        %3318 = vmatpush1.bf16.msra.mxu0 %v3021
        %3319 = vmatprep.subr.bf16.mxu0 0
        %3320 = vmatpush1.bf16.msra.mxu0 %v3020
        %3321 = vmatprep.subr.bf16.mxu0 0
        %3322 = vmatpush1.bf16.msra.mxu0 %v3019
        %3323 = vmatprep.subr.bf16.mxu0 0
        %3324 = vmatpush2.bf16.msra.mxu0 %v3034
        %3325 = vmatprep.subr.bf16.mxu0 0
        %3326 = vmatpush2.bf16.msra.mxu0 %v3033
        %3327 = vmatprep.subr.bf16.mxu0 0
        %3328 = vmatpush2.bf16.msra.mxu0 %v3032
        %3329 = vmatprep.subr.bf16.mxu0 0
        %3330 = vmatpush2.bf16.msra.mxu0 %v3031
        %3331 = vmatprep.subr.bf16.mxu0 0
        %3332 = vmatpush2.bf16.msra.mxu0 %v3030
        %3333 = vmatprep.subr.bf16.mxu0 0
        %3334 = vmatpush2.bf16.msra.mxu0 %v3029
        %3335 = vmatprep.subr.bf16.mxu0 0
        %3336 = vmatpush2.bf16.msra.mxu0 %v3028
        %3337 = vmatprep.subr.bf16.mxu0 0
        %3338 = vmatpush2.bf16.msra.mxu0 %v3027
        %3339 = vmatprep.mubr.bf16.mxu0 %v2369
        %3340 = vmatmul.mubr.bf16.gmra.mxu0 %v2368
        %v3341 = vpop.f32.mrf.mxu0
        %v3342 = vadd.f32 %v3302, %v3341
        %v3343 = vpop.f32.mrf.mxu0
        %v3344 = vpop.f32.mrf.mxu0
        %v3345 = vpop.f32.mrf.mxu0
        %3346 = vdwg.mxu0
        %3347 = vmatprep.subr.bf16.mxu0 0
        %3348 = vmatpush1.bf16.msra.mxu0 %v3042
        %3349 = vmatprep.subr.bf16.mxu0 0
        %3350 = vmatpush1.bf16.msra.mxu0 %v3041
        %3351 = vmatprep.subr.bf16.mxu0 0
        %3352 = vmatpush1.bf16.msra.mxu0 %v3040
        %3353 = vmatprep.subr.bf16.mxu0 0
        %3354 = vmatpush1.bf16.msra.mxu0 %v3039
        %3355 = vmatprep.subr.bf16.mxu0 0
        %3356 = vmatpush1.bf16.msra.mxu0 %v3038
        %3357 = vmatprep.subr.bf16.mxu0 0
        %3358 = vmatpush1.bf16.msra.mxu0 %v3037
        %3359 = vmatprep.subr.bf16.mxu0 0
        %3360 = vmatpush1.bf16.msra.mxu0 %v3036
        %3361 = vmatprep.subr.bf16.mxu0 0
        %3362 = vmatpush1.bf16.msra.mxu0 %v3035
        %3363 = vmatprep.subr.bf16.mxu0 0
        %3364 = vmatpush2.bf16.msra.mxu0 %v3050
        %3365 = vmatprep.subr.bf16.mxu0 0
        %3366 = vmatpush2.bf16.msra.mxu0 %v3049
        %3367 = vmatprep.subr.bf16.mxu0 0
        %3368 = vmatpush2.bf16.msra.mxu0 %v3048
        %3369 = vmatprep.subr.bf16.mxu0 0
        %3370 = vmatpush2.bf16.msra.mxu0 %v3047
        %3371 = vmatprep.subr.bf16.mxu0 0
        %3372 = vmatpush2.bf16.msra.mxu0 %v3046
        %3373 = vmatprep.subr.bf16.mxu0 0
        %3374 = vmatpush2.bf16.msra.mxu0 %v3045
        %3375 = vmatprep.subr.bf16.mxu0 0
        %3376 = vmatpush2.bf16.msra.mxu0 %v3044
        %3377 = vmatprep.subr.bf16.mxu0 0
        %3378 = vmatpush2.bf16.msra.mxu0 %v3043
        %3379 = vmatprep.mubr.bf16.mxu0 %v2371
        %3380 = vmatmul.mubr.bf16.gmra.mxu0 %v2370
        %v3381 = vpop.f32.mrf.mxu0
        %v3382 = vadd.f32 %v3342, %v3381
        %v3383 = vpop.f32.mrf.mxu0
        %v3384 = vpop.f32.mrf.mxu0
        %v3385 = vpop.f32.mrf.mxu0
        %3386 = vdwg.mxu0
        %vm3387 = vcmp.ge.f32.partialorder %v3382, 0.0
        %v3388 = vlaneseq
        %v3389 = vshrl.u32 %v3388, 7
        %v3390 = vsub.s32 2, %v3389
        %v3391 = vrot.slane %v520, %v3390
        %v3392 = vmul.f32 %v3382, %v3391
        %v3393 = vsel %vm3387, %v3382, %v3392
        %v3394 = vsel %vm1397, %v3393, -inf
        %v3395 = vrot.slane %v3394, 4
        %v3396 = vmax.f32 %v3394, %v3395
        %v3397 = vrot.slane %v3396, 2
        %v3398 = vmax.f32 %v3396, %v3397
        %v3399 = vrot.slane %v3398, 1
        %v3400 = vmax.f32 %v3398, %v3399
        %3401 = vst [vmem:[%s385] sm:$0x1] %v3400
        %p3402 = scmp.lt.s32.totalorder %s23, 1
        %s3403 = scalar_select %p3402, %s23, 1
        %s3404 = scalar_lea.vmem %s10, %s3403
        // Predicated region
        $region69: #{forward.4} parent=59 // pred_check
          %p3405 = pneg %p256
        $region70: #{forward.4} parent=59 // pred_check_branch
          %3407 = sbr.rel (%p3405) target = $region72
        $region71: #{forward.4} parent=59 // pred_region
          _
        $region72: #{forward.4} parent=59 // pred_fallthru
          _
      $region60: #{forward.4} parent=5 // pred_fallthru
        _
      %p3408 = scmp.le.s32.totalorder 2, %s18
      // Predicated region
      $region73: #{forward.4} parent=5 // pred_check
        %p3409 = pneg %p3408
      $region74: #{forward.4} parent=5 // pred_check_branch
        %3411 = sbr.rel (%p3409) target = $region76
      $region75: #{forward.4} parent=5 // pred_region
        %s3412 = ssub.s32 %s18, 2
        // Predicated region
        $region77: #{forward.4} parent=75 // pred_check
          %p3413 = pneg %p262
        $region78: #{forward.4} parent=75 // pred_check_branch
          %3415 = sbr.rel (%p3413) target = $region80
        $region79: #{forward.4} parent=75 // pred_region
          %p3416 = scmp.lt.s32.totalorder %s24, 1
          %s3417 = scalar_select %p3416, %s24, 1
          %s3418 = scalar_lea.vmem %s10, %s3417
        $region80: #{forward.4} parent=75 // pred_fallthru
          _
      $region76: #{forward.4} parent=5 // pred_fallthru
        _
    $region6: #{forward.4} parent=1 // loop_footer
      %s22 = sadd.s32 1, %s18
    $region7: #{forward.4} parent=1 // loop_footer_branch
      %17 = sbr.rel target = $region3
    $region8: #{forward.4} parent=1 // loop_exit
      _
    %3419 = vsyncpa [#allocation3], 1
    %s3420 = scalar_lea.sflag [#allocation3], 1
    %3421 = vsyncpa %s3420, 1
    %3422 = vsyncpa [#allocation5], 1

// kernel: forward.6
$region0: #{forward.6}
  #allocation0 [shape = 'u32[]', space=smem, size = 0x4, offset = 0x4, fixed_abs, tag = 'smem constant byte address 0x4 - core index']
  #allocation1 [shape = 'u32[144,128]{1,0:T(1,128)}', space=vmem, size = 0x12000, scoped, tag = 'internal scratch']
  %s0 = inlined_call_operand.vmem [shape: s32[2,48,1], index: 0, kind: input, shape index: {}]
  %s1 = inlined_call_operand.vmem [shape: bf16[65,128], index: 1, kind: input, shape index: {}]
  %s2 = inlined_call_operand.vmem [shape: f32[1,128], index: 2, kind: input, shape index: {}]
  %s3 = inlined_call_operand.vmem [shape: bf16[512,128], index: 3, kind: input, shape index: {}]
  %s4 = inlined_call_operand.vmem [shape: f32[1,128], index: 4, kind: input, shape index: {}]
  %s5 = inlined_call_operand.vmem [shape: bf16[768,128], index: 5, kind: input, shape index: {}]
  %s6 = inlined_call_operand.vmem [shape: f32[1,128], index: 6, kind: input, shape index: {}]
  %s7 = inlined_call_operand.vmem [shape: bf16[1024,128], index: 7, kind: input, shape index: {}]
  %s8 = inlined_call_operand.vmem [shape: f32[1,128], index: 8, kind: input, shape index: {}]
  %s9 = inlined_call_operand.vmem [shape: f32[3,128], index: 9, kind: input, shape index: {}]
  %s10 = inlined_call_operand.vmem [shape: f32[2,1,128], index: 10, kind: output, shape index: {}]
  %s11 = sld [smem:[#allocation0]]
  $region73: #{forward.6} parent=0
    _
  %s13 = ssub.s32 1, %s11
  %s14 = scalar_select 0, %s13, %s11
  loop: start=0, step=1, limit=4
  $region2: #{forward.6} parent=0 // loop_pre_header
    _
  $region3: #{forward.6} parent=0 // loop_header
    %s16 = sphi 0, %s20
    %p17 = scmp.ge.s32.totalorder %s16, 4
    %s26 = sphi 0, %s28
    %s29 = sphi 0, %s26
    %s30 = sphi 0, %s29
    %s46 = sphi 0, %s30
    %s50 = sphi 0, %s50
    %s52 = sphi 0, %s50
    %s53 = sphi 0, %s52
    %s67 = sphi 0, %s53
    %s71 = sphi 0, %s71
    %s73 = sphi 0, %s71
    %s74 = sphi 0, %s73
    %s88 = sphi 0, %s74
    %s92 = sphi 0, %s92
    %s94 = sphi 0, %s92
    %s95 = sphi 0, %s94
    %s109 = sphi 0, %s95
    %s113 = sphi 0, %s113
    %s115 = sphi 0, %s113
    %s116 = sphi 0, %s115
    %s130 = sphi 0, %s116
    %s134 = sphi 0, %s134
    %s136 = sphi 0, %s134
    %s137 = sphi 0, %s136
    %s151 = sphi 0, %s137
    %s155 = sphi 0, %s155
    %s157 = sphi 0, %s155
    %s158 = sphi 0, %s157
    %s172 = sphi 0, %s158
    %s176 = sphi 0, %s176
    %s178 = sphi 0, %s176
    %s179 = sphi 0, %s178
    %s193 = sphi 0, %s179
    %s197 = sphi 0, %s197
    %s199 = sphi 0, %s197
    %s200 = sphi 0, %s199
    %s214 = sphi 0, %s200
    %s218 = sphi 0, %s218
    %s220 = sphi 0, %s218
    %s221 = sphi 0, %s220
    %s235 = sphi 0, %s221
    %s241 = sphi 0, %s243
    %s244 = sphi 0, %s241
    %s245 = sphi 0, %s244
    %s261 = sphi 0, %s245
  $region4: #{forward.6} parent=0 // loop_header_branch
    %19 = sbr.rel (%p17) target = $region8
  $region5: #{forward.6} parent=0 // loop_body
    %s21 = ssub.s32 %s16, 1
    %s22 = ssub.s32 %s16, 2
    %s23 = sadd.s32 %s16, 1
    %s24 = ssub.s32 %s16, %s23
    %p25 = scmp.eq.s32.totalorder %s24, 0
    %s27 = sadd.s32 %s26, 1
    %s28 = scalar_select %p25, %s26, %s27
    %p31 = pneg %p25
    %p32 = scmp.eq.s32.totalorder %s16, 1
    %p33 = por %p31, %p32
    %p34 = scmp.ne.s32.totalorder %s26, %s29
    %p35 = scmp.eq.s32.totalorder %s16, 0
    %p36 = por %p34, %p35
    %p37 = scmp.ne.s32.totalorder %s26, %s29
    %p38 = scmp.eq.s32.totalorder %s21, 1
    %p39 = por %p37, %p38
    %p40 = scmp.ne.s32.totalorder %s29, %s30
    %p41 = scmp.eq.s32.totalorder %s21, 0
    %p42 = por %p40, %p41
    %p43 = scmp.ne.s32.totalorder %s29, %s30
    %p44 = scmp.eq.s32.totalorder %s22, 1
    %p45 = por %p43, %p44
    %p47 = scmp.ne.s32.totalorder %s30, %s46
    %p48 = scmp.eq.s32.totalorder %s22, 0
    %p49 = por %p47, %p48
    %s51 = sadd.s32 %s50, 1
    %p54 = scmp.eq.s32.totalorder %s16, 1
    %p55 = scmp.ne.s32.totalorder %s50, %s52
    %p56 = scmp.eq.s32.totalorder %s16, 0
    %p57 = por %p55, %p56
    %p58 = scmp.ne.s32.totalorder %s50, %s52
    %p59 = scmp.eq.s32.totalorder %s21, 1
    %p60 = por %p58, %p59
    %p61 = scmp.ne.s32.totalorder %s52, %s53
    %p62 = scmp.eq.s32.totalorder %s21, 0
    %p63 = por %p61, %p62
    %p64 = scmp.ne.s32.totalorder %s52, %s53
    %p65 = scmp.eq.s32.totalorder %s22, 1
    %p66 = por %p64, %p65
    %p68 = scmp.ne.s32.totalorder %s53, %s67
    %p69 = scmp.eq.s32.totalorder %s22, 0
    %p70 = por %p68, %p69
    %s72 = sadd.s32 %s71, 1
    %p75 = scmp.eq.s32.totalorder %s16, 1
    %p76 = scmp.ne.s32.totalorder %s71, %s73
    %p77 = scmp.eq.s32.totalorder %s16, 0
    %p78 = por %p76, %p77
    %p79 = scmp.ne.s32.totalorder %s71, %s73
    %p80 = scmp.eq.s32.totalorder %s21, 1
    %p81 = por %p79, %p80
    %p82 = scmp.ne.s32.totalorder %s73, %s74
    %p83 = scmp.eq.s32.totalorder %s21, 0
    %p84 = por %p82, %p83
    %p85 = scmp.ne.s32.totalorder %s73, %s74
    %p86 = scmp.eq.s32.totalorder %s22, 1
    %p87 = por %p85, %p86
    %p89 = scmp.ne.s32.totalorder %s74, %s88
    %p90 = scmp.eq.s32.totalorder %s22, 0
    %p91 = por %p89, %p90
    %s93 = sadd.s32 %s92, 1
    %p96 = scmp.eq.s32.totalorder %s16, 1
    %p97 = scmp.ne.s32.totalorder %s92, %s94
    %p98 = scmp.eq.s32.totalorder %s16, 0
    %p99 = por %p97, %p98
    %p100 = scmp.ne.s32.totalorder %s92, %s94
    %p101 = scmp.eq.s32.totalorder %s21, 1
    %p102 = por %p100, %p101
    %p103 = scmp.ne.s32.totalorder %s94, %s95
    %p104 = scmp.eq.s32.totalorder %s21, 0
    %p105 = por %p103, %p104
    %p106 = scmp.ne.s32.totalorder %s94, %s95
    %p107 = scmp.eq.s32.totalorder %s22, 1
    %p108 = por %p106, %p107
    %p110 = scmp.ne.s32.totalorder %s95, %s109
    %p111 = scmp.eq.s32.totalorder %s22, 0
    %p112 = por %p110, %p111
    %s114 = sadd.s32 %s113, 1
    %p117 = scmp.eq.s32.totalorder %s16, 1
    %p118 = scmp.ne.s32.totalorder %s113, %s115
    %p119 = scmp.eq.s32.totalorder %s16, 0
    %p120 = por %p118, %p119
    %p121 = scmp.ne.s32.totalorder %s113, %s115
    %p122 = scmp.eq.s32.totalorder %s21, 1
    %p123 = por %p121, %p122
    %p124 = scmp.ne.s32.totalorder %s115, %s116
    %p125 = scmp.eq.s32.totalorder %s21, 0
    %p126 = por %p124, %p125
    %p127 = scmp.ne.s32.totalorder %s115, %s116
    %p128 = scmp.eq.s32.totalorder %s22, 1
    %p129 = por %p127, %p128
    %p131 = scmp.ne.s32.totalorder %s116, %s130
    %p132 = scmp.eq.s32.totalorder %s22, 0
    %p133 = por %p131, %p132
    %s135 = sadd.s32 %s134, 1
    %p138 = scmp.eq.s32.totalorder %s16, 1
    %p139 = scmp.ne.s32.totalorder %s134, %s136
    %p140 = scmp.eq.s32.totalorder %s16, 0
    %p141 = por %p139, %p140
    %p142 = scmp.ne.s32.totalorder %s134, %s136
    %p143 = scmp.eq.s32.totalorder %s21, 1
    %p144 = por %p142, %p143
    %p145 = scmp.ne.s32.totalorder %s136, %s137
    %p146 = scmp.eq.s32.totalorder %s21, 0
    %p147 = por %p145, %p146
    %p148 = scmp.ne.s32.totalorder %s136, %s137
    %p149 = scmp.eq.s32.totalorder %s22, 1
    %p150 = por %p148, %p149
    %p152 = scmp.ne.s32.totalorder %s137, %s151
    %p153 = scmp.eq.s32.totalorder %s22, 0
    %p154 = por %p152, %p153
    %s156 = sadd.s32 %s155, 1
    %p159 = scmp.eq.s32.totalorder %s16, 1
    %p160 = scmp.ne.s32.totalorder %s155, %s157
    %p161 = scmp.eq.s32.totalorder %s16, 0
    %p162 = por %p160, %p161
    %p163 = scmp.ne.s32.totalorder %s155, %s157
    %p164 = scmp.eq.s32.totalorder %s21, 1
    %p165 = por %p163, %p164
    %p166 = scmp.ne.s32.totalorder %s157, %s158
    %p167 = scmp.eq.s32.totalorder %s21, 0
    %p168 = por %p166, %p167
    %p169 = scmp.ne.s32.totalorder %s157, %s158
    %p170 = scmp.eq.s32.totalorder %s22, 1
    %p171 = por %p169, %p170
    %p173 = scmp.ne.s32.totalorder %s158, %s172
    %p174 = scmp.eq.s32.totalorder %s22, 0
    %p175 = por %p173, %p174
    %s177 = sadd.s32 %s176, 1
    %p180 = scmp.eq.s32.totalorder %s16, 1
    %p181 = scmp.ne.s32.totalorder %s176, %s178
    %p182 = scmp.eq.s32.totalorder %s16, 0
    %p183 = por %p181, %p182
    %p184 = scmp.ne.s32.totalorder %s176, %s178
    %p185 = scmp.eq.s32.totalorder %s21, 1
    %p186 = por %p184, %p185
    %p187 = scmp.ne.s32.totalorder %s178, %s179
    %p188 = scmp.eq.s32.totalorder %s21, 0
    %p189 = por %p187, %p188
    %p190 = scmp.ne.s32.totalorder %s178, %s179
    %p191 = scmp.eq.s32.totalorder %s22, 1
    %p192 = por %p190, %p191
    %p194 = scmp.ne.s32.totalorder %s179, %s193
    %p195 = scmp.eq.s32.totalorder %s22, 0
    %p196 = por %p194, %p195
    %s198 = sadd.s32 %s197, 1
    %p201 = scmp.eq.s32.totalorder %s16, 1
    %p202 = scmp.ne.s32.totalorder %s197, %s199
    %p203 = scmp.eq.s32.totalorder %s16, 0
    %p204 = por %p202, %p203
    %p205 = scmp.ne.s32.totalorder %s197, %s199
    %p206 = scmp.eq.s32.totalorder %s21, 1
    %p207 = por %p205, %p206
    %p208 = scmp.ne.s32.totalorder %s199, %s200
    %p209 = scmp.eq.s32.totalorder %s21, 0
    %p210 = por %p208, %p209
    %p211 = scmp.ne.s32.totalorder %s199, %s200
    %p212 = scmp.eq.s32.totalorder %s22, 1
    %p213 = por %p211, %p212
    %p215 = scmp.ne.s32.totalorder %s200, %s214
    %p216 = scmp.eq.s32.totalorder %s22, 0
    %p217 = por %p215, %p216
    %s219 = sadd.s32 %s218, 1
    %p222 = scmp.eq.s32.totalorder %s16, 1
    %p223 = scmp.ne.s32.totalorder %s218, %s220
    %p224 = scmp.eq.s32.totalorder %s16, 0
    %p225 = por %p223, %p224
    %p226 = scmp.ne.s32.totalorder %s218, %s220
    %p227 = scmp.eq.s32.totalorder %s21, 1
    %p228 = por %p226, %p227
    %p229 = scmp.ne.s32.totalorder %s220, %s221
    %p230 = scmp.eq.s32.totalorder %s21, 0
    %p231 = por %p229, %p230
    %p232 = scmp.ne.s32.totalorder %s220, %s221
    %p233 = scmp.eq.s32.totalorder %s22, 1
    %p234 = por %p232, %p233
    %p236 = scmp.ne.s32.totalorder %s221, %s235
    %p237 = scmp.eq.s32.totalorder %s22, 0
    %p238 = por %p236, %p237
    %s239 = ssub.s32 %s16, %s23
    %p240 = scmp.eq.s32.totalorder %s239, 0
    %s242 = sadd.s32 %s241, 1
    %s243 = scalar_select %p240, %s241, %s242
    %p246 = pneg %p240
    %p247 = scmp.eq.s32.totalorder %s16, 1
    %p248 = por %p246, %p247
    %p249 = scmp.ne.s32.totalorder %s241, %s244
    %p250 = scmp.eq.s32.totalorder %s16, 0
    %p251 = por %p249, %p250
    %p252 = scmp.ne.s32.totalorder %s241, %s244
    %p253 = scmp.eq.s32.totalorder %s21, 1
    %p254 = por %p252, %p253
    %p255 = scmp.ne.s32.totalorder %s244, %s245
    %p256 = scmp.eq.s32.totalorder %s21, 0
    %p257 = por %p255, %p256
    %p258 = scmp.ne.s32.totalorder %s244, %s245
    %p259 = scmp.eq.s32.totalorder %s22, 1
    %p260 = por %p258, %p259
    %p262 = scmp.ne.s32.totalorder %s245, %s261
    %p263 = scmp.eq.s32.totalorder %s22, 0
    %p264 = por %p262, %p263
    %p265 = scmp.le.s32.totalorder 1, %s16
    %p266 = scmp.lt.s32.totalorder %s16, 3
    %p267 = pnand %p265, %p266
    %p268 = pneg %p267
    // Predicated region
    $region9: #{forward.6} parent=5 // pred_check
      _
    $region10: #{forward.6} parent=5 // pred_check_branch
      %270 = sbr.rel (%p267) target = $region12
    $region11: #{forward.6} parent=5 // pred_region
      %s271 = ssub.s32 %s16, 1
      // Predicated region
      $region13: #{forward.6} parent=11 // pred_check
        %p272 = pneg %p63
      $region14: #{forward.6} parent=11 // pred_check_branch
        %274 = sbr.rel (%p272) target = $region16
      $region15: #{forward.6} parent=11 // pred_region
        _
      $region16: #{forward.6} parent=11 // pred_fallthru
        _
      // Predicated region
      $region17: #{forward.6} parent=11 // pred_check
        %p275 = pneg %p84
      $region18: #{forward.6} parent=11 // pred_check_branch
        %277 = sbr.rel (%p275) target = $region20
      $region19: #{forward.6} parent=11 // pred_region
        _
      $region20: #{forward.6} parent=11 // pred_fallthru
        _
      // Predicated region
      $region21: #{forward.6} parent=11 // pred_check
        %p278 = pneg %p105
      $region22: #{forward.6} parent=11 // pred_check_branch
        %280 = sbr.rel (%p278) target = $region24
      $region23: #{forward.6} parent=11 // pred_region
        _
      $region24: #{forward.6} parent=11 // pred_fallthru
        _
      // Predicated region
      $region25: #{forward.6} parent=11 // pred_check
        %p281 = pneg %p126
      $region26: #{forward.6} parent=11 // pred_check_branch
        %283 = sbr.rel (%p281) target = $region28
      $region27: #{forward.6} parent=11 // pred_region
        _
      $region28: #{forward.6} parent=11 // pred_fallthru
        _
      // Predicated region
      $region29: #{forward.6} parent=11 // pred_check
        %p284 = pneg %p147
      $region30: #{forward.6} parent=11 // pred_check_branch
        %286 = sbr.rel (%p284) target = $region32
      $region31: #{forward.6} parent=11 // pred_region
        _
      $region32: #{forward.6} parent=11 // pred_fallthru
        _
      // Predicated region
      $region33: #{forward.6} parent=11 // pred_check
        %p287 = pneg %p168
      $region34: #{forward.6} parent=11 // pred_check_branch
        %289 = sbr.rel (%p287) target = $region36
      $region35: #{forward.6} parent=11 // pred_region
        _
      $region36: #{forward.6} parent=11 // pred_fallthru
        _
      // Predicated region
      $region37: #{forward.6} parent=11 // pred_check
        %p290 = pneg %p189
      $region38: #{forward.6} parent=11 // pred_check_branch
        %292 = sbr.rel (%p290) target = $region40
      $region39: #{forward.6} parent=11 // pred_region
        _
      $region40: #{forward.6} parent=11 // pred_fallthru
        _
      // Predicated region
      $region41: #{forward.6} parent=11 // pred_check
        %p293 = pneg %p210
      $region42: #{forward.6} parent=11 // pred_check_branch
        %295 = sbr.rel (%p293) target = $region44
      $region43: #{forward.6} parent=11 // pred_region
        _
      $region44: #{forward.6} parent=11 // pred_fallthru
        _
      // Predicated region
      $region45: #{forward.6} parent=11 // pred_check
        %p296 = pneg %p231
      $region46: #{forward.6} parent=11 // pred_check_branch
        %298 = sbr.rel (%p296) target = $region48
      $region47: #{forward.6} parent=11 // pred_region
        _
      $region48: #{forward.6} parent=11 // pred_fallthru
        _
    $region12: #{forward.6} parent=5 // pred_fallthru
      _
    %p299 = scmp.lt.s32.totalorder %s16, 2
    // Predicated region
    $region49: #{forward.6} parent=5 // pred_check
      %p300 = pneg %p299
    $region50: #{forward.6} parent=5 // pred_check_branch
      %302 = sbr.rel (%p300) target = $region52
    $region51: #{forward.6} parent=5 // pred_region
      // Predicated region
      $region53: #{forward.6} parent=51 // pred_check
        %p303 = pneg %p36
      $region54: #{forward.6} parent=51 // pred_check_branch
        %305 = sbr.rel (%p303) target = $region56
      $region55: #{forward.6} parent=51 // pred_region
        %p306 = scmp.lt.s32.totalorder %s16, 1
        %s307 = scalar_select %p306, %s16, 1
        %s308 = smul.addr %s307, 6
        %s309 = smul.addr %s308, 8
        %s310 = scalar_lea.vmem %s0, %s309
      $region56: #{forward.6} parent=51 // pred_fallthru
        _
    $region52: #{forward.6} parent=5 // pred_fallthru
      _
    %p311 = scmp.le.s32.totalorder 1, %s16
    %p312 = scmp.lt.s32.totalorder %s16, 3
    %p313 = pnand %p311, %p312
    %p314 = pneg %p313
    // Predicated region
    $region57: #{forward.6} parent=5 // pred_check
      _
    $region58: #{forward.6} parent=5 // pred_check_branch
      %316 = sbr.rel (%p313) target = $region60
    $region59: #{forward.6} parent=5 // pred_region
      %s317 = ssub.s32 %s16, 1
      %p318 = scmp.lt.s32.totalorder %s21, 1
      %s319 = scalar_select %p318, %s21, 1
      %s320 = smul.addr %s319, 6
      %s321 = smul.addr %s320, 8
      %s322 = scalar_lea.vmem %s0, %s321
      %p323 = pneg %p42
      %p324 = pneg %p39
      %p325 = pneg %p63
      %p326 = pneg %p60
      %p327 = pneg %p84
      %p328 = pneg %p81
      %p329 = pneg %p105
      %p330 = pneg %p102
      %p331 = pneg %p126
      %p332 = pneg %p123
      %p333 = pneg %p147
      %p334 = pneg %p144
      %p335 = pneg %p168
      %p336 = pneg %p165
      %p337 = pneg %p189
      %p338 = pneg %p186
      %p339 = pneg %p210
      %p340 = pneg %p207
      %p341 = pneg %p231
      %p342 = pneg %p228
      %p343 = pneg %p257
      %p344 = pneg %p254
      %p345 = scmp.lt.s32.totalorder %s21, 1
      %s346 = scalar_select %p345, %s21, 1
      %s347 = scalar_lea.vmem %s10, %s346
      %p348 = scmp.lt.s32.totalorder %s21, 1
      %s349 = scalar_select %p348, %s21, 1
      %s350 = smul.addr %s349, 6
      %s351 = smul.addr %s350, 8
      %s352 = scalar_lea.vmem %s0, %s351
      %p353 = scmp.lt.s32.totalorder %s21, 1
      %s354 = scalar_select %p353, %s21, 1
      %s355 = scalar_lea.vmem %s10, %s354
      %v357 = vld [vmem:[%s352] sm:$0xff]
      %v358 = vld [vmem:[%s352 + $0x8] sm:$0xff]
      %v359 = vld [vmem:[%s352 + $0x10] sm:$0xff]
      %v360 = vld [vmem:[%s352 + $0x18] sm:$0xff]
      %v361 = vld [vmem:[%s352 + $0x20] sm:$0xff]
      %v362 = vld [vmem:[%s352 + $0x28] sm:$0xff]
      %v363 = vlaneseq
      %v364 = vand.u32 %v363, 127
      %365 = vset.pattern.permute.xlu0 0
      %366 = vperm.xlu0 %365, %v357
      %v367 = vpop.permute.xlu0 %366
      %368 = vset.pattern.permute.xlu0 0
      %369 = vperm.xlu0 %368, %v358
      %v370 = vpop.permute.xlu0 %369
      %371 = vset.pattern.permute.xlu0 0
      %372 = vperm.xlu0 %371, %v359
      %v373 = vpop.permute.xlu0 %372
      %374 = vset.pattern.permute.xlu0 0
      %375 = vperm.xlu0 %374, %v360
      %v376 = vpop.permute.xlu0 %375
      %377 = vset.pattern.permute.xlu0 0
      %378 = vperm.xlu0 %377, %v361
      %v379 = vpop.permute.xlu0 %378
      %380 = vset.pattern.permute.xlu0 0
      %381 = vperm.xlu0 %380, %v362
      %v382 = vpop.permute.xlu0 %381
      %vm383 = vcmp.eq.s32.totalorder %v364, %v367
      %vm384 = vcmp.eq.s32.totalorder %v364, %v370
      %vm385 = vcmp.eq.s32.totalorder %v364, %v373
      %vm386 = vcmp.eq.s32.totalorder %v364, %v376
      %vm387 = vcmp.eq.s32.totalorder %v364, %v379
      %vm388 = vcmp.eq.s32.totalorder %v364, %v382
      %v389 = vsel %vm383, 1, 0
      %v390 = vsel %vm384, 1, 0
      %v391 = vsel %vm385, 1, 0
      %v392 = vsel %vm386, 1, 0
      %v393 = vsel %vm387, 1, 0
      %v394 = vsel %vm388, 1, 0
      %v395 = vcvt.s32.f32 %v389
      %v396 = vcvt.s32.f32 %v390
      %v397 = vcvt.s32.f32 %v391
      %v398 = vcvt.s32.f32 %v392
      %v399 = vcvt.s32.f32 %v393
      %v400 = vcvt.s32.f32 %v394
      %v401 = vpack.c.bf16 %v396, %v395
      %v402 = vpack.c.bf16 %v398, %v397
      %v403 = vpack.c.bf16 %v400, %v399
      %v404 = vld [vmem:[%s1] sm:$0xf]
      %v405 = vld [vmem:[%s1 + $0x4] sm:$0xf]
      %v406 = vld [vmem:[%s1 + $0x8] sm:$0xf]
      %v407 = vld [vmem:[%s1 + $0xc] sm:$0xf]
      %v408 = vld [vmem:[%s1 + $0x10] sm:$0xf]
      %v409 = vld [vmem:[%s1 + $0x14] sm:$0xf]
      %v410 = vld [vmem:[%s1 + $0x18] sm:$0xf]
      %v411 = vld [vmem:[%s1 + $0x1c] sm:$0xf]
      %v412 = vld [vmem:[%s1 + $0x20] sm:$0x1]
      %v422 = vunpack.c.l.b16 %v404
      %v423 = vunpack.c.l.b16 %v405
      %v424 = vunpack.c.l.b16 %v406
      %v425 = vunpack.c.l.b16 %v407
      %v426 = vunpack.c.l.b16 %v408
      %v427 = vunpack.c.l.b16 %v409
      %v428 = vunpack.c.l.b16 %v410
      %v429 = vunpack.c.l.b16 %v411
      %v430 = vunpack.c.l.b16 %v412
      %v431 = vpack.c.b16 %v423, %v422
      %v432 = vpack.c.b16 %v425, %v424
      %v433 = vpack.c.b16 %v427, %v426
      %v434 = vpack.c.b16 %v429, %v428
      %v435 = vpack.c.b16 %v430, %v430
      %vm440 = vcmask 531456
      %v442 = vsel %vm440, %v401, 0
      %v445 = vsel %vm440, %v402, 0
      %v448 = vsel %vm440, %v403, 0
      %vm450 = vcmask 1040384
      %v451 = vsel 0, 4294967295, 65535
      %v452 = vsel %vm450, %v451, 0
      %v454 = vand.u32 %v435, %v452
      %456 = vmatprep.subr.bf16.mxu0 0
      %457 = vmatpush1.bf16.msra.mxu0 0
      %458 = vmatprep.subr.bf16.mxu0 0
      %459 = vmatpush1.bf16.msra.mxu0 0
      %460 = vmatprep.subr.bf16.mxu0 0
      %461 = vmatpush1.bf16.msra.mxu0 0
      %462 = vmatprep.subr.bf16.mxu0 0
      %463 = vmatpush1.bf16.msra.mxu0 %v454
      %464 = vmatprep.subr.bf16.mxu0 0
      %465 = vmatpush1.bf16.msra.mxu0 %v434
      %466 = vmatprep.subr.bf16.mxu0 0
      %467 = vmatpush1.bf16.msra.mxu0 %v433
      %468 = vmatprep.subr.bf16.mxu0 0
      %469 = vmatpush1.bf16.msra.mxu0 %v432
      %470 = vmatprep.subr.bf16.mxu0 0
      %471 = vmatpush1.bf16.msra.mxu0 %v431
      %472 = vmatprep.subr.bf16.mxu0 0
      %473 = vmatpush2.bf16.msra.mxu0 0
      %474 = vmatprep.subr.bf16.mxu0 0
      %475 = vmatpush2.bf16.msra.mxu0 0
      %476 = vmatprep.subr.bf16.mxu0 0
      %477 = vmatpush2.bf16.msra.mxu0 0
      %478 = vmatprep.subr.bf16.mxu0 0
      %479 = vmatpush2.bf16.msra.mxu0 0
      %480 = vmatprep.subr.bf16.mxu0 0
      %481 = vmatpush2.bf16.msra.mxu0 0
      %482 = vmatprep.subr.bf16.mxu0 0
      %483 = vmatpush2.bf16.msra.mxu0 0
      %484 = vmatprep.subr.bf16.mxu0 0
      %485 = vmatpush2.bf16.msra.mxu0 0
      %486 = vmatprep.subr.bf16.mxu0 0
      %487 = vmatpush2.bf16.msra.mxu0 0
      %488 = vmatprep.mubr.bf16.mxu0 0
      %489 = vmatmul.mubr.bf16.gmra.mxu0 %v442
      %v490 = vpop.f32.mrf.mxu0
      %v491 = vadd.f32 0.0, %v490
      %v492 = vpop.f32.mrf.mxu0
      %v493 = vpop.f32.mrf.mxu0
      %v494 = vadd.f32 0.0, %v493
      %v495 = vpop.f32.mrf.mxu0
      %496 = vmatprep.mubr.bf16.mxu0 0
      %497 = vmatmul.mubr.bf16.gmra.mxu0 %v445
      %v498 = vpop.f32.mrf.mxu0
      %v499 = vadd.f32 0.0, %v498
      %v500 = vpop.f32.mrf.mxu0
      %v501 = vpop.f32.mrf.mxu0
      %v502 = vadd.f32 0.0, %v501
      %v503 = vpop.f32.mrf.mxu0
      %504 = vmatprep.mubr.bf16.mxu0 0
      %505 = vmatmul.mubr.bf16.gmra.mxu0 %v448
      %v506 = vpop.f32.mrf.mxu0
      %v507 = vadd.f32 0.0, %v506
      %v508 = vpop.f32.mrf.mxu0
      %v509 = vpop.f32.mrf.mxu0
      %v510 = vadd.f32 0.0, %v509
      %v511 = vpop.f32.mrf.mxu0
      %512 = vdwg.mxu0
      %v513 = vld [vmem:[%s9] sm:$0x7]
      %vm520 = vcmask 1046528
      %v521 = vrot.slane %v491, 1
      %v522 = vrot.slane %v494, 1
      %v523 = vsel %vm520, %v521, %v522
      %v524 = vrot.slane %v499, 1
      %v525 = vsel %vm520, %v522, %v524
      %v526 = vrot.slane %v502, 1
      %v527 = vsel %vm520, %v524, %v526
      %v528 = vrot.slane %v507, 1
      %v529 = vsel %vm520, %v526, %v528
      %v530 = vrot.slane %v510, 1
      %v531 = vsel %vm520, %v528, %v530
      %vm538 = vcmask 1045504
      %v539 = vrot.slane %v491, 2
      %v540 = vrot.slane %v494, 2
      %v541 = vsel %vm538, %v539, %v540
      %v542 = vrot.slane %v499, 2
      %v543 = vsel %vm538, %v540, %v542
      %v544 = vrot.slane %v502, 2
      %v545 = vsel %vm538, %v542, %v544
      %v546 = vrot.slane %v507, 2
      %v547 = vsel %vm538, %v544, %v546
      %v548 = vrot.slane %v510, 2
      %v549 = vsel %vm538, %v546, %v548
      %vm556 = vcmask 1044480
      %v557 = vrot.slane %v491, 3
      %v558 = vrot.slane %v494, 3
      %v559 = vsel %vm556, %v557, %v558
      %v560 = vrot.slane %v499, 3
      %v561 = vsel %vm556, %v558, %v560
      %v562 = vrot.slane %v502, 3
      %v563 = vsel %vm556, %v560, %v562
      %v564 = vrot.slane %v507, 3
      %v565 = vsel %vm556, %v562, %v564
      %v566 = vrot.slane %v510, 3
      %v567 = vsel %vm556, %v564, %v566
      %v574 = vpack.c.bf16 %v494, %v491
      %v575 = vpack.c.bf16 %v525, %v523
      %v576 = vpack.c.bf16 %v543, %v541
      %v577 = vpack.c.bf16 %v561, %v559
      %v578 = vpack.c.bf16 %v502, %v499
      %v579 = vpack.c.bf16 %v529, %v527
      %v580 = vpack.c.bf16 %v547, %v545
      %v581 = vpack.c.bf16 %v565, %v563
      %v582 = vpack.c.bf16 %v510, %v507
      %v583 = vpack.c.bf16 %v530, %v531
      %v584 = vpack.c.bf16 %v548, %v549
      %v585 = vpack.c.bf16 %v566, %v567
      %v586 = vld [vmem:[%s3] sm:$0xf]
      %v587 = vld [vmem:[%s3 + $0x4] sm:$0xf]
      %v588 = vld [vmem:[%s3 + $0x8] sm:$0xf]
      %v589 = vld [vmem:[%s3 + $0xc] sm:$0xf]
      %v590 = vld [vmem:[%s3 + $0x10] sm:$0xf]
      %v591 = vld [vmem:[%s3 + $0x14] sm:$0xf]
      %v592 = vld [vmem:[%s3 + $0x18] sm:$0xf]
      %v593 = vld [vmem:[%s3 + $0x1c] sm:$0xf]
      %v594 = vld [vmem:[%s3 + $0x20] sm:$0xf]
      %v595 = vld [vmem:[%s3 + $0x24] sm:$0xf]
      %v596 = vld [vmem:[%s3 + $0x28] sm:$0xf]
      %v597 = vld [vmem:[%s3 + $0x2c] sm:$0xf]
      %v598 = vld [vmem:[%s3 + $0x30] sm:$0xf]
      %v599 = vld [vmem:[%s3 + $0x34] sm:$0xf]
      %v600 = vld [vmem:[%s3 + $0x38] sm:$0xf]
      %v601 = vld [vmem:[%s3 + $0x3c] sm:$0xf]
      %v602 = vld [vmem:[%s3 + $0x40] sm:$0xf]
      %v603 = vld [vmem:[%s3 + $0x44] sm:$0xf]
      %v604 = vld [vmem:[%s3 + $0x48] sm:$0xf]
      %v605 = vld [vmem:[%s3 + $0x4c] sm:$0xf]
      %v606 = vld [vmem:[%s3 + $0x50] sm:$0xf]
      %v607 = vld [vmem:[%s3 + $0x54] sm:$0xf]
      %v608 = vld [vmem:[%s3 + $0x58] sm:$0xf]
      %v609 = vld [vmem:[%s3 + $0x5c] sm:$0xf]
      %v610 = vld [vmem:[%s3 + $0x60] sm:$0xf]
      %v611 = vld [vmem:[%s3 + $0x64] sm:$0xf]
      %v612 = vld [vmem:[%s3 + $0x68] sm:$0xf]
      %v613 = vld [vmem:[%s3 + $0x6c] sm:$0xf]
      %v614 = vld [vmem:[%s3 + $0x70] sm:$0xf]
      %v615 = vld [vmem:[%s3 + $0x74] sm:$0xf]
      %v616 = vld [vmem:[%s3 + $0x78] sm:$0xf]
      %v617 = vld [vmem:[%s3 + $0x7c] sm:$0xf]
      %v618 = vld [vmem:[%s3 + $0x80] sm:$0xf]
      %v619 = vld [vmem:[%s3 + $0x84] sm:$0xf]
      %v620 = vld [vmem:[%s3 + $0x88] sm:$0xf]
      %v621 = vld [vmem:[%s3 + $0x8c] sm:$0xf]
      %v622 = vld [vmem:[%s3 + $0x90] sm:$0xf]
      %v623 = vld [vmem:[%s3 + $0x94] sm:$0xf]
      %v624 = vld [vmem:[%s3 + $0x98] sm:$0xf]
      %v625 = vld [vmem:[%s3 + $0x9c] sm:$0xf]
      %v626 = vld [vmem:[%s3 + $0xa0] sm:$0xf]
      %v627 = vld [vmem:[%s3 + $0xa4] sm:$0xf]
      %v628 = vld [vmem:[%s3 + $0xa8] sm:$0xf]
      %v629 = vld [vmem:[%s3 + $0xac] sm:$0xf]
      %v630 = vld [vmem:[%s3 + $0xb0] sm:$0xf]
      %v631 = vld [vmem:[%s3 + $0xb4] sm:$0xf]
      %v632 = vld [vmem:[%s3 + $0xb8] sm:$0xf]
      %v633 = vld [vmem:[%s3 + $0xbc] sm:$0xf]
      %v634 = vld [vmem:[%s3 + $0xc0] sm:$0xf]
      %v635 = vld [vmem:[%s3 + $0xc4] sm:$0xf]
      %v636 = vld [vmem:[%s3 + $0xc8] sm:$0xf]
      %v637 = vld [vmem:[%s3 + $0xcc] sm:$0xf]
      %v638 = vld [vmem:[%s3 + $0xd0] sm:$0xf]
      %v639 = vld [vmem:[%s3 + $0xd4] sm:$0xf]
      %v640 = vld [vmem:[%s3 + $0xd8] sm:$0xf]
      %v641 = vld [vmem:[%s3 + $0xdc] sm:$0xf]
      %v642 = vld [vmem:[%s3 + $0xe0] sm:$0xf]
      %v643 = vld [vmem:[%s3 + $0xe4] sm:$0xf]
      %v644 = vld [vmem:[%s3 + $0xe8] sm:$0xf]
      %v645 = vld [vmem:[%s3 + $0xec] sm:$0xf]
      %v646 = vld [vmem:[%s3 + $0xf0] sm:$0xf]
      %v647 = vld [vmem:[%s3 + $0xf4] sm:$0xf]
      %v648 = vld [vmem:[%s3 + $0xf8] sm:$0xf]
      %v649 = vld [vmem:[%s3 + $0xfc] sm:$0xf]
      %v650 = vld [vmem:[%s4] sm:$0x1]
      %v652 = vlaneseq
      %v653 = vshrl.u32 %v652, 7
      %v654 = vsub.s32 0, %v653
      %v655 = vrot.slane %v650, %v654
      %v721 = vunpack.c.l.b16 %v586
      %v722 = vunpack.c.l.b16 %v587
      %v723 = vunpack.c.l.b16 %v588
      %v724 = vunpack.c.l.b16 %v589
      %v725 = vunpack.c.l.b16 %v590
      %v726 = vunpack.c.l.b16 %v591
      %v727 = vunpack.c.l.b16 %v592
      %v728 = vunpack.c.l.b16 %v593
      %v729 = vunpack.c.l.b16 %v594
      %v730 = vunpack.c.l.b16 %v595
      %v731 = vunpack.c.l.b16 %v596
      %v732 = vunpack.c.l.b16 %v597
      %v733 = vunpack.c.l.b16 %v598
      %v734 = vunpack.c.l.b16 %v599
      %v735 = vunpack.c.l.b16 %v600
      %v736 = vunpack.c.l.b16 %v601
      %v737 = vunpack.c.l.b16 %v602
      %v738 = vunpack.c.l.b16 %v603
      %v739 = vunpack.c.l.b16 %v604
      %v740 = vunpack.c.l.b16 %v605
      %v741 = vunpack.c.l.b16 %v606
      %v742 = vunpack.c.l.b16 %v607
      %v743 = vunpack.c.l.b16 %v608
      %v744 = vunpack.c.l.b16 %v609
      %v745 = vunpack.c.l.b16 %v610
      %v746 = vunpack.c.l.b16 %v611
      %v747 = vunpack.c.l.b16 %v612
      %v748 = vunpack.c.l.b16 %v613
      %v749 = vunpack.c.l.b16 %v614
      %v750 = vunpack.c.l.b16 %v615
      %v751 = vunpack.c.l.b16 %v616
      %v752 = vunpack.c.l.b16 %v617
      %v753 = vunpack.c.l.b16 %v618
      %v754 = vunpack.c.l.b16 %v619
      %v755 = vunpack.c.l.b16 %v620
      %v756 = vunpack.c.l.b16 %v621
      %v757 = vunpack.c.l.b16 %v622
      %v758 = vunpack.c.l.b16 %v623
      %v759 = vunpack.c.l.b16 %v624
      %v760 = vunpack.c.l.b16 %v625
      %v761 = vunpack.c.l.b16 %v626
      %v762 = vunpack.c.l.b16 %v627
      %v763 = vunpack.c.l.b16 %v628
      %v764 = vunpack.c.l.b16 %v629
      %v765 = vunpack.c.l.b16 %v630
      %v766 = vunpack.c.l.b16 %v631
      %v767 = vunpack.c.l.b16 %v632
      %v768 = vunpack.c.l.b16 %v633
      %v769 = vunpack.c.l.b16 %v634
      %v770 = vunpack.c.l.b16 %v635
      %v771 = vunpack.c.l.b16 %v636
      %v772 = vunpack.c.l.b16 %v637
      %v773 = vunpack.c.l.b16 %v638
      %v774 = vunpack.c.l.b16 %v639
      %v775 = vunpack.c.l.b16 %v640
      %v776 = vunpack.c.l.b16 %v641
      %v777 = vunpack.c.l.b16 %v642
      %v778 = vunpack.c.l.b16 %v643
      %v779 = vunpack.c.l.b16 %v644
      %v780 = vunpack.c.l.b16 %v645
      %v781 = vunpack.c.l.b16 %v646
      %v782 = vunpack.c.l.b16 %v647
      %v783 = vunpack.c.l.b16 %v648
      %v784 = vunpack.c.l.b16 %v649
      %v785 = vpack.c.b16 %v722, %v721
      %v786 = vpack.c.b16 %v724, %v723
      %v787 = vpack.c.b16 %v726, %v725
      %v788 = vpack.c.b16 %v728, %v727
      %v789 = vpack.c.b16 %v730, %v729
      %v790 = vpack.c.b16 %v732, %v731
      %v791 = vpack.c.b16 %v734, %v733
      %v792 = vpack.c.b16 %v736, %v735
      %v793 = vpack.c.b16 %v738, %v737
      %v794 = vpack.c.b16 %v740, %v739
      %v795 = vpack.c.b16 %v742, %v741
      %v796 = vpack.c.b16 %v744, %v743
      %v797 = vpack.c.b16 %v746, %v745
      %v798 = vpack.c.b16 %v748, %v747
      %v799 = vpack.c.b16 %v750, %v749
      %v800 = vpack.c.b16 %v752, %v751
      %v801 = vpack.c.b16 %v754, %v753
      %v802 = vpack.c.b16 %v756, %v755
      %v803 = vpack.c.b16 %v758, %v757
      %v804 = vpack.c.b16 %v760, %v759
      %v805 = vpack.c.b16 %v762, %v761
      %v806 = vpack.c.b16 %v764, %v763
      %v807 = vpack.c.b16 %v766, %v765
      %v808 = vpack.c.b16 %v768, %v767
      %v809 = vpack.c.b16 %v770, %v769
      %v810 = vpack.c.b16 %v772, %v771
      %v811 = vpack.c.b16 %v774, %v773
      %v812 = vpack.c.b16 %v776, %v775
      %v813 = vpack.c.b16 %v778, %v777
      %v814 = vpack.c.b16 %v780, %v779
      %v815 = vpack.c.b16 %v782, %v781
      %v816 = vpack.c.b16 %v784, %v783
      %849 = vmatprep.subr.bf16.mxu0 0
      %850 = vmatpush1.bf16.msra.mxu0 %v792
      %851 = vmatprep.subr.bf16.mxu0 0
      %852 = vmatpush1.bf16.msra.mxu0 %v791
      %853 = vmatprep.subr.bf16.mxu0 0
      %854 = vmatpush1.bf16.msra.mxu0 %v790
      %855 = vmatprep.subr.bf16.mxu0 0
      %856 = vmatpush1.bf16.msra.mxu0 %v789
      %857 = vmatprep.subr.bf16.mxu0 0
      %858 = vmatpush1.bf16.msra.mxu0 %v788
      %859 = vmatprep.subr.bf16.mxu0 0
      %860 = vmatpush1.bf16.msra.mxu0 %v787
      %861 = vmatprep.subr.bf16.mxu0 0
      %862 = vmatpush1.bf16.msra.mxu0 %v786
      %863 = vmatprep.subr.bf16.mxu0 0
      %864 = vmatpush1.bf16.msra.mxu0 %v785
      %865 = vmatprep.subr.bf16.mxu0 0
      %866 = vmatpush2.bf16.msra.mxu0 %v800
      %867 = vmatprep.subr.bf16.mxu0 0
      %868 = vmatpush2.bf16.msra.mxu0 %v799
      %869 = vmatprep.subr.bf16.mxu0 0
      %870 = vmatpush2.bf16.msra.mxu0 %v798
      %871 = vmatprep.subr.bf16.mxu0 0
      %872 = vmatpush2.bf16.msra.mxu0 %v797
      %873 = vmatprep.subr.bf16.mxu0 0
      %874 = vmatpush2.bf16.msra.mxu0 %v796
      %875 = vmatprep.subr.bf16.mxu0 0
      %876 = vmatpush2.bf16.msra.mxu0 %v795
      %877 = vmatprep.subr.bf16.mxu0 0
      %878 = vmatpush2.bf16.msra.mxu0 %v794
      %879 = vmatprep.subr.bf16.mxu0 0
      %880 = vmatpush2.bf16.msra.mxu0 %v793
      %881 = vmatprep.mubr.bf16.mxu0 %v575
      %882 = vmatmul.mubr.bf16.gmra.mxu0 %v574
      %v883 = vpop.f32.mrf.mxu0
      %v884 = vadd.f32 %v655, %v883
      %v885 = vpop.f32.mrf.mxu0
      %v886 = vpop.f32.mrf.mxu0
      %v887 = vadd.f32 %v655, %v886
      %v888 = vpop.f32.mrf.mxu0
      %889 = vmatprep.mubr.bf16.mxu0 %v579
      %890 = vmatmul.mubr.bf16.gmra.mxu0 %v578
      %v891 = vpop.f32.mrf.mxu0
      %v892 = vadd.f32 %v655, %v891
      %v893 = vpop.f32.mrf.mxu0
      %v894 = vpop.f32.mrf.mxu0
      %v895 = vadd.f32 %v655, %v894
      %v896 = vpop.f32.mrf.mxu0
      %897 = vmatprep.mubr.bf16.mxu0 %v583
      %898 = vmatmul.mubr.bf16.gmra.mxu0 %v582
      %v899 = vpop.f32.mrf.mxu0
      %v900 = vadd.f32 %v655, %v899
      %v901 = vpop.f32.mrf.mxu0
      %v902 = vpop.f32.mrf.mxu0
      %v903 = vadd.f32 %v655, %v902
      %v904 = vpop.f32.mrf.mxu0
      %905 = vdwg.mxu0
      %906 = vmatprep.subr.bf16.mxu0 0
      %907 = vmatpush1.bf16.msra.mxu0 %v808
      %908 = vmatprep.subr.bf16.mxu0 0
      %909 = vmatpush1.bf16.msra.mxu0 %v807
      %910 = vmatprep.subr.bf16.mxu0 0
      %911 = vmatpush1.bf16.msra.mxu0 %v806
      %912 = vmatprep.subr.bf16.mxu0 0
      %913 = vmatpush1.bf16.msra.mxu0 %v805
      %914 = vmatprep.subr.bf16.mxu0 0
      %915 = vmatpush1.bf16.msra.mxu0 %v804
      %916 = vmatprep.subr.bf16.mxu0 0
      %917 = vmatpush1.bf16.msra.mxu0 %v803
      %918 = vmatprep.subr.bf16.mxu0 0
      %919 = vmatpush1.bf16.msra.mxu0 %v802
      %920 = vmatprep.subr.bf16.mxu0 0
      %921 = vmatpush1.bf16.msra.mxu0 %v801
      %922 = vmatprep.subr.bf16.mxu0 0
      %923 = vmatpush2.bf16.msra.mxu0 %v816
      %924 = vmatprep.subr.bf16.mxu0 0
      %925 = vmatpush2.bf16.msra.mxu0 %v815
      %926 = vmatprep.subr.bf16.mxu0 0
      %927 = vmatpush2.bf16.msra.mxu0 %v814
      %928 = vmatprep.subr.bf16.mxu0 0
      %929 = vmatpush2.bf16.msra.mxu0 %v813
      %930 = vmatprep.subr.bf16.mxu0 0
      %931 = vmatpush2.bf16.msra.mxu0 %v812
      %932 = vmatprep.subr.bf16.mxu0 0
      %933 = vmatpush2.bf16.msra.mxu0 %v811
      %934 = vmatprep.subr.bf16.mxu0 0
      %935 = vmatpush2.bf16.msra.mxu0 %v810
      %936 = vmatprep.subr.bf16.mxu0 0
      %937 = vmatpush2.bf16.msra.mxu0 %v809
      %938 = vmatprep.mubr.bf16.mxu0 %v577
      %939 = vmatmul.mubr.bf16.gmra.mxu0 %v576
      %v940 = vpop.f32.mrf.mxu0
      %v941 = vadd.f32 %v884, %v940
      %v942 = vpop.f32.mrf.mxu0
      %v943 = vpop.f32.mrf.mxu0
      %v944 = vadd.f32 %v887, %v943
      %v945 = vpop.f32.mrf.mxu0
      %946 = vmatprep.mubr.bf16.mxu0 %v581
      %947 = vmatmul.mubr.bf16.gmra.mxu0 %v580
      %v948 = vpop.f32.mrf.mxu0
      %v949 = vadd.f32 %v892, %v948
      %v950 = vpop.f32.mrf.mxu0
      %v951 = vpop.f32.mrf.mxu0
      %v952 = vadd.f32 %v895, %v951
      %v953 = vpop.f32.mrf.mxu0
      %954 = vmatprep.mubr.bf16.mxu0 %v585
      %955 = vmatmul.mubr.bf16.gmra.mxu0 %v584
      %v956 = vpop.f32.mrf.mxu0
      %v957 = vadd.f32 %v900, %v956
      %v958 = vpop.f32.mrf.mxu0
      %v959 = vpop.f32.mrf.mxu0
      %v960 = vadd.f32 %v903, %v959
      %v961 = vpop.f32.mrf.mxu0
      %962 = vdwg.mxu0
      %vm963 = vcmp.ge.f32.partialorder %v941, 0.0
      %vm964 = vcmp.ge.f32.partialorder %v944, 0.0
      %vm965 = vcmp.ge.f32.partialorder %v949, 0.0
      %vm966 = vcmp.ge.f32.partialorder %v952, 0.0
      %vm967 = vcmp.ge.f32.partialorder %v957, 0.0
      %vm968 = vcmp.ge.f32.partialorder %v960, 0.0
      %v969 = vlaneseq
      %v970 = vshrl.u32 %v969, 7
      %v971 = vsub.s32 0, %v970
      %v972 = vrot.slane %v513, %v971
      %v973 = vmul.f32 %v941, %v972
      %v974 = vmul.f32 %v944, %v972
      %v975 = vmul.f32 %v949, %v972
      %v976 = vmul.f32 %v952, %v972
      %v977 = vmul.f32 %v957, %v972
      %v978 = vmul.f32 %v960, %v972
      %v979 = vsel %vm963, %v941, %v973
      %v980 = vsel %vm964, %v944, %v974
      %v981 = vsel %vm965, %v949, %v975
      %v982 = vsel %vm966, %v952, %v976
      %v983 = vsel %vm967, %v957, %v977
      %v984 = vsel %vm968, %v960, %v978
      %v985 = vlaneseq
      %v986 = vshrl.u32 %v985, 7
      %v987 = vadd.s32 %v986, 8
      %v988 = vadd.s32 %v986, 16
      %v989 = vmul.u32 %v986, 2
      %v990 = vmul.u32 %v987, 2
      %v991 = vmul.u32 %v988, 2
      %vm992 = vcmp.eq.s32.totalorder %v364, %v989
      %vm993 = vcmp.eq.s32.totalorder %v364, %v990
      %vm994 = vcmp.eq.s32.totalorder %v364, %v991
      %v995 = vsel %vm992, 1, 0
      %v996 = vsel %vm993, 1, 0
      %v997 = vsel %vm994, 1, 0
      %v998 = vcvt.s32.f32 %v995
      %v999 = vcvt.s32.f32 %v996
      %v1000 = vcvt.s32.f32 %v997
      %v1001 = vadd.s32 %v989, 1
      %v1002 = vadd.s32 %v990, 1
      %v1003 = vadd.s32 %v991, 1
      %vm1004 = vcmp.eq.s32.totalorder %v364, %v1001
      %vm1005 = vcmp.eq.s32.totalorder %v364, %v1002
      %vm1006 = vcmp.eq.s32.totalorder %v364, %v1003
      %v1007 = vsel %vm1004, 1, 0
      %v1008 = vsel %vm1005, 1, 0
      %v1009 = vsel %vm1006, 1, 0
      %v1010 = vcvt.s32.f32 %v1007
      %v1011 = vcvt.s32.f32 %v1008
      %v1012 = vcvt.s32.f32 %v1009
      %vm1013 = vcmask 367616
      %v1015 = vsel %vm1013, %v998, 0
      %v1018 = vsel %vm1013, %v999, 0
      %v1021 = vsel %vm1013, %v1000, 0
      %v1024 = vsel %vm556, %v984, 0
      %1026 = vmatprep.subr.mxu0 0.0
      %1027 = vmatpush1.msra.mxu0 0.0
      %1028 = vmatprep.subr.mxu0 0.0
      %1029 = vmatpush1.msra.mxu0 0.0
      %1030 = vmatprep.subr.mxu0 0.0
      %1031 = vmatpush1.msra.mxu0 0.0
      %1032 = vmatprep.subr.mxu0 0.0
      %1033 = vmatpush1.msra.mxu0 0.0
      %1034 = vmatprep.subr.mxu0 0.0
      %1035 = vmatpush1.msra.mxu0 0.0
      %1036 = vmatprep.subr.mxu0 0.0
      %1037 = vmatpush1.msra.mxu0 0.0
      %1038 = vmatprep.subr.mxu0 0.0
      %1039 = vmatpush1.msra.mxu0 0.0
      %1040 = vmatprep.subr.mxu0 0.0
      %1041 = vmatpush1.msra.mxu0 0.0
      %1042 = vmatprep.subr.mxu0 0.0
      %1043 = vmatpush1.msra.mxu0 0.0
      %1044 = vmatprep.subr.mxu0 0.0
      %1045 = vmatpush1.msra.mxu0 0.0
      %1046 = vmatprep.subr.mxu0 0.0
      %1047 = vmatpush1.msra.mxu0 %v1024
      %1048 = vmatprep.subr.mxu0 0.0
      %1049 = vmatpush1.msra.mxu0 %v983
      %1050 = vmatprep.subr.mxu0 0.0
      %1051 = vmatpush1.msra.mxu0 %v982
      %1052 = vmatprep.subr.mxu0 0.0
      %1053 = vmatpush1.msra.mxu0 %v981
      %1054 = vmatprep.subr.mxu0 0.0
      %1055 = vmatpush1.msra.mxu0 %v980
      %1056 = vmatprep.subr.mxu0 0.0
      %1057 = vmatpush1.msra.mxu0 %v979
      %1058 = vmatprep.subr.mxu0 0.0
      %1059 = vmatpush2.msra.mxu0 0.0
      %1060 = vmatprep.subr.mxu0 0.0
      %1061 = vmatpush2.msra.mxu0 0.0
      %1062 = vmatprep.subr.mxu0 0.0
      %1063 = vmatpush2.msra.mxu0 0.0
      %1064 = vmatprep.subr.mxu0 0.0
      %1065 = vmatpush2.msra.mxu0 0.0
      %1066 = vmatprep.subr.mxu0 0.0
      %1067 = vmatpush2.msra.mxu0 0.0
      %1068 = vmatprep.subr.mxu0 0.0
      %1069 = vmatpush2.msra.mxu0 0.0
      %1070 = vmatprep.subr.mxu0 0.0
      %1071 = vmatpush2.msra.mxu0 0.0
      %1072 = vmatprep.subr.mxu0 0.0
      %1073 = vmatpush2.msra.mxu0 0.0
      %1074 = vmatprep.subr.mxu0 0.0
      %1075 = vmatpush2.msra.mxu0 0.0
      %1076 = vmatprep.subr.mxu0 0.0
      %1077 = vmatpush2.msra.mxu0 0.0
      %1078 = vmatprep.subr.mxu0 0.0
      %1079 = vmatpush2.msra.mxu0 0.0
      %1080 = vmatprep.subr.mxu0 0.0
      %1081 = vmatpush2.msra.mxu0 0.0
      %1082 = vmatprep.subr.mxu0 0.0
      %1083 = vmatpush2.msra.mxu0 0.0
      %1084 = vmatprep.subr.mxu0 0.0
      %1085 = vmatpush2.msra.mxu0 0.0
      %1086 = vmatprep.subr.mxu0 0.0
      %1087 = vmatpush2.msra.mxu0 0.0
      %1088 = vmatprep.subr.mxu0 0.0
      %1089 = vmatpush2.msra.mxu0 0.0
      %1090 = vmatprep.mubr.f32.mxu0 0.0
      %1091 = vmatmul.mubr.f32.gmra.mxu0 %v1015
      %v1092 = vpop.f32.mrf.mxu0
      %v1093 = vadd.f32 0.0, %v1092
      %v1094 = vpop.f32.mrf.mxu0
      %1095 = vmatprep.mubr.f32.mxu0 0.0
      %1096 = vmatmul.mubr.f32.gmra.mxu0 %v1018
      %v1097 = vpop.f32.mrf.mxu0
      %v1098 = vadd.f32 0.0, %v1097
      %v1099 = vpop.f32.mrf.mxu0
      %1100 = vmatprep.mubr.f32.mxu0 0.0
      %1101 = vmatmul.mubr.f32.gmra.mxu0 %v1021
      %v1102 = vpop.f32.mrf.mxu0
      %v1103 = vadd.f32 0.0, %v1102
      %v1104 = vpop.f32.mrf.mxu0
      %1105 = vdwg.mxu0
      %v1107 = vsel %vm1013, %v1010, 0
      %v1110 = vsel %vm1013, %v1011, 0
      %v1113 = vsel %vm1013, %v1012, 0
      %1115 = vmatprep.subr.mxu0 0.0
      %1116 = vmatpush1.msra.mxu0 0.0
      %1117 = vmatprep.subr.mxu0 0.0
      %1118 = vmatpush1.msra.mxu0 0.0
      %1119 = vmatprep.subr.mxu0 0.0
      %1120 = vmatpush1.msra.mxu0 0.0
      %1121 = vmatprep.subr.mxu0 0.0
      %1122 = vmatpush1.msra.mxu0 0.0
      %1123 = vmatprep.subr.mxu0 0.0
      %1124 = vmatpush1.msra.mxu0 0.0
      %1125 = vmatprep.subr.mxu0 0.0
      %1126 = vmatpush1.msra.mxu0 0.0
      %1127 = vmatprep.subr.mxu0 0.0
      %1128 = vmatpush1.msra.mxu0 0.0
      %1129 = vmatprep.subr.mxu0 0.0
      %1130 = vmatpush1.msra.mxu0 0.0
      %1131 = vmatprep.subr.mxu0 0.0
      %1132 = vmatpush1.msra.mxu0 0.0
      %1133 = vmatprep.subr.mxu0 0.0
      %1134 = vmatpush1.msra.mxu0 0.0
      %1135 = vmatprep.subr.mxu0 0.0
      %1136 = vmatpush1.msra.mxu0 %v1024
      %1137 = vmatprep.subr.mxu0 0.0
      %1138 = vmatpush1.msra.mxu0 %v983
      %1139 = vmatprep.subr.mxu0 0.0
      %1140 = vmatpush1.msra.mxu0 %v982
      %1141 = vmatprep.subr.mxu0 0.0
      %1142 = vmatpush1.msra.mxu0 %v981
      %1143 = vmatprep.subr.mxu0 0.0
      %1144 = vmatpush1.msra.mxu0 %v980
      %1145 = vmatprep.subr.mxu0 0.0
      %1146 = vmatpush1.msra.mxu0 %v979
      %1147 = vmatprep.subr.mxu0 0.0
      %1148 = vmatpush2.msra.mxu0 0.0
      %1149 = vmatprep.subr.mxu0 0.0
      %1150 = vmatpush2.msra.mxu0 0.0
      %1151 = vmatprep.subr.mxu0 0.0
      %1152 = vmatpush2.msra.mxu0 0.0
      %1153 = vmatprep.subr.mxu0 0.0
      %1154 = vmatpush2.msra.mxu0 0.0
      %1155 = vmatprep.subr.mxu0 0.0
      %1156 = vmatpush2.msra.mxu0 0.0
      %1157 = vmatprep.subr.mxu0 0.0
      %1158 = vmatpush2.msra.mxu0 0.0
      %1159 = vmatprep.subr.mxu0 0.0
      %1160 = vmatpush2.msra.mxu0 0.0
      %1161 = vmatprep.subr.mxu0 0.0
      %1162 = vmatpush2.msra.mxu0 0.0
      %1163 = vmatprep.subr.mxu0 0.0
      %1164 = vmatpush2.msra.mxu0 0.0
      %1165 = vmatprep.subr.mxu0 0.0
      %1166 = vmatpush2.msra.mxu0 0.0
      %1167 = vmatprep.subr.mxu0 0.0
      %1168 = vmatpush2.msra.mxu0 0.0
      %1169 = vmatprep.subr.mxu0 0.0
      %1170 = vmatpush2.msra.mxu0 0.0
      %1171 = vmatprep.subr.mxu0 0.0
      %1172 = vmatpush2.msra.mxu0 0.0
      %1173 = vmatprep.subr.mxu0 0.0
      %1174 = vmatpush2.msra.mxu0 0.0
      %1175 = vmatprep.subr.mxu0 0.0
      %1176 = vmatpush2.msra.mxu0 0.0
      %1177 = vmatprep.subr.mxu0 0.0
      %1178 = vmatpush2.msra.mxu0 0.0
      %1179 = vmatprep.mubr.f32.mxu0 0.0
      %1180 = vmatmul.mubr.f32.gmra.mxu0 %v1107
      %v1181 = vpop.f32.mrf.mxu0
      %v1182 = vadd.f32 0.0, %v1181
      %v1183 = vpop.f32.mrf.mxu0
      %1184 = vmatprep.mubr.f32.mxu0 0.0
      %1185 = vmatmul.mubr.f32.gmra.mxu0 %v1110
      %v1186 = vpop.f32.mrf.mxu0
      %v1187 = vadd.f32 0.0, %v1186
      %v1188 = vpop.f32.mrf.mxu0
      %1189 = vmatprep.mubr.f32.mxu0 0.0
      %1190 = vmatmul.mubr.f32.gmra.mxu0 %v1113
      %v1191 = vpop.f32.mrf.mxu0
      %v1192 = vadd.f32 0.0, %v1191
      %v1193 = vpop.f32.mrf.mxu0
      %1194 = vdwg.mxu0
      %v1195 = vmax.f32 %v1093, %v1182
      %v1196 = vmax.f32 %v1098, %v1187
      %v1197 = vmax.f32 %v1103, %v1192
      %v1201 = vrot.slane %v1195, 1
      %v1202 = vrot.slane %v1196, 1
      %v1203 = vsel %vm520, %v1201, %v1202
      %v1204 = vrot.slane %v1197, 1
      %v1205 = vsel %vm520, %v1202, %v1204
      %v1209 = vrot.slane %v1195, 2
      %v1210 = vrot.slane %v1196, 2
      %v1211 = vsel %vm538, %v1209, %v1210
      %v1212 = vrot.slane %v1197, 2
      %v1213 = vsel %vm538, %v1210, %v1212
      %v1217 = vrot.slane %v1195, 3
      %v1218 = vrot.slane %v1196, 3
      %v1219 = vsel %vm556, %v1217, %v1218
      %v1220 = vrot.slane %v1197, 3
      %v1221 = vsel %vm556, %v1218, %v1220
      %vm1225 = vcmask 1043456
      %v1226 = vrot.slane %v1195, 4
      %v1227 = vrot.slane %v1196, 4
      %v1228 = vsel %vm1225, %v1226, %v1227
      %v1229 = vrot.slane %v1197, 4
      %v1230 = vsel %vm1225, %v1227, %v1229
      %vm1234 = vcmask 1042432
      %v1235 = vrot.slane %v1195, 5
      %v1236 = vrot.slane %v1196, 5
      %v1237 = vsel %vm1234, %v1235, %v1236
      %v1238 = vrot.slane %v1197, 5
      %v1239 = vsel %vm1234, %v1236, %v1238
      %v1243 = vpack.c.bf16 %v1196, %v1195
      %v1244 = vpack.c.bf16 %v1205, %v1203
      %v1245 = vpack.c.bf16 %v1213, %v1211
      %v1246 = vpack.c.bf16 %v1221, %v1219
      %v1247 = vpack.c.bf16 %v1230, %v1228
      %v1248 = vpack.c.bf16 %v1239, %v1237
      %v1249 = vpack.c.bf16 %v1197, %v1197
      %v1250 = vpack.c.bf16 %v1204, %v1204
      %v1251 = vpack.c.bf16 %v1212, %v1212
      %v1252 = vpack.c.bf16 %v1220, %v1220
      %v1253 = vpack.c.bf16 %v1229, %v1229
      %v1254 = vpack.c.bf16 %v1238, %v1238
      %v1255 = vld [vmem:[%s5] sm:$0xf]
      %v1256 = vld [vmem:[%s5 + $0x4] sm:$0xf]
      %v1257 = vld [vmem:[%s5 + $0x8] sm:$0xf]
      %v1258 = vld [vmem:[%s5 + $0xc] sm:$0xf]
      %v1259 = vld [vmem:[%s5 + $0x10] sm:$0xf]
      %v1260 = vld [vmem:[%s5 + $0x14] sm:$0xf]
      %v1261 = vld [vmem:[%s5 + $0x18] sm:$0xf]
      %v1262 = vld [vmem:[%s5 + $0x1c] sm:$0xf]
      %v1263 = vld [vmem:[%s5 + $0x20] sm:$0xf]
      %v1264 = vld [vmem:[%s5 + $0x24] sm:$0xf]
      %v1265 = vld [vmem:[%s5 + $0x28] sm:$0xf]
      %v1266 = vld [vmem:[%s5 + $0x2c] sm:$0xf]
      %v1267 = vld [vmem:[%s5 + $0x30] sm:$0xf]
      %v1268 = vld [vmem:[%s5 + $0x34] sm:$0xf]
      %v1269 = vld [vmem:[%s5 + $0x38] sm:$0xf]
      %v1270 = vld [vmem:[%s5 + $0x3c] sm:$0xf]
      %v1271 = vld [vmem:[%s5 + $0x40] sm:$0xf]
      %v1272 = vld [vmem:[%s5 + $0x44] sm:$0xf]
      %v1273 = vld [vmem:[%s5 + $0x48] sm:$0xf]
      %v1274 = vld [vmem:[%s5 + $0x4c] sm:$0xf]
      %v1275 = vld [vmem:[%s5 + $0x50] sm:$0xf]
      %v1276 = vld [vmem:[%s5 + $0x54] sm:$0xf]
      %v1277 = vld [vmem:[%s5 + $0x58] sm:$0xf]
      %v1278 = vld [vmem:[%s5 + $0x5c] sm:$0xf]
      %v1279 = vld [vmem:[%s5 + $0x60] sm:$0xf]
      %v1280 = vld [vmem:[%s5 + $0x64] sm:$0xf]
      %v1281 = vld [vmem:[%s5 + $0x68] sm:$0xf]
      %v1282 = vld [vmem:[%s5 + $0x6c] sm:$0xf]
      %v1283 = vld [vmem:[%s5 + $0x70] sm:$0xf]
      %v1284 = vld [vmem:[%s5 + $0x74] sm:$0xf]
      %v1285 = vld [vmem:[%s5 + $0x78] sm:$0xf]
      %v1286 = vld [vmem:[%s5 + $0x7c] sm:$0xf]
      %v1287 = vld [vmem:[%s5 + $0x80] sm:$0xf]
      %v1288 = vld [vmem:[%s5 + $0x84] sm:$0xf]
      %v1289 = vld [vmem:[%s5 + $0x88] sm:$0xf]
      %v1290 = vld [vmem:[%s5 + $0x8c] sm:$0xf]
      %v1291 = vld [vmem:[%s5 + $0x90] sm:$0xf]
      %v1292 = vld [vmem:[%s5 + $0x94] sm:$0xf]
      %v1293 = vld [vmem:[%s5 + $0x98] sm:$0xf]
      %v1294 = vld [vmem:[%s5 + $0x9c] sm:$0xf]
      %v1295 = vld [vmem:[%s5 + $0xa0] sm:$0xf]
      %v1296 = vld [vmem:[%s5 + $0xa4] sm:$0xf]
      %v1297 = vld [vmem:[%s5 + $0xa8] sm:$0xf]
      %v1298 = vld [vmem:[%s5 + $0xac] sm:$0xf]
      %v1299 = vld [vmem:[%s5 + $0xb0] sm:$0xf]
      %v1300 = vld [vmem:[%s5 + $0xb4] sm:$0xf]
      %v1301 = vld [vmem:[%s5 + $0xb8] sm:$0xf]
      %v1302 = vld [vmem:[%s5 + $0xbc] sm:$0xf]
      %v1303 = vld [vmem:[%s5 + $0xc0] sm:$0xf]
      %v1304 = vld [vmem:[%s5 + $0xc4] sm:$0xf]
      %v1305 = vld [vmem:[%s5 + $0xc8] sm:$0xf]
      %v1306 = vld [vmem:[%s5 + $0xcc] sm:$0xf]
      %v1307 = vld [vmem:[%s5 + $0xd0] sm:$0xf]
      %v1308 = vld [vmem:[%s5 + $0xd4] sm:$0xf]
      %v1309 = vld [vmem:[%s5 + $0xd8] sm:$0xf]
      %v1310 = vld [vmem:[%s5 + $0xdc] sm:$0xf]
      %v1311 = vld [vmem:[%s5 + $0xe0] sm:$0xf]
      %v1312 = vld [vmem:[%s5 + $0xe4] sm:$0xf]
      %v1313 = vld [vmem:[%s5 + $0xe8] sm:$0xf]
      %v1314 = vld [vmem:[%s5 + $0xec] sm:$0xf]
      %v1315 = vld [vmem:[%s5 + $0xf0] sm:$0xf]
      %v1316 = vld [vmem:[%s5 + $0xf4] sm:$0xf]
      %v1317 = vld [vmem:[%s5 + $0xf8] sm:$0xf]
      %v1318 = vld [vmem:[%s5 + $0xfc] sm:$0xf]
      %v1319 = vld [vmem:[%s5 + $0x100] sm:$0xf]
      %v1320 = vld [vmem:[%s5 + $0x104] sm:$0xf]
      %v1321 = vld [vmem:[%s5 + $0x108] sm:$0xf]
      %v1322 = vld [vmem:[%s5 + $0x10c] sm:$0xf]
      %v1323 = vld [vmem:[%s5 + $0x110] sm:$0xf]
      %v1324 = vld [vmem:[%s5 + $0x114] sm:$0xf]
      %v1325 = vld [vmem:[%s5 + $0x118] sm:$0xf]
      %v1326 = vld [vmem:[%s5 + $0x11c] sm:$0xf]
      %v1327 = vld [vmem:[%s5 + $0x120] sm:$0xf]
      %v1328 = vld [vmem:[%s5 + $0x124] sm:$0xf]
      %v1329 = vld [vmem:[%s5 + $0x128] sm:$0xf]
      %v1330 = vld [vmem:[%s5 + $0x12c] sm:$0xf]
      %v1331 = vld [vmem:[%s5 + $0x130] sm:$0xf]
      %v1332 = vld [vmem:[%s5 + $0x134] sm:$0xf]
      %v1333 = vld [vmem:[%s5 + $0x138] sm:$0xf]
      %v1334 = vld [vmem:[%s5 + $0x13c] sm:$0xf]
      %v1335 = vld [vmem:[%s5 + $0x140] sm:$0xf]
      %v1336 = vld [vmem:[%s5 + $0x144] sm:$0xf]
      %v1337 = vld [vmem:[%s5 + $0x148] sm:$0xf]
      %v1338 = vld [vmem:[%s5 + $0x14c] sm:$0xf]
      %v1339 = vld [vmem:[%s5 + $0x150] sm:$0xf]
      %v1340 = vld [vmem:[%s5 + $0x154] sm:$0xf]
      %v1341 = vld [vmem:[%s5 + $0x158] sm:$0xf]
      %v1342 = vld [vmem:[%s5 + $0x15c] sm:$0xf]
      %v1343 = vld [vmem:[%s5 + $0x160] sm:$0xf]
      %v1344 = vld [vmem:[%s5 + $0x164] sm:$0xf]
      %v1345 = vld [vmem:[%s5 + $0x168] sm:$0xf]
      %v1346 = vld [vmem:[%s5 + $0x16c] sm:$0xf]
      %v1347 = vld [vmem:[%s5 + $0x170] sm:$0xf]
      %v1348 = vld [vmem:[%s5 + $0x174] sm:$0xf]
      %v1349 = vld [vmem:[%s5 + $0x178] sm:$0xf]
      %v1350 = vld [vmem:[%s5 + $0x17c] sm:$0xf]
      %v1351 = vld [vmem:[%s6] sm:$0x1]
      %v1353 = vlaneseq
      %v1354 = vshrl.u32 %v1353, 7
      %v1355 = vsub.s32 0, %v1354
      %v1356 = vrot.slane %v1351, %v1355
      %v1454 = vunpack.c.l.b16 %v1255
      %v1455 = vunpack.c.l.b16 %v1256
      %v1456 = vunpack.c.l.b16 %v1257
      %v1457 = vunpack.c.l.b16 %v1258
      %v1458 = vunpack.c.l.b16 %v1259
      %v1459 = vunpack.c.l.b16 %v1260
      %v1460 = vunpack.c.l.b16 %v1261
      %v1461 = vunpack.c.l.b16 %v1262
      %v1462 = vunpack.c.l.b16 %v1263
      %v1463 = vunpack.c.l.b16 %v1264
      %v1464 = vunpack.c.l.b16 %v1265
      %v1465 = vunpack.c.l.b16 %v1266
      %v1466 = vunpack.c.l.b16 %v1267
      %v1467 = vunpack.c.l.b16 %v1268
      %v1468 = vunpack.c.l.b16 %v1269
      %v1469 = vunpack.c.l.b16 %v1270
      %v1470 = vunpack.c.l.b16 %v1271
      %v1471 = vunpack.c.l.b16 %v1272
      %v1472 = vunpack.c.l.b16 %v1273
      %v1473 = vunpack.c.l.b16 %v1274
      %v1474 = vunpack.c.l.b16 %v1275
      %v1475 = vunpack.c.l.b16 %v1276
      %v1476 = vunpack.c.l.b16 %v1277
      %v1477 = vunpack.c.l.b16 %v1278
      %v1478 = vunpack.c.l.b16 %v1279
      %v1479 = vunpack.c.l.b16 %v1280
      %v1480 = vunpack.c.l.b16 %v1281
      %v1481 = vunpack.c.l.b16 %v1282
      %v1482 = vunpack.c.l.b16 %v1283
      %v1483 = vunpack.c.l.b16 %v1284
      %v1484 = vunpack.c.l.b16 %v1285
      %v1485 = vunpack.c.l.b16 %v1286
      %v1486 = vunpack.c.l.b16 %v1287
      %v1487 = vunpack.c.l.b16 %v1288
      %v1488 = vunpack.c.l.b16 %v1289
      %v1489 = vunpack.c.l.b16 %v1290
      %v1490 = vunpack.c.l.b16 %v1291
      %v1491 = vunpack.c.l.b16 %v1292
      %v1492 = vunpack.c.l.b16 %v1293
      %v1493 = vunpack.c.l.b16 %v1294
      %v1494 = vunpack.c.l.b16 %v1295
      %v1495 = vunpack.c.l.b16 %v1296
      %v1496 = vunpack.c.l.b16 %v1297
      %v1497 = vunpack.c.l.b16 %v1298
      %v1498 = vunpack.c.l.b16 %v1299
      %v1499 = vunpack.c.l.b16 %v1300
      %v1500 = vunpack.c.l.b16 %v1301
      %v1501 = vunpack.c.l.b16 %v1302
      %v1502 = vunpack.c.l.b16 %v1303
      %v1503 = vunpack.c.l.b16 %v1304
      %v1504 = vunpack.c.l.b16 %v1305
      %v1505 = vunpack.c.l.b16 %v1306
      %v1506 = vunpack.c.l.b16 %v1307
      %v1507 = vunpack.c.l.b16 %v1308
      %v1508 = vunpack.c.l.b16 %v1309
      %v1509 = vunpack.c.l.b16 %v1310
      %v1510 = vunpack.c.l.b16 %v1311
      %v1511 = vunpack.c.l.b16 %v1312
      %v1512 = vunpack.c.l.b16 %v1313
      %v1513 = vunpack.c.l.b16 %v1314
      %v1514 = vunpack.c.l.b16 %v1315
      %v1515 = vunpack.c.l.b16 %v1316
      %v1516 = vunpack.c.l.b16 %v1317
      %v1517 = vunpack.c.l.b16 %v1318
      %v1518 = vunpack.c.l.b16 %v1319
      %v1519 = vunpack.c.l.b16 %v1320
      %v1520 = vunpack.c.l.b16 %v1321
      %v1521 = vunpack.c.l.b16 %v1322
      %v1522 = vunpack.c.l.b16 %v1323
      %v1523 = vunpack.c.l.b16 %v1324
      %v1524 = vunpack.c.l.b16 %v1325
      %v1525 = vunpack.c.l.b16 %v1326
      %v1526 = vunpack.c.l.b16 %v1327
      %v1527 = vunpack.c.l.b16 %v1328
      %v1528 = vunpack.c.l.b16 %v1329
      %v1529 = vunpack.c.l.b16 %v1330
      %v1530 = vunpack.c.l.b16 %v1331
      %v1531 = vunpack.c.l.b16 %v1332
      %v1532 = vunpack.c.l.b16 %v1333
      %v1533 = vunpack.c.l.b16 %v1334
      %v1534 = vunpack.c.l.b16 %v1335
      %v1535 = vunpack.c.l.b16 %v1336
      %v1536 = vunpack.c.l.b16 %v1337
      %v1537 = vunpack.c.l.b16 %v1338
      %v1538 = vunpack.c.l.b16 %v1339
      %v1539 = vunpack.c.l.b16 %v1340
      %v1540 = vunpack.c.l.b16 %v1341
      %v1541 = vunpack.c.l.b16 %v1342
      %v1542 = vunpack.c.l.b16 %v1343
      %v1543 = vunpack.c.l.b16 %v1344
      %v1544 = vunpack.c.l.b16 %v1345
      %v1545 = vunpack.c.l.b16 %v1346
      %v1546 = vunpack.c.l.b16 %v1347
      %v1547 = vunpack.c.l.b16 %v1348
      %v1548 = vunpack.c.l.b16 %v1349
      %v1549 = vunpack.c.l.b16 %v1350
      %v1550 = vpack.c.b16 %v1455, %v1454
      %v1551 = vpack.c.b16 %v1457, %v1456
      %v1552 = vpack.c.b16 %v1459, %v1458
      %v1553 = vpack.c.b16 %v1461, %v1460
      %v1554 = vpack.c.b16 %v1463, %v1462
      %v1555 = vpack.c.b16 %v1465, %v1464
      %v1556 = vpack.c.b16 %v1467, %v1466
      %v1557 = vpack.c.b16 %v1469, %v1468
      %v1558 = vpack.c.b16 %v1471, %v1470
      %v1559 = vpack.c.b16 %v1473, %v1472
      %v1560 = vpack.c.b16 %v1475, %v1474
      %v1561 = vpack.c.b16 %v1477, %v1476
      %v1562 = vpack.c.b16 %v1479, %v1478
      %v1563 = vpack.c.b16 %v1481, %v1480
      %v1564 = vpack.c.b16 %v1483, %v1482
      %v1565 = vpack.c.b16 %v1485, %v1484
      %v1566 = vpack.c.b16 %v1487, %v1486
      %v1567 = vpack.c.b16 %v1489, %v1488
      %v1568 = vpack.c.b16 %v1491, %v1490
      %v1569 = vpack.c.b16 %v1493, %v1492
      %v1570 = vpack.c.b16 %v1495, %v1494
      %v1571 = vpack.c.b16 %v1497, %v1496
      %v1572 = vpack.c.b16 %v1499, %v1498
      %v1573 = vpack.c.b16 %v1501, %v1500
      %v1574 = vpack.c.b16 %v1503, %v1502
      %v1575 = vpack.c.b16 %v1505, %v1504
      %v1576 = vpack.c.b16 %v1507, %v1506
      %v1577 = vpack.c.b16 %v1509, %v1508
      %v1578 = vpack.c.b16 %v1511, %v1510
      %v1579 = vpack.c.b16 %v1513, %v1512
      %v1580 = vpack.c.b16 %v1515, %v1514
      %v1581 = vpack.c.b16 %v1517, %v1516
      %v1582 = vpack.c.b16 %v1519, %v1518
      %v1583 = vpack.c.b16 %v1521, %v1520
      %v1584 = vpack.c.b16 %v1523, %v1522
      %v1585 = vpack.c.b16 %v1525, %v1524
      %v1586 = vpack.c.b16 %v1527, %v1526
      %v1587 = vpack.c.b16 %v1529, %v1528
      %v1588 = vpack.c.b16 %v1531, %v1530
      %v1589 = vpack.c.b16 %v1533, %v1532
      %v1590 = vpack.c.b16 %v1535, %v1534
      %v1591 = vpack.c.b16 %v1537, %v1536
      %v1592 = vpack.c.b16 %v1539, %v1538
      %v1593 = vpack.c.b16 %v1541, %v1540
      %v1594 = vpack.c.b16 %v1543, %v1542
      %v1595 = vpack.c.b16 %v1545, %v1544
      %v1596 = vpack.c.b16 %v1547, %v1546
      %v1597 = vpack.c.b16 %v1549, %v1548
      %1646 = vmatprep.subr.bf16.mxu0 0
      %1647 = vmatpush1.bf16.msra.mxu0 %v1557
      %1648 = vmatprep.subr.bf16.mxu0 0
      %1649 = vmatpush1.bf16.msra.mxu0 %v1556
      %1650 = vmatprep.subr.bf16.mxu0 0
      %1651 = vmatpush1.bf16.msra.mxu0 %v1555
      %1652 = vmatprep.subr.bf16.mxu0 0
      %1653 = vmatpush1.bf16.msra.mxu0 %v1554
      %1654 = vmatprep.subr.bf16.mxu0 0
      %1655 = vmatpush1.bf16.msra.mxu0 %v1553
      %1656 = vmatprep.subr.bf16.mxu0 0
      %1657 = vmatpush1.bf16.msra.mxu0 %v1552
      %1658 = vmatprep.subr.bf16.mxu0 0
      %1659 = vmatpush1.bf16.msra.mxu0 %v1551
      %1660 = vmatprep.subr.bf16.mxu0 0
      %1661 = vmatpush1.bf16.msra.mxu0 %v1550
      %1662 = vmatprep.subr.bf16.mxu0 0
      %1663 = vmatpush2.bf16.msra.mxu0 %v1565
      %1664 = vmatprep.subr.bf16.mxu0 0
      %1665 = vmatpush2.bf16.msra.mxu0 %v1564
      %1666 = vmatprep.subr.bf16.mxu0 0
      %1667 = vmatpush2.bf16.msra.mxu0 %v1563
      %1668 = vmatprep.subr.bf16.mxu0 0
      %1669 = vmatpush2.bf16.msra.mxu0 %v1562
      %1670 = vmatprep.subr.bf16.mxu0 0
      %1671 = vmatpush2.bf16.msra.mxu0 %v1561
      %1672 = vmatprep.subr.bf16.mxu0 0
      %1673 = vmatpush2.bf16.msra.mxu0 %v1560
      %1674 = vmatprep.subr.bf16.mxu0 0
      %1675 = vmatpush2.bf16.msra.mxu0 %v1559
      %1676 = vmatprep.subr.bf16.mxu0 0
      %1677 = vmatpush2.bf16.msra.mxu0 %v1558
      %1678 = vmatprep.mubr.bf16.mxu0 %v1244
      %1679 = vmatmul.mubr.bf16.gmra.mxu0 %v1243
      %v1680 = vpop.f32.mrf.mxu0
      %v1681 = vadd.f32 %v1356, %v1680
      %v1682 = vpop.f32.mrf.mxu0
      %v1683 = vpop.f32.mrf.mxu0
      %v1684 = vadd.f32 %v1356, %v1683
      %v1685 = vpop.f32.mrf.mxu0
      %1686 = vmatprep.mubr.bf16.mxu0 %v1250
      %1687 = vmatmul.mubr.bf16.gmra.mxu0 %v1249
      %v1688 = vpop.f32.mrf.mxu0
      %v1689 = vadd.f32 %v1356, %v1688
      %v1690 = vpop.f32.mrf.mxu0
      %v1691 = vpop.f32.mrf.mxu0
      %v1692 = vpop.f32.mrf.mxu0
      %1693 = vdwg.mxu0
      %1694 = vmatprep.subr.bf16.mxu0 0
      %1695 = vmatpush1.bf16.msra.mxu0 %v1573
      %1696 = vmatprep.subr.bf16.mxu0 0
      %1697 = vmatpush1.bf16.msra.mxu0 %v1572
      %1698 = vmatprep.subr.bf16.mxu0 0
      %1699 = vmatpush1.bf16.msra.mxu0 %v1571
      %1700 = vmatprep.subr.bf16.mxu0 0
      %1701 = vmatpush1.bf16.msra.mxu0 %v1570
      %1702 = vmatprep.subr.bf16.mxu0 0
      %1703 = vmatpush1.bf16.msra.mxu0 %v1569
      %1704 = vmatprep.subr.bf16.mxu0 0
      %1705 = vmatpush1.bf16.msra.mxu0 %v1568
      %1706 = vmatprep.subr.bf16.mxu0 0
      %1707 = vmatpush1.bf16.msra.mxu0 %v1567
      %1708 = vmatprep.subr.bf16.mxu0 0
      %1709 = vmatpush1.bf16.msra.mxu0 %v1566
      %1710 = vmatprep.subr.bf16.mxu0 0
      %1711 = vmatpush2.bf16.msra.mxu0 %v1581
      %1712 = vmatprep.subr.bf16.mxu0 0
      %1713 = vmatpush2.bf16.msra.mxu0 %v1580
      %1714 = vmatprep.subr.bf16.mxu0 0
      %1715 = vmatpush2.bf16.msra.mxu0 %v1579
      %1716 = vmatprep.subr.bf16.mxu0 0
      %1717 = vmatpush2.bf16.msra.mxu0 %v1578
      %1718 = vmatprep.subr.bf16.mxu0 0
      %1719 = vmatpush2.bf16.msra.mxu0 %v1577
      %1720 = vmatprep.subr.bf16.mxu0 0
      %1721 = vmatpush2.bf16.msra.mxu0 %v1576
      %1722 = vmatprep.subr.bf16.mxu0 0
      %1723 = vmatpush2.bf16.msra.mxu0 %v1575
      %1724 = vmatprep.subr.bf16.mxu0 0
      %1725 = vmatpush2.bf16.msra.mxu0 %v1574
      %1726 = vmatprep.mubr.bf16.mxu0 %v1246
      %1727 = vmatmul.mubr.bf16.gmra.mxu0 %v1245
      %v1728 = vpop.f32.mrf.mxu0
      %v1729 = vadd.f32 %v1681, %v1728
      %v1730 = vpop.f32.mrf.mxu0
      %v1731 = vpop.f32.mrf.mxu0
      %v1732 = vadd.f32 %v1684, %v1731
      %v1733 = vpop.f32.mrf.mxu0
      %1734 = vmatprep.mubr.bf16.mxu0 %v1252
      %1735 = vmatmul.mubr.bf16.gmra.mxu0 %v1251
      %v1736 = vpop.f32.mrf.mxu0
      %v1737 = vadd.f32 %v1689, %v1736
      %v1738 = vpop.f32.mrf.mxu0
      %v1739 = vpop.f32.mrf.mxu0
      %v1740 = vpop.f32.mrf.mxu0
      %1741 = vdwg.mxu0
      %1742 = vmatprep.subr.bf16.mxu0 0
      %1743 = vmatpush1.bf16.msra.mxu0 %v1589
      %1744 = vmatprep.subr.bf16.mxu0 0
      %1745 = vmatpush1.bf16.msra.mxu0 %v1588
      %1746 = vmatprep.subr.bf16.mxu0 0
      %1747 = vmatpush1.bf16.msra.mxu0 %v1587
      %1748 = vmatprep.subr.bf16.mxu0 0
      %1749 = vmatpush1.bf16.msra.mxu0 %v1586
      %1750 = vmatprep.subr.bf16.mxu0 0
      %1751 = vmatpush1.bf16.msra.mxu0 %v1585
      %1752 = vmatprep.subr.bf16.mxu0 0
      %1753 = vmatpush1.bf16.msra.mxu0 %v1584
      %1754 = vmatprep.subr.bf16.mxu0 0
      %1755 = vmatpush1.bf16.msra.mxu0 %v1583
      %1756 = vmatprep.subr.bf16.mxu0 0
      %1757 = vmatpush1.bf16.msra.mxu0 %v1582
      %1758 = vmatprep.subr.bf16.mxu0 0
      %1759 = vmatpush2.bf16.msra.mxu0 %v1597
      %1760 = vmatprep.subr.bf16.mxu0 0
      %1761 = vmatpush2.bf16.msra.mxu0 %v1596
      %1762 = vmatprep.subr.bf16.mxu0 0
      %1763 = vmatpush2.bf16.msra.mxu0 %v1595
      %1764 = vmatprep.subr.bf16.mxu0 0
      %1765 = vmatpush2.bf16.msra.mxu0 %v1594
      %1766 = vmatprep.subr.bf16.mxu0 0
      %1767 = vmatpush2.bf16.msra.mxu0 %v1593
      %1768 = vmatprep.subr.bf16.mxu0 0
      %1769 = vmatpush2.bf16.msra.mxu0 %v1592
      %1770 = vmatprep.subr.bf16.mxu0 0
      %1771 = vmatpush2.bf16.msra.mxu0 %v1591
      %1772 = vmatprep.subr.bf16.mxu0 0
      %1773 = vmatpush2.bf16.msra.mxu0 %v1590
      %1774 = vmatprep.mubr.bf16.mxu0 %v1248
      %1775 = vmatmul.mubr.bf16.gmra.mxu0 %v1247
      %v1776 = vpop.f32.mrf.mxu0
      %v1777 = vadd.f32 %v1729, %v1776
      %v1778 = vpop.f32.mrf.mxu0
      %v1779 = vpop.f32.mrf.mxu0
      %v1780 = vadd.f32 %v1732, %v1779
      %v1781 = vpop.f32.mrf.mxu0
      %1782 = vmatprep.mubr.bf16.mxu0 %v1254
      %1783 = vmatmul.mubr.bf16.gmra.mxu0 %v1253
      %v1784 = vpop.f32.mrf.mxu0
      %v1785 = vadd.f32 %v1737, %v1784
      %v1786 = vpop.f32.mrf.mxu0
      %v1787 = vpop.f32.mrf.mxu0
      %v1788 = vpop.f32.mrf.mxu0
      %1789 = vdwg.mxu0
      %vm1790 = vcmp.ge.f32.partialorder %v1777, 0.0
      %vm1791 = vcmp.ge.f32.partialorder %v1780, 0.0
      %vm1792 = vcmp.ge.f32.partialorder %v1785, 0.0
      %v1793 = vlaneseq
      %v1794 = vshrl.u32 %v1793, 7
      %v1795 = vsub.s32 1, %v1794
      %v1796 = vrot.slane %v513, %v1795
      %v1797 = vmul.f32 %v1777, %v1796
      %v1798 = vmul.f32 %v1780, %v1796
      %v1799 = vmul.f32 %v1785, %v1796
      %v1800 = vsel %vm1790, %v1777, %v1797
      %v1801 = vsel %vm1791, %v1780, %v1798
      %v1802 = vsel %vm1792, %v1785, %v1799
      %vm1803 = vcmask 138240
      %v1804 = vsel %vm1803, %v998, 0
      %v1807 = vsel %vm450, %v1802, 0
      %1809 = vmatprep.subr.mxu0 0.0
      %1810 = vmatpush1.msra.mxu0 0.0
      %1811 = vmatprep.subr.mxu0 0.0
      %1812 = vmatpush1.msra.mxu0 0.0
      %1813 = vmatprep.subr.mxu0 0.0
      %1814 = vmatpush1.msra.mxu0 0.0
      %1815 = vmatprep.subr.mxu0 0.0
      %1816 = vmatpush1.msra.mxu0 0.0
      %1817 = vmatprep.subr.mxu0 0.0
      %1818 = vmatpush1.msra.mxu0 0.0
      %1819 = vmatprep.subr.mxu0 0.0
      %1820 = vmatpush1.msra.mxu0 0.0
      %1821 = vmatprep.subr.mxu0 0.0
      %1822 = vmatpush1.msra.mxu0 0.0
      %1823 = vmatprep.subr.mxu0 0.0
      %1824 = vmatpush1.msra.mxu0 0.0
      %1825 = vmatprep.subr.mxu0 0.0
      %1826 = vmatpush1.msra.mxu0 0.0
      %1827 = vmatprep.subr.mxu0 0.0
      %1828 = vmatpush1.msra.mxu0 0.0
      %1829 = vmatprep.subr.mxu0 0.0
      %1830 = vmatpush1.msra.mxu0 0.0
      %1831 = vmatprep.subr.mxu0 0.0
      %1832 = vmatpush1.msra.mxu0 0.0
      %1833 = vmatprep.subr.mxu0 0.0
      %1834 = vmatpush1.msra.mxu0 0.0
      %1835 = vmatprep.subr.mxu0 0.0
      %1836 = vmatpush1.msra.mxu0 %v1807
      %1837 = vmatprep.subr.mxu0 0.0
      %1838 = vmatpush1.msra.mxu0 %v1801
      %1839 = vmatprep.subr.mxu0 0.0
      %1840 = vmatpush1.msra.mxu0 %v1800
      %1841 = vmatprep.subr.mxu0 0.0
      %1842 = vmatpush2.msra.mxu0 0.0
      %1843 = vmatprep.subr.mxu0 0.0
      %1844 = vmatpush2.msra.mxu0 0.0
      %1845 = vmatprep.subr.mxu0 0.0
      %1846 = vmatpush2.msra.mxu0 0.0
      %1847 = vmatprep.subr.mxu0 0.0
      %1848 = vmatpush2.msra.mxu0 0.0
      %1849 = vmatprep.subr.mxu0 0.0
      %1850 = vmatpush2.msra.mxu0 0.0
      %1851 = vmatprep.subr.mxu0 0.0
      %1852 = vmatpush2.msra.mxu0 0.0
      %1853 = vmatprep.subr.mxu0 0.0
      %1854 = vmatpush2.msra.mxu0 0.0
      %1855 = vmatprep.subr.mxu0 0.0
      %1856 = vmatpush2.msra.mxu0 0.0
      %1857 = vmatprep.subr.mxu0 0.0
      %1858 = vmatpush2.msra.mxu0 0.0
      %1859 = vmatprep.subr.mxu0 0.0
      %1860 = vmatpush2.msra.mxu0 0.0
      %1861 = vmatprep.subr.mxu0 0.0
      %1862 = vmatpush2.msra.mxu0 0.0
      %1863 = vmatprep.subr.mxu0 0.0
      %1864 = vmatpush2.msra.mxu0 0.0
      %1865 = vmatprep.subr.mxu0 0.0
      %1866 = vmatpush2.msra.mxu0 0.0
      %1867 = vmatprep.subr.mxu0 0.0
      %1868 = vmatpush2.msra.mxu0 0.0
      %1869 = vmatprep.subr.mxu0 0.0
      %1870 = vmatpush2.msra.mxu0 0.0
      %1871 = vmatprep.subr.mxu0 0.0
      %1872 = vmatpush2.msra.mxu0 0.0
      %1873 = vmatprep.mubr.f32.mxu0 0.0
      %1874 = vmatmul.mubr.f32.gmra.mxu0 %v1804
      %v1875 = vpop.f32.mrf.mxu0
      %v1876 = vadd.f32 0.0, %v1875
      %v1877 = vpop.f32.mrf.mxu0
      %1878 = vdwg.mxu0
      %v1879 = vsel %vm1803, %v1010, 0
      %1881 = vmatprep.subr.mxu0 0.0
      %1882 = vmatpush1.msra.mxu0 0.0
      %1883 = vmatprep.subr.mxu0 0.0
      %1884 = vmatpush1.msra.mxu0 0.0
      %1885 = vmatprep.subr.mxu0 0.0
      %1886 = vmatpush1.msra.mxu0 0.0
      %1887 = vmatprep.subr.mxu0 0.0
      %1888 = vmatpush1.msra.mxu0 0.0
      %1889 = vmatprep.subr.mxu0 0.0
      %1890 = vmatpush1.msra.mxu0 0.0
      %1891 = vmatprep.subr.mxu0 0.0
      %1892 = vmatpush1.msra.mxu0 0.0
      %1893 = vmatprep.subr.mxu0 0.0
      %1894 = vmatpush1.msra.mxu0 0.0
      %1895 = vmatprep.subr.mxu0 0.0
      %1896 = vmatpush1.msra.mxu0 0.0
      %1897 = vmatprep.subr.mxu0 0.0
      %1898 = vmatpush1.msra.mxu0 0.0
      %1899 = vmatprep.subr.mxu0 0.0
      %1900 = vmatpush1.msra.mxu0 0.0
      %1901 = vmatprep.subr.mxu0 0.0
      %1902 = vmatpush1.msra.mxu0 0.0
      %1903 = vmatprep.subr.mxu0 0.0
      %1904 = vmatpush1.msra.mxu0 0.0
      %1905 = vmatprep.subr.mxu0 0.0
      %1906 = vmatpush1.msra.mxu0 0.0
      %1907 = vmatprep.subr.mxu0 0.0
      %1908 = vmatpush1.msra.mxu0 %v1807
      %1909 = vmatprep.subr.mxu0 0.0
      %1910 = vmatpush1.msra.mxu0 %v1801
      %1911 = vmatprep.subr.mxu0 0.0
      %1912 = vmatpush1.msra.mxu0 %v1800
      %1913 = vmatprep.subr.mxu0 0.0
      %1914 = vmatpush2.msra.mxu0 0.0
      %1915 = vmatprep.subr.mxu0 0.0
      %1916 = vmatpush2.msra.mxu0 0.0
      %1917 = vmatprep.subr.mxu0 0.0
      %1918 = vmatpush2.msra.mxu0 0.0
      %1919 = vmatprep.subr.mxu0 0.0
      %1920 = vmatpush2.msra.mxu0 0.0
      %1921 = vmatprep.subr.mxu0 0.0
      %1922 = vmatpush2.msra.mxu0 0.0
      %1923 = vmatprep.subr.mxu0 0.0
      %1924 = vmatpush2.msra.mxu0 0.0
      %1925 = vmatprep.subr.mxu0 0.0
      %1926 = vmatpush2.msra.mxu0 0.0
      %1927 = vmatprep.subr.mxu0 0.0
      %1928 = vmatpush2.msra.mxu0 0.0
      %1929 = vmatprep.subr.mxu0 0.0
      %1930 = vmatpush2.msra.mxu0 0.0
      %1931 = vmatprep.subr.mxu0 0.0
      %1932 = vmatpush2.msra.mxu0 0.0
      %1933 = vmatprep.subr.mxu0 0.0
      %1934 = vmatpush2.msra.mxu0 0.0
      %1935 = vmatprep.subr.mxu0 0.0
      %1936 = vmatpush2.msra.mxu0 0.0
      %1937 = vmatprep.subr.mxu0 0.0
      %1938 = vmatpush2.msra.mxu0 0.0
      %1939 = vmatprep.subr.mxu0 0.0
      %1940 = vmatpush2.msra.mxu0 0.0
      %1941 = vmatprep.subr.mxu0 0.0
      %1942 = vmatpush2.msra.mxu0 0.0
      %1943 = vmatprep.subr.mxu0 0.0
      %1944 = vmatpush2.msra.mxu0 0.0
      %1945 = vmatprep.mubr.f32.mxu0 0.0
      %1946 = vmatmul.mubr.f32.gmra.mxu0 %v1879
      %v1947 = vpop.f32.mrf.mxu0
      %v1948 = vadd.f32 0.0, %v1947
      %v1949 = vpop.f32.mrf.mxu0
      %1950 = vdwg.mxu0
      %v1951 = vmax.f32 %v1876, %v1948
      %v1953 = vrot.slane %v1951, 1
      %v1955 = vrot.slane %v1951, 2
      %v1957 = vrot.slane %v1951, 3
      %v1959 = vrot.slane %v1951, 4
      %v1961 = vrot.slane %v1951, 5
      %v1963 = vrot.slane %v1951, 6
      %v1965 = vrot.slane %v1951, 7
      %v1967 = vpack.c.bf16 %v1951, %v1951
      %v1968 = vpack.c.bf16 %v1953, %v1953
      %v1969 = vpack.c.bf16 %v1955, %v1955
      %v1970 = vpack.c.bf16 %v1957, %v1957
      %v1971 = vpack.c.bf16 %v1959, %v1959
      %v1972 = vpack.c.bf16 %v1961, %v1961
      %v1973 = vpack.c.bf16 %v1963, %v1963
      %v1974 = vpack.c.bf16 %v1965, %v1965
      %v1975 = vld [vmem:[%s7] sm:$0xf]
      %v1976 = vld [vmem:[%s7 + $0x4] sm:$0xf]
      %v1977 = vld [vmem:[%s7 + $0x8] sm:$0xf]
      %v1978 = vld [vmem:[%s7 + $0xc] sm:$0xf]
      %v1979 = vld [vmem:[%s7 + $0x10] sm:$0xf]
      %v1980 = vld [vmem:[%s7 + $0x14] sm:$0xf]
      %v1981 = vld [vmem:[%s7 + $0x18] sm:$0xf]
      %v1982 = vld [vmem:[%s7 + $0x1c] sm:$0xf]
      %v1983 = vld [vmem:[%s7 + $0x20] sm:$0xf]
      %v1984 = vld [vmem:[%s7 + $0x24] sm:$0xf]
      %v1985 = vld [vmem:[%s7 + $0x28] sm:$0xf]
      %v1986 = vld [vmem:[%s7 + $0x2c] sm:$0xf]
      %v1987 = vld [vmem:[%s7 + $0x30] sm:$0xf]
      %v1988 = vld [vmem:[%s7 + $0x34] sm:$0xf]
      %v1989 = vld [vmem:[%s7 + $0x38] sm:$0xf]
      %v1990 = vld [vmem:[%s7 + $0x3c] sm:$0xf]
      %v1991 = vld [vmem:[%s7 + $0x40] sm:$0xf]
      %v1992 = vld [vmem:[%s7 + $0x44] sm:$0xf]
      %v1993 = vld [vmem:[%s7 + $0x48] sm:$0xf]
      %v1994 = vld [vmem:[%s7 + $0x4c] sm:$0xf]
      %v1995 = vld [vmem:[%s7 + $0x50] sm:$0xf]
      %v1996 = vld [vmem:[%s7 + $0x54] sm:$0xf]
      %v1997 = vld [vmem:[%s7 + $0x58] sm:$0xf]
      %v1998 = vld [vmem:[%s7 + $0x5c] sm:$0xf]
      %v1999 = vld [vmem:[%s7 + $0x60] sm:$0xf]
      %v2000 = vld [vmem:[%s7 + $0x64] sm:$0xf]
      %v2001 = vld [vmem:[%s7 + $0x68] sm:$0xf]
      %v2002 = vld [vmem:[%s7 + $0x6c] sm:$0xf]
      %v2003 = vld [vmem:[%s7 + $0x70] sm:$0xf]
      %v2004 = vld [vmem:[%s7 + $0x74] sm:$0xf]
      %v2005 = vld [vmem:[%s7 + $0x78] sm:$0xf]
      %v2006 = vld [vmem:[%s7 + $0x7c] sm:$0xf]
      %v2007 = vld [vmem:[%s7 + $0x80] sm:$0xf]
      %v2008 = vld [vmem:[%s7 + $0x84] sm:$0xf]
      %v2009 = vld [vmem:[%s7 + $0x88] sm:$0xf]
      %v2010 = vld [vmem:[%s7 + $0x8c] sm:$0xf]
      %v2011 = vld [vmem:[%s7 + $0x90] sm:$0xf]
      %v2012 = vld [vmem:[%s7 + $0x94] sm:$0xf]
      %v2013 = vld [vmem:[%s7 + $0x98] sm:$0xf]
      %v2014 = vld [vmem:[%s7 + $0x9c] sm:$0xf]
      %v2015 = vld [vmem:[%s7 + $0xa0] sm:$0xf]
      %v2016 = vld [vmem:[%s7 + $0xa4] sm:$0xf]
      %v2017 = vld [vmem:[%s7 + $0xa8] sm:$0xf]
      %v2018 = vld [vmem:[%s7 + $0xac] sm:$0xf]
      %v2019 = vld [vmem:[%s7 + $0xb0] sm:$0xf]
      %v2020 = vld [vmem:[%s7 + $0xb4] sm:$0xf]
      %v2021 = vld [vmem:[%s7 + $0xb8] sm:$0xf]
      %v2022 = vld [vmem:[%s7 + $0xbc] sm:$0xf]
      %v2023 = vld [vmem:[%s7 + $0xc0] sm:$0xf]
      %v2024 = vld [vmem:[%s7 + $0xc4] sm:$0xf]
      %v2025 = vld [vmem:[%s7 + $0xc8] sm:$0xf]
      %v2026 = vld [vmem:[%s7 + $0xcc] sm:$0xf]
      %v2027 = vld [vmem:[%s7 + $0xd0] sm:$0xf]
      %v2028 = vld [vmem:[%s7 + $0xd4] sm:$0xf]
      %v2029 = vld [vmem:[%s7 + $0xd8] sm:$0xf]
      %v2030 = vld [vmem:[%s7 + $0xdc] sm:$0xf]
      %v2031 = vld [vmem:[%s7 + $0xe0] sm:$0xf]
      %v2032 = vld [vmem:[%s7 + $0xe4] sm:$0xf]
      %v2033 = vld [vmem:[%s7 + $0xe8] sm:$0xf]
      %v2034 = vld [vmem:[%s7 + $0xec] sm:$0xf]
      %v2035 = vld [vmem:[%s7 + $0xf0] sm:$0xf]
      %v2036 = vld [vmem:[%s7 + $0xf4] sm:$0xf]
      %v2037 = vld [vmem:[%s7 + $0xf8] sm:$0xf]
      %v2038 = vld [vmem:[%s7 + $0xfc] sm:$0xf]
      %v2039 = vld [vmem:[%s7 + $0x100] sm:$0xf]
      %v2040 = vld [vmem:[%s7 + $0x104] sm:$0xf]
      %v2041 = vld [vmem:[%s7 + $0x108] sm:$0xf]
      %v2042 = vld [vmem:[%s7 + $0x10c] sm:$0xf]
      %v2043 = vld [vmem:[%s7 + $0x110] sm:$0xf]
      %v2044 = vld [vmem:[%s7 + $0x114] sm:$0xf]
      %v2045 = vld [vmem:[%s7 + $0x118] sm:$0xf]
      %v2046 = vld [vmem:[%s7 + $0x11c] sm:$0xf]
      %v2047 = vld [vmem:[%s7 + $0x120] sm:$0xf]
      %v2048 = vld [vmem:[%s7 + $0x124] sm:$0xf]
      %v2049 = vld [vmem:[%s7 + $0x128] sm:$0xf]
      %v2050 = vld [vmem:[%s7 + $0x12c] sm:$0xf]
      %v2051 = vld [vmem:[%s7 + $0x130] sm:$0xf]
      %v2052 = vld [vmem:[%s7 + $0x134] sm:$0xf]
      %v2053 = vld [vmem:[%s7 + $0x138] sm:$0xf]
      %v2054 = vld [vmem:[%s7 + $0x13c] sm:$0xf]
      %v2055 = vld [vmem:[%s7 + $0x140] sm:$0xf]
      %v2056 = vld [vmem:[%s7 + $0x144] sm:$0xf]
      %v2057 = vld [vmem:[%s7 + $0x148] sm:$0xf]
      %v2058 = vld [vmem:[%s7 + $0x14c] sm:$0xf]
      %v2059 = vld [vmem:[%s7 + $0x150] sm:$0xf]
      %v2060 = vld [vmem:[%s7 + $0x154] sm:$0xf]
      %v2061 = vld [vmem:[%s7 + $0x158] sm:$0xf]
      %v2062 = vld [vmem:[%s7 + $0x15c] sm:$0xf]
      %v2063 = vld [vmem:[%s7 + $0x160] sm:$0xf]
      %v2064 = vld [vmem:[%s7 + $0x164] sm:$0xf]
      %v2065 = vld [vmem:[%s7 + $0x168] sm:$0xf]
      %v2066 = vld [vmem:[%s7 + $0x16c] sm:$0xf]
      %v2067 = vld [vmem:[%s7 + $0x170] sm:$0xf]
      %v2068 = vld [vmem:[%s7 + $0x174] sm:$0xf]
      %v2069 = vld [vmem:[%s7 + $0x178] sm:$0xf]
      %v2070 = vld [vmem:[%s7 + $0x17c] sm:$0xf]
      %v2071 = vld [vmem:[%s7 + $0x180] sm:$0xf]
      %v2072 = vld [vmem:[%s7 + $0x184] sm:$0xf]
      %v2073 = vld [vmem:[%s7 + $0x188] sm:$0xf]
      %v2074 = vld [vmem:[%s7 + $0x18c] sm:$0xf]
      %v2075 = vld [vmem:[%s7 + $0x190] sm:$0xf]
      %v2076 = vld [vmem:[%s7 + $0x194] sm:$0xf]
      %v2077 = vld [vmem:[%s7 + $0x198] sm:$0xf]
      %v2078 = vld [vmem:[%s7 + $0x19c] sm:$0xf]
      %v2079 = vld [vmem:[%s7 + $0x1a0] sm:$0xf]
      %v2080 = vld [vmem:[%s7 + $0x1a4] sm:$0xf]
      %v2081 = vld [vmem:[%s7 + $0x1a8] sm:$0xf]
      %v2082 = vld [vmem:[%s7 + $0x1ac] sm:$0xf]
      %v2083 = vld [vmem:[%s7 + $0x1b0] sm:$0xf]
      %v2084 = vld [vmem:[%s7 + $0x1b4] sm:$0xf]
      %v2085 = vld [vmem:[%s7 + $0x1b8] sm:$0xf]
      %v2086 = vld [vmem:[%s7 + $0x1bc] sm:$0xf]
      %v2087 = vld [vmem:[%s7 + $0x1c0] sm:$0xf]
      %v2088 = vld [vmem:[%s7 + $0x1c4] sm:$0xf]
      %v2089 = vld [vmem:[%s7 + $0x1c8] sm:$0xf]
      %v2090 = vld [vmem:[%s7 + $0x1cc] sm:$0xf]
      %v2091 = vld [vmem:[%s7 + $0x1d0] sm:$0xf]
      %v2092 = vld [vmem:[%s7 + $0x1d4] sm:$0xf]
      %v2093 = vld [vmem:[%s7 + $0x1d8] sm:$0xf]
      %v2094 = vld [vmem:[%s7 + $0x1dc] sm:$0xf]
      %v2095 = vld [vmem:[%s7 + $0x1e0] sm:$0xf]
      %v2096 = vld [vmem:[%s7 + $0x1e4] sm:$0xf]
      %v2097 = vld [vmem:[%s7 + $0x1e8] sm:$0xf]
      %v2098 = vld [vmem:[%s7 + $0x1ec] sm:$0xf]
      %v2099 = vld [vmem:[%s7 + $0x1f0] sm:$0xf]
      %v2100 = vld [vmem:[%s7 + $0x1f4] sm:$0xf]
      %v2101 = vld [vmem:[%s7 + $0x1f8] sm:$0xf]
      %v2102 = vld [vmem:[%s7 + $0x1fc] sm:$0xf]
      %v2103 = vld [vmem:[%s8] sm:$0x1]
      %v2232 = vunpack.c.l.b16 %v1975
      %v2233 = vunpack.c.l.b16 %v1976
      %v2234 = vunpack.c.l.b16 %v1977
      %v2235 = vunpack.c.l.b16 %v1978
      %v2236 = vunpack.c.l.b16 %v1979
      %v2237 = vunpack.c.l.b16 %v1980
      %v2238 = vunpack.c.l.b16 %v1981
      %v2239 = vunpack.c.l.b16 %v1982
      %v2240 = vunpack.c.l.b16 %v1983
      %v2241 = vunpack.c.l.b16 %v1984
      %v2242 = vunpack.c.l.b16 %v1985
      %v2243 = vunpack.c.l.b16 %v1986
      %v2244 = vunpack.c.l.b16 %v1987
      %v2245 = vunpack.c.l.b16 %v1988
      %v2246 = vunpack.c.l.b16 %v1989
      %v2247 = vunpack.c.l.b16 %v1990
      %v2248 = vunpack.c.l.b16 %v1991
      %v2249 = vunpack.c.l.b16 %v1992
      %v2250 = vunpack.c.l.b16 %v1993
      %v2251 = vunpack.c.l.b16 %v1994
      %v2252 = vunpack.c.l.b16 %v1995
      %v2253 = vunpack.c.l.b16 %v1996
      %v2254 = vunpack.c.l.b16 %v1997
      %v2255 = vunpack.c.l.b16 %v1998
      %v2256 = vunpack.c.l.b16 %v1999
      %v2257 = vunpack.c.l.b16 %v2000
      %v2258 = vunpack.c.l.b16 %v2001
      %v2259 = vunpack.c.l.b16 %v2002
      %v2260 = vunpack.c.l.b16 %v2003
      %v2261 = vunpack.c.l.b16 %v2004
      %v2262 = vunpack.c.l.b16 %v2005
      %v2263 = vunpack.c.l.b16 %v2006
      %v2264 = vunpack.c.l.b16 %v2007
      %v2265 = vunpack.c.l.b16 %v2008
      %v2266 = vunpack.c.l.b16 %v2009
      %v2267 = vunpack.c.l.b16 %v2010
      %v2268 = vunpack.c.l.b16 %v2011
      %v2269 = vunpack.c.l.b16 %v2012
      %v2270 = vunpack.c.l.b16 %v2013
      %v2271 = vunpack.c.l.b16 %v2014
      %v2272 = vunpack.c.l.b16 %v2015
      %v2273 = vunpack.c.l.b16 %v2016
      %v2274 = vunpack.c.l.b16 %v2017
      %v2275 = vunpack.c.l.b16 %v2018
      %v2276 = vunpack.c.l.b16 %v2019
      %v2277 = vunpack.c.l.b16 %v2020
      %v2278 = vunpack.c.l.b16 %v2021
      %v2279 = vunpack.c.l.b16 %v2022
      %v2280 = vunpack.c.l.b16 %v2023
      %v2281 = vunpack.c.l.b16 %v2024
      %v2282 = vunpack.c.l.b16 %v2025
      %v2283 = vunpack.c.l.b16 %v2026
      %v2284 = vunpack.c.l.b16 %v2027
      %v2285 = vunpack.c.l.b16 %v2028
      %v2286 = vunpack.c.l.b16 %v2029
      %v2287 = vunpack.c.l.b16 %v2030
      %v2288 = vunpack.c.l.b16 %v2031
      %v2289 = vunpack.c.l.b16 %v2032
      %v2290 = vunpack.c.l.b16 %v2033
      %v2291 = vunpack.c.l.b16 %v2034
      %v2292 = vunpack.c.l.b16 %v2035
      %v2293 = vunpack.c.l.b16 %v2036
      %v2294 = vunpack.c.l.b16 %v2037
      %v2295 = vunpack.c.l.b16 %v2038
      %v2296 = vunpack.c.l.b16 %v2039
      %v2297 = vunpack.c.l.b16 %v2040
      %v2298 = vunpack.c.l.b16 %v2041
      %v2299 = vunpack.c.l.b16 %v2042
      %v2300 = vunpack.c.l.b16 %v2043
      %v2301 = vunpack.c.l.b16 %v2044
      %v2302 = vunpack.c.l.b16 %v2045
      %v2303 = vunpack.c.l.b16 %v2046
      %v2304 = vunpack.c.l.b16 %v2047
      %v2305 = vunpack.c.l.b16 %v2048
      %v2306 = vunpack.c.l.b16 %v2049
      %v2307 = vunpack.c.l.b16 %v2050
      %v2308 = vunpack.c.l.b16 %v2051
      %v2309 = vunpack.c.l.b16 %v2052
      %v2310 = vunpack.c.l.b16 %v2053
      %v2311 = vunpack.c.l.b16 %v2054
      %v2312 = vunpack.c.l.b16 %v2055
      %v2313 = vunpack.c.l.b16 %v2056
      %v2314 = vunpack.c.l.b16 %v2057
      %v2315 = vunpack.c.l.b16 %v2058
      %v2316 = vunpack.c.l.b16 %v2059
      %v2317 = vunpack.c.l.b16 %v2060
      %v2318 = vunpack.c.l.b16 %v2061
      %v2319 = vunpack.c.l.b16 %v2062
      %v2320 = vunpack.c.l.b16 %v2063
      %v2321 = vunpack.c.l.b16 %v2064
      %v2322 = vunpack.c.l.b16 %v2065
      %v2323 = vunpack.c.l.b16 %v2066
      %v2324 = vunpack.c.l.b16 %v2067
      %v2325 = vunpack.c.l.b16 %v2068
      %v2326 = vunpack.c.l.b16 %v2069
      %v2327 = vunpack.c.l.b16 %v2070
      %v2328 = vunpack.c.l.b16 %v2071
      %v2329 = vunpack.c.l.b16 %v2072
      %v2330 = vunpack.c.l.b16 %v2073
      %v2331 = vunpack.c.l.b16 %v2074
      %v2332 = vunpack.c.l.b16 %v2075
      %v2333 = vunpack.c.l.b16 %v2076
      %v2334 = vunpack.c.l.b16 %v2077
      %v2335 = vunpack.c.l.b16 %v2078
      %v2336 = vunpack.c.l.b16 %v2079
      %v2337 = vunpack.c.l.b16 %v2080
      %v2338 = vunpack.c.l.b16 %v2081
      %v2339 = vunpack.c.l.b16 %v2082
      %v2340 = vunpack.c.l.b16 %v2083
      %v2341 = vunpack.c.l.b16 %v2084
      %v2342 = vunpack.c.l.b16 %v2085
      %v2343 = vunpack.c.l.b16 %v2086
      %v2344 = vunpack.c.l.b16 %v2087
      %v2345 = vunpack.c.l.b16 %v2088
      %v2346 = vunpack.c.l.b16 %v2089
      %v2347 = vunpack.c.l.b16 %v2090
      %v2348 = vunpack.c.l.b16 %v2091
      %v2349 = vunpack.c.l.b16 %v2092
      %v2350 = vunpack.c.l.b16 %v2093
      %v2351 = vunpack.c.l.b16 %v2094
      %v2352 = vunpack.c.l.b16 %v2095
      %v2353 = vunpack.c.l.b16 %v2096
      %v2354 = vunpack.c.l.b16 %v2097
      %v2355 = vunpack.c.l.b16 %v2098
      %v2356 = vunpack.c.l.b16 %v2099
      %v2357 = vunpack.c.l.b16 %v2100
      %v2358 = vunpack.c.l.b16 %v2101
      %v2359 = vunpack.c.l.b16 %v2102
      %v2360 = vpack.c.b16 %v2233, %v2232
      %v2361 = vpack.c.b16 %v2235, %v2234
      %v2362 = vpack.c.b16 %v2237, %v2236
      %v2363 = vpack.c.b16 %v2239, %v2238
      %v2364 = vpack.c.b16 %v2241, %v2240
      %v2365 = vpack.c.b16 %v2243, %v2242
      %v2366 = vpack.c.b16 %v2245, %v2244
      %v2367 = vpack.c.b16 %v2247, %v2246
      %v2368 = vpack.c.b16 %v2249, %v2248
      %v2369 = vpack.c.b16 %v2251, %v2250
      %v2370 = vpack.c.b16 %v2253, %v2252
      %v2371 = vpack.c.b16 %v2255, %v2254
      %v2372 = vpack.c.b16 %v2257, %v2256
      %v2373 = vpack.c.b16 %v2259, %v2258
      %v2374 = vpack.c.b16 %v2261, %v2260
      %v2375 = vpack.c.b16 %v2263, %v2262
      %v2376 = vpack.c.b16 %v2265, %v2264
      %v2377 = vpack.c.b16 %v2267, %v2266
      %v2378 = vpack.c.b16 %v2269, %v2268
      %v2379 = vpack.c.b16 %v2271, %v2270
      %v2380 = vpack.c.b16 %v2273, %v2272
      %v2381 = vpack.c.b16 %v2275, %v2274
      %v2382 = vpack.c.b16 %v2277, %v2276
      %v2383 = vpack.c.b16 %v2279, %v2278
      %v2384 = vpack.c.b16 %v2281, %v2280
      %v2385 = vpack.c.b16 %v2283, %v2282
      %v2386 = vpack.c.b16 %v2285, %v2284
      %v2387 = vpack.c.b16 %v2287, %v2286
      %v2388 = vpack.c.b16 %v2289, %v2288
      %v2389 = vpack.c.b16 %v2291, %v2290
      %v2390 = vpack.c.b16 %v2293, %v2292
      %v2391 = vpack.c.b16 %v2295, %v2294
      %v2392 = vpack.c.b16 %v2297, %v2296
      %v2393 = vpack.c.b16 %v2299, %v2298
      %v2394 = vpack.c.b16 %v2301, %v2300
      %v2395 = vpack.c.b16 %v2303, %v2302
      %v2396 = vpack.c.b16 %v2305, %v2304
      %v2397 = vpack.c.b16 %v2307, %v2306
      %v2398 = vpack.c.b16 %v2309, %v2308
      %v2399 = vpack.c.b16 %v2311, %v2310
      %v2400 = vpack.c.b16 %v2313, %v2312
      %v2401 = vpack.c.b16 %v2315, %v2314
      %v2402 = vpack.c.b16 %v2317, %v2316
      %v2403 = vpack.c.b16 %v2319, %v2318
      %v2404 = vpack.c.b16 %v2321, %v2320
      %v2405 = vpack.c.b16 %v2323, %v2322
      %v2406 = vpack.c.b16 %v2325, %v2324
      %v2407 = vpack.c.b16 %v2327, %v2326
      %v2408 = vpack.c.b16 %v2329, %v2328
      %v2409 = vpack.c.b16 %v2331, %v2330
      %v2410 = vpack.c.b16 %v2333, %v2332
      %v2411 = vpack.c.b16 %v2335, %v2334
      %v2412 = vpack.c.b16 %v2337, %v2336
      %v2413 = vpack.c.b16 %v2339, %v2338
      %v2414 = vpack.c.b16 %v2341, %v2340
      %v2415 = vpack.c.b16 %v2343, %v2342
      %v2416 = vpack.c.b16 %v2345, %v2344
      %v2417 = vpack.c.b16 %v2347, %v2346
      %v2418 = vpack.c.b16 %v2349, %v2348
      %v2419 = vpack.c.b16 %v2351, %v2350
      %v2420 = vpack.c.b16 %v2353, %v2352
      %v2421 = vpack.c.b16 %v2355, %v2354
      %v2422 = vpack.c.b16 %v2357, %v2356
      %v2423 = vpack.c.b16 %v2359, %v2358
      %2488 = vmatprep.subr.bf16.mxu0 0
      %2489 = vmatpush1.bf16.msra.mxu0 %v2367
      %2490 = vmatprep.subr.bf16.mxu0 0
      %2491 = vmatpush1.bf16.msra.mxu0 %v2366
      %2492 = vmatprep.subr.bf16.mxu0 0
      %2493 = vmatpush1.bf16.msra.mxu0 %v2365
      %2494 = vmatprep.subr.bf16.mxu0 0
      %2495 = vmatpush1.bf16.msra.mxu0 %v2364
      %2496 = vmatprep.subr.bf16.mxu0 0
      %2497 = vmatpush1.bf16.msra.mxu0 %v2363
      %2498 = vmatprep.subr.bf16.mxu0 0
      %2499 = vmatpush1.bf16.msra.mxu0 %v2362
      %2500 = vmatprep.subr.bf16.mxu0 0
      %2501 = vmatpush1.bf16.msra.mxu0 %v2361
      %2502 = vmatprep.subr.bf16.mxu0 0
      %2503 = vmatpush1.bf16.msra.mxu0 %v2360
      %2504 = vmatprep.subr.bf16.mxu0 0
      %2505 = vmatpush2.bf16.msra.mxu0 %v2375
      %2506 = vmatprep.subr.bf16.mxu0 0
      %2507 = vmatpush2.bf16.msra.mxu0 %v2374
      %2508 = vmatprep.subr.bf16.mxu0 0
      %2509 = vmatpush2.bf16.msra.mxu0 %v2373
      %2510 = vmatprep.subr.bf16.mxu0 0
      %2511 = vmatpush2.bf16.msra.mxu0 %v2372
      %2512 = vmatprep.subr.bf16.mxu0 0
      %2513 = vmatpush2.bf16.msra.mxu0 %v2371
      %2514 = vmatprep.subr.bf16.mxu0 0
      %2515 = vmatpush2.bf16.msra.mxu0 %v2370
      %2516 = vmatprep.subr.bf16.mxu0 0
      %2517 = vmatpush2.bf16.msra.mxu0 %v2369
      %2518 = vmatprep.subr.bf16.mxu0 0
      %2519 = vmatpush2.bf16.msra.mxu0 %v2368
      %2520 = vmatprep.mubr.bf16.mxu0 %v1968
      %2521 = vmatmul.mubr.bf16.gmra.mxu0 %v1967
      %v2522 = vpop.f32.mrf.mxu0
      %v2523 = vadd.f32 %v2103, %v2522
      %v2524 = vpop.f32.mrf.mxu0
      %v2525 = vpop.f32.mrf.mxu0
      %v2526 = vpop.f32.mrf.mxu0
      %2527 = vdwg.mxu0
      %2528 = vmatprep.subr.bf16.mxu0 0
      %2529 = vmatpush1.bf16.msra.mxu0 %v2383
      %2530 = vmatprep.subr.bf16.mxu0 0
      %2531 = vmatpush1.bf16.msra.mxu0 %v2382
      %2532 = vmatprep.subr.bf16.mxu0 0
      %2533 = vmatpush1.bf16.msra.mxu0 %v2381
      %2534 = vmatprep.subr.bf16.mxu0 0
      %2535 = vmatpush1.bf16.msra.mxu0 %v2380
      %2536 = vmatprep.subr.bf16.mxu0 0
      %2537 = vmatpush1.bf16.msra.mxu0 %v2379
      %2538 = vmatprep.subr.bf16.mxu0 0
      %2539 = vmatpush1.bf16.msra.mxu0 %v2378
      %2540 = vmatprep.subr.bf16.mxu0 0
      %2541 = vmatpush1.bf16.msra.mxu0 %v2377
      %2542 = vmatprep.subr.bf16.mxu0 0
      %2543 = vmatpush1.bf16.msra.mxu0 %v2376
      %2544 = vmatprep.subr.bf16.mxu0 0
      %2545 = vmatpush2.bf16.msra.mxu0 %v2391
      %2546 = vmatprep.subr.bf16.mxu0 0
      %2547 = vmatpush2.bf16.msra.mxu0 %v2390
      %2548 = vmatprep.subr.bf16.mxu0 0
      %2549 = vmatpush2.bf16.msra.mxu0 %v2389
      %2550 = vmatprep.subr.bf16.mxu0 0
      %2551 = vmatpush2.bf16.msra.mxu0 %v2388
      %2552 = vmatprep.subr.bf16.mxu0 0
      %2553 = vmatpush2.bf16.msra.mxu0 %v2387
      %2554 = vmatprep.subr.bf16.mxu0 0
      %2555 = vmatpush2.bf16.msra.mxu0 %v2386
      %2556 = vmatprep.subr.bf16.mxu0 0
      %2557 = vmatpush2.bf16.msra.mxu0 %v2385
      %2558 = vmatprep.subr.bf16.mxu0 0
      %2559 = vmatpush2.bf16.msra.mxu0 %v2384
      %2560 = vmatprep.mubr.bf16.mxu0 %v1970
      %2561 = vmatmul.mubr.bf16.gmra.mxu0 %v1969
      %v2562 = vpop.f32.mrf.mxu0
      %v2563 = vadd.f32 %v2523, %v2562
      %v2564 = vpop.f32.mrf.mxu0
      %v2565 = vpop.f32.mrf.mxu0
      %v2566 = vpop.f32.mrf.mxu0
      %2567 = vdwg.mxu0
      %2568 = vmatprep.subr.bf16.mxu0 0
      %2569 = vmatpush1.bf16.msra.mxu0 %v2399
      %2570 = vmatprep.subr.bf16.mxu0 0
      %2571 = vmatpush1.bf16.msra.mxu0 %v2398
      %2572 = vmatprep.subr.bf16.mxu0 0
      %2573 = vmatpush1.bf16.msra.mxu0 %v2397
      %2574 = vmatprep.subr.bf16.mxu0 0
      %2575 = vmatpush1.bf16.msra.mxu0 %v2396
      %2576 = vmatprep.subr.bf16.mxu0 0
      %2577 = vmatpush1.bf16.msra.mxu0 %v2395
      %2578 = vmatprep.subr.bf16.mxu0 0
      %2579 = vmatpush1.bf16.msra.mxu0 %v2394
      %2580 = vmatprep.subr.bf16.mxu0 0
      %2581 = vmatpush1.bf16.msra.mxu0 %v2393
      %2582 = vmatprep.subr.bf16.mxu0 0
      %2583 = vmatpush1.bf16.msra.mxu0 %v2392
      %2584 = vmatprep.subr.bf16.mxu0 0
      %2585 = vmatpush2.bf16.msra.mxu0 %v2407
      %2586 = vmatprep.subr.bf16.mxu0 0
      %2587 = vmatpush2.bf16.msra.mxu0 %v2406
      %2588 = vmatprep.subr.bf16.mxu0 0
      %2589 = vmatpush2.bf16.msra.mxu0 %v2405
      %2590 = vmatprep.subr.bf16.mxu0 0
      %2591 = vmatpush2.bf16.msra.mxu0 %v2404
      %2592 = vmatprep.subr.bf16.mxu0 0
      %2593 = vmatpush2.bf16.msra.mxu0 %v2403
      %2594 = vmatprep.subr.bf16.mxu0 0
      %2595 = vmatpush2.bf16.msra.mxu0 %v2402
      %2596 = vmatprep.subr.bf16.mxu0 0
      %2597 = vmatpush2.bf16.msra.mxu0 %v2401
      %2598 = vmatprep.subr.bf16.mxu0 0
      %2599 = vmatpush2.bf16.msra.mxu0 %v2400
      %2600 = vmatprep.mubr.bf16.mxu0 %v1972
      %2601 = vmatmul.mubr.bf16.gmra.mxu0 %v1971
      %v2602 = vpop.f32.mrf.mxu0
      %v2603 = vadd.f32 %v2563, %v2602
      %v2604 = vpop.f32.mrf.mxu0
      %v2605 = vpop.f32.mrf.mxu0
      %v2606 = vpop.f32.mrf.mxu0
      %2607 = vdwg.mxu0
      %2608 = vmatprep.subr.bf16.mxu0 0
      %2609 = vmatpush1.bf16.msra.mxu0 %v2415
      %2610 = vmatprep.subr.bf16.mxu0 0
      %2611 = vmatpush1.bf16.msra.mxu0 %v2414
      %2612 = vmatprep.subr.bf16.mxu0 0
      %2613 = vmatpush1.bf16.msra.mxu0 %v2413
      %2614 = vmatprep.subr.bf16.mxu0 0
      %2615 = vmatpush1.bf16.msra.mxu0 %v2412
      %2616 = vmatprep.subr.bf16.mxu0 0
      %2617 = vmatpush1.bf16.msra.mxu0 %v2411
      %2618 = vmatprep.subr.bf16.mxu0 0
      %2619 = vmatpush1.bf16.msra.mxu0 %v2410
      %2620 = vmatprep.subr.bf16.mxu0 0
      %2621 = vmatpush1.bf16.msra.mxu0 %v2409
      %2622 = vmatprep.subr.bf16.mxu0 0
      %2623 = vmatpush1.bf16.msra.mxu0 %v2408
      %2624 = vmatprep.subr.bf16.mxu0 0
      %2625 = vmatpush2.bf16.msra.mxu0 %v2423
      %2626 = vmatprep.subr.bf16.mxu0 0
      %2627 = vmatpush2.bf16.msra.mxu0 %v2422
      %2628 = vmatprep.subr.bf16.mxu0 0
      %2629 = vmatpush2.bf16.msra.mxu0 %v2421
      %2630 = vmatprep.subr.bf16.mxu0 0
      %2631 = vmatpush2.bf16.msra.mxu0 %v2420
      %2632 = vmatprep.subr.bf16.mxu0 0
      %2633 = vmatpush2.bf16.msra.mxu0 %v2419
      %2634 = vmatprep.subr.bf16.mxu0 0
      %2635 = vmatpush2.bf16.msra.mxu0 %v2418
      %2636 = vmatprep.subr.bf16.mxu0 0
      %2637 = vmatpush2.bf16.msra.mxu0 %v2417
      %2638 = vmatprep.subr.bf16.mxu0 0
      %2639 = vmatpush2.bf16.msra.mxu0 %v2416
      %2640 = vmatprep.mubr.bf16.mxu0 %v1974
      %2641 = vmatmul.mubr.bf16.gmra.mxu0 %v1973
      %v2642 = vpop.f32.mrf.mxu0
      %v2643 = vadd.f32 %v2603, %v2642
      %v2644 = vpop.f32.mrf.mxu0
      %v2645 = vpop.f32.mrf.mxu0
      %v2646 = vpop.f32.mrf.mxu0
      %2647 = vdwg.mxu0
      %vm2648 = vcmp.ge.f32.partialorder %v2643, 0.0
      %v2650 = vrot.slane %v513, 2
      %v2652 = vmul.f32 %v2643, %v2650
      %v2653 = vsel %vm2648, %v2643, %v2652
      %2654 = vst [vmem:[%s355] sm:$0x1] %v2653
      %p2655 = scmp.lt.s32.totalorder %s21, 1
      %s2656 = scalar_select %p2655, %s21, 1
      %s2657 = scalar_lea.vmem %s10, %s2656
      // Predicated region
      $region61: #{forward.6} parent=59 // pred_check
        %p2658 = pneg %p254
      $region62: #{forward.6} parent=59 // pred_check_branch
        %2660 = sbr.rel (%p2658) target = $region64
      $region63: #{forward.6} parent=59 // pred_region
        _
      $region64: #{forward.6} parent=59 // pred_fallthru
        _
    $region60: #{forward.6} parent=5 // pred_fallthru
      _
    %p2661 = scmp.le.s32.totalorder 2, %s16
    // Predicated region
    $region65: #{forward.6} parent=5 // pred_check
      %p2662 = pneg %p2661
    $region66: #{forward.6} parent=5 // pred_check_branch
      %2664 = sbr.rel (%p2662) target = $region68
    $region67: #{forward.6} parent=5 // pred_region
      %s2665 = ssub.s32 %s16, 2
      // Predicated region
      $region69: #{forward.6} parent=67 // pred_check
        %p2666 = pneg %p260
      $region70: #{forward.6} parent=67 // pred_check_branch
        %2668 = sbr.rel (%p2666) target = $region72
      $region71: #{forward.6} parent=67 // pred_region
        %p2669 = scmp.lt.s32.totalorder %s22, 1
        %s2670 = scalar_select %p2669, %s22, 1
        %s2671 = scalar_lea.vmem %s10, %s2670
      $region72: #{forward.6} parent=67 // pred_fallthru
        _
    $region68: #{forward.6} parent=5 // pred_fallthru
      _
  $region6: #{forward.6} parent=0 // loop_footer
    %s20 = sadd.s32 1, %s16
  $region7: #{forward.6} parent=0 // loop_footer_branch
    %15 = sbr.rel target = $region3
  $region8: #{forward.6} parent=0 // loop_exit
    _

</llo_original>
